<compile_context>
chip_gen: v7x
topology: tpu7x:2x2x1
jax: 0.10.0
libtpu: 0.0.40
codegen_flags: <defaults>
</compile_context>

<pallas_src>
import math

import jax
import jax.numpy as jnp
from jax.experimental import pallas as pl
from jax.experimental.pallas import tpu as pltpu

IN_FEATURES = 4
HIDDEN = 1024
ACTION_SIZE = 4
OUT_PAD = 128          # output layer padded to one full 128-lane slab
MAX_TM = 512           # max batch tile (rows per grid step)
MIN_TM = 128           # smallest tile considered when searching for low-waste tiles


def _round_up(n, m):
    return ((n + m - 1) // m) * m


def _cdiv(a, b):
    return (a + b - 1) // b


def dqn_kernel(x_ref,
               w1_ref, b1_ref,
               w2_ref, b2_ref,
               w3_ref, b3_ref,
               w4_ref, b4_ref,
               o_ref):
    # Layer 1: (TM, 4) @ (4, 1024) + (1, 1024) -> ReLU   (bf16 operands, f32 accum)
    h = jnp.dot(x_ref[...].astype(jnp.bfloat16), w1_ref[...],
                preferred_element_type=jnp.float32)
    h = jnp.maximum(h + b1_ref[...], 0.0)
    # Layer 2
    h = jnp.dot(h.astype(jnp.bfloat16), w2_ref[...],
                preferred_element_type=jnp.float32)
    h = jnp.maximum(h + b2_ref[...], 0.0)
    # Layer 3
    h = jnp.dot(h.astype(jnp.bfloat16), w3_ref[...],
                preferred_element_type=jnp.float32)
    h = jnp.maximum(h + b3_ref[...], 0.0)
    # Output layer (padded to 128 lanes -> unmasked vst; no activation)
    o_ref[...] = jnp.dot(h.astype(jnp.bfloat16), w4_ref[...],
                         preferred_element_type=jnp.float32) + b4_ref[...]


def init_params(key):
    """Mirror PyTorch nn.Linear default init: U(-1/sqrt(fan_in), +1/sqrt(fan_in)).
    Weights stored as (in_features, out_features) in bfloat16 (streamed dtype);
    biases stored in float32 as (1, out_features). The 4-wide output layer is
    zero-padded to 128 lanes ONCE here (hoisted out of the forward path)."""
    dims = [(IN_FEATURES, HIDDEN), (HIDDEN, HIDDEN), (HIDDEN, HIDDEN),
            (HIDDEN, ACTION_SIZE)]
    params = []
    for fan_in, fan_out in dims:
        key, kw, kb = jax.random.split(key, 3)
        bound = 1.0 / math.sqrt(fan_in)
        w = jax.random.uniform(kw, (fan_in, fan_out), jnp.float32,
                               -bound, bound).astype(jnp.bfloat16)
        b = jax.random.uniform(kb, (1, fan_out), jnp.float32, -bound, bound)
        if fan_out == ACTION_SIZE:
            # Pad to a full 128-lane slab; zero columns keep the math exact.
            w = jnp.pad(w, ((0, 0), (0, OUT_PAD - ACTION_SIZE)))
            b = jnp.pad(b, ((0, 0), (0, OUT_PAD - ACTION_SIZE)))
        params += [w, b]
    return params
    # TODO(synk): int8 weights (v5e/v6e) / fp8-e4m3 weights (v7x) would halve the
    # ~4.3 MB weight HBM stream that bounds small-batch latency; bf16 is the
    # portable default kept here.


def _choose_tm(B, max_tm=MAX_TM):
    """Pick a batch tile (multiple of 8, <= max_tm) minimizing padding waste, and
    ensure compute-bound batches get >= 2 grid steps so v7x's second TensorCore
    participates (a second step is ~free on single-core v5e/v6e)."""
    B8 = _round_up(B, 8)
    if B8 <= max_tm:
        tm = B8
    else:
        best_waste = None
        tm = max_tm
        for cand in range(max_tm, MIN_TM - 1, -8):
            waste = _round_up(B8, cand) - B8
            if best_waste is None or waste < best_waste:
                best_waste, tm = waste, cand
                if waste == 0:
                    break
    if B8 >= 512 and _round_up(B8, tm) == tm:
        # Single compute-bound step: halve the tile so grid=(2,) shards across TCs.
        tm = _round_up(_cdiv(B8, 2), 8)
    return tm


def dqn_forward(x, params, *, max_tm=MAX_TM):
    # PyTorch forward casts bool/uint8 to float32; everything goes through f32 here.
    x = x.astype(jnp.float32)
    B = x.shape[0]
    w1, b1, w2, b2, w3, b3, w4p, b4p = params

    tm = _choose_tm(B, max_tm)
    bp = _round_up(B, tm)
    xp = jnp.pad(x, ((0, bp - B), (0, 0))) if bp != B else x

    flops = 2 * bp * HIDDEN * (IN_FEATURES + HIDDEN + HIDDEN + OUT_PAD)
    bytes_accessed = (bp * IN_FEATURES * 4
                      + (w1.size + w2.size + w3.size + w4p.size) * 2
                      + (b1.size + b2.size + b3.size + b4p.size) * 4
                      + bp * OUT_PAD * 4)

    out = pl.pallas_call(
        dqn_kernel,
        out_shape=jax.ShapeDtypeStruct((bp, OUT_PAD), jnp.float32),
        grid=(bp // tm,),
        in_specs=[
            pl.BlockSpec((tm, IN_FEATURES), lambda i: (i, 0)),   # x tile (streamed)
            # Weights/biases: constant index maps -> DMA'd once, VMEM-resident.
            pl.BlockSpec(w1.shape, lambda i: (0, 0)),
            pl.BlockSpec(b1.shape, lambda i: (0, 0)),
            pl.BlockSpec(w2.shape, lambda i: (0, 0)),
            pl.BlockSpec(b2.shape, lambda i: (0, 0)),
            pl.BlockSpec(w3.shape, lambda i: (0, 0)),
            pl.BlockSpec(b3.shape, lambda i: (0, 0)),
            pl.BlockSpec(w4p.shape, lambda i: (0, 0)),
            pl.BlockSpec(b4p.shape, lambda i: (0, 0)),
        ],
        out_specs=pl.BlockSpec((tm, OUT_PAD), lambda i: (i, 0)),
        compiler_params=pltpu.CompilerParams(
            dimension_semantics=("parallel",),
            vmem_limit_bytes=32 << 20,
        ),
        cost_estimate=pl.CostEstimate(flops=flops, transcendentals=0,
                                      bytes_accessed=bytes_accessed),
    )(xp, w1, b1, w2, b2, w3, b3, w4p, b4p)

    return out[:B, :ACTION_SIZE]


def dqn_reference(x, params):
    """Pure-JAX reference using the same bf16-weight / f32-accumulate math."""
    w1, b1, w2, b2, w3, b3, w4p, b4p = params
    h = x.astype(jnp.float32)
    for w, b, act in ((w1, b1, True), (w2, b2, True), (w3, b3, True),
                      (w4p, b4p, False)):
        h = jnp.dot(h.astype(jnp.bfloat16), w,
                    preferred_element_type=jnp.float32) + b
        if act:
            h = jnp.maximum(h, 0.0)
    return h[:, :ACTION_SIZE]


if __name__ == "__main__":
    key = jax.random.PRNGKey(0)
    pkey, xkey1, xkey2, xkey3 = jax.random.split(key, 4)

    params = init_params(pkey)

    # Case 1: small RL-style batch (B=8, single grid step).
    x_small = jax.random.uniform(xkey1, (8, IN_FEATURES), jnp.float32)
    out_small = jax.block_until_ready(dqn_forward(x_small, params))
    ref_small = dqn_reference(x_small, params)
    assert out_small.shape == (8, ACTION_SIZE)
    assert jnp.allclose(out_small, ref_small, atol=1e-2, rtol=1e-2)

    # Case 2: B=384 — previously padded to 512 (33% waste); now tm=384, no padding.
    x_mid = jax.random.uniform(xkey2, (384, IN_FEATURES), jnp.float32)
    out_mid = jax.block_until_ready(dqn_forward(x_mid, params))
    ref_mid = dqn_reference(x_mid, params)
    assert out_mid.shape == (384, ACTION_SIZE)
    assert jnp.allclose(out_mid, ref_mid, atol=1e-2, rtol=1e-2)

    # Case 3: B=520 — exercises the low-waste tile search (tm=264, 2 grid steps,
    # only 8 padded rows) and the multi-step "parallel" batch grid.
    x_big = jax.random.uniform(xkey3, (520, IN_FEATURES), jnp.float32)
    out_big = jax.block_until_ready(dqn_forward(x_big, params))
    ref_big = dqn_reference(x_big, params)
    assert out_big.shape == (520, ACTION_SIZE)
    assert jnp.allclose(out_big, ref_big, atol=1e-2, rtol=1e-2)

    print("KERNEL_OK")
</pallas_src>

<mosaic_0001>
module attributes {stable_mosaic.version = 11 : i64} {
  func.func @dqn_kernel(%arg0: i32, %arg1: memref<8x4xf32, #tpu.memory_space<vmem>>, %arg2: memref<4x1024xbf16, #tpu.memory_space<vmem>>, %arg3: memref<1x1024xf32, #tpu.memory_space<vmem>>, %arg4: memref<1024x1024xbf16, #tpu.memory_space<vmem>>, %arg5: memref<1x1024xf32, #tpu.memory_space<vmem>>, %arg6: memref<1024x1024xbf16, #tpu.memory_space<vmem>>, %arg7: memref<1x1024xf32, #tpu.memory_space<vmem>>, %arg8: memref<1024x128xbf16, #tpu.memory_space<vmem>>, %arg9: memref<1x128xf32, #tpu.memory_space<vmem>>, %arg10: memref<8x128xf32, #tpu.memory_space<vmem>>) attributes {dimension_semantics = [#tpu.dimension_semantics<parallel>], iteration_bounds = array<i64: 1>, scalar_prefetch = 0 : i64, scratch_operands = 0 : i64, tpu.core_type = #tpu.core_type<tc>, window_params = [{transform_indices = @transform_0, window_bounds = array<i64: 8, 4>}, {pipeline_mode = #tpu.pipeline_mode<synchronous>, transform_indices = @transform_1, window_bounds = array<i64: 4, 1024>}, {pipeline_mode = #tpu.pipeline_mode<synchronous>, transform_indices = @transform_2, window_bounds = array<i64: 1, 1024>}, {pipeline_mode = #tpu.pipeline_mode<synchronous>, transform_indices = @transform_3, window_bounds = array<i64: 1024, 1024>}, {pipeline_mode = #tpu.pipeline_mode<synchronous>, transform_indices = @transform_4, window_bounds = array<i64: 1, 1024>}, {pipeline_mode = #tpu.pipeline_mode<synchronous>, transform_indices = @transform_5, window_bounds = array<i64: 1024, 1024>}, {pipeline_mode = #tpu.pipeline_mode<synchronous>, transform_indices = @transform_6, window_bounds = array<i64: 1, 1024>}, {pipeline_mode = #tpu.pipeline_mode<synchronous>, transform_indices = @transform_7, window_bounds = array<i64: 1024, 128>}, {pipeline_mode = #tpu.pipeline_mode<synchronous>, transform_indices = @transform_8, window_bounds = array<i64: 1, 128>}, {transform_indices = @transform_9, window_bounds = array<i64: 8, 128>}]} {
    %c0 = arith.constant 0 : index
    %c0_0 = arith.constant 0 : index
    %0 = vector.load %arg1[%c0, %c0_0] : memref<8x4xf32, #tpu.memory_space<vmem>>, vector<8x4xf32>
    %1 = arith.truncf %0 : vector<8x4xf32> to vector<8x4xbf16>
    %c0_1 = arith.constant 0 : index
    %c0_2 = arith.constant 0 : index
    %2 = vector.load %arg2[%c0_1, %c0_2] : memref<4x1024xbf16, #tpu.memory_space<vmem>>, vector<4x1024xbf16>
    %cst = arith.constant dense<0.000000e+00> : vector<8x1024xf32>
    %3 = tpu.matmul %1, %2, %cst {dimension_numbers = #tpu.dot_dimension_numbers<[1], [0], [0], [1], [0, 0, 1, 1], [], []>} : vector<8x4xbf16>, vector<4x1024xbf16>, vector<8x1024xf32> -> vector<8x1024xf32>
    %c0_3 = arith.constant 0 : index
    %c0_4 = arith.constant 0 : index
    %4 = vector.load %arg3[%c0_3, %c0_4] : memref<1x1024xf32, #tpu.memory_space<vmem>>, vector<1x1024xf32>
    %5 = vector.broadcast %4 : vector<1x1024xf32> to vector<8x1024xf32>
    %6 = arith.addf %3, %5 : vector<8x1024xf32>
    %cst_5 = arith.constant 0.000000e+00 : f32
    %7 = vector.broadcast %cst_5 : f32 to vector<8x1024xf32>
    %8 = arith.maximumf %6, %7 : vector<8x1024xf32>
    %9 = arith.truncf %8 : vector<8x1024xf32> to vector<8x1024xbf16>
    %c0_6 = arith.constant 0 : index
    %c0_7 = arith.constant 0 : index
    %10 = vector.load %arg4[%c0_6, %c0_7] : memref<1024x1024xbf16, #tpu.memory_space<vmem>>, vector<1024x1024xbf16>
    %cst_8 = arith.constant dense<0.000000e+00> : vector<8x1024xf32>
    %11 = tpu.matmul %9, %10, %cst_8 {dimension_numbers = #tpu.dot_dimension_numbers<[1], [0], [0], [1], [0, 0, 1, 1], [], []>} : vector<8x1024xbf16>, vector<1024x1024xbf16>, vector<8x1024xf32> -> vector<8x1024xf32>
    %c0_9 = arith.constant 0 : index
    %c0_10 = arith.constant 0 : index
    %12 = vector.load %arg5[%c0_9, %c0_10] : memref<1x1024xf32, #tpu.memory_space<vmem>>, vector<1x1024xf32>
    %13 = vector.broadcast %12 : vector<1x1024xf32> to vector<8x1024xf32>
    %14 = arith.addf %11, %13 : vector<8x1024xf32>
    %cst_11 = arith.constant 0.000000e+00 : f32
    %15 = vector.broadcast %cst_11 : f32 to vector<8x1024xf32>
    %16 = arith.maximumf %14, %15 : vector<8x1024xf32>
    %17 = arith.truncf %16 : vector<8x1024xf32> to vector<8x1024xbf16>
    %c0_12 = arith.constant 0 : index
    %c0_13 = arith.constant 0 : index
    %18 = vector.load %arg6[%c0_12, %c0_13] : memref<1024x1024xbf16, #tpu.memory_space<vmem>>, vector<1024x1024xbf16>
    %cst_14 = arith.constant dense<0.000000e+00> : vector<8x1024xf32>
    %19 = tpu.matmul %17, %18, %cst_14 {dimension_numbers = #tpu.dot_dimension_numbers<[1], [0], [0], [1], [0, 0, 1, 1], [], []>} : vector<8x1024xbf16>, vector<1024x1024xbf16>, vector<8x1024xf32> -> vector<8x1024xf32>
    %c0_15 = arith.constant 0 : index
    %c0_16 = arith.constant 0 : index
    %20 = vector.load %arg7[%c0_15, %c0_16] : memref<1x1024xf32, #tpu.memory_space<vmem>>, vector<1x1024xf32>
    %21 = vector.broadcast %20 : vector<1x1024xf32> to vector<8x1024xf32>
    %22 = arith.addf %19, %21 : vector<8x1024xf32>
    %cst_17 = arith.constant 0.000000e+00 : f32
    %23 = vector.broadcast %cst_17 : f32 to vector<8x1024xf32>
    %24 = arith.maximumf %22, %23 : vector<8x1024xf32>
    %25 = arith.truncf %24 : vector<8x1024xf32> to vector<8x1024xbf16>
    %c0_18 = arith.constant 0 : index
    %c0_19 = arith.constant 0 : index
    %26 = vector.load %arg8[%c0_18, %c0_19] : memref<1024x128xbf16, #tpu.memory_space<vmem>>, vector<1024x128xbf16>
    %cst_20 = arith.constant dense<0.000000e+00> : vector<8x128xf32>
    %27 = tpu.matmul %25, %26, %cst_20 {dimension_numbers = #tpu.dot_dimension_numbers<[1], [0], [0], [1], [0, 0, 1, 1], [], []>} : vector<8x1024xbf16>, vector<1024x128xbf16>, vector<8x128xf32> -> vector<8x128xf32>
    %c0_21 = arith.constant 0 : index
    %c0_22 = arith.constant 0 : index
    %28 = vector.load %arg9[%c0_21, %c0_22] : memref<1x128xf32, #tpu.memory_space<vmem>>, vector<1x128xf32>
    %29 = vector.broadcast %28 : vector<1x128xf32> to vector<8x128xf32>
    %30 = arith.addf %27, %29 : vector<8x128xf32>
    %c0_23 = arith.constant 0 : index
    %c0_24 = arith.constant 0 : index
    %31 = vector.load %arg10[%c0_23, %c0_24] : memref<8x128xf32, #tpu.memory_space<vmem>>, vector<8x128xf32>
    tpu.vector_store %arg10[%c0_23, %c0_24], %30 {strides = array<i32>} : memref<8x128xf32, #tpu.memory_space<vmem>>, vector<8x128xf32>,
    return
  }
  func.func @transform_0(%arg0: i32) -> (i32, i32) {
    %c0_i32 = arith.constant 0 : i32
    %c0_i32_0 = arith.constant 0 : i32
    return %arg0, %c0_i32 : i32, i32
  }
  func.func @transform_1(%arg0: i32) -> (i32, i32) {
    %c0_i32 = arith.constant 0 : i32
    %c0_i32_0 = arith.constant 0 : i32
    %c0_i32_1 = arith.constant 0 : i32
    return %c0_i32, %c0_i32_0 : i32, i32
  }
  func.func @transform_2(%arg0: i32) -> (i32, i32) {
    %c0_i32 = arith.constant 0 : i32
    %c0_i32_0 = arith.constant 0 : i32
    %c0_i32_1 = arith.constant 0 : i32
    return %c0_i32, %c0_i32_0 : i32, i32
  }
  func.func @transform_3(%arg0: i32) -> (i32, i32) {
    %c0_i32 = arith.constant 0 : i32
    %c0_i32_0 = arith.constant 0 : i32
    %c0_i32_1 = arith.constant 0 : i32
    return %c0_i32, %c0_i32_0 : i32, i32
  }
  func.func @transform_4(%arg0: i32) -> (i32, i32) {
    %c0_i32 = arith.constant 0 : i32
    %c0_i32_0 = arith.constant 0 : i32
    %c0_i32_1 = arith.constant 0 : i32
    return %c0_i32, %c0_i32_0 : i32, i32
  }
  func.func @transform_5(%arg0: i32) -> (i32, i32) {
    %c0_i32 = arith.constant 0 : i32
    %c0_i32_0 = arith.constant 0 : i32
    %c0_i32_1 = arith.constant 0 : i32
    return %c0_i32, %c0_i32_0 : i32, i32
  }
  func.func @transform_6(%arg0: i32) -> (i32, i32) {
    %c0_i32 = arith.constant 0 : i32
    %c0_i32_0 = arith.constant 0 : i32
    %c0_i32_1 = arith.constant 0 : i32
    return %c0_i32, %c0_i32_0 : i32, i32
  }
  func.func @transform_7(%arg0: i32) -> (i32, i32) {
    %c0_i32 = arith.constant 0 : i32
    %c0_i32_0 = arith.constant 0 : i32
    %c0_i32_1 = arith.constant 0 : i32
    return %c0_i32, %c0_i32_0 : i32, i32
  }
  func.func @transform_8(%arg0: i32) -> (i32, i32) {
    %c0_i32 = arith.constant 0 : i32
    %c0_i32_0 = arith.constant 0 : i32
    %c0_i32_1 = arith.constant 0 : i32
    return %c0_i32, %c0_i32_0 : i32, i32
  }
  func.func @transform_9(%arg0: i32) -> (i32, i32) {
    %c0_i32 = arith.constant 0 : i32
    %c0_i32_0 = arith.constant 0 : i32
    return %arg0, %c0_i32 : i32, i32
  }
}

</mosaic_0001>

<llo_original>
// kernel: tpu_custom_call.1
$region0: #{tpu_custom_call.1}
  #allocation0 [shape = 'u32[]', space=smem, size = 0x4, offset = 0x4, fixed_abs, tag = 'smem constant byte address 0x4 - core index']
  #allocation1 [shape = 'u32[144,128]{1,0:T(1,128)}', space=vmem, size = 0x12000, scoped, tag = 'internal scratch']
  %s0 = inlined_call_operand.vmem [shape: f32[8,4], index: 0, kind: input, shape index: {}]
  %s1 = inlined_call_operand.hbm [shape: bf16[4,1024], index: 1, kind: input, shape index: {}]
  %s2 = inlined_call_operand.hbm [shape: f32[1,1024], index: 2, kind: input, shape index: {}]
  %s3 = inlined_call_operand.hbm [shape: bf16[1024,1024], index: 3, kind: input, shape index: {}]
  %s4 = inlined_call_operand.hbm [shape: f32[1,1024], index: 4, kind: input, shape index: {}]
  %s5 = inlined_call_operand.hbm [shape: bf16[1024,1024], index: 5, kind: input, shape index: {}]
  %s6 = inlined_call_operand.hbm [shape: f32[1,1024], index: 6, kind: input, shape index: {}]
  %s7 = inlined_call_operand.hbm [shape: bf16[1024,128], index: 7, kind: input, shape index: {}]
  %s8 = inlined_call_operand.hbm [shape: f32[1,128], index: 8, kind: input, shape index: {}]
  %s9 = inlined_call_operand.hbm [shape: f32[8,128], index: 9, kind: output, shape index: {}]
  %s10 = sld [smem:[#allocation0]]
  $region78: #{tpu_custom_call.1} parent=0
    _
  %s12 = ssub.s32 1, %s10
  %s13 = scalar_select 0, %s12, %s10
  $region1: #{tpu_custom_call.1} parent=0
    #allocation2 [shape = 'u8[8192]{0}', space=vmem, size = 0x2000, scoped, tag = 'input window, operand 1, single buffered']
    #allocation3 [shape = 's32[1]{0}', space=sflag, size = 0x4, scoped, tag = 'scoped memory for tpu_custom_call.1']
    #allocation4 [shape = 's32[1]{0}', space=sflag, size = 0x4, scoped, tag = 'scoped memory for tpu_custom_call.1']
    #allocation5 [shape = 'u8[4096]{0}', space=vmem, size = 0x1000, scoped, tag = 'input window, operand 2, single buffered']
    #allocation6 [shape = 's32[1]{0}', space=sflag, size = 0x4, scoped, tag = 'scoped memory for tpu_custom_call.1']
    #allocation7 [shape = 'u8[2097152]{0}', space=vmem, size = 0x200000, scoped, tag = 'input window, operand 3, single buffered']
    #allocation8 [shape = 'u8[4096]{0}', space=vmem, size = 0x1000, scoped, tag = 'input window, operand 4, single buffered']
    #allocation9 [shape = 's32[1]{0}', space=sflag, size = 0x4, scoped, tag = 'scoped memory for tpu_custom_call.1']
    #allocation10 [shape = 'u8[2097152]{0}', space=vmem, size = 0x200000, scoped, tag = 'input window, operand 5, single buffered']
    #allocation11 [shape = 'u8[4096]{0}', space=vmem, size = 0x1000, scoped, tag = 'input window, operand 6, single buffered']
    #allocation12 [shape = 's32[1]{0}', space=sflag, size = 0x4, scoped, tag = 'scoped memory for tpu_custom_call.1']
    #allocation13 [shape = 'u8[262144]{0}', space=vmem, size = 0x40000, scoped, tag = 'input window, operand 7, single buffered']
    #allocation14 [shape = 'u8[512]{0}', space=vmem, size = 0x400, scoped, tag = 'input window, operand 8, single buffered']
    #allocation15 [shape = 's32[1]{0}', space=sflag, size = 0x4, scoped, tag = 'scoped memory for tpu_custom_call.1']
    #allocation16 [shape = 'u8[4096]{0}', space=vmem, size = 0x1000, scoped, tag = 'output window, operand 0, single buffered']
    %14 = vsyncpa [#allocation3], 0
    %15 = vsyncpa [#allocation6], 0
    %16 = vsyncpa [#allocation9], 0
    %17 = vsyncpa [#allocation12], 0
    %18 = vsyncpa [#allocation15], 0
    %19 = vsyncpa [#allocation4], 0
    // Predicated region
    $region2: #{tpu_custom_call.1} parent=1 // pred_check
      _
    $region3: #{tpu_custom_call.1} parent=1 // pred_check_branch
      %21 = sbr.rel (0) target = $region5
    $region4: #{tpu_custom_call.1} parent=1 // pred_region
      _
    $region5: #{tpu_custom_call.1} parent=1 // pred_fallthru
      _
    // Predicated region
    $region6: #{tpu_custom_call.1} parent=1 // pred_check
      _
    $region7: #{tpu_custom_call.1} parent=1 // pred_check_branch
      %23 = sbr.rel (0) target = $region9
    $region8: #{tpu_custom_call.1} parent=1 // pred_region
      %s25 = ssub.s32 256, 256
      %26 = vsyncadd [#allocation3], %s25
      %s28 = sshll.u32 [#allocation2], 4
      %s29 = int_to_ptr.vmem [resolvable:$true] %s28
      %31 = dma.hbm_to_vmem [thread:$0]  %s1, 256, %s29, [#allocation3]
    $region9: #{tpu_custom_call.1} parent=1 // pred_fallthru
      _
    // Predicated region
    $region10: #{tpu_custom_call.1} parent=1 // pred_check
      _
    $region11: #{tpu_custom_call.1} parent=1 // pred_check_branch
      %33 = sbr.rel (0) target = $region13
    $region12: #{tpu_custom_call.1} parent=1 // pred_region
      %s35 = ssub.s32 128, 128
      %36 = vsyncadd [#allocation6], %s35
      %s38 = sshll.u32 [#allocation5], 4
      %s39 = int_to_ptr.vmem [resolvable:$true] %s38
      %41 = dma.hbm_to_vmem [thread:$0]  %s2, 128, %s39, [#allocation6]
    $region13: #{tpu_custom_call.1} parent=1 // pred_fallthru
      _
    // Predicated region
    $region14: #{tpu_custom_call.1} parent=1 // pred_check
      _
    $region15: #{tpu_custom_call.1} parent=1 // pred_check_branch
      %43 = sbr.rel (0) target = $region17
    $region16: #{tpu_custom_call.1} parent=1 // pred_region
      %s45 = ssub.s32 65536, 65536
      %46 = vsyncadd [#allocation6], %s45
      %s47 = sshll.u32 [#allocation7], 4
      %s48 = int_to_ptr.vmem [resolvable:$true] %s47
      %53 = dma.hbm_to_vmem [thread:$0]  %s3, 65536, %s48, [#allocation6], 512, 512, 32
    $region17: #{tpu_custom_call.1} parent=1 // pred_fallthru
      _
    // Predicated region
    $region18: #{tpu_custom_call.1} parent=1 // pred_check
      _
    $region19: #{tpu_custom_call.1} parent=1 // pred_check_branch
      %55 = sbr.rel (0) target = $region21
    $region20: #{tpu_custom_call.1} parent=1 // pred_region
      %s57 = ssub.s32 128, 128
      %58 = vsyncadd [#allocation9], %s57
      %s60 = sshll.u32 [#allocation8], 4
      %s61 = int_to_ptr.vmem [resolvable:$true] %s60
      %63 = dma.hbm_to_vmem [thread:$0]  %s4, 128, %s61, [#allocation9]
    $region21: #{tpu_custom_call.1} parent=1 // pred_fallthru
      _
    // Predicated region
    $region22: #{tpu_custom_call.1} parent=1 // pred_check
      _
    $region23: #{tpu_custom_call.1} parent=1 // pred_check_branch
      %65 = sbr.rel (0) target = $region25
    $region24: #{tpu_custom_call.1} parent=1 // pred_region
      %s67 = ssub.s32 65536, 65536
      %68 = vsyncadd [#allocation9], %s67
      %s69 = sshll.u32 [#allocation10], 4
      %s70 = int_to_ptr.vmem [resolvable:$true] %s69
      %75 = dma.hbm_to_vmem [thread:$0]  %s5, 65536, %s70, [#allocation9], 512, 512, 32
    $region25: #{tpu_custom_call.1} parent=1 // pred_fallthru
      _
    // Predicated region
    $region26: #{tpu_custom_call.1} parent=1 // pred_check
      _
    $region27: #{tpu_custom_call.1} parent=1 // pred_check_branch
      %77 = sbr.rel (0) target = $region29
    $region28: #{tpu_custom_call.1} parent=1 // pred_region
      %s79 = ssub.s32 128, 128
      %80 = vsyncadd [#allocation12], %s79
      %s82 = sshll.u32 [#allocation11], 4
      %s83 = int_to_ptr.vmem [resolvable:$true] %s82
      %85 = dma.hbm_to_vmem [thread:$0]  %s6, 128, %s83, [#allocation12]
    $region29: #{tpu_custom_call.1} parent=1 // pred_fallthru
      _
    // Predicated region
    $region30: #{tpu_custom_call.1} parent=1 // pred_check
      _
    $region31: #{tpu_custom_call.1} parent=1 // pred_check_branch
      %87 = sbr.rel (0) target = $region33
    $region32: #{tpu_custom_call.1} parent=1 // pred_region
      %s89 = ssub.s32 8192, 8192
      %90 = vsyncadd [#allocation12], %s89
      %s91 = sshll.u32 [#allocation13], 4
      %s92 = int_to_ptr.vmem [resolvable:$true] %s91
      %97 = dma.hbm_to_vmem [thread:$0]  %s7, 8192, %s92, [#allocation12], 64, 64, 4
    $region33: #{tpu_custom_call.1} parent=1 // pred_fallthru
      _
    // Predicated region
    $region34: #{tpu_custom_call.1} parent=1 // pred_check
      _
    $region35: #{tpu_custom_call.1} parent=1 // pred_check_branch
      %99 = sbr.rel (0) target = $region37
    $region36: #{tpu_custom_call.1} parent=1 // pred_region
      %s101 = ssub.s32 16, 16
      %102 = vsyncadd [#allocation15], %s101
      %s104 = sshll.u32 [#allocation14], 4
      %s105 = int_to_ptr.vmem [resolvable:$true] %s104
      %107 = dma.hbm_to_vmem [thread:$0]  %s8, 16, %s105, [#allocation15]
    $region37: #{tpu_custom_call.1} parent=1 // pred_fallthru
      _
    // Predicated region
    $region38: #{tpu_custom_call.1} parent=1 // pred_check
      _
    $region39: #{tpu_custom_call.1} parent=1 // pred_check_branch
      %109 = sbr.rel (0) target = $region41
    $region40: #{tpu_custom_call.1} parent=1 // pred_region
      %110 = dma.done [#allocation3], 256
    $region41: #{tpu_custom_call.1} parent=1 // pred_fallthru
      _
    // Predicated region
    $region42: #{tpu_custom_call.1} parent=1 // pred_check
      _
    $region43: #{tpu_custom_call.1} parent=1 // pred_check_branch
      %112 = sbr.rel (0) target = $region45
    $region44: #{tpu_custom_call.1} parent=1 // pred_region
      %113 = dma.done [#allocation6], 128
    $region45: #{tpu_custom_call.1} parent=1 // pred_fallthru
      _
    // Predicated region
    $region46: #{tpu_custom_call.1} parent=1 // pred_check
      _
    $region47: #{tpu_custom_call.1} parent=1 // pred_check_branch
      %115 = sbr.rel (0) target = $region49
    $region48: #{tpu_custom_call.1} parent=1 // pred_region
      %116 = dma.done [#allocation6], 65536
    $region49: #{tpu_custom_call.1} parent=1 // pred_fallthru
      _
    // Predicated region
    $region50: #{tpu_custom_call.1} parent=1 // pred_check
      _
    $region51: #{tpu_custom_call.1} parent=1 // pred_check_branch
      %118 = sbr.rel (0) target = $region53
    $region52: #{tpu_custom_call.1} parent=1 // pred_region
      %119 = dma.done [#allocation9], 128
    $region53: #{tpu_custom_call.1} parent=1 // pred_fallthru
      _
    // Predicated region
    $region54: #{tpu_custom_call.1} parent=1 // pred_check
      _
    $region55: #{tpu_custom_call.1} parent=1 // pred_check_branch
      %121 = sbr.rel (0) target = $region57
    $region56: #{tpu_custom_call.1} parent=1 // pred_region
      %122 = dma.done [#allocation9], 65536
    $region57: #{tpu_custom_call.1} parent=1 // pred_fallthru
      _
    // Predicated region
    $region58: #{tpu_custom_call.1} parent=1 // pred_check
      _
    $region59: #{tpu_custom_call.1} parent=1 // pred_check_branch
      %124 = sbr.rel (0) target = $region61
    $region60: #{tpu_custom_call.1} parent=1 // pred_region
      %125 = dma.done [#allocation12], 128
    $region61: #{tpu_custom_call.1} parent=1 // pred_fallthru
      _
    // Predicated region
    $region62: #{tpu_custom_call.1} parent=1 // pred_check
      _
    $region63: #{tpu_custom_call.1} parent=1 // pred_check_branch
      %127 = sbr.rel (0) target = $region65
    $region64: #{tpu_custom_call.1} parent=1 // pred_region
      %128 = dma.done [#allocation12], 8192
    $region65: #{tpu_custom_call.1} parent=1 // pred_fallthru
      _
    // Predicated region
    $region66: #{tpu_custom_call.1} parent=1 // pred_check
      _
    $region67: #{tpu_custom_call.1} parent=1 // pred_check_branch
      %130 = sbr.rel (0) target = $region69
    $region68: #{tpu_custom_call.1} parent=1 // pred_region
      %131 = dma.done [#allocation15], 16
    $region69: #{tpu_custom_call.1} parent=1 // pred_fallthru
      _
    %v133 = vld [vmem:[%s0] sm:$0xff]
    %v134 = vpack.c.bf16 %v133, %v133
    %v135 = vld [vmem:[#allocation2] sm:$0xff]
    %v136 = vld [vmem:[#allocation2 + $0x8] sm:$0xff]
    %v137 = vld [vmem:[#allocation5] sm:$0xff]
    %v139 = vlaneseq
    %v140 = vshrl.u32 %v139, 7
    %v141 = vsub.s32 0, %v140
    %v142 = vrot.slane %v137, %v141
    %v143 = vlaneseq
    %v144 = vshrl.u32 %v143, 7
    %v145 = vsub.s32 1, %v144
    %v146 = vrot.slane %v137, %v145
    %v147 = vlaneseq
    %v148 = vshrl.u32 %v147, 7
    %v149 = vsub.s32 2, %v148
    %v150 = vrot.slane %v137, %v149
    %v151 = vlaneseq
    %v152 = vshrl.u32 %v151, 7
    %v153 = vsub.s32 3, %v152
    %v154 = vrot.slane %v137, %v153
    %v155 = vlaneseq
    %v156 = vshrl.u32 %v155, 7
    %v157 = vsub.s32 4, %v156
    %v158 = vrot.slane %v137, %v157
    %v159 = vlaneseq
    %v160 = vshrl.u32 %v159, 7
    %v161 = vsub.s32 5, %v160
    %v162 = vrot.slane %v137, %v161
    %v163 = vlaneseq
    %v164 = vshrl.u32 %v163, 7
    %v165 = vsub.s32 6, %v164
    %v166 = vrot.slane %v137, %v165
    %v167 = vlaneseq
    %v168 = vshrl.u32 %v167, 7
    %v169 = vsub.s32 7, %v168
    %v170 = vrot.slane %v137, %v169
    %v181 = vcombine.high %v135, %v135
    %v183 = vunpack.c.l.s4 1983009808
    %v184 = vunpack.c.0.s8 %v183
    %v185 = vlaneseq
    %v186 = vshrl.u32 %v185, 7
    %v187 = vsub.s32 %v184, %v186
    %v188 = vrot.slane %v135, %v187
    %v190 = vunpack.c.l.s4 1983009808
    %v191 = vunpack.c.0.s8 %v190
    %v192 = vlaneseq
    %v193 = vshrl.u32 %v192, 7
    %v194 = vsub.s32 %v191, %v193
    %v195 = vrot.slane %v181, %v194
    %v196 = vcombine.high %v188, %v188
    %v197 = vcombine.high %v195, %v195
    %v198 = vcombine.high %v136, %v136
    %v200 = vunpack.c.l.s4 1983009808
    %v201 = vunpack.c.0.s8 %v200
    %v202 = vlaneseq
    %v203 = vshrl.u32 %v202, 7
    %v204 = vsub.s32 %v201, %v203
    %v205 = vrot.slane %v136, %v204
    %v207 = vunpack.c.l.s4 1983009808
    %v208 = vunpack.c.0.s8 %v207
    %v209 = vlaneseq
    %v210 = vshrl.u32 %v209, 7
    %v211 = vsub.s32 %v208, %v210
    %v212 = vrot.slane %v198, %v211
    %v213 = vcombine.high %v205, %v205
    %v214 = vcombine.high %v212, %v212
    %vm215 = vcmask 31744
    %v217 = vsel %vm215, %v134, 0
    %vm219 = vcmask 1041408
    %v221 = vsel %vm219, %v188, 0
    %v224 = vsel %vm219, %v196, 0
    %v227 = vsel %vm219, %v195, 0
    %v230 = vsel %vm219, %v197, 0
    %v233 = vsel %vm219, %v205, 0
    %v236 = vsel %vm219, %v213, 0
    %v239 = vsel %vm219, %v212, 0
    %v242 = vsel %vm219, %v214, 0
    %244 = vmatprep.subr.bf16.mxu0 %v224
    %245 = vmatpush1.bf16.msra.mxu0 %v221
    %246 = vmatprep.subr.bf16.mxu0 0
    %247 = vmatpush1.bf16.msra.mxu0 0
    %248 = vmatprep.subr.bf16.mxu0 0
    %249 = vmatpush1.bf16.msra.mxu0 0
    %250 = vmatprep.subr.bf16.mxu0 0
    %251 = vmatpush1.bf16.msra.mxu0 0
    %252 = vmatprep.subr.bf16.mxu0 0
    %253 = vmatpush1.bf16.msra.mxu0 0
    %254 = vmatprep.subr.bf16.mxu0 0
    %255 = vmatpush1.bf16.msra.mxu0 0
    %256 = vmatprep.subr.bf16.mxu0 0
    %257 = vmatpush1.bf16.msra.mxu0 0
    %258 = vmatprep.subr.bf16.mxu0 0
    %259 = vmatpush1.bf16.msra.mxu0 0
    %260 = vmatprep.subr.bf16.mxu0 0
    %261 = vmatpush1.bf16.msra.mxu0 0
    %262 = vmatprep.subr.bf16.mxu0 0
    %263 = vmatpush1.bf16.msra.mxu0 0
    %264 = vmatprep.subr.bf16.mxu0 0
    %265 = vmatpush1.bf16.msra.mxu0 0
    %266 = vmatprep.subr.bf16.mxu0 0
    %267 = vmatpush1.bf16.msra.mxu0 0
    %268 = vmatprep.subr.bf16.mxu0 0
    %269 = vmatpush1.bf16.msra.mxu0 0
    %270 = vmatprep.subr.bf16.mxu0 0
    %271 = vmatpush1.bf16.msra.mxu0 0
    %272 = vmatprep.subr.bf16.mxu0 0
    %273 = vmatpush1.bf16.msra.mxu0 0
    %274 = vmatprep.subr.bf16.mxu0 0
    %275 = vmatpush1.bf16.msra.mxu0 0
    %276 = vmatprep.mubr.bf16.mxu0 0
    %277 = vmatmul.mubr.bf16.gmra.mrb[0].mxu0 %v217
    %v278 = vpop.f32.mrb[0].mxu0
    %v279 = vadd.f32 %v142, %v278
    %v280 = vpop.f32.mrb[0].mxu0
    %v281 = vadd.f32 %v146, %v280
    %v282 = vpop.f32.mrb[0].mxu0
    %v283 = vpop.f32.mrb[0].mxu0
    %284 = vdwg.mxu0
    %285 = vmatprep.subr.bf16.mxu0 %v230
    %286 = vmatpush1.bf16.msra.mxu0 %v227
    %287 = vmatprep.subr.bf16.mxu0 0
    %288 = vmatpush1.bf16.msra.mxu0 0
    %289 = vmatprep.subr.bf16.mxu0 0
    %290 = vmatpush1.bf16.msra.mxu0 0
    %291 = vmatprep.subr.bf16.mxu0 0
    %292 = vmatpush1.bf16.msra.mxu0 0
    %293 = vmatprep.subr.bf16.mxu0 0
    %294 = vmatpush1.bf16.msra.mxu0 0
    %295 = vmatprep.subr.bf16.mxu0 0
    %296 = vmatpush1.bf16.msra.mxu0 0
    %297 = vmatprep.subr.bf16.mxu0 0
    %298 = vmatpush1.bf16.msra.mxu0 0
    %299 = vmatprep.subr.bf16.mxu0 0
    %300 = vmatpush1.bf16.msra.mxu0 0
    %301 = vmatprep.subr.bf16.mxu0 0
    %302 = vmatpush1.bf16.msra.mxu0 0
    %303 = vmatprep.subr.bf16.mxu0 0
    %304 = vmatpush1.bf16.msra.mxu0 0
    %305 = vmatprep.subr.bf16.mxu0 0
    %306 = vmatpush1.bf16.msra.mxu0 0
    %307 = vmatprep.subr.bf16.mxu0 0
    %308 = vmatpush1.bf16.msra.mxu0 0
    %309 = vmatprep.subr.bf16.mxu0 0
    %310 = vmatpush1.bf16.msra.mxu0 0
    %311 = vmatprep.subr.bf16.mxu0 0
    %312 = vmatpush1.bf16.msra.mxu0 0
    %313 = vmatprep.subr.bf16.mxu0 0
    %314 = vmatpush1.bf16.msra.mxu0 0
    %315 = vmatprep.subr.bf16.mxu0 0
    %316 = vmatpush1.bf16.msra.mxu0 0
    %317 = vmatprep.mubr.bf16.mxu0 0
    %318 = vmatmul.mubr.bf16.gmra.mrb[0].mxu0 %v217
    %v319 = vpop.f32.mrb[0].mxu0
    %v320 = vadd.f32 %v150, %v319
    %v321 = vpop.f32.mrb[0].mxu0
    %v322 = vadd.f32 %v154, %v321
    %v323 = vpop.f32.mrb[0].mxu0
    %v324 = vpop.f32.mrb[0].mxu0
    %325 = vdwg.mxu0
    %326 = vmatprep.subr.bf16.mxu0 %v236
    %327 = vmatpush1.bf16.msra.mxu0 %v233
    %328 = vmatprep.subr.bf16.mxu0 0
    %329 = vmatpush1.bf16.msra.mxu0 0
    %330 = vmatprep.subr.bf16.mxu0 0
    %331 = vmatpush1.bf16.msra.mxu0 0
    %332 = vmatprep.subr.bf16.mxu0 0
    %333 = vmatpush1.bf16.msra.mxu0 0
    %334 = vmatprep.subr.bf16.mxu0 0
    %335 = vmatpush1.bf16.msra.mxu0 0
    %336 = vmatprep.subr.bf16.mxu0 0
    %337 = vmatpush1.bf16.msra.mxu0 0
    %338 = vmatprep.subr.bf16.mxu0 0
    %339 = vmatpush1.bf16.msra.mxu0 0
    %340 = vmatprep.subr.bf16.mxu0 0
    %341 = vmatpush1.bf16.msra.mxu0 0
    %342 = vmatprep.subr.bf16.mxu0 0
    %343 = vmatpush1.bf16.msra.mxu0 0
    %344 = vmatprep.subr.bf16.mxu0 0
    %345 = vmatpush1.bf16.msra.mxu0 0
    %346 = vmatprep.subr.bf16.mxu0 0
    %347 = vmatpush1.bf16.msra.mxu0 0
    %348 = vmatprep.subr.bf16.mxu0 0
    %349 = vmatpush1.bf16.msra.mxu0 0
    %350 = vmatprep.subr.bf16.mxu0 0
    %351 = vmatpush1.bf16.msra.mxu0 0
    %352 = vmatprep.subr.bf16.mxu0 0
    %353 = vmatpush1.bf16.msra.mxu0 0
    %354 = vmatprep.subr.bf16.mxu0 0
    %355 = vmatpush1.bf16.msra.mxu0 0
    %356 = vmatprep.subr.bf16.mxu0 0
    %357 = vmatpush1.bf16.msra.mxu0 0
    %358 = vmatprep.mubr.bf16.mxu0 0
    %359 = vmatmul.mubr.bf16.gmra.mrb[0].mxu0 %v217
    %v360 = vpop.f32.mrb[0].mxu0
    %v361 = vadd.f32 %v158, %v360
    %v362 = vpop.f32.mrb[0].mxu0
    %v363 = vadd.f32 %v162, %v362
    %v364 = vpop.f32.mrb[0].mxu0
    %v365 = vpop.f32.mrb[0].mxu0
    %366 = vdwg.mxu0
    %367 = vmatprep.subr.bf16.mxu0 %v242
    %368 = vmatpush1.bf16.msra.mxu0 %v239
    %369 = vmatprep.subr.bf16.mxu0 0
    %370 = vmatpush1.bf16.msra.mxu0 0
    %371 = vmatprep.subr.bf16.mxu0 0
    %372 = vmatpush1.bf16.msra.mxu0 0
    %373 = vmatprep.subr.bf16.mxu0 0
    %374 = vmatpush1.bf16.msra.mxu0 0
    %375 = vmatprep.subr.bf16.mxu0 0
    %376 = vmatpush1.bf16.msra.mxu0 0
    %377 = vmatprep.subr.bf16.mxu0 0
    %378 = vmatpush1.bf16.msra.mxu0 0
    %379 = vmatprep.subr.bf16.mxu0 0
    %380 = vmatpush1.bf16.msra.mxu0 0
    %381 = vmatprep.subr.bf16.mxu0 0
    %382 = vmatpush1.bf16.msra.mxu0 0
    %383 = vmatprep.subr.bf16.mxu0 0
    %384 = vmatpush1.bf16.msra.mxu0 0
    %385 = vmatprep.subr.bf16.mxu0 0
    %386 = vmatpush1.bf16.msra.mxu0 0
    %387 = vmatprep.subr.bf16.mxu0 0
    %388 = vmatpush1.bf16.msra.mxu0 0
    %389 = vmatprep.subr.bf16.mxu0 0
    %390 = vmatpush1.bf16.msra.mxu0 0
    %391 = vmatprep.subr.bf16.mxu0 0
    %392 = vmatpush1.bf16.msra.mxu0 0
    %393 = vmatprep.subr.bf16.mxu0 0
    %394 = vmatpush1.bf16.msra.mxu0 0
    %395 = vmatprep.subr.bf16.mxu0 0
    %396 = vmatpush1.bf16.msra.mxu0 0
    %397 = vmatprep.subr.bf16.mxu0 0
    %398 = vmatpush1.bf16.msra.mxu0 0
    %399 = vmatprep.mubr.bf16.mxu0 0
    %400 = vmatmul.mubr.bf16.gmra.mrb[0].mxu0 %v217
    %v401 = vpop.f32.mrb[0].mxu0
    %v402 = vadd.f32 %v166, %v401
    %v403 = vpop.f32.mrb[0].mxu0
    %v404 = vadd.f32 %v170, %v403
    %v405 = vpop.f32.mrb[0].mxu0
    %v406 = vpop.f32.mrb[0].mxu0
    %407 = vdwg.mxu0
    %v408 = vmax.f32 %v279, 0.0
    %v409 = vmax.f32 %v281, 0.0
    %v410 = vmax.f32 %v320, 0.0
    %v411 = vmax.f32 %v322, 0.0
    %v412 = vmax.f32 %v361, 0.0
    %v413 = vmax.f32 %v363, 0.0
    %v414 = vmax.f32 %v402, 0.0
    %v415 = vmax.f32 %v404, 0.0
    %v416 = vpack.c.bf16 %v408, %v408
    %v417 = vpack.c.bf16 %v409, %v409
    %v418 = vpack.c.bf16 %v410, %v410
    %v419 = vpack.c.bf16 %v411, %v411
    %v420 = vpack.c.bf16 %v412, %v412
    %v421 = vpack.c.bf16 %v413, %v413
    %v422 = vpack.c.bf16 %v414, %v414
    %v423 = vpack.c.bf16 %v415, %v415
    %v424 = vld [vmem:[#allocation7] sm:$0xff]
    %v425 = vld [vmem:[#allocation7 + $0x8] sm:$0xff]
    %v426 = vld [vmem:[#allocation7 + $0x10] sm:$0xff]
    %v427 = vld [vmem:[#allocation7 + $0x18] sm:$0xff]
    %v428 = vld [vmem:[#allocation7 + $0x20] sm:$0xff]
    %v429 = vld [vmem:[#allocation7 + $0x28] sm:$0xff]
    %v430 = vld [vmem:[#allocation7 + $0x30] sm:$0xff]
    %v431 = vld [vmem:[#allocation7 + $0x38] sm:$0xff]
    %v432 = vld [vmem:[#allocation7 + $0x40] sm:$0xff]
    %v433 = vld [vmem:[#allocation7 + $0x48] sm:$0xff]
    %v434 = vld [vmem:[#allocation7 + $0x50] sm:$0xff]
    %v435 = vld [vmem:[#allocation7 + $0x58] sm:$0xff]
    %v436 = vld [vmem:[#allocation7 + $0x60] sm:$0xff]
    %v437 = vld [vmem:[#allocation7 + $0x68] sm:$0xff]
    %v438 = vld [vmem:[#allocation7 + $0x70] sm:$0xff]
    %v439 = vld [vmem:[#allocation7 + $0x78] sm:$0xff]
    %v440 = vld [vmem:[#allocation7 + $0x80] sm:$0xff]
    %v441 = vld [vmem:[#allocation7 + $0x88] sm:$0xff]
    %v442 = vld [vmem:[#allocation7 + $0x90] sm:$0xff]
    %v443 = vld [vmem:[#allocation7 + $0x98] sm:$0xff]
    %v444 = vld [vmem:[#allocation7 + $0xa0] sm:$0xff]
    %v445 = vld [vmem:[#allocation7 + $0xa8] sm:$0xff]
    %v446 = vld [vmem:[#allocation7 + $0xb0] sm:$0xff]
    %v447 = vld [vmem:[#allocation7 + $0xb8] sm:$0xff]
    %v448 = vld [vmem:[#allocation7 + $0xc0] sm:$0xff]
    %v449 = vld [vmem:[#allocation7 + $0xc8] sm:$0xff]
    %v450 = vld [vmem:[#allocation7 + $0xd0] sm:$0xff]
    %v451 = vld [vmem:[#allocation7 + $0xd8] sm:$0xff]
    %v452 = vld [vmem:[#allocation7 + $0xe0] sm:$0xff]
    %v453 = vld [vmem:[#allocation7 + $0xe8] sm:$0xff]
    %v454 = vld [vmem:[#allocation7 + $0xf0] sm:$0xff]
    %v455 = vld [vmem:[#allocation7 + $0xf8] sm:$0xff]
    %v456 = vld [vmem:[#allocation7 + $0x100] sm:$0xff]
    %v457 = vld [vmem:[#allocation7 + $0x108] sm:$0xff]
    %v458 = vld [vmem:[#allocation7 + $0x110] sm:$0xff]
    %v459 = vld [vmem:[#allocation7 + $0x118] sm:$0xff]
    %v460 = vld [vmem:[#allocation7 + $0x120] sm:$0xff]
    %v461 = vld [vmem:[#allocation7 + $0x128] sm:$0xff]
    %v462 = vld [vmem:[#allocation7 + $0x130] sm:$0xff]
    %v463 = vld [vmem:[#allocation7 + $0x138] sm:$0xff]
    %v464 = vld [vmem:[#allocation7 + $0x140] sm:$0xff]
    %v465 = vld [vmem:[#allocation7 + $0x148] sm:$0xff]
    %v466 = vld [vmem:[#allocation7 + $0x150] sm:$0xff]
    %v467 = vld [vmem:[#allocation7 + $0x158] sm:$0xff]
    %v468 = vld [vmem:[#allocation7 + $0x160] sm:$0xff]
    %v469 = vld [vmem:[#allocation7 + $0x168] sm:$0xff]
    %v470 = vld [vmem:[#allocation7 + $0x170] sm:$0xff]
    %v471 = vld [vmem:[#allocation7 + $0x178] sm:$0xff]
    %v472 = vld [vmem:[#allocation7 + $0x180] sm:$0xff]
    %v473 = vld [vmem:[#allocation7 + $0x188] sm:$0xff]
    %v474 = vld [vmem:[#allocation7 + $0x190] sm:$0xff]
    %v475 = vld [vmem:[#allocation7 + $0x198] sm:$0xff]
    %v476 = vld [vmem:[#allocation7 + $0x1a0] sm:$0xff]
    %v477 = vld [vmem:[#allocation7 + $0x1a8] sm:$0xff]
    %v478 = vld [vmem:[#allocation7 + $0x1b0] sm:$0xff]
    %v479 = vld [vmem:[#allocation7 + $0x1b8] sm:$0xff]
    %v480 = vld [vmem:[#allocation7 + $0x1c0] sm:$0xff]
    %v481 = vld [vmem:[#allocation7 + $0x1c8] sm:$0xff]
    %v482 = vld [vmem:[#allocation7 + $0x1d0] sm:$0xff]
    %v483 = vld [vmem:[#allocation7 + $0x1d8] sm:$0xff]
    %v484 = vld [vmem:[#allocation7 + $0x1e0] sm:$0xff]
    %v485 = vld [vmem:[#allocation7 + $0x1e8] sm:$0xff]
    %v486 = vld [vmem:[#allocation7 + $0x1f0] sm:$0xff]
    %v487 = vld [vmem:[#allocation7 + $0x1f8] sm:$0xff]
    %v488 = vld [vmem:[#allocation7 + $0x200] sm:$0xff]
    %v489 = vld [vmem:[#allocation7 + $0x208] sm:$0xff]
    %v490 = vld [vmem:[#allocation7 + $0x210] sm:$0xff]
    %v491 = vld [vmem:[#allocation7 + $0x218] sm:$0xff]
    %v492 = vld [vmem:[#allocation7 + $0x220] sm:$0xff]
    %v493 = vld [vmem:[#allocation7 + $0x228] sm:$0xff]
    %v494 = vld [vmem:[#allocation7 + $0x230] sm:$0xff]
    %v495 = vld [vmem:[#allocation7 + $0x238] sm:$0xff]
    %v496 = vld [vmem:[#allocation7 + $0x240] sm:$0xff]
    %v497 = vld [vmem:[#allocation7 + $0x248] sm:$0xff]
    %v498 = vld [vmem:[#allocation7 + $0x250] sm:$0xff]
    %v499 = vld [vmem:[#allocation7 + $0x258] sm:$0xff]
    %v500 = vld [vmem:[#allocation7 + $0x260] sm:$0xff]
    %v501 = vld [vmem:[#allocation7 + $0x268] sm:$0xff]
    %v502 = vld [vmem:[#allocation7 + $0x270] sm:$0xff]
    %v503 = vld [vmem:[#allocation7 + $0x278] sm:$0xff]
    %v504 = vld [vmem:[#allocation7 + $0x280] sm:$0xff]
    %v505 = vld [vmem:[#allocation7 + $0x288] sm:$0xff]
    %v506 = vld [vmem:[#allocation7 + $0x290] sm:$0xff]
    %v507 = vld [vmem:[#allocation7 + $0x298] sm:$0xff]
    %v508 = vld [vmem:[#allocation7 + $0x2a0] sm:$0xff]
    %v509 = vld [vmem:[#allocation7 + $0x2a8] sm:$0xff]
    %v510 = vld [vmem:[#allocation7 + $0x2b0] sm:$0xff]
    %v511 = vld [vmem:[#allocation7 + $0x2b8] sm:$0xff]
    %v512 = vld [vmem:[#allocation7 + $0x2c0] sm:$0xff]
    %v513 = vld [vmem:[#allocation7 + $0x2c8] sm:$0xff]
    %v514 = vld [vmem:[#allocation7 + $0x2d0] sm:$0xff]
    %v515 = vld [vmem:[#allocation7 + $0x2d8] sm:$0xff]
    %v516 = vld [vmem:[#allocation7 + $0x2e0] sm:$0xff]
    %v517 = vld [vmem:[#allocation7 + $0x2e8] sm:$0xff]
    %v518 = vld [vmem:[#allocation7 + $0x2f0] sm:$0xff]
    %v519 = vld [vmem:[#allocation7 + $0x2f8] sm:$0xff]
    %v520 = vld [vmem:[#allocation7 + $0x300] sm:$0xff]
    %v521 = vld [vmem:[#allocation7 + $0x308] sm:$0xff]
    %v522 = vld [vmem:[#allocation7 + $0x310] sm:$0xff]
    %v523 = vld [vmem:[#allocation7 + $0x318] sm:$0xff]
    %v524 = vld [vmem:[#allocation7 + $0x320] sm:$0xff]
    %v525 = vld [vmem:[#allocation7 + $0x328] sm:$0xff]
    %v526 = vld [vmem:[#allocation7 + $0x330] sm:$0xff]
    %v527 = vld [vmem:[#allocation7 + $0x338] sm:$0xff]
    %v528 = vld [vmem:[#allocation7 + $0x340] sm:$0xff]
    %v529 = vld [vmem:[#allocation7 + $0x348] sm:$0xff]
    %v530 = vld [vmem:[#allocation7 + $0x350] sm:$0xff]
    %v531 = vld [vmem:[#allocation7 + $0x358] sm:$0xff]
    %v532 = vld [vmem:[#allocation7 + $0x360] sm:$0xff]
    %v533 = vld [vmem:[#allocation7 + $0x368] sm:$0xff]
    %v534 = vld [vmem:[#allocation7 + $0x370] sm:$0xff]
    %v535 = vld [vmem:[#allocation7 + $0x378] sm:$0xff]
    %v536 = vld [vmem:[#allocation7 + $0x380] sm:$0xff]
    %v537 = vld [vmem:[#allocation7 + $0x388] sm:$0xff]
    %v538 = vld [vmem:[#allocation7 + $0x390] sm:$0xff]
    %v539 = vld [vmem:[#allocation7 + $0x398] sm:$0xff]
    %v540 = vld [vmem:[#allocation7 + $0x3a0] sm:$0xff]
    %v541 = vld [vmem:[#allocation7 + $0x3a8] sm:$0xff]
    %v542 = vld [vmem:[#allocation7 + $0x3b0] sm:$0xff]
    %v543 = vld [vmem:[#allocation7 + $0x3b8] sm:$0xff]
    %v544 = vld [vmem:[#allocation7 + $0x3c0] sm:$0xff]
    %v545 = vld [vmem:[#allocation7 + $0x3c8] sm:$0xff]
    %v546 = vld [vmem:[#allocation7 + $0x3d0] sm:$0xff]
    %v547 = vld [vmem:[#allocation7 + $0x3d8] sm:$0xff]
    %v548 = vld [vmem:[#allocation7 + $0x3e0] sm:$0xff]
    %v549 = vld [vmem:[#allocation7 + $0x3e8] sm:$0xff]
    %v550 = vld [vmem:[#allocation7 + $0x3f0] sm:$0xff]
    %v551 = vld [vmem:[#allocation7 + $0x3f8] sm:$0xff]
    %v552 = vld [vmem:[#allocation7 + $0x400] sm:$0xff]
    %v553 = vld [vmem:[#allocation7 + $0x408] sm:$0xff]
    %v554 = vld [vmem:[#allocation7 + $0x410] sm:$0xff]
    %v555 = vld [vmem:[#allocation7 + $0x418] sm:$0xff]
    %v556 = vld [vmem:[#allocation7 + $0x420] sm:$0xff]
    %v557 = vld [vmem:[#allocation7 + $0x428] sm:$0xff]
    %v558 = vld [vmem:[#allocation7 + $0x430] sm:$0xff]
    %v559 = vld [vmem:[#allocation7 + $0x438] sm:$0xff]
    %v560 = vld [vmem:[#allocation7 + $0x440] sm:$0xff]
    %v561 = vld [vmem:[#allocation7 + $0x448] sm:$0xff]
    %v562 = vld [vmem:[#allocation7 + $0x450] sm:$0xff]
    %v563 = vld [vmem:[#allocation7 + $0x458] sm:$0xff]
    %v564 = vld [vmem:[#allocation7 + $0x460] sm:$0xff]
    %v565 = vld [vmem:[#allocation7 + $0x468] sm:$0xff]
    %v566 = vld [vmem:[#allocation7 + $0x470] sm:$0xff]
    %v567 = vld [vmem:[#allocation7 + $0x478] sm:$0xff]
    %v568 = vld [vmem:[#allocation7 + $0x480] sm:$0xff]
    %v569 = vld [vmem:[#allocation7 + $0x488] sm:$0xff]
    %v570 = vld [vmem:[#allocation7 + $0x490] sm:$0xff]
    %v571 = vld [vmem:[#allocation7 + $0x498] sm:$0xff]
    %v572 = vld [vmem:[#allocation7 + $0x4a0] sm:$0xff]
    %v573 = vld [vmem:[#allocation7 + $0x4a8] sm:$0xff]
    %v574 = vld [vmem:[#allocation7 + $0x4b0] sm:$0xff]
    %v575 = vld [vmem:[#allocation7 + $0x4b8] sm:$0xff]
    %v576 = vld [vmem:[#allocation7 + $0x4c0] sm:$0xff]
    %v577 = vld [vmem:[#allocation7 + $0x4c8] sm:$0xff]
    %v578 = vld [vmem:[#allocation7 + $0x4d0] sm:$0xff]
    %v579 = vld [vmem:[#allocation7 + $0x4d8] sm:$0xff]
    %v580 = vld [vmem:[#allocation7 + $0x4e0] sm:$0xff]
    %v581 = vld [vmem:[#allocation7 + $0x4e8] sm:$0xff]
    %v582 = vld [vmem:[#allocation7 + $0x4f0] sm:$0xff]
    %v583 = vld [vmem:[#allocation7 + $0x4f8] sm:$0xff]
    %v584 = vld [vmem:[#allocation7 + $0x500] sm:$0xff]
    %v585 = vld [vmem:[#allocation7 + $0x508] sm:$0xff]
    %v586 = vld [vmem:[#allocation7 + $0x510] sm:$0xff]
    %v587 = vld [vmem:[#allocation7 + $0x518] sm:$0xff]
    %v588 = vld [vmem:[#allocation7 + $0x520] sm:$0xff]
    %v589 = vld [vmem:[#allocation7 + $0x528] sm:$0xff]
    %v590 = vld [vmem:[#allocation7 + $0x530] sm:$0xff]
    %v591 = vld [vmem:[#allocation7 + $0x538] sm:$0xff]
    %v592 = vld [vmem:[#allocation7 + $0x540] sm:$0xff]
    %v593 = vld [vmem:[#allocation7 + $0x548] sm:$0xff]
    %v594 = vld [vmem:[#allocation7 + $0x550] sm:$0xff]
    %v595 = vld [vmem:[#allocation7 + $0x558] sm:$0xff]
    %v596 = vld [vmem:[#allocation7 + $0x560] sm:$0xff]
    %v597 = vld [vmem:[#allocation7 + $0x568] sm:$0xff]
    %v598 = vld [vmem:[#allocation7 + $0x570] sm:$0xff]
    %v599 = vld [vmem:[#allocation7 + $0x578] sm:$0xff]
    %v600 = vld [vmem:[#allocation7 + $0x580] sm:$0xff]
    %v601 = vld [vmem:[#allocation7 + $0x588] sm:$0xff]
    %v602 = vld [vmem:[#allocation7 + $0x590] sm:$0xff]
    %v603 = vld [vmem:[#allocation7 + $0x598] sm:$0xff]
    %v604 = vld [vmem:[#allocation7 + $0x5a0] sm:$0xff]
    %v605 = vld [vmem:[#allocation7 + $0x5a8] sm:$0xff]
    %v606 = vld [vmem:[#allocation7 + $0x5b0] sm:$0xff]
    %v607 = vld [vmem:[#allocation7 + $0x5b8] sm:$0xff]
    %v608 = vld [vmem:[#allocation7 + $0x5c0] sm:$0xff]
    %v609 = vld [vmem:[#allocation7 + $0x5c8] sm:$0xff]
    %v610 = vld [vmem:[#allocation7 + $0x5d0] sm:$0xff]
    %v611 = vld [vmem:[#allocation7 + $0x5d8] sm:$0xff]
    %v612 = vld [vmem:[#allocation7 + $0x5e0] sm:$0xff]
    %v613 = vld [vmem:[#allocation7 + $0x5e8] sm:$0xff]
    %v614 = vld [vmem:[#allocation7 + $0x5f0] sm:$0xff]
    %v615 = vld [vmem:[#allocation7 + $0x5f8] sm:$0xff]
    %v616 = vld [vmem:[#allocation7 + $0x600] sm:$0xff]
    %v617 = vld [vmem:[#allocation7 + $0x608] sm:$0xff]
    %v618 = vld [vmem:[#allocation7 + $0x610] sm:$0xff]
    %v619 = vld [vmem:[#allocation7 + $0x618] sm:$0xff]
    %v620 = vld [vmem:[#allocation7 + $0x620] sm:$0xff]
    %v621 = vld [vmem:[#allocation7 + $0x628] sm:$0xff]
    %v622 = vld [vmem:[#allocation7 + $0x630] sm:$0xff]
    %v623 = vld [vmem:[#allocation7 + $0x638] sm:$0xff]
    %v624 = vld [vmem:[#allocation7 + $0x640] sm:$0xff]
    %v625 = vld [vmem:[#allocation7 + $0x648] sm:$0xff]
    %v626 = vld [vmem:[#allocation7 + $0x650] sm:$0xff]
    %v627 = vld [vmem:[#allocation7 + $0x658] sm:$0xff]
    %v628 = vld [vmem:[#allocation7 + $0x660] sm:$0xff]
    %v629 = vld [vmem:[#allocation7 + $0x668] sm:$0xff]
    %v630 = vld [vmem:[#allocation7 + $0x670] sm:$0xff]
    %v631 = vld [vmem:[#allocation7 + $0x678] sm:$0xff]
    %v632 = vld [vmem:[#allocation7 + $0x680] sm:$0xff]
    %v633 = vld [vmem:[#allocation7 + $0x688] sm:$0xff]
    %v634 = vld [vmem:[#allocation7 + $0x690] sm:$0xff]
    %v635 = vld [vmem:[#allocation7 + $0x698] sm:$0xff]
    %v636 = vld [vmem:[#allocation7 + $0x6a0] sm:$0xff]
    %v637 = vld [vmem:[#allocation7 + $0x6a8] sm:$0xff]
    %v638 = vld [vmem:[#allocation7 + $0x6b0] sm:$0xff]
    %v639 = vld [vmem:[#allocation7 + $0x6b8] sm:$0xff]
    %v640 = vld [vmem:[#allocation7 + $0x6c0] sm:$0xff]
    %v641 = vld [vmem:[#allocation7 + $0x6c8] sm:$0xff]
    %v642 = vld [vmem:[#allocation7 + $0x6d0] sm:$0xff]
    %v643 = vld [vmem:[#allocation7 + $0x6d8] sm:$0xff]
    %v644 = vld [vmem:[#allocation7 + $0x6e0] sm:$0xff]
    %v645 = vld [vmem:[#allocation7 + $0x6e8] sm:$0xff]
    %v646 = vld [vmem:[#allocation7 + $0x6f0] sm:$0xff]
    %v647 = vld [vmem:[#allocation7 + $0x6f8] sm:$0xff]
    %v648 = vld [vmem:[#allocation7 + $0x700] sm:$0xff]
    %v649 = vld [vmem:[#allocation7 + $0x708] sm:$0xff]
    %v650 = vld [vmem:[#allocation7 + $0x710] sm:$0xff]
    %v651 = vld [vmem:[#allocation7 + $0x718] sm:$0xff]
    %v652 = vld [vmem:[#allocation7 + $0x720] sm:$0xff]
    %v653 = vld [vmem:[#allocation7 + $0x728] sm:$0xff]
    %v654 = vld [vmem:[#allocation7 + $0x730] sm:$0xff]
    %v655 = vld [vmem:[#allocation7 + $0x738] sm:$0xff]
    %v656 = vld [vmem:[#allocation7 + $0x740] sm:$0xff]
    %v657 = vld [vmem:[#allocation7 + $0x748] sm:$0xff]
    %v658 = vld [vmem:[#allocation7 + $0x750] sm:$0xff]
    %v659 = vld [vmem:[#allocation7 + $0x758] sm:$0xff]
    %v660 = vld [vmem:[#allocation7 + $0x760] sm:$0xff]
    %v661 = vld [vmem:[#allocation7 + $0x768] sm:$0xff]
    %v662 = vld [vmem:[#allocation7 + $0x770] sm:$0xff]
    %v663 = vld [vmem:[#allocation7 + $0x778] sm:$0xff]
    %v664 = vld [vmem:[#allocation7 + $0x780] sm:$0xff]
    %v665 = vld [vmem:[#allocation7 + $0x788] sm:$0xff]
    %v666 = vld [vmem:[#allocation7 + $0x790] sm:$0xff]
    %v667 = vld [vmem:[#allocation7 + $0x798] sm:$0xff]
    %v668 = vld [vmem:[#allocation7 + $0x7a0] sm:$0xff]
    %v669 = vld [vmem:[#allocation7 + $0x7a8] sm:$0xff]
    %v670 = vld [vmem:[#allocation7 + $0x7b0] sm:$0xff]
    %v671 = vld [vmem:[#allocation7 + $0x7b8] sm:$0xff]
    %v672 = vld [vmem:[#allocation7 + $0x7c0] sm:$0xff]
    %v673 = vld [vmem:[#allocation7 + $0x7c8] sm:$0xff]
    %v674 = vld [vmem:[#allocation7 + $0x7d0] sm:$0xff]
    %v675 = vld [vmem:[#allocation7 + $0x7d8] sm:$0xff]
    %v676 = vld [vmem:[#allocation7 + $0x7e0] sm:$0xff]
    %v677 = vld [vmem:[#allocation7 + $0x7e8] sm:$0xff]
    %v678 = vld [vmem:[#allocation7 + $0x7f0] sm:$0xff]
    %v679 = vld [vmem:[#allocation7 + $0x7f8] sm:$0xff]
    %v680 = vld [vmem:[#allocation7 + $0x800] sm:$0xff]
    %v681 = vld [vmem:[#allocation7 + $0x808] sm:$0xff]
    %v682 = vld [vmem:[#allocation7 + $0x810] sm:$0xff]
    %v683 = vld [vmem:[#allocation7 + $0x818] sm:$0xff]
    %v684 = vld [vmem:[#allocation7 + $0x820] sm:$0xff]
    %v685 = vld [vmem:[#allocation7 + $0x828] sm:$0xff]
    %v686 = vld [vmem:[#allocation7 + $0x830] sm:$0xff]
    %v687 = vld [vmem:[#allocation7 + $0x838] sm:$0xff]
    %v688 = vld [vmem:[#allocation7 + $0x840] sm:$0xff]
    %v689 = vld [vmem:[#allocation7 + $0x848] sm:$0xff]
    %v690 = vld [vmem:[#allocation7 + $0x850] sm:$0xff]
    %v691 = vld [vmem:[#allocation7 + $0x858] sm:$0xff]
    %v692 = vld [vmem:[#allocation7 + $0x860] sm:$0xff]
    %v693 = vld [vmem:[#allocation7 + $0x868] sm:$0xff]
    %v694 = vld [vmem:[#allocation7 + $0x870] sm:$0xff]
    %v695 = vld [vmem:[#allocation7 + $0x878] sm:$0xff]
    %v696 = vld [vmem:[#allocation7 + $0x880] sm:$0xff]
    %v697 = vld [vmem:[#allocation7 + $0x888] sm:$0xff]
    %v698 = vld [vmem:[#allocation7 + $0x890] sm:$0xff]
    %v699 = vld [vmem:[#allocation7 + $0x898] sm:$0xff]
    %v700 = vld [vmem:[#allocation7 + $0x8a0] sm:$0xff]
    %v701 = vld [vmem:[#allocation7 + $0x8a8] sm:$0xff]
    %v702 = vld [vmem:[#allocation7 + $0x8b0] sm:$0xff]
    %v703 = vld [vmem:[#allocation7 + $0x8b8] sm:$0xff]
    %v704 = vld [vmem:[#allocation7 + $0x8c0] sm:$0xff]
    %v705 = vld [vmem:[#allocation7 + $0x8c8] sm:$0xff]
    %v706 = vld [vmem:[#allocation7 + $0x8d0] sm:$0xff]
    %v707 = vld [vmem:[#allocation7 + $0x8d8] sm:$0xff]
    %v708 = vld [vmem:[#allocation7 + $0x8e0] sm:$0xff]
    %v709 = vld [vmem:[#allocation7 + $0x8e8] sm:$0xff]
    %v710 = vld [vmem:[#allocation7 + $0x8f0] sm:$0xff]
    %v711 = vld [vmem:[#allocation7 + $0x8f8] sm:$0xff]
    %v712 = vld [vmem:[#allocation7 + $0x900] sm:$0xff]
    %v713 = vld [vmem:[#allocation7 + $0x908] sm:$0xff]
    %v714 = vld [vmem:[#allocation7 + $0x910] sm:$0xff]
    %v715 = vld [vmem:[#allocation7 + $0x918] sm:$0xff]
    %v716 = vld [vmem:[#allocation7 + $0x920] sm:$0xff]
    %v717 = vld [vmem:[#allocation7 + $0x928] sm:$0xff]
    %v718 = vld [vmem:[#allocation7 + $0x930] sm:$0xff]
    %v719 = vld [vmem:[#allocation7 + $0x938] sm:$0xff]
    %v720 = vld [vmem:[#allocation7 + $0x940] sm:$0xff]
    %v721 = vld [vmem:[#allocation7 + $0x948] sm:$0xff]
    %v722 = vld [vmem:[#allocation7 + $0x950] sm:$0xff]
    %v723 = vld [vmem:[#allocation7 + $0x958] sm:$0xff]
    %v724 = vld [vmem:[#allocation7 + $0x960] sm:$0xff]
    %v725 = vld [vmem:[#allocation7 + $0x968] sm:$0xff]
    %v726 = vld [vmem:[#allocation7 + $0x970] sm:$0xff]
    %v727 = vld [vmem:[#allocation7 + $0x978] sm:$0xff]
    %v728 = vld [vmem:[#allocation7 + $0x980] sm:$0xff]
    %v729 = vld [vmem:[#allocation7 + $0x988] sm:$0xff]
    %v730 = vld [vmem:[#allocation7 + $0x990] sm:$0xff]
    %v731 = vld [vmem:[#allocation7 + $0x998] sm:$0xff]
    %v732 = vld [vmem:[#allocation7 + $0x9a0] sm:$0xff]
    %v733 = vld [vmem:[#allocation7 + $0x9a8] sm:$0xff]
    %v734 = vld [vmem:[#allocation7 + $0x9b0] sm:$0xff]
    %v735 = vld [vmem:[#allocation7 + $0x9b8] sm:$0xff]
    %v736 = vld [vmem:[#allocation7 + $0x9c0] sm:$0xff]
    %v737 = vld [vmem:[#allocation7 + $0x9c8] sm:$0xff]
    %v738 = vld [vmem:[#allocation7 + $0x9d0] sm:$0xff]
    %v739 = vld [vmem:[#allocation7 + $0x9d8] sm:$0xff]
    %v740 = vld [vmem:[#allocation7 + $0x9e0] sm:$0xff]
    %v741 = vld [vmem:[#allocation7 + $0x9e8] sm:$0xff]
    %v742 = vld [vmem:[#allocation7 + $0x9f0] sm:$0xff]
    %v743 = vld [vmem:[#allocation7 + $0x9f8] sm:$0xff]
    %v744 = vld [vmem:[#allocation7 + $0xa00] sm:$0xff]
    %v745 = vld [vmem:[#allocation7 + $0xa08] sm:$0xff]
    %v746 = vld [vmem:[#allocation7 + $0xa10] sm:$0xff]
    %v747 = vld [vmem:[#allocation7 + $0xa18] sm:$0xff]
    %v748 = vld [vmem:[#allocation7 + $0xa20] sm:$0xff]
    %v749 = vld [vmem:[#allocation7 + $0xa28] sm:$0xff]
    %v750 = vld [vmem:[#allocation7 + $0xa30] sm:$0xff]
    %v751 = vld [vmem:[#allocation7 + $0xa38] sm:$0xff]
    %v752 = vld [vmem:[#allocation7 + $0xa40] sm:$0xff]
    %v753 = vld [vmem:[#allocation7 + $0xa48] sm:$0xff]
    %v754 = vld [vmem:[#allocation7 + $0xa50] sm:$0xff]
    %v755 = vld [vmem:[#allocation7 + $0xa58] sm:$0xff]
    %v756 = vld [vmem:[#allocation7 + $0xa60] sm:$0xff]
    %v757 = vld [vmem:[#allocation7 + $0xa68] sm:$0xff]
    %v758 = vld [vmem:[#allocation7 + $0xa70] sm:$0xff]
    %v759 = vld [vmem:[#allocation7 + $0xa78] sm:$0xff]
    %v760 = vld [vmem:[#allocation7 + $0xa80] sm:$0xff]
    %v761 = vld [vmem:[#allocation7 + $0xa88] sm:$0xff]
    %v762 = vld [vmem:[#allocation7 + $0xa90] sm:$0xff]
    %v763 = vld [vmem:[#allocation7 + $0xa98] sm:$0xff]
    %v764 = vld [vmem:[#allocation7 + $0xaa0] sm:$0xff]
    %v765 = vld [vmem:[#allocation7 + $0xaa8] sm:$0xff]
    %v766 = vld [vmem:[#allocation7 + $0xab0] sm:$0xff]
    %v767 = vld [vmem:[#allocation7 + $0xab8] sm:$0xff]
    %v768 = vld [vmem:[#allocation7 + $0xac0] sm:$0xff]
    %v769 = vld [vmem:[#allocation7 + $0xac8] sm:$0xff]
    %v770 = vld [vmem:[#allocation7 + $0xad0] sm:$0xff]
    %v771 = vld [vmem:[#allocation7 + $0xad8] sm:$0xff]
    %v772 = vld [vmem:[#allocation7 + $0xae0] sm:$0xff]
    %v773 = vld [vmem:[#allocation7 + $0xae8] sm:$0xff]
    %v774 = vld [vmem:[#allocation7 + $0xaf0] sm:$0xff]
    %v775 = vld [vmem:[#allocation7 + $0xaf8] sm:$0xff]
    %v776 = vld [vmem:[#allocation7 + $0xb00] sm:$0xff]
    %v777 = vld [vmem:[#allocation7 + $0xb08] sm:$0xff]
    %v778 = vld [vmem:[#allocation7 + $0xb10] sm:$0xff]
    %v779 = vld [vmem:[#allocation7 + $0xb18] sm:$0xff]
    %v780 = vld [vmem:[#allocation7 + $0xb20] sm:$0xff]
    %v781 = vld [vmem:[#allocation7 + $0xb28] sm:$0xff]
    %v782 = vld [vmem:[#allocation7 + $0xb30] sm:$0xff]
    %v783 = vld [vmem:[#allocation7 + $0xb38] sm:$0xff]
    %v784 = vld [vmem:[#allocation7 + $0xb40] sm:$0xff]
    %v785 = vld [vmem:[#allocation7 + $0xb48] sm:$0xff]
    %v786 = vld [vmem:[#allocation7 + $0xb50] sm:$0xff]
    %v787 = vld [vmem:[#allocation7 + $0xb58] sm:$0xff]
    %v788 = vld [vmem:[#allocation7 + $0xb60] sm:$0xff]
    %v789 = vld [vmem:[#allocation7 + $0xb68] sm:$0xff]
    %v790 = vld [vmem:[#allocation7 + $0xb70] sm:$0xff]
    %v791 = vld [vmem:[#allocation7 + $0xb78] sm:$0xff]
    %v792 = vld [vmem:[#allocation7 + $0xb80] sm:$0xff]
    %v793 = vld [vmem:[#allocation7 + $0xb88] sm:$0xff]
    %v794 = vld [vmem:[#allocation7 + $0xb90] sm:$0xff]
    %v795 = vld [vmem:[#allocation7 + $0xb98] sm:$0xff]
    %v796 = vld [vmem:[#allocation7 + $0xba0] sm:$0xff]
    %v797 = vld [vmem:[#allocation7 + $0xba8] sm:$0xff]
    %v798 = vld [vmem:[#allocation7 + $0xbb0] sm:$0xff]
    %v799 = vld [vmem:[#allocation7 + $0xbb8] sm:$0xff]
    %v800 = vld [vmem:[#allocation7 + $0xbc0] sm:$0xff]
    %v801 = vld [vmem:[#allocation7 + $0xbc8] sm:$0xff]
    %v802 = vld [vmem:[#allocation7 + $0xbd0] sm:$0xff]
    %v803 = vld [vmem:[#allocation7 + $0xbd8] sm:$0xff]
    %v804 = vld [vmem:[#allocation7 + $0xbe0] sm:$0xff]
    %v805 = vld [vmem:[#allocation7 + $0xbe8] sm:$0xff]
    %v806 = vld [vmem:[#allocation7 + $0xbf0] sm:$0xff]
    %v807 = vld [vmem:[#allocation7 + $0xbf8] sm:$0xff]
    %v808 = vld [vmem:[#allocation7 + $0xc00] sm:$0xff]
    %v809 = vld [vmem:[#allocation7 + $0xc08] sm:$0xff]
    %v810 = vld [vmem:[#allocation7 + $0xc10] sm:$0xff]
    %v811 = vld [vmem:[#allocation7 + $0xc18] sm:$0xff]
    %v812 = vld [vmem:[#allocation7 + $0xc20] sm:$0xff]
    %v813 = vld [vmem:[#allocation7 + $0xc28] sm:$0xff]
    %v814 = vld [vmem:[#allocation7 + $0xc30] sm:$0xff]
    %v815 = vld [vmem:[#allocation7 + $0xc38] sm:$0xff]
    %v816 = vld [vmem:[#allocation7 + $0xc40] sm:$0xff]
    %v817 = vld [vmem:[#allocation7 + $0xc48] sm:$0xff]
    %v818 = vld [vmem:[#allocation7 + $0xc50] sm:$0xff]
    %v819 = vld [vmem:[#allocation7 + $0xc58] sm:$0xff]
    %v820 = vld [vmem:[#allocation7 + $0xc60] sm:$0xff]
    %v821 = vld [vmem:[#allocation7 + $0xc68] sm:$0xff]
    %v822 = vld [vmem:[#allocation7 + $0xc70] sm:$0xff]
    %v823 = vld [vmem:[#allocation7 + $0xc78] sm:$0xff]
    %v824 = vld [vmem:[#allocation7 + $0xc80] sm:$0xff]
    %v825 = vld [vmem:[#allocation7 + $0xc88] sm:$0xff]
    %v826 = vld [vmem:[#allocation7 + $0xc90] sm:$0xff]
    %v827 = vld [vmem:[#allocation7 + $0xc98] sm:$0xff]
    %v828 = vld [vmem:[#allocation7 + $0xca0] sm:$0xff]
    %v829 = vld [vmem:[#allocation7 + $0xca8] sm:$0xff]
    %v830 = vld [vmem:[#allocation7 + $0xcb0] sm:$0xff]
    %v831 = vld [vmem:[#allocation7 + $0xcb8] sm:$0xff]
    %v832 = vld [vmem:[#allocation7 + $0xcc0] sm:$0xff]
    %v833 = vld [vmem:[#allocation7 + $0xcc8] sm:$0xff]
    %v834 = vld [vmem:[#allocation7 + $0xcd0] sm:$0xff]
    %v835 = vld [vmem:[#allocation7 + $0xcd8] sm:$0xff]
    %v836 = vld [vmem:[#allocation7 + $0xce0] sm:$0xff]
    %v837 = vld [vmem:[#allocation7 + $0xce8] sm:$0xff]
    %v838 = vld [vmem:[#allocation7 + $0xcf0] sm:$0xff]
    %v839 = vld [vmem:[#allocation7 + $0xcf8] sm:$0xff]
    %v840 = vld [vmem:[#allocation7 + $0xd00] sm:$0xff]
    %v841 = vld [vmem:[#allocation7 + $0xd08] sm:$0xff]
    %v842 = vld [vmem:[#allocation7 + $0xd10] sm:$0xff]
    %v843 = vld [vmem:[#allocation7 + $0xd18] sm:$0xff]
    %v844 = vld [vmem:[#allocation7 + $0xd20] sm:$0xff]
    %v845 = vld [vmem:[#allocation7 + $0xd28] sm:$0xff]
    %v846 = vld [vmem:[#allocation7 + $0xd30] sm:$0xff]
    %v847 = vld [vmem:[#allocation7 + $0xd38] sm:$0xff]
    %v848 = vld [vmem:[#allocation7 + $0xd40] sm:$0xff]
    %v849 = vld [vmem:[#allocation7 + $0xd48] sm:$0xff]
    %v850 = vld [vmem:[#allocation7 + $0xd50] sm:$0xff]
    %v851 = vld [vmem:[#allocation7 + $0xd58] sm:$0xff]
    %v852 = vld [vmem:[#allocation7 + $0xd60] sm:$0xff]
    %v853 = vld [vmem:[#allocation7 + $0xd68] sm:$0xff]
    %v854 = vld [vmem:[#allocation7 + $0xd70] sm:$0xff]
    %v855 = vld [vmem:[#allocation7 + $0xd78] sm:$0xff]
    %v856 = vld [vmem:[#allocation7 + $0xd80] sm:$0xff]
    %v857 = vld [vmem:[#allocation7 + $0xd88] sm:$0xff]
    %v858 = vld [vmem:[#allocation7 + $0xd90] sm:$0xff]
    %v859 = vld [vmem:[#allocation7 + $0xd98] sm:$0xff]
    %v860 = vld [vmem:[#allocation7 + $0xda0] sm:$0xff]
    %v861 = vld [vmem:[#allocation7 + $0xda8] sm:$0xff]
    %v862 = vld [vmem:[#allocation7 + $0xdb0] sm:$0xff]
    %v863 = vld [vmem:[#allocation7 + $0xdb8] sm:$0xff]
    %v864 = vld [vmem:[#allocation7 + $0xdc0] sm:$0xff]
    %v865 = vld [vmem:[#allocation7 + $0xdc8] sm:$0xff]
    %v866 = vld [vmem:[#allocation7 + $0xdd0] sm:$0xff]
    %v867 = vld [vmem:[#allocation7 + $0xdd8] sm:$0xff]
    %v868 = vld [vmem:[#allocation7 + $0xde0] sm:$0xff]
    %v869 = vld [vmem:[#allocation7 + $0xde8] sm:$0xff]
    %v870 = vld [vmem:[#allocation7 + $0xdf0] sm:$0xff]
    %v871 = vld [vmem:[#allocation7 + $0xdf8] sm:$0xff]
    %v872 = vld [vmem:[#allocation7 + $0xe00] sm:$0xff]
    %v873 = vld [vmem:[#allocation7 + $0xe08] sm:$0xff]
    %v874 = vld [vmem:[#allocation7 + $0xe10] sm:$0xff]
    %v875 = vld [vmem:[#allocation7 + $0xe18] sm:$0xff]
    %v876 = vld [vmem:[#allocation7 + $0xe20] sm:$0xff]
    %v877 = vld [vmem:[#allocation7 + $0xe28] sm:$0xff]
    %v878 = vld [vmem:[#allocation7 + $0xe30] sm:$0xff]
    %v879 = vld [vmem:[#allocation7 + $0xe38] sm:$0xff]
    %v880 = vld [vmem:[#allocation7 + $0xe40] sm:$0xff]
    %v881 = vld [vmem:[#allocation7 + $0xe48] sm:$0xff]
    %v882 = vld [vmem:[#allocation7 + $0xe50] sm:$0xff]
    %v883 = vld [vmem:[#allocation7 + $0xe58] sm:$0xff]
    %v884 = vld [vmem:[#allocation7 + $0xe60] sm:$0xff]
    %v885 = vld [vmem:[#allocation7 + $0xe68] sm:$0xff]
    %v886 = vld [vmem:[#allocation7 + $0xe70] sm:$0xff]
    %v887 = vld [vmem:[#allocation7 + $0xe78] sm:$0xff]
    %v888 = vld [vmem:[#allocation7 + $0xe80] sm:$0xff]
    %v889 = vld [vmem:[#allocation7 + $0xe88] sm:$0xff]
    %v890 = vld [vmem:[#allocation7 + $0xe90] sm:$0xff]
    %v891 = vld [vmem:[#allocation7 + $0xe98] sm:$0xff]
    %v892 = vld [vmem:[#allocation7 + $0xea0] sm:$0xff]
    %v893 = vld [vmem:[#allocation7 + $0xea8] sm:$0xff]
    %v894 = vld [vmem:[#allocation7 + $0xeb0] sm:$0xff]
    %v895 = vld [vmem:[#allocation7 + $0xeb8] sm:$0xff]
    %v896 = vld [vmem:[#allocation7 + $0xec0] sm:$0xff]
    %v897 = vld [vmem:[#allocation7 + $0xec8] sm:$0xff]
    %v898 = vld [vmem:[#allocation7 + $0xed0] sm:$0xff]
    %v899 = vld [vmem:[#allocation7 + $0xed8] sm:$0xff]
    %v900 = vld [vmem:[#allocation7 + $0xee0] sm:$0xff]
    %v901 = vld [vmem:[#allocation7 + $0xee8] sm:$0xff]
    %v902 = vld [vmem:[#allocation7 + $0xef0] sm:$0xff]
    %v903 = vld [vmem:[#allocation7 + $0xef8] sm:$0xff]
    %v904 = vld [vmem:[#allocation7 + $0xf00] sm:$0xff]
    %v905 = vld [vmem:[#allocation7 + $0xf08] sm:$0xff]
    %v906 = vld [vmem:[#allocation7 + $0xf10] sm:$0xff]
    %v907 = vld [vmem:[#allocation7 + $0xf18] sm:$0xff]
    %v908 = vld [vmem:[#allocation7 + $0xf20] sm:$0xff]
    %v909 = vld [vmem:[#allocation7 + $0xf28] sm:$0xff]
    %v910 = vld [vmem:[#allocation7 + $0xf30] sm:$0xff]
    %v911 = vld [vmem:[#allocation7 + $0xf38] sm:$0xff]
    %v912 = vld [vmem:[#allocation7 + $0xf40] sm:$0xff]
    %v913 = vld [vmem:[#allocation7 + $0xf48] sm:$0xff]
    %v914 = vld [vmem:[#allocation7 + $0xf50] sm:$0xff]
    %v915 = vld [vmem:[#allocation7 + $0xf58] sm:$0xff]
    %v916 = vld [vmem:[#allocation7 + $0xf60] sm:$0xff]
    %v917 = vld [vmem:[#allocation7 + $0xf68] sm:$0xff]
    %v918 = vld [vmem:[#allocation7 + $0xf70] sm:$0xff]
    %v919 = vld [vmem:[#allocation7 + $0xf78] sm:$0xff]
    %v920 = vld [vmem:[#allocation7 + $0xf80] sm:$0xff]
    %v921 = vld [vmem:[#allocation7 + $0xf88] sm:$0xff]
    %v922 = vld [vmem:[#allocation7 + $0xf90] sm:$0xff]
    %v923 = vld [vmem:[#allocation7 + $0xf98] sm:$0xff]
    %v924 = vld [vmem:[#allocation7 + $0xfa0] sm:$0xff]
    %v925 = vld [vmem:[#allocation7 + $0xfa8] sm:$0xff]
    %v926 = vld [vmem:[#allocation7 + $0xfb0] sm:$0xff]
    %v927 = vld [vmem:[#allocation7 + $0xfb8] sm:$0xff]
    %v928 = vld [vmem:[#allocation7 + $0xfc0] sm:$0xff]
    %v929 = vld [vmem:[#allocation7 + $0xfc8] sm:$0xff]
    %v930 = vld [vmem:[#allocation7 + $0xfd0] sm:$0xff]
    %v931 = vld [vmem:[#allocation7 + $0xfd8] sm:$0xff]
    %v932 = vld [vmem:[#allocation7 + $0xfe0] sm:$0xff]
    %v933 = vld [vmem:[#allocation7 + $0xfe8] sm:$0xff]
    %v934 = vld [vmem:[#allocation7 + $0xff0] sm:$0xff]
    %v935 = vld [vmem:[#allocation7 + $0xff8] sm:$0xff]
    %v936 = vld [vmem:[#allocation8] sm:$0xff]
    %v938 = vlaneseq
    %v939 = vshrl.u32 %v938, 7
    %v940 = vsub.s32 0, %v939
    %v941 = vrot.slane %v936, %v940
    %v942 = vlaneseq
    %v943 = vshrl.u32 %v942, 7
    %v944 = vsub.s32 1, %v943
    %v945 = vrot.slane %v936, %v944
    %v946 = vlaneseq
    %v947 = vshrl.u32 %v946, 7
    %v948 = vsub.s32 2, %v947
    %v949 = vrot.slane %v936, %v948
    %v950 = vlaneseq
    %v951 = vshrl.u32 %v950, 7
    %v952 = vsub.s32 3, %v951
    %v953 = vrot.slane %v936, %v952
    %v954 = vlaneseq
    %v955 = vshrl.u32 %v954, 7
    %v956 = vsub.s32 4, %v955
    %v957 = vrot.slane %v936, %v956
    %v958 = vlaneseq
    %v959 = vshrl.u32 %v958, 7
    %v960 = vsub.s32 5, %v959
    %v961 = vrot.slane %v936, %v960
    %v962 = vlaneseq
    %v963 = vshrl.u32 %v962, 7
    %v964 = vsub.s32 6, %v963
    %v965 = vrot.slane %v936, %v964
    %v966 = vlaneseq
    %v967 = vshrl.u32 %v966, 7
    %v968 = vsub.s32 7, %v967
    %v969 = vrot.slane %v936, %v968
    %v1490 = vunpack.c.l.b16 %v424
    %v1491 = vunpack.c.h.b16 %v424
    %v1492 = vunpack.c.l.b16 %v425
    %v1493 = vunpack.c.h.b16 %v425
    %v1494 = vunpack.c.l.b16 %v426
    %v1495 = vunpack.c.h.b16 %v426
    %v1496 = vunpack.c.l.b16 %v427
    %v1497 = vunpack.c.h.b16 %v427
    %v1498 = vunpack.c.l.b16 %v428
    %v1499 = vunpack.c.h.b16 %v428
    %v1500 = vunpack.c.l.b16 %v429
    %v1501 = vunpack.c.h.b16 %v429
    %v1502 = vunpack.c.l.b16 %v430
    %v1503 = vunpack.c.h.b16 %v430
    %v1504 = vunpack.c.l.b16 %v431
    %v1505 = vunpack.c.h.b16 %v431
    %v1506 = vunpack.c.l.b16 %v432
    %v1507 = vunpack.c.h.b16 %v432
    %v1508 = vunpack.c.l.b16 %v433
    %v1509 = vunpack.c.h.b16 %v433
    %v1510 = vunpack.c.l.b16 %v434
    %v1511 = vunpack.c.h.b16 %v434
    %v1512 = vunpack.c.l.b16 %v435
    %v1513 = vunpack.c.h.b16 %v435
    %v1514 = vunpack.c.l.b16 %v436
    %v1515 = vunpack.c.h.b16 %v436
    %v1516 = vunpack.c.l.b16 %v437
    %v1517 = vunpack.c.h.b16 %v437
    %v1518 = vunpack.c.l.b16 %v438
    %v1519 = vunpack.c.h.b16 %v438
    %v1520 = vunpack.c.l.b16 %v439
    %v1521 = vunpack.c.h.b16 %v439
    %v1522 = vunpack.c.l.b16 %v440
    %v1523 = vunpack.c.h.b16 %v440
    %v1524 = vunpack.c.l.b16 %v441
    %v1525 = vunpack.c.h.b16 %v441
    %v1526 = vunpack.c.l.b16 %v442
    %v1527 = vunpack.c.h.b16 %v442
    %v1528 = vunpack.c.l.b16 %v443
    %v1529 = vunpack.c.h.b16 %v443
    %v1530 = vunpack.c.l.b16 %v444
    %v1531 = vunpack.c.h.b16 %v444
    %v1532 = vunpack.c.l.b16 %v445
    %v1533 = vunpack.c.h.b16 %v445
    %v1534 = vunpack.c.l.b16 %v446
    %v1535 = vunpack.c.h.b16 %v446
    %v1536 = vunpack.c.l.b16 %v447
    %v1537 = vunpack.c.h.b16 %v447
    %v1538 = vunpack.c.l.b16 %v448
    %v1539 = vunpack.c.h.b16 %v448
    %v1540 = vunpack.c.l.b16 %v449
    %v1541 = vunpack.c.h.b16 %v449
    %v1542 = vunpack.c.l.b16 %v450
    %v1543 = vunpack.c.h.b16 %v450
    %v1544 = vunpack.c.l.b16 %v451
    %v1545 = vunpack.c.h.b16 %v451
    %v1546 = vunpack.c.l.b16 %v452
    %v1547 = vunpack.c.h.b16 %v452
    %v1548 = vunpack.c.l.b16 %v453
    %v1549 = vunpack.c.h.b16 %v453
    %v1550 = vunpack.c.l.b16 %v454
    %v1551 = vunpack.c.h.b16 %v454
    %v1552 = vunpack.c.l.b16 %v455
    %v1553 = vunpack.c.h.b16 %v455
    %v1554 = vunpack.c.l.b16 %v456
    %v1555 = vunpack.c.h.b16 %v456
    %v1556 = vunpack.c.l.b16 %v457
    %v1557 = vunpack.c.h.b16 %v457
    %v1558 = vunpack.c.l.b16 %v458
    %v1559 = vunpack.c.h.b16 %v458
    %v1560 = vunpack.c.l.b16 %v459
    %v1561 = vunpack.c.h.b16 %v459
    %v1562 = vunpack.c.l.b16 %v460
    %v1563 = vunpack.c.h.b16 %v460
    %v1564 = vunpack.c.l.b16 %v461
    %v1565 = vunpack.c.h.b16 %v461
    %v1566 = vunpack.c.l.b16 %v462
    %v1567 = vunpack.c.h.b16 %v462
    %v1568 = vunpack.c.l.b16 %v463
    %v1569 = vunpack.c.h.b16 %v463
    %v1570 = vunpack.c.l.b16 %v464
    %v1571 = vunpack.c.h.b16 %v464
    %v1572 = vunpack.c.l.b16 %v465
    %v1573 = vunpack.c.h.b16 %v465
    %v1574 = vunpack.c.l.b16 %v466
    %v1575 = vunpack.c.h.b16 %v466
    %v1576 = vunpack.c.l.b16 %v467
    %v1577 = vunpack.c.h.b16 %v467
    %v1578 = vunpack.c.l.b16 %v468
    %v1579 = vunpack.c.h.b16 %v468
    %v1580 = vunpack.c.l.b16 %v469
    %v1581 = vunpack.c.h.b16 %v469
    %v1582 = vunpack.c.l.b16 %v470
    %v1583 = vunpack.c.h.b16 %v470
    %v1584 = vunpack.c.l.b16 %v471
    %v1585 = vunpack.c.h.b16 %v471
    %v1586 = vunpack.c.l.b16 %v472
    %v1587 = vunpack.c.h.b16 %v472
    %v1588 = vunpack.c.l.b16 %v473
    %v1589 = vunpack.c.h.b16 %v473
    %v1590 = vunpack.c.l.b16 %v474
    %v1591 = vunpack.c.h.b16 %v474
    %v1592 = vunpack.c.l.b16 %v475
    %v1593 = vunpack.c.h.b16 %v475
    %v1594 = vunpack.c.l.b16 %v476
    %v1595 = vunpack.c.h.b16 %v476
    %v1596 = vunpack.c.l.b16 %v477
    %v1597 = vunpack.c.h.b16 %v477
    %v1598 = vunpack.c.l.b16 %v478
    %v1599 = vunpack.c.h.b16 %v478
    %v1600 = vunpack.c.l.b16 %v479
    %v1601 = vunpack.c.h.b16 %v479
    %v1602 = vunpack.c.l.b16 %v480
    %v1603 = vunpack.c.h.b16 %v480
    %v1604 = vunpack.c.l.b16 %v481
    %v1605 = vunpack.c.h.b16 %v481
    %v1606 = vunpack.c.l.b16 %v482
    %v1607 = vunpack.c.h.b16 %v482
    %v1608 = vunpack.c.l.b16 %v483
    %v1609 = vunpack.c.h.b16 %v483
    %v1610 = vunpack.c.l.b16 %v484
    %v1611 = vunpack.c.h.b16 %v484
    %v1612 = vunpack.c.l.b16 %v485
    %v1613 = vunpack.c.h.b16 %v485
    %v1614 = vunpack.c.l.b16 %v486
    %v1615 = vunpack.c.h.b16 %v486
    %v1616 = vunpack.c.l.b16 %v487
    %v1617 = vunpack.c.h.b16 %v487
    %v1618 = vunpack.c.l.b16 %v488
    %v1619 = vunpack.c.h.b16 %v488
    %v1620 = vunpack.c.l.b16 %v489
    %v1621 = vunpack.c.h.b16 %v489
    %v1622 = vunpack.c.l.b16 %v490
    %v1623 = vunpack.c.h.b16 %v490
    %v1624 = vunpack.c.l.b16 %v491
    %v1625 = vunpack.c.h.b16 %v491
    %v1626 = vunpack.c.l.b16 %v492
    %v1627 = vunpack.c.h.b16 %v492
    %v1628 = vunpack.c.l.b16 %v493
    %v1629 = vunpack.c.h.b16 %v493
    %v1630 = vunpack.c.l.b16 %v494
    %v1631 = vunpack.c.h.b16 %v494
    %v1632 = vunpack.c.l.b16 %v495
    %v1633 = vunpack.c.h.b16 %v495
    %v1634 = vunpack.c.l.b16 %v496
    %v1635 = vunpack.c.h.b16 %v496
    %v1636 = vunpack.c.l.b16 %v497
    %v1637 = vunpack.c.h.b16 %v497
    %v1638 = vunpack.c.l.b16 %v498
    %v1639 = vunpack.c.h.b16 %v498
    %v1640 = vunpack.c.l.b16 %v499
    %v1641 = vunpack.c.h.b16 %v499
    %v1642 = vunpack.c.l.b16 %v500
    %v1643 = vunpack.c.h.b16 %v500
    %v1644 = vunpack.c.l.b16 %v501
    %v1645 = vunpack.c.h.b16 %v501
    %v1646 = vunpack.c.l.b16 %v502
    %v1647 = vunpack.c.h.b16 %v502
    %v1648 = vunpack.c.l.b16 %v503
    %v1649 = vunpack.c.h.b16 %v503
    %v1650 = vunpack.c.l.b16 %v504
    %v1651 = vunpack.c.h.b16 %v504
    %v1652 = vunpack.c.l.b16 %v505
    %v1653 = vunpack.c.h.b16 %v505
    %v1654 = vunpack.c.l.b16 %v506
    %v1655 = vunpack.c.h.b16 %v506
    %v1656 = vunpack.c.l.b16 %v507
    %v1657 = vunpack.c.h.b16 %v507
    %v1658 = vunpack.c.l.b16 %v508
    %v1659 = vunpack.c.h.b16 %v508
    %v1660 = vunpack.c.l.b16 %v509
    %v1661 = vunpack.c.h.b16 %v509
    %v1662 = vunpack.c.l.b16 %v510
    %v1663 = vunpack.c.h.b16 %v510
    %v1664 = vunpack.c.l.b16 %v511
    %v1665 = vunpack.c.h.b16 %v511
    %v1666 = vunpack.c.l.b16 %v512
    %v1667 = vunpack.c.h.b16 %v512
    %v1668 = vunpack.c.l.b16 %v513
    %v1669 = vunpack.c.h.b16 %v513
    %v1670 = vunpack.c.l.b16 %v514
    %v1671 = vunpack.c.h.b16 %v514
    %v1672 = vunpack.c.l.b16 %v515
    %v1673 = vunpack.c.h.b16 %v515
    %v1674 = vunpack.c.l.b16 %v516
    %v1675 = vunpack.c.h.b16 %v516
    %v1676 = vunpack.c.l.b16 %v517
    %v1677 = vunpack.c.h.b16 %v517
    %v1678 = vunpack.c.l.b16 %v518
    %v1679 = vunpack.c.h.b16 %v518
    %v1680 = vunpack.c.l.b16 %v519
    %v1681 = vunpack.c.h.b16 %v519
    %v1682 = vunpack.c.l.b16 %v520
    %v1683 = vunpack.c.h.b16 %v520
    %v1684 = vunpack.c.l.b16 %v521
    %v1685 = vunpack.c.h.b16 %v521
    %v1686 = vunpack.c.l.b16 %v522
    %v1687 = vunpack.c.h.b16 %v522
    %v1688 = vunpack.c.l.b16 %v523
    %v1689 = vunpack.c.h.b16 %v523
    %v1690 = vunpack.c.l.b16 %v524
    %v1691 = vunpack.c.h.b16 %v524
    %v1692 = vunpack.c.l.b16 %v525
    %v1693 = vunpack.c.h.b16 %v525
    %v1694 = vunpack.c.l.b16 %v526
    %v1695 = vunpack.c.h.b16 %v526
    %v1696 = vunpack.c.l.b16 %v527
    %v1697 = vunpack.c.h.b16 %v527
    %v1698 = vunpack.c.l.b16 %v528
    %v1699 = vunpack.c.h.b16 %v528
    %v1700 = vunpack.c.l.b16 %v529
    %v1701 = vunpack.c.h.b16 %v529
    %v1702 = vunpack.c.l.b16 %v530
    %v1703 = vunpack.c.h.b16 %v530
    %v1704 = vunpack.c.l.b16 %v531
    %v1705 = vunpack.c.h.b16 %v531
    %v1706 = vunpack.c.l.b16 %v532
    %v1707 = vunpack.c.h.b16 %v532
    %v1708 = vunpack.c.l.b16 %v533
    %v1709 = vunpack.c.h.b16 %v533
    %v1710 = vunpack.c.l.b16 %v534
    %v1711 = vunpack.c.h.b16 %v534
    %v1712 = vunpack.c.l.b16 %v535
    %v1713 = vunpack.c.h.b16 %v535
    %v1714 = vunpack.c.l.b16 %v536
    %v1715 = vunpack.c.h.b16 %v536
    %v1716 = vunpack.c.l.b16 %v537
    %v1717 = vunpack.c.h.b16 %v537
    %v1718 = vunpack.c.l.b16 %v538
    %v1719 = vunpack.c.h.b16 %v538
    %v1720 = vunpack.c.l.b16 %v539
    %v1721 = vunpack.c.h.b16 %v539
    %v1722 = vunpack.c.l.b16 %v540
    %v1723 = vunpack.c.h.b16 %v540
    %v1724 = vunpack.c.l.b16 %v541
    %v1725 = vunpack.c.h.b16 %v541
    %v1726 = vunpack.c.l.b16 %v542
    %v1727 = vunpack.c.h.b16 %v542
    %v1728 = vunpack.c.l.b16 %v543
    %v1729 = vunpack.c.h.b16 %v543
    %v1730 = vunpack.c.l.b16 %v544
    %v1731 = vunpack.c.h.b16 %v544
    %v1732 = vunpack.c.l.b16 %v545
    %v1733 = vunpack.c.h.b16 %v545
    %v1734 = vunpack.c.l.b16 %v546
    %v1735 = vunpack.c.h.b16 %v546
    %v1736 = vunpack.c.l.b16 %v547
    %v1737 = vunpack.c.h.b16 %v547
    %v1738 = vunpack.c.l.b16 %v548
    %v1739 = vunpack.c.h.b16 %v548
    %v1740 = vunpack.c.l.b16 %v549
    %v1741 = vunpack.c.h.b16 %v549
    %v1742 = vunpack.c.l.b16 %v550
    %v1743 = vunpack.c.h.b16 %v550
    %v1744 = vunpack.c.l.b16 %v551
    %v1745 = vunpack.c.h.b16 %v551
    %v1746 = vunpack.c.l.b16 %v552
    %v1747 = vunpack.c.h.b16 %v552
    %v1748 = vunpack.c.l.b16 %v553
    %v1749 = vunpack.c.h.b16 %v553
    %v1750 = vunpack.c.l.b16 %v554
    %v1751 = vunpack.c.h.b16 %v554
    %v1752 = vunpack.c.l.b16 %v555
    %v1753 = vunpack.c.h.b16 %v555
    %v1754 = vunpack.c.l.b16 %v556
    %v1755 = vunpack.c.h.b16 %v556
    %v1756 = vunpack.c.l.b16 %v557
    %v1757 = vunpack.c.h.b16 %v557
    %v1758 = vunpack.c.l.b16 %v558
    %v1759 = vunpack.c.h.b16 %v558
    %v1760 = vunpack.c.l.b16 %v559
    %v1761 = vunpack.c.h.b16 %v559
    %v1762 = vunpack.c.l.b16 %v560
    %v1763 = vunpack.c.h.b16 %v560
    %v1764 = vunpack.c.l.b16 %v561
    %v1765 = vunpack.c.h.b16 %v561
    %v1766 = vunpack.c.l.b16 %v562
    %v1767 = vunpack.c.h.b16 %v562
    %v1768 = vunpack.c.l.b16 %v563
    %v1769 = vunpack.c.h.b16 %v563
    %v1770 = vunpack.c.l.b16 %v564
    %v1771 = vunpack.c.h.b16 %v564
    %v1772 = vunpack.c.l.b16 %v565
    %v1773 = vunpack.c.h.b16 %v565
    %v1774 = vunpack.c.l.b16 %v566
    %v1775 = vunpack.c.h.b16 %v566
    %v1776 = vunpack.c.l.b16 %v567
    %v1777 = vunpack.c.h.b16 %v567
    %v1778 = vunpack.c.l.b16 %v568
    %v1779 = vunpack.c.h.b16 %v568
    %v1780 = vunpack.c.l.b16 %v569
    %v1781 = vunpack.c.h.b16 %v569
    %v1782 = vunpack.c.l.b16 %v570
    %v1783 = vunpack.c.h.b16 %v570
    %v1784 = vunpack.c.l.b16 %v571
    %v1785 = vunpack.c.h.b16 %v571
    %v1786 = vunpack.c.l.b16 %v572
    %v1787 = vunpack.c.h.b16 %v572
    %v1788 = vunpack.c.l.b16 %v573
    %v1789 = vunpack.c.h.b16 %v573
    %v1790 = vunpack.c.l.b16 %v574
    %v1791 = vunpack.c.h.b16 %v574
    %v1792 = vunpack.c.l.b16 %v575
    %v1793 = vunpack.c.h.b16 %v575
    %v1794 = vunpack.c.l.b16 %v576
    %v1795 = vunpack.c.h.b16 %v576
    %v1796 = vunpack.c.l.b16 %v577
    %v1797 = vunpack.c.h.b16 %v577
    %v1798 = vunpack.c.l.b16 %v578
    %v1799 = vunpack.c.h.b16 %v578
    %v1800 = vunpack.c.l.b16 %v579
    %v1801 = vunpack.c.h.b16 %v579
    %v1802 = vunpack.c.l.b16 %v580
    %v1803 = vunpack.c.h.b16 %v580
    %v1804 = vunpack.c.l.b16 %v581
    %v1805 = vunpack.c.h.b16 %v581
    %v1806 = vunpack.c.l.b16 %v582
    %v1807 = vunpack.c.h.b16 %v582
    %v1808 = vunpack.c.l.b16 %v583
    %v1809 = vunpack.c.h.b16 %v583
    %v1810 = vunpack.c.l.b16 %v584
    %v1811 = vunpack.c.h.b16 %v584
    %v1812 = vunpack.c.l.b16 %v585
    %v1813 = vunpack.c.h.b16 %v585
    %v1814 = vunpack.c.l.b16 %v586
    %v1815 = vunpack.c.h.b16 %v586
    %v1816 = vunpack.c.l.b16 %v587
    %v1817 = vunpack.c.h.b16 %v587
    %v1818 = vunpack.c.l.b16 %v588
    %v1819 = vunpack.c.h.b16 %v588
    %v1820 = vunpack.c.l.b16 %v589
    %v1821 = vunpack.c.h.b16 %v589
    %v1822 = vunpack.c.l.b16 %v590
    %v1823 = vunpack.c.h.b16 %v590
    %v1824 = vunpack.c.l.b16 %v591
    %v1825 = vunpack.c.h.b16 %v591
    %v1826 = vunpack.c.l.b16 %v592
    %v1827 = vunpack.c.h.b16 %v592
    %v1828 = vunpack.c.l.b16 %v593
    %v1829 = vunpack.c.h.b16 %v593
    %v1830 = vunpack.c.l.b16 %v594
    %v1831 = vunpack.c.h.b16 %v594
    %v1832 = vunpack.c.l.b16 %v595
    %v1833 = vunpack.c.h.b16 %v595
    %v1834 = vunpack.c.l.b16 %v596
    %v1835 = vunpack.c.h.b16 %v596
    %v1836 = vunpack.c.l.b16 %v597
    %v1837 = vunpack.c.h.b16 %v597
    %v1838 = vunpack.c.l.b16 %v598
    %v1839 = vunpack.c.h.b16 %v598
    %v1840 = vunpack.c.l.b16 %v599
    %v1841 = vunpack.c.h.b16 %v599
    %v1842 = vunpack.c.l.b16 %v600
    %v1843 = vunpack.c.h.b16 %v600
    %v1844 = vunpack.c.l.b16 %v601
    %v1845 = vunpack.c.h.b16 %v601
    %v1846 = vunpack.c.l.b16 %v602
    %v1847 = vunpack.c.h.b16 %v602
    %v1848 = vunpack.c.l.b16 %v603
    %v1849 = vunpack.c.h.b16 %v603
    %v1850 = vunpack.c.l.b16 %v604
    %v1851 = vunpack.c.h.b16 %v604
    %v1852 = vunpack.c.l.b16 %v605
    %v1853 = vunpack.c.h.b16 %v605
    %v1854 = vunpack.c.l.b16 %v606
    %v1855 = vunpack.c.h.b16 %v606
    %v1856 = vunpack.c.l.b16 %v607
    %v1857 = vunpack.c.h.b16 %v607
    %v1858 = vunpack.c.l.b16 %v608
    %v1859 = vunpack.c.h.b16 %v608
    %v1860 = vunpack.c.l.b16 %v609
    %v1861 = vunpack.c.h.b16 %v609
    %v1862 = vunpack.c.l.b16 %v610
    %v1863 = vunpack.c.h.b16 %v610
    %v1864 = vunpack.c.l.b16 %v611
    %v1865 = vunpack.c.h.b16 %v611
    %v1866 = vunpack.c.l.b16 %v612
    %v1867 = vunpack.c.h.b16 %v612
    %v1868 = vunpack.c.l.b16 %v613
    %v1869 = vunpack.c.h.b16 %v613
    %v1870 = vunpack.c.l.b16 %v614
    %v1871 = vunpack.c.h.b16 %v614
    %v1872 = vunpack.c.l.b16 %v615
    %v1873 = vunpack.c.h.b16 %v615
    %v1874 = vunpack.c.l.b16 %v616
    %v1875 = vunpack.c.h.b16 %v616
    %v1876 = vunpack.c.l.b16 %v617
    %v1877 = vunpack.c.h.b16 %v617
    %v1878 = vunpack.c.l.b16 %v618
    %v1879 = vunpack.c.h.b16 %v618
    %v1880 = vunpack.c.l.b16 %v619
    %v1881 = vunpack.c.h.b16 %v619
    %v1882 = vunpack.c.l.b16 %v620
    %v1883 = vunpack.c.h.b16 %v620
    %v1884 = vunpack.c.l.b16 %v621
    %v1885 = vunpack.c.h.b16 %v621
    %v1886 = vunpack.c.l.b16 %v622
    %v1887 = vunpack.c.h.b16 %v622
    %v1888 = vunpack.c.l.b16 %v623
    %v1889 = vunpack.c.h.b16 %v623
    %v1890 = vunpack.c.l.b16 %v624
    %v1891 = vunpack.c.h.b16 %v624
    %v1892 = vunpack.c.l.b16 %v625
    %v1893 = vunpack.c.h.b16 %v625
    %v1894 = vunpack.c.l.b16 %v626
    %v1895 = vunpack.c.h.b16 %v626
    %v1896 = vunpack.c.l.b16 %v627
    %v1897 = vunpack.c.h.b16 %v627
    %v1898 = vunpack.c.l.b16 %v628
    %v1899 = vunpack.c.h.b16 %v628
    %v1900 = vunpack.c.l.b16 %v629
    %v1901 = vunpack.c.h.b16 %v629
    %v1902 = vunpack.c.l.b16 %v630
    %v1903 = vunpack.c.h.b16 %v630
    %v1904 = vunpack.c.l.b16 %v631
    %v1905 = vunpack.c.h.b16 %v631
    %v1906 = vunpack.c.l.b16 %v632
    %v1907 = vunpack.c.h.b16 %v632
    %v1908 = vunpack.c.l.b16 %v633
    %v1909 = vunpack.c.h.b16 %v633
    %v1910 = vunpack.c.l.b16 %v634
    %v1911 = vunpack.c.h.b16 %v634
    %v1912 = vunpack.c.l.b16 %v635
    %v1913 = vunpack.c.h.b16 %v635
    %v1914 = vunpack.c.l.b16 %v636
    %v1915 = vunpack.c.h.b16 %v636
    %v1916 = vunpack.c.l.b16 %v637
    %v1917 = vunpack.c.h.b16 %v637
    %v1918 = vunpack.c.l.b16 %v638
    %v1919 = vunpack.c.h.b16 %v638
    %v1920 = vunpack.c.l.b16 %v639
    %v1921 = vunpack.c.h.b16 %v639
    %v1922 = vunpack.c.l.b16 %v640
    %v1923 = vunpack.c.h.b16 %v640
    %v1924 = vunpack.c.l.b16 %v641
    %v1925 = vunpack.c.h.b16 %v641
    %v1926 = vunpack.c.l.b16 %v642
    %v1927 = vunpack.c.h.b16 %v642
    %v1928 = vunpack.c.l.b16 %v643
    %v1929 = vunpack.c.h.b16 %v643
    %v1930 = vunpack.c.l.b16 %v644
    %v1931 = vunpack.c.h.b16 %v644
    %v1932 = vunpack.c.l.b16 %v645
    %v1933 = vunpack.c.h.b16 %v645
    %v1934 = vunpack.c.l.b16 %v646
    %v1935 = vunpack.c.h.b16 %v646
    %v1936 = vunpack.c.l.b16 %v647
    %v1937 = vunpack.c.h.b16 %v647
    %v1938 = vunpack.c.l.b16 %v648
    %v1939 = vunpack.c.h.b16 %v648
    %v1940 = vunpack.c.l.b16 %v649
    %v1941 = vunpack.c.h.b16 %v649
    %v1942 = vunpack.c.l.b16 %v650
    %v1943 = vunpack.c.h.b16 %v650
    %v1944 = vunpack.c.l.b16 %v651
    %v1945 = vunpack.c.h.b16 %v651
    %v1946 = vunpack.c.l.b16 %v652
    %v1947 = vunpack.c.h.b16 %v652
    %v1948 = vunpack.c.l.b16 %v653
    %v1949 = vunpack.c.h.b16 %v653
    %v1950 = vunpack.c.l.b16 %v654
    %v1951 = vunpack.c.h.b16 %v654
    %v1952 = vunpack.c.l.b16 %v655
    %v1953 = vunpack.c.h.b16 %v655
    %v1954 = vunpack.c.l.b16 %v656
    %v1955 = vunpack.c.h.b16 %v656
    %v1956 = vunpack.c.l.b16 %v657
    %v1957 = vunpack.c.h.b16 %v657
    %v1958 = vunpack.c.l.b16 %v658
    %v1959 = vunpack.c.h.b16 %v658
    %v1960 = vunpack.c.l.b16 %v659
    %v1961 = vunpack.c.h.b16 %v659
    %v1962 = vunpack.c.l.b16 %v660
    %v1963 = vunpack.c.h.b16 %v660
    %v1964 = vunpack.c.l.b16 %v661
    %v1965 = vunpack.c.h.b16 %v661
    %v1966 = vunpack.c.l.b16 %v662
    %v1967 = vunpack.c.h.b16 %v662
    %v1968 = vunpack.c.l.b16 %v663
    %v1969 = vunpack.c.h.b16 %v663
    %v1970 = vunpack.c.l.b16 %v664
    %v1971 = vunpack.c.h.b16 %v664
    %v1972 = vunpack.c.l.b16 %v665
    %v1973 = vunpack.c.h.b16 %v665
    %v1974 = vunpack.c.l.b16 %v666
    %v1975 = vunpack.c.h.b16 %v666
    %v1976 = vunpack.c.l.b16 %v667
    %v1977 = vunpack.c.h.b16 %v667
    %v1978 = vunpack.c.l.b16 %v668
    %v1979 = vunpack.c.h.b16 %v668
    %v1980 = vunpack.c.l.b16 %v669
    %v1981 = vunpack.c.h.b16 %v669
    %v1982 = vunpack.c.l.b16 %v670
    %v1983 = vunpack.c.h.b16 %v670
    %v1984 = vunpack.c.l.b16 %v671
    %v1985 = vunpack.c.h.b16 %v671
    %v1986 = vunpack.c.l.b16 %v672
    %v1987 = vunpack.c.h.b16 %v672
    %v1988 = vunpack.c.l.b16 %v673
    %v1989 = vunpack.c.h.b16 %v673
    %v1990 = vunpack.c.l.b16 %v674
    %v1991 = vunpack.c.h.b16 %v674
    %v1992 = vunpack.c.l.b16 %v675
    %v1993 = vunpack.c.h.b16 %v675
    %v1994 = vunpack.c.l.b16 %v676
    %v1995 = vunpack.c.h.b16 %v676
    %v1996 = vunpack.c.l.b16 %v677
    %v1997 = vunpack.c.h.b16 %v677
    %v1998 = vunpack.c.l.b16 %v678
    %v1999 = vunpack.c.h.b16 %v678
    %v2000 = vunpack.c.l.b16 %v679
    %v2001 = vunpack.c.h.b16 %v679
    %v2002 = vunpack.c.l.b16 %v680
    %v2003 = vunpack.c.h.b16 %v680
    %v2004 = vunpack.c.l.b16 %v681
    %v2005 = vunpack.c.h.b16 %v681
    %v2006 = vunpack.c.l.b16 %v682
    %v2007 = vunpack.c.h.b16 %v682
    %v2008 = vunpack.c.l.b16 %v683
    %v2009 = vunpack.c.h.b16 %v683
    %v2010 = vunpack.c.l.b16 %v684
    %v2011 = vunpack.c.h.b16 %v684
    %v2012 = vunpack.c.l.b16 %v685
    %v2013 = vunpack.c.h.b16 %v685
    %v2014 = vunpack.c.l.b16 %v686
    %v2015 = vunpack.c.h.b16 %v686
    %v2016 = vunpack.c.l.b16 %v687
    %v2017 = vunpack.c.h.b16 %v687
    %v2018 = vunpack.c.l.b16 %v688
    %v2019 = vunpack.c.h.b16 %v688
    %v2020 = vunpack.c.l.b16 %v689
    %v2021 = vunpack.c.h.b16 %v689
    %v2022 = vunpack.c.l.b16 %v690
    %v2023 = vunpack.c.h.b16 %v690
    %v2024 = vunpack.c.l.b16 %v691
    %v2025 = vunpack.c.h.b16 %v691
    %v2026 = vunpack.c.l.b16 %v692
    %v2027 = vunpack.c.h.b16 %v692
    %v2028 = vunpack.c.l.b16 %v693
    %v2029 = vunpack.c.h.b16 %v693
    %v2030 = vunpack.c.l.b16 %v694
    %v2031 = vunpack.c.h.b16 %v694
    %v2032 = vunpack.c.l.b16 %v695
    %v2033 = vunpack.c.h.b16 %v695
    %v2034 = vunpack.c.l.b16 %v696
    %v2035 = vunpack.c.h.b16 %v696
    %v2036 = vunpack.c.l.b16 %v697
    %v2037 = vunpack.c.h.b16 %v697
    %v2038 = vunpack.c.l.b16 %v698
    %v2039 = vunpack.c.h.b16 %v698
    %v2040 = vunpack.c.l.b16 %v699
    %v2041 = vunpack.c.h.b16 %v699
    %v2042 = vunpack.c.l.b16 %v700
    %v2043 = vunpack.c.h.b16 %v700
    %v2044 = vunpack.c.l.b16 %v701
    %v2045 = vunpack.c.h.b16 %v701
    %v2046 = vunpack.c.l.b16 %v702
    %v2047 = vunpack.c.h.b16 %v702
    %v2048 = vunpack.c.l.b16 %v703
    %v2049 = vunpack.c.h.b16 %v703
    %v2050 = vunpack.c.l.b16 %v704
    %v2051 = vunpack.c.h.b16 %v704
    %v2052 = vunpack.c.l.b16 %v705
    %v2053 = vunpack.c.h.b16 %v705
    %v2054 = vunpack.c.l.b16 %v706
    %v2055 = vunpack.c.h.b16 %v706
    %v2056 = vunpack.c.l.b16 %v707
    %v2057 = vunpack.c.h.b16 %v707
    %v2058 = vunpack.c.l.b16 %v708
    %v2059 = vunpack.c.h.b16 %v708
    %v2060 = vunpack.c.l.b16 %v709
    %v2061 = vunpack.c.h.b16 %v709
    %v2062 = vunpack.c.l.b16 %v710
    %v2063 = vunpack.c.h.b16 %v710
    %v2064 = vunpack.c.l.b16 %v711
    %v2065 = vunpack.c.h.b16 %v711
    %v2066 = vunpack.c.l.b16 %v712
    %v2067 = vunpack.c.h.b16 %v712
    %v2068 = vunpack.c.l.b16 %v713
    %v2069 = vunpack.c.h.b16 %v713
    %v2070 = vunpack.c.l.b16 %v714
    %v2071 = vunpack.c.h.b16 %v714
    %v2072 = vunpack.c.l.b16 %v715
    %v2073 = vunpack.c.h.b16 %v715
    %v2074 = vunpack.c.l.b16 %v716
    %v2075 = vunpack.c.h.b16 %v716
    %v2076 = vunpack.c.l.b16 %v717
    %v2077 = vunpack.c.h.b16 %v717
    %v2078 = vunpack.c.l.b16 %v718
    %v2079 = vunpack.c.h.b16 %v718
    %v2080 = vunpack.c.l.b16 %v719
    %v2081 = vunpack.c.h.b16 %v719
    %v2082 = vunpack.c.l.b16 %v720
    %v2083 = vunpack.c.h.b16 %v720
    %v2084 = vunpack.c.l.b16 %v721
    %v2085 = vunpack.c.h.b16 %v721
    %v2086 = vunpack.c.l.b16 %v722
    %v2087 = vunpack.c.h.b16 %v722
    %v2088 = vunpack.c.l.b16 %v723
    %v2089 = vunpack.c.h.b16 %v723
    %v2090 = vunpack.c.l.b16 %v724
    %v2091 = vunpack.c.h.b16 %v724
    %v2092 = vunpack.c.l.b16 %v725
    %v2093 = vunpack.c.h.b16 %v725
    %v2094 = vunpack.c.l.b16 %v726
    %v2095 = vunpack.c.h.b16 %v726
    %v2096 = vunpack.c.l.b16 %v727
    %v2097 = vunpack.c.h.b16 %v727
    %v2098 = vunpack.c.l.b16 %v728
    %v2099 = vunpack.c.h.b16 %v728
    %v2100 = vunpack.c.l.b16 %v729
    %v2101 = vunpack.c.h.b16 %v729
    %v2102 = vunpack.c.l.b16 %v730
    %v2103 = vunpack.c.h.b16 %v730
    %v2104 = vunpack.c.l.b16 %v731
    %v2105 = vunpack.c.h.b16 %v731
    %v2106 = vunpack.c.l.b16 %v732
    %v2107 = vunpack.c.h.b16 %v732
    %v2108 = vunpack.c.l.b16 %v733
    %v2109 = vunpack.c.h.b16 %v733
    %v2110 = vunpack.c.l.b16 %v734
    %v2111 = vunpack.c.h.b16 %v734
    %v2112 = vunpack.c.l.b16 %v735
    %v2113 = vunpack.c.h.b16 %v735
    %v2114 = vunpack.c.l.b16 %v736
    %v2115 = vunpack.c.h.b16 %v736
    %v2116 = vunpack.c.l.b16 %v737
    %v2117 = vunpack.c.h.b16 %v737
    %v2118 = vunpack.c.l.b16 %v738
    %v2119 = vunpack.c.h.b16 %v738
    %v2120 = vunpack.c.l.b16 %v739
    %v2121 = vunpack.c.h.b16 %v739
    %v2122 = vunpack.c.l.b16 %v740
    %v2123 = vunpack.c.h.b16 %v740
    %v2124 = vunpack.c.l.b16 %v741
    %v2125 = vunpack.c.h.b16 %v741
    %v2126 = vunpack.c.l.b16 %v742
    %v2127 = vunpack.c.h.b16 %v742
    %v2128 = vunpack.c.l.b16 %v743
    %v2129 = vunpack.c.h.b16 %v743
    %v2130 = vunpack.c.l.b16 %v744
    %v2131 = vunpack.c.h.b16 %v744
    %v2132 = vunpack.c.l.b16 %v745
    %v2133 = vunpack.c.h.b16 %v745
    %v2134 = vunpack.c.l.b16 %v746
    %v2135 = vunpack.c.h.b16 %v746
    %v2136 = vunpack.c.l.b16 %v747
    %v2137 = vunpack.c.h.b16 %v747
    %v2138 = vunpack.c.l.b16 %v748
    %v2139 = vunpack.c.h.b16 %v748
    %v2140 = vunpack.c.l.b16 %v749
    %v2141 = vunpack.c.h.b16 %v749
    %v2142 = vunpack.c.l.b16 %v750
    %v2143 = vunpack.c.h.b16 %v750
    %v2144 = vunpack.c.l.b16 %v751
    %v2145 = vunpack.c.h.b16 %v751
    %v2146 = vunpack.c.l.b16 %v752
    %v2147 = vunpack.c.h.b16 %v752
    %v2148 = vunpack.c.l.b16 %v753
    %v2149 = vunpack.c.h.b16 %v753
    %v2150 = vunpack.c.l.b16 %v754
    %v2151 = vunpack.c.h.b16 %v754
    %v2152 = vunpack.c.l.b16 %v755
    %v2153 = vunpack.c.h.b16 %v755
    %v2154 = vunpack.c.l.b16 %v756
    %v2155 = vunpack.c.h.b16 %v756
    %v2156 = vunpack.c.l.b16 %v757
    %v2157 = vunpack.c.h.b16 %v757
    %v2158 = vunpack.c.l.b16 %v758
    %v2159 = vunpack.c.h.b16 %v758
    %v2160 = vunpack.c.l.b16 %v759
    %v2161 = vunpack.c.h.b16 %v759
    %v2162 = vunpack.c.l.b16 %v760
    %v2163 = vunpack.c.h.b16 %v760
    %v2164 = vunpack.c.l.b16 %v761
    %v2165 = vunpack.c.h.b16 %v761
    %v2166 = vunpack.c.l.b16 %v762
    %v2167 = vunpack.c.h.b16 %v762
    %v2168 = vunpack.c.l.b16 %v763
    %v2169 = vunpack.c.h.b16 %v763
    %v2170 = vunpack.c.l.b16 %v764
    %v2171 = vunpack.c.h.b16 %v764
    %v2172 = vunpack.c.l.b16 %v765
    %v2173 = vunpack.c.h.b16 %v765
    %v2174 = vunpack.c.l.b16 %v766
    %v2175 = vunpack.c.h.b16 %v766
    %v2176 = vunpack.c.l.b16 %v767
    %v2177 = vunpack.c.h.b16 %v767
    %v2178 = vunpack.c.l.b16 %v768
    %v2179 = vunpack.c.h.b16 %v768
    %v2180 = vunpack.c.l.b16 %v769
    %v2181 = vunpack.c.h.b16 %v769
    %v2182 = vunpack.c.l.b16 %v770
    %v2183 = vunpack.c.h.b16 %v770
    %v2184 = vunpack.c.l.b16 %v771
    %v2185 = vunpack.c.h.b16 %v771
    %v2186 = vunpack.c.l.b16 %v772
    %v2187 = vunpack.c.h.b16 %v772
    %v2188 = vunpack.c.l.b16 %v773
    %v2189 = vunpack.c.h.b16 %v773
    %v2190 = vunpack.c.l.b16 %v774
    %v2191 = vunpack.c.h.b16 %v774
    %v2192 = vunpack.c.l.b16 %v775
    %v2193 = vunpack.c.h.b16 %v775
    %v2194 = vunpack.c.l.b16 %v776
    %v2195 = vunpack.c.h.b16 %v776
    %v2196 = vunpack.c.l.b16 %v777
    %v2197 = vunpack.c.h.b16 %v777
    %v2198 = vunpack.c.l.b16 %v778
    %v2199 = vunpack.c.h.b16 %v778
    %v2200 = vunpack.c.l.b16 %v779
    %v2201 = vunpack.c.h.b16 %v779
    %v2202 = vunpack.c.l.b16 %v780
    %v2203 = vunpack.c.h.b16 %v780
    %v2204 = vunpack.c.l.b16 %v781
    %v2205 = vunpack.c.h.b16 %v781
    %v2206 = vunpack.c.l.b16 %v782
    %v2207 = vunpack.c.h.b16 %v782
    %v2208 = vunpack.c.l.b16 %v783
    %v2209 = vunpack.c.h.b16 %v783
    %v2210 = vunpack.c.l.b16 %v784
    %v2211 = vunpack.c.h.b16 %v784
    %v2212 = vunpack.c.l.b16 %v785
    %v2213 = vunpack.c.h.b16 %v785
    %v2214 = vunpack.c.l.b16 %v786
    %v2215 = vunpack.c.h.b16 %v786
    %v2216 = vunpack.c.l.b16 %v787
    %v2217 = vunpack.c.h.b16 %v787
    %v2218 = vunpack.c.l.b16 %v788
    %v2219 = vunpack.c.h.b16 %v788
    %v2220 = vunpack.c.l.b16 %v789
    %v2221 = vunpack.c.h.b16 %v789
    %v2222 = vunpack.c.l.b16 %v790
    %v2223 = vunpack.c.h.b16 %v790
    %v2224 = vunpack.c.l.b16 %v791
    %v2225 = vunpack.c.h.b16 %v791
    %v2226 = vunpack.c.l.b16 %v792
    %v2227 = vunpack.c.h.b16 %v792
    %v2228 = vunpack.c.l.b16 %v793
    %v2229 = vunpack.c.h.b16 %v793
    %v2230 = vunpack.c.l.b16 %v794
    %v2231 = vunpack.c.h.b16 %v794
    %v2232 = vunpack.c.l.b16 %v795
    %v2233 = vunpack.c.h.b16 %v795
    %v2234 = vunpack.c.l.b16 %v796
    %v2235 = vunpack.c.h.b16 %v796
    %v2236 = vunpack.c.l.b16 %v797
    %v2237 = vunpack.c.h.b16 %v797
    %v2238 = vunpack.c.l.b16 %v798
    %v2239 = vunpack.c.h.b16 %v798
    %v2240 = vunpack.c.l.b16 %v799
    %v2241 = vunpack.c.h.b16 %v799
    %v2242 = vunpack.c.l.b16 %v800
    %v2243 = vunpack.c.h.b16 %v800
    %v2244 = vunpack.c.l.b16 %v801
    %v2245 = vunpack.c.h.b16 %v801
    %v2246 = vunpack.c.l.b16 %v802
    %v2247 = vunpack.c.h.b16 %v802
    %v2248 = vunpack.c.l.b16 %v803
    %v2249 = vunpack.c.h.b16 %v803
    %v2250 = vunpack.c.l.b16 %v804
    %v2251 = vunpack.c.h.b16 %v804
    %v2252 = vunpack.c.l.b16 %v805
    %v2253 = vunpack.c.h.b16 %v805
    %v2254 = vunpack.c.l.b16 %v806
    %v2255 = vunpack.c.h.b16 %v806
    %v2256 = vunpack.c.l.b16 %v807
    %v2257 = vunpack.c.h.b16 %v807
    %v2258 = vunpack.c.l.b16 %v808
    %v2259 = vunpack.c.h.b16 %v808
    %v2260 = vunpack.c.l.b16 %v809
    %v2261 = vunpack.c.h.b16 %v809
    %v2262 = vunpack.c.l.b16 %v810
    %v2263 = vunpack.c.h.b16 %v810
    %v2264 = vunpack.c.l.b16 %v811
    %v2265 = vunpack.c.h.b16 %v811
    %v2266 = vunpack.c.l.b16 %v812
    %v2267 = vunpack.c.h.b16 %v812
    %v2268 = vunpack.c.l.b16 %v813
    %v2269 = vunpack.c.h.b16 %v813
    %v2270 = vunpack.c.l.b16 %v814
    %v2271 = vunpack.c.h.b16 %v814
    %v2272 = vunpack.c.l.b16 %v815
    %v2273 = vunpack.c.h.b16 %v815
    %v2274 = vunpack.c.l.b16 %v816
    %v2275 = vunpack.c.h.b16 %v816
    %v2276 = vunpack.c.l.b16 %v817
    %v2277 = vunpack.c.h.b16 %v817
    %v2278 = vunpack.c.l.b16 %v818
    %v2279 = vunpack.c.h.b16 %v818
    %v2280 = vunpack.c.l.b16 %v819
    %v2281 = vunpack.c.h.b16 %v819
    %v2282 = vunpack.c.l.b16 %v820
    %v2283 = vunpack.c.h.b16 %v820
    %v2284 = vunpack.c.l.b16 %v821
    %v2285 = vunpack.c.h.b16 %v821
    %v2286 = vunpack.c.l.b16 %v822
    %v2287 = vunpack.c.h.b16 %v822
    %v2288 = vunpack.c.l.b16 %v823
    %v2289 = vunpack.c.h.b16 %v823
    %v2290 = vunpack.c.l.b16 %v824
    %v2291 = vunpack.c.h.b16 %v824
    %v2292 = vunpack.c.l.b16 %v825
    %v2293 = vunpack.c.h.b16 %v825
    %v2294 = vunpack.c.l.b16 %v826
    %v2295 = vunpack.c.h.b16 %v826
    %v2296 = vunpack.c.l.b16 %v827
    %v2297 = vunpack.c.h.b16 %v827
    %v2298 = vunpack.c.l.b16 %v828
    %v2299 = vunpack.c.h.b16 %v828
    %v2300 = vunpack.c.l.b16 %v829
    %v2301 = vunpack.c.h.b16 %v829
    %v2302 = vunpack.c.l.b16 %v830
    %v2303 = vunpack.c.h.b16 %v830
    %v2304 = vunpack.c.l.b16 %v831
    %v2305 = vunpack.c.h.b16 %v831
    %v2306 = vunpack.c.l.b16 %v832
    %v2307 = vunpack.c.h.b16 %v832
    %v2308 = vunpack.c.l.b16 %v833
    %v2309 = vunpack.c.h.b16 %v833
    %v2310 = vunpack.c.l.b16 %v834
    %v2311 = vunpack.c.h.b16 %v834
    %v2312 = vunpack.c.l.b16 %v835
    %v2313 = vunpack.c.h.b16 %v835
    %v2314 = vunpack.c.l.b16 %v836
    %v2315 = vunpack.c.h.b16 %v836
    %v2316 = vunpack.c.l.b16 %v837
    %v2317 = vunpack.c.h.b16 %v837
    %v2318 = vunpack.c.l.b16 %v838
    %v2319 = vunpack.c.h.b16 %v838
    %v2320 = vunpack.c.l.b16 %v839
    %v2321 = vunpack.c.h.b16 %v839
    %v2322 = vunpack.c.l.b16 %v840
    %v2323 = vunpack.c.h.b16 %v840
    %v2324 = vunpack.c.l.b16 %v841
    %v2325 = vunpack.c.h.b16 %v841
    %v2326 = vunpack.c.l.b16 %v842
    %v2327 = vunpack.c.h.b16 %v842
    %v2328 = vunpack.c.l.b16 %v843
    %v2329 = vunpack.c.h.b16 %v843
    %v2330 = vunpack.c.l.b16 %v844
    %v2331 = vunpack.c.h.b16 %v844
    %v2332 = vunpack.c.l.b16 %v845
    %v2333 = vunpack.c.h.b16 %v845
    %v2334 = vunpack.c.l.b16 %v846
    %v2335 = vunpack.c.h.b16 %v846
    %v2336 = vunpack.c.l.b16 %v847
    %v2337 = vunpack.c.h.b16 %v847
    %v2338 = vunpack.c.l.b16 %v848
    %v2339 = vunpack.c.h.b16 %v848
    %v2340 = vunpack.c.l.b16 %v849
    %v2341 = vunpack.c.h.b16 %v849
    %v2342 = vunpack.c.l.b16 %v850
    %v2343 = vunpack.c.h.b16 %v850
    %v2344 = vunpack.c.l.b16 %v851
    %v2345 = vunpack.c.h.b16 %v851
    %v2346 = vunpack.c.l.b16 %v852
    %v2347 = vunpack.c.h.b16 %v852
    %v2348 = vunpack.c.l.b16 %v853
    %v2349 = vunpack.c.h.b16 %v853
    %v2350 = vunpack.c.l.b16 %v854
    %v2351 = vunpack.c.h.b16 %v854
    %v2352 = vunpack.c.l.b16 %v855
    %v2353 = vunpack.c.h.b16 %v855
    %v2354 = vunpack.c.l.b16 %v856
    %v2355 = vunpack.c.h.b16 %v856
    %v2356 = vunpack.c.l.b16 %v857
    %v2357 = vunpack.c.h.b16 %v857
    %v2358 = vunpack.c.l.b16 %v858
    %v2359 = vunpack.c.h.b16 %v858
    %v2360 = vunpack.c.l.b16 %v859
    %v2361 = vunpack.c.h.b16 %v859
    %v2362 = vunpack.c.l.b16 %v860
    %v2363 = vunpack.c.h.b16 %v860
    %v2364 = vunpack.c.l.b16 %v861
    %v2365 = vunpack.c.h.b16 %v861
    %v2366 = vunpack.c.l.b16 %v862
    %v2367 = vunpack.c.h.b16 %v862
    %v2368 = vunpack.c.l.b16 %v863
    %v2369 = vunpack.c.h.b16 %v863
    %v2370 = vunpack.c.l.b16 %v864
    %v2371 = vunpack.c.h.b16 %v864
    %v2372 = vunpack.c.l.b16 %v865
    %v2373 = vunpack.c.h.b16 %v865
    %v2374 = vunpack.c.l.b16 %v866
    %v2375 = vunpack.c.h.b16 %v866
    %v2376 = vunpack.c.l.b16 %v867
    %v2377 = vunpack.c.h.b16 %v867
    %v2378 = vunpack.c.l.b16 %v868
    %v2379 = vunpack.c.h.b16 %v868
    %v2380 = vunpack.c.l.b16 %v869
    %v2381 = vunpack.c.h.b16 %v869
    %v2382 = vunpack.c.l.b16 %v870
    %v2383 = vunpack.c.h.b16 %v870
    %v2384 = vunpack.c.l.b16 %v871
    %v2385 = vunpack.c.h.b16 %v871
    %v2386 = vunpack.c.l.b16 %v872
    %v2387 = vunpack.c.h.b16 %v872
    %v2388 = vunpack.c.l.b16 %v873
    %v2389 = vunpack.c.h.b16 %v873
    %v2390 = vunpack.c.l.b16 %v874
    %v2391 = vunpack.c.h.b16 %v874
    %v2392 = vunpack.c.l.b16 %v875
    %v2393 = vunpack.c.h.b16 %v875
    %v2394 = vunpack.c.l.b16 %v876
    %v2395 = vunpack.c.h.b16 %v876
    %v2396 = vunpack.c.l.b16 %v877
    %v2397 = vunpack.c.h.b16 %v877
    %v2398 = vunpack.c.l.b16 %v878
    %v2399 = vunpack.c.h.b16 %v878
    %v2400 = vunpack.c.l.b16 %v879
    %v2401 = vunpack.c.h.b16 %v879
    %v2402 = vunpack.c.l.b16 %v880
    %v2403 = vunpack.c.h.b16 %v880
    %v2404 = vunpack.c.l.b16 %v881
    %v2405 = vunpack.c.h.b16 %v881
    %v2406 = vunpack.c.l.b16 %v882
    %v2407 = vunpack.c.h.b16 %v882
    %v2408 = vunpack.c.l.b16 %v883
    %v2409 = vunpack.c.h.b16 %v883
    %v2410 = vunpack.c.l.b16 %v884
    %v2411 = vunpack.c.h.b16 %v884
    %v2412 = vunpack.c.l.b16 %v885
    %v2413 = vunpack.c.h.b16 %v885
    %v2414 = vunpack.c.l.b16 %v886
    %v2415 = vunpack.c.h.b16 %v886
    %v2416 = vunpack.c.l.b16 %v887
    %v2417 = vunpack.c.h.b16 %v887
    %v2418 = vunpack.c.l.b16 %v888
    %v2419 = vunpack.c.h.b16 %v888
    %v2420 = vunpack.c.l.b16 %v889
    %v2421 = vunpack.c.h.b16 %v889
    %v2422 = vunpack.c.l.b16 %v890
    %v2423 = vunpack.c.h.b16 %v890
    %v2424 = vunpack.c.l.b16 %v891
    %v2425 = vunpack.c.h.b16 %v891
    %v2426 = vunpack.c.l.b16 %v892
    %v2427 = vunpack.c.h.b16 %v892
    %v2428 = vunpack.c.l.b16 %v893
    %v2429 = vunpack.c.h.b16 %v893
    %v2430 = vunpack.c.l.b16 %v894
    %v2431 = vunpack.c.h.b16 %v894
    %v2432 = vunpack.c.l.b16 %v895
    %v2433 = vunpack.c.h.b16 %v895
    %v2434 = vunpack.c.l.b16 %v896
    %v2435 = vunpack.c.h.b16 %v896
    %v2436 = vunpack.c.l.b16 %v897
    %v2437 = vunpack.c.h.b16 %v897
    %v2438 = vunpack.c.l.b16 %v898
    %v2439 = vunpack.c.h.b16 %v898
    %v2440 = vunpack.c.l.b16 %v899
    %v2441 = vunpack.c.h.b16 %v899
    %v2442 = vunpack.c.l.b16 %v900
    %v2443 = vunpack.c.h.b16 %v900
    %v2444 = vunpack.c.l.b16 %v901
    %v2445 = vunpack.c.h.b16 %v901
    %v2446 = vunpack.c.l.b16 %v902
    %v2447 = vunpack.c.h.b16 %v902
    %v2448 = vunpack.c.l.b16 %v903
    %v2449 = vunpack.c.h.b16 %v903
    %v2450 = vunpack.c.l.b16 %v904
    %v2451 = vunpack.c.h.b16 %v904
    %v2452 = vunpack.c.l.b16 %v905
    %v2453 = vunpack.c.h.b16 %v905
    %v2454 = vunpack.c.l.b16 %v906
    %v2455 = vunpack.c.h.b16 %v906
    %v2456 = vunpack.c.l.b16 %v907
    %v2457 = vunpack.c.h.b16 %v907
    %v2458 = vunpack.c.l.b16 %v908
    %v2459 = vunpack.c.h.b16 %v908
    %v2460 = vunpack.c.l.b16 %v909
    %v2461 = vunpack.c.h.b16 %v909
    %v2462 = vunpack.c.l.b16 %v910
    %v2463 = vunpack.c.h.b16 %v910
    %v2464 = vunpack.c.l.b16 %v911
    %v2465 = vunpack.c.h.b16 %v911
    %v2466 = vunpack.c.l.b16 %v912
    %v2467 = vunpack.c.h.b16 %v912
    %v2468 = vunpack.c.l.b16 %v913
    %v2469 = vunpack.c.h.b16 %v913
    %v2470 = vunpack.c.l.b16 %v914
    %v2471 = vunpack.c.h.b16 %v914
    %v2472 = vunpack.c.l.b16 %v915
    %v2473 = vunpack.c.h.b16 %v915
    %v2474 = vunpack.c.l.b16 %v916
    %v2475 = vunpack.c.h.b16 %v916
    %v2476 = vunpack.c.l.b16 %v917
    %v2477 = vunpack.c.h.b16 %v917
    %v2478 = vunpack.c.l.b16 %v918
    %v2479 = vunpack.c.h.b16 %v918
    %v2480 = vunpack.c.l.b16 %v919
    %v2481 = vunpack.c.h.b16 %v919
    %v2482 = vunpack.c.l.b16 %v920
    %v2483 = vunpack.c.h.b16 %v920
    %v2484 = vunpack.c.l.b16 %v921
    %v2485 = vunpack.c.h.b16 %v921
    %v2486 = vunpack.c.l.b16 %v922
    %v2487 = vunpack.c.h.b16 %v922
    %v2488 = vunpack.c.l.b16 %v923
    %v2489 = vunpack.c.h.b16 %v923
    %v2490 = vunpack.c.l.b16 %v924
    %v2491 = vunpack.c.h.b16 %v924
    %v2492 = vunpack.c.l.b16 %v925
    %v2493 = vunpack.c.h.b16 %v925
    %v2494 = vunpack.c.l.b16 %v926
    %v2495 = vunpack.c.h.b16 %v926
    %v2496 = vunpack.c.l.b16 %v927
    %v2497 = vunpack.c.h.b16 %v927
    %v2498 = vunpack.c.l.b16 %v928
    %v2499 = vunpack.c.h.b16 %v928
    %v2500 = vunpack.c.l.b16 %v929
    %v2501 = vunpack.c.h.b16 %v929
    %v2502 = vunpack.c.l.b16 %v930
    %v2503 = vunpack.c.h.b16 %v930
    %v2504 = vunpack.c.l.b16 %v931
    %v2505 = vunpack.c.h.b16 %v931
    %v2506 = vunpack.c.l.b16 %v932
    %v2507 = vunpack.c.h.b16 %v932
    %v2508 = vunpack.c.l.b16 %v933
    %v2509 = vunpack.c.h.b16 %v933
    %v2510 = vunpack.c.l.b16 %v934
    %v2511 = vunpack.c.h.b16 %v934
    %v2512 = vunpack.c.l.b16 %v935
    %v2513 = vunpack.c.h.b16 %v935
    %v2514 = vpack.c.b16 %v1498, %v1490
    %v2515 = vpack.c.b16 %v1499, %v1491
    %v2516 = vpack.c.b16 %v1500, %v1492
    %v2517 = vpack.c.b16 %v1501, %v1493
    %v2518 = vpack.c.b16 %v1502, %v1494
    %v2519 = vpack.c.b16 %v1503, %v1495
    %v2520 = vpack.c.b16 %v1504, %v1496
    %v2521 = vpack.c.b16 %v1505, %v1497
    %v2522 = vpack.c.b16 %v1514, %v1506
    %v2523 = vpack.c.b16 %v1515, %v1507
    %v2524 = vpack.c.b16 %v1516, %v1508
    %v2525 = vpack.c.b16 %v1517, %v1509
    %v2526 = vpack.c.b16 %v1518, %v1510
    %v2527 = vpack.c.b16 %v1519, %v1511
    %v2528 = vpack.c.b16 %v1520, %v1512
    %v2529 = vpack.c.b16 %v1521, %v1513
    %v2530 = vpack.c.b16 %v1530, %v1522
    %v2531 = vpack.c.b16 %v1531, %v1523
    %v2532 = vpack.c.b16 %v1532, %v1524
    %v2533 = vpack.c.b16 %v1533, %v1525
    %v2534 = vpack.c.b16 %v1534, %v1526
    %v2535 = vpack.c.b16 %v1535, %v1527
    %v2536 = vpack.c.b16 %v1536, %v1528
    %v2537 = vpack.c.b16 %v1537, %v1529
    %v2538 = vpack.c.b16 %v1546, %v1538
    %v2539 = vpack.c.b16 %v1547, %v1539
    %v2540 = vpack.c.b16 %v1548, %v1540
    %v2541 = vpack.c.b16 %v1549, %v1541
    %v2542 = vpack.c.b16 %v1550, %v1542
    %v2543 = vpack.c.b16 %v1551, %v1543
    %v2544 = vpack.c.b16 %v1552, %v1544
    %v2545 = vpack.c.b16 %v1553, %v1545
    %v2546 = vpack.c.b16 %v1562, %v1554
    %v2547 = vpack.c.b16 %v1563, %v1555
    %v2548 = vpack.c.b16 %v1564, %v1556
    %v2549 = vpack.c.b16 %v1565, %v1557
    %v2550 = vpack.c.b16 %v1566, %v1558
    %v2551 = vpack.c.b16 %v1567, %v1559
    %v2552 = vpack.c.b16 %v1568, %v1560
    %v2553 = vpack.c.b16 %v1569, %v1561
    %v2554 = vpack.c.b16 %v1578, %v1570
    %v2555 = vpack.c.b16 %v1579, %v1571
    %v2556 = vpack.c.b16 %v1580, %v1572
    %v2557 = vpack.c.b16 %v1581, %v1573
    %v2558 = vpack.c.b16 %v1582, %v1574
    %v2559 = vpack.c.b16 %v1583, %v1575
    %v2560 = vpack.c.b16 %v1584, %v1576
    %v2561 = vpack.c.b16 %v1585, %v1577
    %v2562 = vpack.c.b16 %v1594, %v1586
    %v2563 = vpack.c.b16 %v1595, %v1587
    %v2564 = vpack.c.b16 %v1596, %v1588
    %v2565 = vpack.c.b16 %v1597, %v1589
    %v2566 = vpack.c.b16 %v1598, %v1590
    %v2567 = vpack.c.b16 %v1599, %v1591
    %v2568 = vpack.c.b16 %v1600, %v1592
    %v2569 = vpack.c.b16 %v1601, %v1593
    %v2570 = vpack.c.b16 %v1610, %v1602
    %v2571 = vpack.c.b16 %v1611, %v1603
    %v2572 = vpack.c.b16 %v1612, %v1604
    %v2573 = vpack.c.b16 %v1613, %v1605
    %v2574 = vpack.c.b16 %v1614, %v1606
    %v2575 = vpack.c.b16 %v1615, %v1607
    %v2576 = vpack.c.b16 %v1616, %v1608
    %v2577 = vpack.c.b16 %v1617, %v1609
    %v2578 = vpack.c.b16 %v1626, %v1618
    %v2579 = vpack.c.b16 %v1627, %v1619
    %v2580 = vpack.c.b16 %v1628, %v1620
    %v2581 = vpack.c.b16 %v1629, %v1621
    %v2582 = vpack.c.b16 %v1630, %v1622
    %v2583 = vpack.c.b16 %v1631, %v1623
    %v2584 = vpack.c.b16 %v1632, %v1624
    %v2585 = vpack.c.b16 %v1633, %v1625
    %v2586 = vpack.c.b16 %v1642, %v1634
    %v2587 = vpack.c.b16 %v1643, %v1635
    %v2588 = vpack.c.b16 %v1644, %v1636
    %v2589 = vpack.c.b16 %v1645, %v1637
    %v2590 = vpack.c.b16 %v1646, %v1638
    %v2591 = vpack.c.b16 %v1647, %v1639
    %v2592 = vpack.c.b16 %v1648, %v1640
    %v2593 = vpack.c.b16 %v1649, %v1641
    %v2594 = vpack.c.b16 %v1658, %v1650
    %v2595 = vpack.c.b16 %v1659, %v1651
    %v2596 = vpack.c.b16 %v1660, %v1652
    %v2597 = vpack.c.b16 %v1661, %v1653
    %v2598 = vpack.c.b16 %v1662, %v1654
    %v2599 = vpack.c.b16 %v1663, %v1655
    %v2600 = vpack.c.b16 %v1664, %v1656
    %v2601 = vpack.c.b16 %v1665, %v1657
    %v2602 = vpack.c.b16 %v1674, %v1666
    %v2603 = vpack.c.b16 %v1675, %v1667
    %v2604 = vpack.c.b16 %v1676, %v1668
    %v2605 = vpack.c.b16 %v1677, %v1669
    %v2606 = vpack.c.b16 %v1678, %v1670
    %v2607 = vpack.c.b16 %v1679, %v1671
    %v2608 = vpack.c.b16 %v1680, %v1672
    %v2609 = vpack.c.b16 %v1681, %v1673
    %v2610 = vpack.c.b16 %v1690, %v1682
    %v2611 = vpack.c.b16 %v1691, %v1683
    %v2612 = vpack.c.b16 %v1692, %v1684
    %v2613 = vpack.c.b16 %v1693, %v1685
    %v2614 = vpack.c.b16 %v1694, %v1686
    %v2615 = vpack.c.b16 %v1695, %v1687
    %v2616 = vpack.c.b16 %v1696, %v1688
    %v2617 = vpack.c.b16 %v1697, %v1689
    %v2618 = vpack.c.b16 %v1706, %v1698
    %v2619 = vpack.c.b16 %v1707, %v1699
    %v2620 = vpack.c.b16 %v1708, %v1700
    %v2621 = vpack.c.b16 %v1709, %v1701
    %v2622 = vpack.c.b16 %v1710, %v1702
    %v2623 = vpack.c.b16 %v1711, %v1703
    %v2624 = vpack.c.b16 %v1712, %v1704
    %v2625 = vpack.c.b16 %v1713, %v1705
    %v2626 = vpack.c.b16 %v1722, %v1714
    %v2627 = vpack.c.b16 %v1723, %v1715
    %v2628 = vpack.c.b16 %v1724, %v1716
    %v2629 = vpack.c.b16 %v1725, %v1717
    %v2630 = vpack.c.b16 %v1726, %v1718
    %v2631 = vpack.c.b16 %v1727, %v1719
    %v2632 = vpack.c.b16 %v1728, %v1720
    %v2633 = vpack.c.b16 %v1729, %v1721
    %v2634 = vpack.c.b16 %v1738, %v1730
    %v2635 = vpack.c.b16 %v1739, %v1731
    %v2636 = vpack.c.b16 %v1740, %v1732
    %v2637 = vpack.c.b16 %v1741, %v1733
    %v2638 = vpack.c.b16 %v1742, %v1734
    %v2639 = vpack.c.b16 %v1743, %v1735
    %v2640 = vpack.c.b16 %v1744, %v1736
    %v2641 = vpack.c.b16 %v1745, %v1737
    %v2642 = vpack.c.b16 %v1754, %v1746
    %v2643 = vpack.c.b16 %v1755, %v1747
    %v2644 = vpack.c.b16 %v1756, %v1748
    %v2645 = vpack.c.b16 %v1757, %v1749
    %v2646 = vpack.c.b16 %v1758, %v1750
    %v2647 = vpack.c.b16 %v1759, %v1751
    %v2648 = vpack.c.b16 %v1760, %v1752
    %v2649 = vpack.c.b16 %v1761, %v1753
    %v2650 = vpack.c.b16 %v1770, %v1762
    %v2651 = vpack.c.b16 %v1771, %v1763
    %v2652 = vpack.c.b16 %v1772, %v1764
    %v2653 = vpack.c.b16 %v1773, %v1765
    %v2654 = vpack.c.b16 %v1774, %v1766
    %v2655 = vpack.c.b16 %v1775, %v1767
    %v2656 = vpack.c.b16 %v1776, %v1768
    %v2657 = vpack.c.b16 %v1777, %v1769
    %v2658 = vpack.c.b16 %v1786, %v1778
    %v2659 = vpack.c.b16 %v1787, %v1779
    %v2660 = vpack.c.b16 %v1788, %v1780
    %v2661 = vpack.c.b16 %v1789, %v1781
    %v2662 = vpack.c.b16 %v1790, %v1782
    %v2663 = vpack.c.b16 %v1791, %v1783
    %v2664 = vpack.c.b16 %v1792, %v1784
    %v2665 = vpack.c.b16 %v1793, %v1785
    %v2666 = vpack.c.b16 %v1802, %v1794
    %v2667 = vpack.c.b16 %v1803, %v1795
    %v2668 = vpack.c.b16 %v1804, %v1796
    %v2669 = vpack.c.b16 %v1805, %v1797
    %v2670 = vpack.c.b16 %v1806, %v1798
    %v2671 = vpack.c.b16 %v1807, %v1799
    %v2672 = vpack.c.b16 %v1808, %v1800
    %v2673 = vpack.c.b16 %v1809, %v1801
    %v2674 = vpack.c.b16 %v1818, %v1810
    %v2675 = vpack.c.b16 %v1819, %v1811
    %v2676 = vpack.c.b16 %v1820, %v1812
    %v2677 = vpack.c.b16 %v1821, %v1813
    %v2678 = vpack.c.b16 %v1822, %v1814
    %v2679 = vpack.c.b16 %v1823, %v1815
    %v2680 = vpack.c.b16 %v1824, %v1816
    %v2681 = vpack.c.b16 %v1825, %v1817
    %v2682 = vpack.c.b16 %v1834, %v1826
    %v2683 = vpack.c.b16 %v1835, %v1827
    %v2684 = vpack.c.b16 %v1836, %v1828
    %v2685 = vpack.c.b16 %v1837, %v1829
    %v2686 = vpack.c.b16 %v1838, %v1830
    %v2687 = vpack.c.b16 %v1839, %v1831
    %v2688 = vpack.c.b16 %v1840, %v1832
    %v2689 = vpack.c.b16 %v1841, %v1833
    %v2690 = vpack.c.b16 %v1850, %v1842
    %v2691 = vpack.c.b16 %v1851, %v1843
    %v2692 = vpack.c.b16 %v1852, %v1844
    %v2693 = vpack.c.b16 %v1853, %v1845
    %v2694 = vpack.c.b16 %v1854, %v1846
    %v2695 = vpack.c.b16 %v1855, %v1847
    %v2696 = vpack.c.b16 %v1856, %v1848
    %v2697 = vpack.c.b16 %v1857, %v1849
    %v2698 = vpack.c.b16 %v1866, %v1858
    %v2699 = vpack.c.b16 %v1867, %v1859
    %v2700 = vpack.c.b16 %v1868, %v1860
    %v2701 = vpack.c.b16 %v1869, %v1861
    %v2702 = vpack.c.b16 %v1870, %v1862
    %v2703 = vpack.c.b16 %v1871, %v1863
    %v2704 = vpack.c.b16 %v1872, %v1864
    %v2705 = vpack.c.b16 %v1873, %v1865
    %v2706 = vpack.c.b16 %v1882, %v1874
    %v2707 = vpack.c.b16 %v1883, %v1875
    %v2708 = vpack.c.b16 %v1884, %v1876
    %v2709 = vpack.c.b16 %v1885, %v1877
    %v2710 = vpack.c.b16 %v1886, %v1878
    %v2711 = vpack.c.b16 %v1887, %v1879
    %v2712 = vpack.c.b16 %v1888, %v1880
    %v2713 = vpack.c.b16 %v1889, %v1881
    %v2714 = vpack.c.b16 %v1898, %v1890
    %v2715 = vpack.c.b16 %v1899, %v1891
    %v2716 = vpack.c.b16 %v1900, %v1892
    %v2717 = vpack.c.b16 %v1901, %v1893
    %v2718 = vpack.c.b16 %v1902, %v1894
    %v2719 = vpack.c.b16 %v1903, %v1895
    %v2720 = vpack.c.b16 %v1904, %v1896
    %v2721 = vpack.c.b16 %v1905, %v1897
    %v2722 = vpack.c.b16 %v1914, %v1906
    %v2723 = vpack.c.b16 %v1915, %v1907
    %v2724 = vpack.c.b16 %v1916, %v1908
    %v2725 = vpack.c.b16 %v1917, %v1909
    %v2726 = vpack.c.b16 %v1918, %v1910
    %v2727 = vpack.c.b16 %v1919, %v1911
    %v2728 = vpack.c.b16 %v1920, %v1912
    %v2729 = vpack.c.b16 %v1921, %v1913
    %v2730 = vpack.c.b16 %v1930, %v1922
    %v2731 = vpack.c.b16 %v1931, %v1923
    %v2732 = vpack.c.b16 %v1932, %v1924
    %v2733 = vpack.c.b16 %v1933, %v1925
    %v2734 = vpack.c.b16 %v1934, %v1926
    %v2735 = vpack.c.b16 %v1935, %v1927
    %v2736 = vpack.c.b16 %v1936, %v1928
    %v2737 = vpack.c.b16 %v1937, %v1929
    %v2738 = vpack.c.b16 %v1946, %v1938
    %v2739 = vpack.c.b16 %v1947, %v1939
    %v2740 = vpack.c.b16 %v1948, %v1940
    %v2741 = vpack.c.b16 %v1949, %v1941
    %v2742 = vpack.c.b16 %v1950, %v1942
    %v2743 = vpack.c.b16 %v1951, %v1943
    %v2744 = vpack.c.b16 %v1952, %v1944
    %v2745 = vpack.c.b16 %v1953, %v1945
    %v2746 = vpack.c.b16 %v1962, %v1954
    %v2747 = vpack.c.b16 %v1963, %v1955
    %v2748 = vpack.c.b16 %v1964, %v1956
    %v2749 = vpack.c.b16 %v1965, %v1957
    %v2750 = vpack.c.b16 %v1966, %v1958
    %v2751 = vpack.c.b16 %v1967, %v1959
    %v2752 = vpack.c.b16 %v1968, %v1960
    %v2753 = vpack.c.b16 %v1969, %v1961
    %v2754 = vpack.c.b16 %v1978, %v1970
    %v2755 = vpack.c.b16 %v1979, %v1971
    %v2756 = vpack.c.b16 %v1980, %v1972
    %v2757 = vpack.c.b16 %v1981, %v1973
    %v2758 = vpack.c.b16 %v1982, %v1974
    %v2759 = vpack.c.b16 %v1983, %v1975
    %v2760 = vpack.c.b16 %v1984, %v1976
    %v2761 = vpack.c.b16 %v1985, %v1977
    %v2762 = vpack.c.b16 %v1994, %v1986
    %v2763 = vpack.c.b16 %v1995, %v1987
    %v2764 = vpack.c.b16 %v1996, %v1988
    %v2765 = vpack.c.b16 %v1997, %v1989
    %v2766 = vpack.c.b16 %v1998, %v1990
    %v2767 = vpack.c.b16 %v1999, %v1991
    %v2768 = vpack.c.b16 %v2000, %v1992
    %v2769 = vpack.c.b16 %v2001, %v1993
    %v2770 = vpack.c.b16 %v2010, %v2002
    %v2771 = vpack.c.b16 %v2011, %v2003
    %v2772 = vpack.c.b16 %v2012, %v2004
    %v2773 = vpack.c.b16 %v2013, %v2005
    %v2774 = vpack.c.b16 %v2014, %v2006
    %v2775 = vpack.c.b16 %v2015, %v2007
    %v2776 = vpack.c.b16 %v2016, %v2008
    %v2777 = vpack.c.b16 %v2017, %v2009
    %v2778 = vpack.c.b16 %v2026, %v2018
    %v2779 = vpack.c.b16 %v2027, %v2019
    %v2780 = vpack.c.b16 %v2028, %v2020
    %v2781 = vpack.c.b16 %v2029, %v2021
    %v2782 = vpack.c.b16 %v2030, %v2022
    %v2783 = vpack.c.b16 %v2031, %v2023
    %v2784 = vpack.c.b16 %v2032, %v2024
    %v2785 = vpack.c.b16 %v2033, %v2025
    %v2786 = vpack.c.b16 %v2042, %v2034
    %v2787 = vpack.c.b16 %v2043, %v2035
    %v2788 = vpack.c.b16 %v2044, %v2036
    %v2789 = vpack.c.b16 %v2045, %v2037
    %v2790 = vpack.c.b16 %v2046, %v2038
    %v2791 = vpack.c.b16 %v2047, %v2039
    %v2792 = vpack.c.b16 %v2048, %v2040
    %v2793 = vpack.c.b16 %v2049, %v2041
    %v2794 = vpack.c.b16 %v2058, %v2050
    %v2795 = vpack.c.b16 %v2059, %v2051
    %v2796 = vpack.c.b16 %v2060, %v2052
    %v2797 = vpack.c.b16 %v2061, %v2053
    %v2798 = vpack.c.b16 %v2062, %v2054
    %v2799 = vpack.c.b16 %v2063, %v2055
    %v2800 = vpack.c.b16 %v2064, %v2056
    %v2801 = vpack.c.b16 %v2065, %v2057
    %v2802 = vpack.c.b16 %v2074, %v2066
    %v2803 = vpack.c.b16 %v2075, %v2067
    %v2804 = vpack.c.b16 %v2076, %v2068
    %v2805 = vpack.c.b16 %v2077, %v2069
    %v2806 = vpack.c.b16 %v2078, %v2070
    %v2807 = vpack.c.b16 %v2079, %v2071
    %v2808 = vpack.c.b16 %v2080, %v2072
    %v2809 = vpack.c.b16 %v2081, %v2073
    %v2810 = vpack.c.b16 %v2090, %v2082
    %v2811 = vpack.c.b16 %v2091, %v2083
    %v2812 = vpack.c.b16 %v2092, %v2084
    %v2813 = vpack.c.b16 %v2093, %v2085
    %v2814 = vpack.c.b16 %v2094, %v2086
    %v2815 = vpack.c.b16 %v2095, %v2087
    %v2816 = vpack.c.b16 %v2096, %v2088
    %v2817 = vpack.c.b16 %v2097, %v2089
    %v2818 = vpack.c.b16 %v2106, %v2098
    %v2819 = vpack.c.b16 %v2107, %v2099
    %v2820 = vpack.c.b16 %v2108, %v2100
    %v2821 = vpack.c.b16 %v2109, %v2101
    %v2822 = vpack.c.b16 %v2110, %v2102
    %v2823 = vpack.c.b16 %v2111, %v2103
    %v2824 = vpack.c.b16 %v2112, %v2104
    %v2825 = vpack.c.b16 %v2113, %v2105
    %v2826 = vpack.c.b16 %v2122, %v2114
    %v2827 = vpack.c.b16 %v2123, %v2115
    %v2828 = vpack.c.b16 %v2124, %v2116
    %v2829 = vpack.c.b16 %v2125, %v2117
    %v2830 = vpack.c.b16 %v2126, %v2118
    %v2831 = vpack.c.b16 %v2127, %v2119
    %v2832 = vpack.c.b16 %v2128, %v2120
    %v2833 = vpack.c.b16 %v2129, %v2121
    %v2834 = vpack.c.b16 %v2138, %v2130
    %v2835 = vpack.c.b16 %v2139, %v2131
    %v2836 = vpack.c.b16 %v2140, %v2132
    %v2837 = vpack.c.b16 %v2141, %v2133
    %v2838 = vpack.c.b16 %v2142, %v2134
    %v2839 = vpack.c.b16 %v2143, %v2135
    %v2840 = vpack.c.b16 %v2144, %v2136
    %v2841 = vpack.c.b16 %v2145, %v2137
    %v2842 = vpack.c.b16 %v2154, %v2146
    %v2843 = vpack.c.b16 %v2155, %v2147
    %v2844 = vpack.c.b16 %v2156, %v2148
    %v2845 = vpack.c.b16 %v2157, %v2149
    %v2846 = vpack.c.b16 %v2158, %v2150
    %v2847 = vpack.c.b16 %v2159, %v2151
    %v2848 = vpack.c.b16 %v2160, %v2152
    %v2849 = vpack.c.b16 %v2161, %v2153
    %v2850 = vpack.c.b16 %v2170, %v2162
    %v2851 = vpack.c.b16 %v2171, %v2163
    %v2852 = vpack.c.b16 %v2172, %v2164
    %v2853 = vpack.c.b16 %v2173, %v2165
    %v2854 = vpack.c.b16 %v2174, %v2166
    %v2855 = vpack.c.b16 %v2175, %v2167
    %v2856 = vpack.c.b16 %v2176, %v2168
    %v2857 = vpack.c.b16 %v2177, %v2169
    %v2858 = vpack.c.b16 %v2186, %v2178
    %v2859 = vpack.c.b16 %v2187, %v2179
    %v2860 = vpack.c.b16 %v2188, %v2180
    %v2861 = vpack.c.b16 %v2189, %v2181
    %v2862 = vpack.c.b16 %v2190, %v2182
    %v2863 = vpack.c.b16 %v2191, %v2183
    %v2864 = vpack.c.b16 %v2192, %v2184
    %v2865 = vpack.c.b16 %v2193, %v2185
    %v2866 = vpack.c.b16 %v2202, %v2194
    %v2867 = vpack.c.b16 %v2203, %v2195
    %v2868 = vpack.c.b16 %v2204, %v2196
    %v2869 = vpack.c.b16 %v2205, %v2197
    %v2870 = vpack.c.b16 %v2206, %v2198
    %v2871 = vpack.c.b16 %v2207, %v2199
    %v2872 = vpack.c.b16 %v2208, %v2200
    %v2873 = vpack.c.b16 %v2209, %v2201
    %v2874 = vpack.c.b16 %v2218, %v2210
    %v2875 = vpack.c.b16 %v2219, %v2211
    %v2876 = vpack.c.b16 %v2220, %v2212
    %v2877 = vpack.c.b16 %v2221, %v2213
    %v2878 = vpack.c.b16 %v2222, %v2214
    %v2879 = vpack.c.b16 %v2223, %v2215
    %v2880 = vpack.c.b16 %v2224, %v2216
    %v2881 = vpack.c.b16 %v2225, %v2217
    %v2882 = vpack.c.b16 %v2234, %v2226
    %v2883 = vpack.c.b16 %v2235, %v2227
    %v2884 = vpack.c.b16 %v2236, %v2228
    %v2885 = vpack.c.b16 %v2237, %v2229
    %v2886 = vpack.c.b16 %v2238, %v2230
    %v2887 = vpack.c.b16 %v2239, %v2231
    %v2888 = vpack.c.b16 %v2240, %v2232
    %v2889 = vpack.c.b16 %v2241, %v2233
    %v2890 = vpack.c.b16 %v2250, %v2242
    %v2891 = vpack.c.b16 %v2251, %v2243
    %v2892 = vpack.c.b16 %v2252, %v2244
    %v2893 = vpack.c.b16 %v2253, %v2245
    %v2894 = vpack.c.b16 %v2254, %v2246
    %v2895 = vpack.c.b16 %v2255, %v2247
    %v2896 = vpack.c.b16 %v2256, %v2248
    %v2897 = vpack.c.b16 %v2257, %v2249
    %v2898 = vpack.c.b16 %v2266, %v2258
    %v2899 = vpack.c.b16 %v2267, %v2259
    %v2900 = vpack.c.b16 %v2268, %v2260
    %v2901 = vpack.c.b16 %v2269, %v2261
    %v2902 = vpack.c.b16 %v2270, %v2262
    %v2903 = vpack.c.b16 %v2271, %v2263
    %v2904 = vpack.c.b16 %v2272, %v2264
    %v2905 = vpack.c.b16 %v2273, %v2265
    %v2906 = vpack.c.b16 %v2282, %v2274
    %v2907 = vpack.c.b16 %v2283, %v2275
    %v2908 = vpack.c.b16 %v2284, %v2276
    %v2909 = vpack.c.b16 %v2285, %v2277
    %v2910 = vpack.c.b16 %v2286, %v2278
    %v2911 = vpack.c.b16 %v2287, %v2279
    %v2912 = vpack.c.b16 %v2288, %v2280
    %v2913 = vpack.c.b16 %v2289, %v2281
    %v2914 = vpack.c.b16 %v2298, %v2290
    %v2915 = vpack.c.b16 %v2299, %v2291
    %v2916 = vpack.c.b16 %v2300, %v2292
    %v2917 = vpack.c.b16 %v2301, %v2293
    %v2918 = vpack.c.b16 %v2302, %v2294
    %v2919 = vpack.c.b16 %v2303, %v2295
    %v2920 = vpack.c.b16 %v2304, %v2296
    %v2921 = vpack.c.b16 %v2305, %v2297
    %v2922 = vpack.c.b16 %v2314, %v2306
    %v2923 = vpack.c.b16 %v2315, %v2307
    %v2924 = vpack.c.b16 %v2316, %v2308
    %v2925 = vpack.c.b16 %v2317, %v2309
    %v2926 = vpack.c.b16 %v2318, %v2310
    %v2927 = vpack.c.b16 %v2319, %v2311
    %v2928 = vpack.c.b16 %v2320, %v2312
    %v2929 = vpack.c.b16 %v2321, %v2313
    %v2930 = vpack.c.b16 %v2330, %v2322
    %v2931 = vpack.c.b16 %v2331, %v2323
    %v2932 = vpack.c.b16 %v2332, %v2324
    %v2933 = vpack.c.b16 %v2333, %v2325
    %v2934 = vpack.c.b16 %v2334, %v2326
    %v2935 = vpack.c.b16 %v2335, %v2327
    %v2936 = vpack.c.b16 %v2336, %v2328
    %v2937 = vpack.c.b16 %v2337, %v2329
    %v2938 = vpack.c.b16 %v2346, %v2338
    %v2939 = vpack.c.b16 %v2347, %v2339
    %v2940 = vpack.c.b16 %v2348, %v2340
    %v2941 = vpack.c.b16 %v2349, %v2341
    %v2942 = vpack.c.b16 %v2350, %v2342
    %v2943 = vpack.c.b16 %v2351, %v2343
    %v2944 = vpack.c.b16 %v2352, %v2344
    %v2945 = vpack.c.b16 %v2353, %v2345
    %v2946 = vpack.c.b16 %v2362, %v2354
    %v2947 = vpack.c.b16 %v2363, %v2355
    %v2948 = vpack.c.b16 %v2364, %v2356
    %v2949 = vpack.c.b16 %v2365, %v2357
    %v2950 = vpack.c.b16 %v2366, %v2358
    %v2951 = vpack.c.b16 %v2367, %v2359
    %v2952 = vpack.c.b16 %v2368, %v2360
    %v2953 = vpack.c.b16 %v2369, %v2361
    %v2954 = vpack.c.b16 %v2378, %v2370
    %v2955 = vpack.c.b16 %v2379, %v2371
    %v2956 = vpack.c.b16 %v2380, %v2372
    %v2957 = vpack.c.b16 %v2381, %v2373
    %v2958 = vpack.c.b16 %v2382, %v2374
    %v2959 = vpack.c.b16 %v2383, %v2375
    %v2960 = vpack.c.b16 %v2384, %v2376
    %v2961 = vpack.c.b16 %v2385, %v2377
    %v2962 = vpack.c.b16 %v2394, %v2386
    %v2963 = vpack.c.b16 %v2395, %v2387
    %v2964 = vpack.c.b16 %v2396, %v2388
    %v2965 = vpack.c.b16 %v2397, %v2389
    %v2966 = vpack.c.b16 %v2398, %v2390
    %v2967 = vpack.c.b16 %v2399, %v2391
    %v2968 = vpack.c.b16 %v2400, %v2392
    %v2969 = vpack.c.b16 %v2401, %v2393
    %v2970 = vpack.c.b16 %v2410, %v2402
    %v2971 = vpack.c.b16 %v2411, %v2403
    %v2972 = vpack.c.b16 %v2412, %v2404
    %v2973 = vpack.c.b16 %v2413, %v2405
    %v2974 = vpack.c.b16 %v2414, %v2406
    %v2975 = vpack.c.b16 %v2415, %v2407
    %v2976 = vpack.c.b16 %v2416, %v2408
    %v2977 = vpack.c.b16 %v2417, %v2409
    %v2978 = vpack.c.b16 %v2426, %v2418
    %v2979 = vpack.c.b16 %v2427, %v2419
    %v2980 = vpack.c.b16 %v2428, %v2420
    %v2981 = vpack.c.b16 %v2429, %v2421
    %v2982 = vpack.c.b16 %v2430, %v2422
    %v2983 = vpack.c.b16 %v2431, %v2423
    %v2984 = vpack.c.b16 %v2432, %v2424
    %v2985 = vpack.c.b16 %v2433, %v2425
    %v2986 = vpack.c.b16 %v2442, %v2434
    %v2987 = vpack.c.b16 %v2443, %v2435
    %v2988 = vpack.c.b16 %v2444, %v2436
    %v2989 = vpack.c.b16 %v2445, %v2437
    %v2990 = vpack.c.b16 %v2446, %v2438
    %v2991 = vpack.c.b16 %v2447, %v2439
    %v2992 = vpack.c.b16 %v2448, %v2440
    %v2993 = vpack.c.b16 %v2449, %v2441
    %v2994 = vpack.c.b16 %v2458, %v2450
    %v2995 = vpack.c.b16 %v2459, %v2451
    %v2996 = vpack.c.b16 %v2460, %v2452
    %v2997 = vpack.c.b16 %v2461, %v2453
    %v2998 = vpack.c.b16 %v2462, %v2454
    %v2999 = vpack.c.b16 %v2463, %v2455
    %v3000 = vpack.c.b16 %v2464, %v2456
    %v3001 = vpack.c.b16 %v2465, %v2457
    %v3002 = vpack.c.b16 %v2474, %v2466
    %v3003 = vpack.c.b16 %v2475, %v2467
    %v3004 = vpack.c.b16 %v2476, %v2468
    %v3005 = vpack.c.b16 %v2477, %v2469
    %v3006 = vpack.c.b16 %v2478, %v2470
    %v3007 = vpack.c.b16 %v2479, %v2471
    %v3008 = vpack.c.b16 %v2480, %v2472
    %v3009 = vpack.c.b16 %v2481, %v2473
    %v3010 = vpack.c.b16 %v2490, %v2482
    %v3011 = vpack.c.b16 %v2491, %v2483
    %v3012 = vpack.c.b16 %v2492, %v2484
    %v3013 = vpack.c.b16 %v2493, %v2485
    %v3014 = vpack.c.b16 %v2494, %v2486
    %v3015 = vpack.c.b16 %v2495, %v2487
    %v3016 = vpack.c.b16 %v2496, %v2488
    %v3017 = vpack.c.b16 %v2497, %v2489
    %v3018 = vpack.c.b16 %v2506, %v2498
    %v3019 = vpack.c.b16 %v2507, %v2499
    %v3020 = vpack.c.b16 %v2508, %v2500
    %v3021 = vpack.c.b16 %v2509, %v2501
    %v3022 = vpack.c.b16 %v2510, %v2502
    %v3023 = vpack.c.b16 %v2511, %v2503
    %v3024 = vpack.c.b16 %v2512, %v2504
    %v3025 = vpack.c.b16 %v2513, %v2505
    %3538 = vmatprep.subr.bf16.mxu0 %v2515
    %3539 = vmatpush1.bf16.msra.mxu0 %v2514
    %3540 = vmatprep.subr.bf16.mxu0 %v2523
    %3541 = vmatpush1.bf16.msra.mxu0 %v2522
    %3542 = vmatprep.subr.bf16.mxu0 %v2531
    %3543 = vmatpush1.bf16.msra.mxu0 %v2530
    %3544 = vmatprep.subr.bf16.mxu0 %v2539
    %3545 = vmatpush1.bf16.msra.mxu0 %v2538
    %3546 = vmatprep.subr.bf16.mxu0 %v2547
    %3547 = vmatpush1.bf16.msra.mxu0 %v2546
    %3548 = vmatprep.subr.bf16.mxu0 %v2555
    %3549 = vmatpush1.bf16.msra.mxu0 %v2554
    %3550 = vmatprep.subr.bf16.mxu0 %v2563
    %3551 = vmatpush1.bf16.msra.mxu0 %v2562
    %3552 = vmatprep.subr.bf16.mxu0 %v2571
    %3553 = vmatpush1.bf16.msra.mxu0 %v2570
    %3554 = vmatprep.subr.bf16.mxu0 %v2579
    %3555 = vmatpush1.bf16.msra.mxu0 %v2578
    %3556 = vmatprep.subr.bf16.mxu0 %v2587
    %3557 = vmatpush1.bf16.msra.mxu0 %v2586
    %3558 = vmatprep.subr.bf16.mxu0 %v2595
    %3559 = vmatpush1.bf16.msra.mxu0 %v2594
    %3560 = vmatprep.subr.bf16.mxu0 %v2603
    %3561 = vmatpush1.bf16.msra.mxu0 %v2602
    %3562 = vmatprep.subr.bf16.mxu0 %v2611
    %3563 = vmatpush1.bf16.msra.mxu0 %v2610
    %3564 = vmatprep.subr.bf16.mxu0 %v2619
    %3565 = vmatpush1.bf16.msra.mxu0 %v2618
    %3566 = vmatprep.subr.bf16.mxu0 %v2627
    %3567 = vmatpush1.bf16.msra.mxu0 %v2626
    %3568 = vmatprep.subr.bf16.mxu0 %v2635
    %3569 = vmatpush1.bf16.msra.mxu0 %v2634
    %3570 = vmatprep.mubr.bf16.mxu0 %v417
    %3571 = vmatmul.mubr.bf16.gmra.mrb[0].mxu0 %v416
    %v3572 = vpop.f32.mrb[0].mxu0
    %v3573 = vadd.f32 %v941, %v3572
    %v3574 = vpop.f32.mrb[0].mxu0
    %v3575 = vadd.f32 %v945, %v3574
    %v3576 = vpop.f32.mrb[0].mxu0
    %v3577 = vpop.f32.mrb[0].mxu0
    %3578 = vdwg.mxu0
    %3579 = vmatprep.subr.bf16.mxu0 %v2643
    %3580 = vmatpush1.bf16.msra.mxu0 %v2642
    %3581 = vmatprep.subr.bf16.mxu0 %v2651
    %3582 = vmatpush1.bf16.msra.mxu0 %v2650
    %3583 = vmatprep.subr.bf16.mxu0 %v2659
    %3584 = vmatpush1.bf16.msra.mxu0 %v2658
    %3585 = vmatprep.subr.bf16.mxu0 %v2667
    %3586 = vmatpush1.bf16.msra.mxu0 %v2666
    %3587 = vmatprep.subr.bf16.mxu0 %v2675
    %3588 = vmatpush1.bf16.msra.mxu0 %v2674
    %3589 = vmatprep.subr.bf16.mxu0 %v2683
    %3590 = vmatpush1.bf16.msra.mxu0 %v2682
    %3591 = vmatprep.subr.bf16.mxu0 %v2691
    %3592 = vmatpush1.bf16.msra.mxu0 %v2690
    %3593 = vmatprep.subr.bf16.mxu0 %v2699
    %3594 = vmatpush1.bf16.msra.mxu0 %v2698
    %3595 = vmatprep.subr.bf16.mxu0 %v2707
    %3596 = vmatpush1.bf16.msra.mxu0 %v2706
    %3597 = vmatprep.subr.bf16.mxu0 %v2715
    %3598 = vmatpush1.bf16.msra.mxu0 %v2714
    %3599 = vmatprep.subr.bf16.mxu0 %v2723
    %3600 = vmatpush1.bf16.msra.mxu0 %v2722
    %3601 = vmatprep.subr.bf16.mxu0 %v2731
    %3602 = vmatpush1.bf16.msra.mxu0 %v2730
    %3603 = vmatprep.subr.bf16.mxu0 %v2739
    %3604 = vmatpush1.bf16.msra.mxu0 %v2738
    %3605 = vmatprep.subr.bf16.mxu0 %v2747
    %3606 = vmatpush1.bf16.msra.mxu0 %v2746
    %3607 = vmatprep.subr.bf16.mxu0 %v2755
    %3608 = vmatpush1.bf16.msra.mxu0 %v2754
    %3609 = vmatprep.subr.bf16.mxu0 %v2763
    %3610 = vmatpush1.bf16.msra.mxu0 %v2762
    %3611 = vmatprep.mubr.bf16.mxu0 %v419
    %3612 = vmatmul.mubr.bf16.gmra.mrb[0].mxu0 %v418
    %v3613 = vpop.f32.mrb[0].mxu0
    %v3614 = vadd.f32 %v3573, %v3613
    %v3615 = vpop.f32.mrb[0].mxu0
    %v3616 = vadd.f32 %v3575, %v3615
    %v3617 = vpop.f32.mrb[0].mxu0
    %v3618 = vpop.f32.mrb[0].mxu0
    %3619 = vdwg.mxu0
    %3620 = vmatprep.subr.bf16.mxu0 %v2771
    %3621 = vmatpush1.bf16.msra.mxu0 %v2770
    %3622 = vmatprep.subr.bf16.mxu0 %v2779
    %3623 = vmatpush1.bf16.msra.mxu0 %v2778
    %3624 = vmatprep.subr.bf16.mxu0 %v2787
    %3625 = vmatpush1.bf16.msra.mxu0 %v2786
    %3626 = vmatprep.subr.bf16.mxu0 %v2795
    %3627 = vmatpush1.bf16.msra.mxu0 %v2794
    %3628 = vmatprep.subr.bf16.mxu0 %v2803
    %3629 = vmatpush1.bf16.msra.mxu0 %v2802
    %3630 = vmatprep.subr.bf16.mxu0 %v2811
    %3631 = vmatpush1.bf16.msra.mxu0 %v2810
    %3632 = vmatprep.subr.bf16.mxu0 %v2819
    %3633 = vmatpush1.bf16.msra.mxu0 %v2818
    %3634 = vmatprep.subr.bf16.mxu0 %v2827
    %3635 = vmatpush1.bf16.msra.mxu0 %v2826
    %3636 = vmatprep.subr.bf16.mxu0 %v2835
    %3637 = vmatpush1.bf16.msra.mxu0 %v2834
    %3638 = vmatprep.subr.bf16.mxu0 %v2843
    %3639 = vmatpush1.bf16.msra.mxu0 %v2842
    %3640 = vmatprep.subr.bf16.mxu0 %v2851
    %3641 = vmatpush1.bf16.msra.mxu0 %v2850
    %3642 = vmatprep.subr.bf16.mxu0 %v2859
    %3643 = vmatpush1.bf16.msra.mxu0 %v2858
    %3644 = vmatprep.subr.bf16.mxu0 %v2867
    %3645 = vmatpush1.bf16.msra.mxu0 %v2866
    %3646 = vmatprep.subr.bf16.mxu0 %v2875
    %3647 = vmatpush1.bf16.msra.mxu0 %v2874
    %3648 = vmatprep.subr.bf16.mxu0 %v2883
    %3649 = vmatpush1.bf16.msra.mxu0 %v2882
    %3650 = vmatprep.subr.bf16.mxu0 %v2891
    %3651 = vmatpush1.bf16.msra.mxu0 %v2890
    %3652 = vmatprep.mubr.bf16.mxu0 %v421
    %3653 = vmatmul.mubr.bf16.gmra.mrb[0].mxu0 %v420
    %v3654 = vpop.f32.mrb[0].mxu0
    %v3655 = vadd.f32 %v3614, %v3654
    %v3656 = vpop.f32.mrb[0].mxu0
    %v3657 = vadd.f32 %v3616, %v3656
    %v3658 = vpop.f32.mrb[0].mxu0
    %v3659 = vpop.f32.mrb[0].mxu0
    %3660 = vdwg.mxu0
    %3661 = vmatprep.subr.bf16.mxu0 %v2899
    %3662 = vmatpush1.bf16.msra.mxu0 %v2898
    %3663 = vmatprep.subr.bf16.mxu0 %v2907
    %3664 = vmatpush1.bf16.msra.mxu0 %v2906
    %3665 = vmatprep.subr.bf16.mxu0 %v2915
    %3666 = vmatpush1.bf16.msra.mxu0 %v2914
    %3667 = vmatprep.subr.bf16.mxu0 %v2923
    %3668 = vmatpush1.bf16.msra.mxu0 %v2922
    %3669 = vmatprep.subr.bf16.mxu0 %v2931
    %3670 = vmatpush1.bf16.msra.mxu0 %v2930
    %3671 = vmatprep.subr.bf16.mxu0 %v2939
    %3672 = vmatpush1.bf16.msra.mxu0 %v2938
    %3673 = vmatprep.subr.bf16.mxu0 %v2947
    %3674 = vmatpush1.bf16.msra.mxu0 %v2946
    %3675 = vmatprep.subr.bf16.mxu0 %v2955
    %3676 = vmatpush1.bf16.msra.mxu0 %v2954
    %3677 = vmatprep.subr.bf16.mxu0 %v2963
    %3678 = vmatpush1.bf16.msra.mxu0 %v2962
    %3679 = vmatprep.subr.bf16.mxu0 %v2971
    %3680 = vmatpush1.bf16.msra.mxu0 %v2970
    %3681 = vmatprep.subr.bf16.mxu0 %v2979
    %3682 = vmatpush1.bf16.msra.mxu0 %v2978
    %3683 = vmatprep.subr.bf16.mxu0 %v2987
    %3684 = vmatpush1.bf16.msra.mxu0 %v2986
    %3685 = vmatprep.subr.bf16.mxu0 %v2995
    %3686 = vmatpush1.bf16.msra.mxu0 %v2994
    %3687 = vmatprep.subr.bf16.mxu0 %v3003
    %3688 = vmatpush1.bf16.msra.mxu0 %v3002
    %3689 = vmatprep.subr.bf16.mxu0 %v3011
    %3690 = vmatpush1.bf16.msra.mxu0 %v3010
    %3691 = vmatprep.subr.bf16.mxu0 %v3019
    %3692 = vmatpush1.bf16.msra.mxu0 %v3018
    %3693 = vmatprep.mubr.bf16.mxu0 %v423
    %3694 = vmatmul.mubr.bf16.gmra.mrb[0].mxu0 %v422
    %v3695 = vpop.f32.mrb[0].mxu0
    %v3696 = vadd.f32 %v3655, %v3695
    %v3697 = vpop.f32.mrb[0].mxu0
    %v3698 = vadd.f32 %v3657, %v3697
    %v3699 = vpop.f32.mrb[0].mxu0
    %v3700 = vpop.f32.mrb[0].mxu0
    %3701 = vdwg.mxu0
    %3702 = vmatprep.subr.bf16.mxu0 %v2517
    %3703 = vmatpush1.bf16.msra.mxu0 %v2516
    %3704 = vmatprep.subr.bf16.mxu0 %v2525
    %3705 = vmatpush1.bf16.msra.mxu0 %v2524
    %3706 = vmatprep.subr.bf16.mxu0 %v2533
    %3707 = vmatpush1.bf16.msra.mxu0 %v2532
    %3708 = vmatprep.subr.bf16.mxu0 %v2541
    %3709 = vmatpush1.bf16.msra.mxu0 %v2540
    %3710 = vmatprep.subr.bf16.mxu0 %v2549
    %3711 = vmatpush1.bf16.msra.mxu0 %v2548
    %3712 = vmatprep.subr.bf16.mxu0 %v2557
    %3713 = vmatpush1.bf16.msra.mxu0 %v2556
    %3714 = vmatprep.subr.bf16.mxu0 %v2565
    %3715 = vmatpush1.bf16.msra.mxu0 %v2564
    %3716 = vmatprep.subr.bf16.mxu0 %v2573
    %3717 = vmatpush1.bf16.msra.mxu0 %v2572
    %3718 = vmatprep.subr.bf16.mxu0 %v2581
    %3719 = vmatpush1.bf16.msra.mxu0 %v2580
    %3720 = vmatprep.subr.bf16.mxu0 %v2589
    %3721 = vmatpush1.bf16.msra.mxu0 %v2588
    %3722 = vmatprep.subr.bf16.mxu0 %v2597
    %3723 = vmatpush1.bf16.msra.mxu0 %v2596
    %3724 = vmatprep.subr.bf16.mxu0 %v2605
    %3725 = vmatpush1.bf16.msra.mxu0 %v2604
    %3726 = vmatprep.subr.bf16.mxu0 %v2613
    %3727 = vmatpush1.bf16.msra.mxu0 %v2612
    %3728 = vmatprep.subr.bf16.mxu0 %v2621
    %3729 = vmatpush1.bf16.msra.mxu0 %v2620
    %3730 = vmatprep.subr.bf16.mxu0 %v2629
    %3731 = vmatpush1.bf16.msra.mxu0 %v2628
    %3732 = vmatprep.subr.bf16.mxu0 %v2637
    %3733 = vmatpush1.bf16.msra.mxu0 %v2636
    %3734 = vmatprep.mubr.bf16.mxu0 %v417
    %3735 = vmatmul.mubr.bf16.gmra.mrb[0].mxu0 %v416
    %v3736 = vpop.f32.mrb[0].mxu0
    %v3737 = vadd.f32 %v949, %v3736
    %v3738 = vpop.f32.mrb[0].mxu0
    %v3739 = vadd.f32 %v953, %v3738
    %v3740 = vpop.f32.mrb[0].mxu0
    %v3741 = vpop.f32.mrb[0].mxu0
    %3742 = vdwg.mxu0
    %3743 = vmatprep.subr.bf16.mxu0 %v2645
    %3744 = vmatpush1.bf16.msra.mxu0 %v2644
    %3745 = vmatprep.subr.bf16.mxu0 %v2653
    %3746 = vmatpush1.bf16.msra.mxu0 %v2652
    %3747 = vmatprep.subr.bf16.mxu0 %v2661
    %3748 = vmatpush1.bf16.msra.mxu0 %v2660
    %3749 = vmatprep.subr.bf16.mxu0 %v2669
    %3750 = vmatpush1.bf16.msra.mxu0 %v2668
    %3751 = vmatprep.subr.bf16.mxu0 %v2677
    %3752 = vmatpush1.bf16.msra.mxu0 %v2676
    %3753 = vmatprep.subr.bf16.mxu0 %v2685
    %3754 = vmatpush1.bf16.msra.mxu0 %v2684
    %3755 = vmatprep.subr.bf16.mxu0 %v2693
    %3756 = vmatpush1.bf16.msra.mxu0 %v2692
    %3757 = vmatprep.subr.bf16.mxu0 %v2701
    %3758 = vmatpush1.bf16.msra.mxu0 %v2700
    %3759 = vmatprep.subr.bf16.mxu0 %v2709
    %3760 = vmatpush1.bf16.msra.mxu0 %v2708
    %3761 = vmatprep.subr.bf16.mxu0 %v2717
    %3762 = vmatpush1.bf16.msra.mxu0 %v2716
    %3763 = vmatprep.subr.bf16.mxu0 %v2725
    %3764 = vmatpush1.bf16.msra.mxu0 %v2724
    %3765 = vmatprep.subr.bf16.mxu0 %v2733
    %3766 = vmatpush1.bf16.msra.mxu0 %v2732
    %3767 = vmatprep.subr.bf16.mxu0 %v2741
    %3768 = vmatpush1.bf16.msra.mxu0 %v2740
    %3769 = vmatprep.subr.bf16.mxu0 %v2749
    %3770 = vmatpush1.bf16.msra.mxu0 %v2748
    %3771 = vmatprep.subr.bf16.mxu0 %v2757
    %3772 = vmatpush1.bf16.msra.mxu0 %v2756
    %3773 = vmatprep.subr.bf16.mxu0 %v2765
    %3774 = vmatpush1.bf16.msra.mxu0 %v2764
    %3775 = vmatprep.mubr.bf16.mxu0 %v419
    %3776 = vmatmul.mubr.bf16.gmra.mrb[0].mxu0 %v418
    %v3777 = vpop.f32.mrb[0].mxu0
    %v3778 = vadd.f32 %v3737, %v3777
    %v3779 = vpop.f32.mrb[0].mxu0
    %v3780 = vadd.f32 %v3739, %v3779
    %v3781 = vpop.f32.mrb[0].mxu0
    %v3782 = vpop.f32.mrb[0].mxu0
    %3783 = vdwg.mxu0
    %3784 = vmatprep.subr.bf16.mxu0 %v2773
    %3785 = vmatpush1.bf16.msra.mxu0 %v2772
    %3786 = vmatprep.subr.bf16.mxu0 %v2781
    %3787 = vmatpush1.bf16.msra.mxu0 %v2780
    %3788 = vmatprep.subr.bf16.mxu0 %v2789
    %3789 = vmatpush1.bf16.msra.mxu0 %v2788
    %3790 = vmatprep.subr.bf16.mxu0 %v2797
    %3791 = vmatpush1.bf16.msra.mxu0 %v2796
    %3792 = vmatprep.subr.bf16.mxu0 %v2805
    %3793 = vmatpush1.bf16.msra.mxu0 %v2804
    %3794 = vmatprep.subr.bf16.mxu0 %v2813
    %3795 = vmatpush1.bf16.msra.mxu0 %v2812
    %3796 = vmatprep.subr.bf16.mxu0 %v2821
    %3797 = vmatpush1.bf16.msra.mxu0 %v2820
    %3798 = vmatprep.subr.bf16.mxu0 %v2829
    %3799 = vmatpush1.bf16.msra.mxu0 %v2828
    %3800 = vmatprep.subr.bf16.mxu0 %v2837
    %3801 = vmatpush1.bf16.msra.mxu0 %v2836
    %3802 = vmatprep.subr.bf16.mxu0 %v2845
    %3803 = vmatpush1.bf16.msra.mxu0 %v2844
    %3804 = vmatprep.subr.bf16.mxu0 %v2853
    %3805 = vmatpush1.bf16.msra.mxu0 %v2852
    %3806 = vmatprep.subr.bf16.mxu0 %v2861
    %3807 = vmatpush1.bf16.msra.mxu0 %v2860
    %3808 = vmatprep.subr.bf16.mxu0 %v2869
    %3809 = vmatpush1.bf16.msra.mxu0 %v2868
    %3810 = vmatprep.subr.bf16.mxu0 %v2877
    %3811 = vmatpush1.bf16.msra.mxu0 %v2876
    %3812 = vmatprep.subr.bf16.mxu0 %v2885
    %3813 = vmatpush1.bf16.msra.mxu0 %v2884
    %3814 = vmatprep.subr.bf16.mxu0 %v2893
    %3815 = vmatpush1.bf16.msra.mxu0 %v2892
    %3816 = vmatprep.mubr.bf16.mxu0 %v421
    %3817 = vmatmul.mubr.bf16.gmra.mrb[0].mxu0 %v420
    %v3818 = vpop.f32.mrb[0].mxu0
    %v3819 = vadd.f32 %v3778, %v3818
    %v3820 = vpop.f32.mrb[0].mxu0
    %v3821 = vadd.f32 %v3780, %v3820
    %v3822 = vpop.f32.mrb[0].mxu0
    %v3823 = vpop.f32.mrb[0].mxu0
    %3824 = vdwg.mxu0
    %3825 = vmatprep.subr.bf16.mxu0 %v2901
    %3826 = vmatpush1.bf16.msra.mxu0 %v2900
    %3827 = vmatprep.subr.bf16.mxu0 %v2909
    %3828 = vmatpush1.bf16.msra.mxu0 %v2908
    %3829 = vmatprep.subr.bf16.mxu0 %v2917
    %3830 = vmatpush1.bf16.msra.mxu0 %v2916
    %3831 = vmatprep.subr.bf16.mxu0 %v2925
    %3832 = vmatpush1.bf16.msra.mxu0 %v2924
    %3833 = vmatprep.subr.bf16.mxu0 %v2933
    %3834 = vmatpush1.bf16.msra.mxu0 %v2932
    %3835 = vmatprep.subr.bf16.mxu0 %v2941
    %3836 = vmatpush1.bf16.msra.mxu0 %v2940
    %3837 = vmatprep.subr.bf16.mxu0 %v2949
    %3838 = vmatpush1.bf16.msra.mxu0 %v2948
    %3839 = vmatprep.subr.bf16.mxu0 %v2957
    %3840 = vmatpush1.bf16.msra.mxu0 %v2956
    %3841 = vmatprep.subr.bf16.mxu0 %v2965
    %3842 = vmatpush1.bf16.msra.mxu0 %v2964
    %3843 = vmatprep.subr.bf16.mxu0 %v2973
    %3844 = vmatpush1.bf16.msra.mxu0 %v2972
    %3845 = vmatprep.subr.bf16.mxu0 %v2981
    %3846 = vmatpush1.bf16.msra.mxu0 %v2980
    %3847 = vmatprep.subr.bf16.mxu0 %v2989
    %3848 = vmatpush1.bf16.msra.mxu0 %v2988
    %3849 = vmatprep.subr.bf16.mxu0 %v2997
    %3850 = vmatpush1.bf16.msra.mxu0 %v2996
    %3851 = vmatprep.subr.bf16.mxu0 %v3005
    %3852 = vmatpush1.bf16.msra.mxu0 %v3004
    %3853 = vmatprep.subr.bf16.mxu0 %v3013
    %3854 = vmatpush1.bf16.msra.mxu0 %v3012
    %3855 = vmatprep.subr.bf16.mxu0 %v3021
    %3856 = vmatpush1.bf16.msra.mxu0 %v3020
    %3857 = vmatprep.mubr.bf16.mxu0 %v423
    %3858 = vmatmul.mubr.bf16.gmra.mrb[0].mxu0 %v422
    %v3859 = vpop.f32.mrb[0].mxu0
    %v3860 = vadd.f32 %v3819, %v3859
    %v3861 = vpop.f32.mrb[0].mxu0
    %v3862 = vadd.f32 %v3821, %v3861
    %v3863 = vpop.f32.mrb[0].mxu0
    %v3864 = vpop.f32.mrb[0].mxu0
    %3865 = vdwg.mxu0
    %3866 = vmatprep.subr.bf16.mxu0 %v2519
    %3867 = vmatpush1.bf16.msra.mxu0 %v2518
    %3868 = vmatprep.subr.bf16.mxu0 %v2527
    %3869 = vmatpush1.bf16.msra.mxu0 %v2526
    %3870 = vmatprep.subr.bf16.mxu0 %v2535
    %3871 = vmatpush1.bf16.msra.mxu0 %v2534
    %3872 = vmatprep.subr.bf16.mxu0 %v2543
    %3873 = vmatpush1.bf16.msra.mxu0 %v2542
    %3874 = vmatprep.subr.bf16.mxu0 %v2551
    %3875 = vmatpush1.bf16.msra.mxu0 %v2550
    %3876 = vmatprep.subr.bf16.mxu0 %v2559
    %3877 = vmatpush1.bf16.msra.mxu0 %v2558
    %3878 = vmatprep.subr.bf16.mxu0 %v2567
    %3879 = vmatpush1.bf16.msra.mxu0 %v2566
    %3880 = vmatprep.subr.bf16.mxu0 %v2575
    %3881 = vmatpush1.bf16.msra.mxu0 %v2574
    %3882 = vmatprep.subr.bf16.mxu0 %v2583
    %3883 = vmatpush1.bf16.msra.mxu0 %v2582
    %3884 = vmatprep.subr.bf16.mxu0 %v2591
    %3885 = vmatpush1.bf16.msra.mxu0 %v2590
    %3886 = vmatprep.subr.bf16.mxu0 %v2599
    %3887 = vmatpush1.bf16.msra.mxu0 %v2598
    %3888 = vmatprep.subr.bf16.mxu0 %v2607
    %3889 = vmatpush1.bf16.msra.mxu0 %v2606
    %3890 = vmatprep.subr.bf16.mxu0 %v2615
    %3891 = vmatpush1.bf16.msra.mxu0 %v2614
    %3892 = vmatprep.subr.bf16.mxu0 %v2623
    %3893 = vmatpush1.bf16.msra.mxu0 %v2622
    %3894 = vmatprep.subr.bf16.mxu0 %v2631
    %3895 = vmatpush1.bf16.msra.mxu0 %v2630
    %3896 = vmatprep.subr.bf16.mxu0 %v2639
    %3897 = vmatpush1.bf16.msra.mxu0 %v2638
    %3898 = vmatprep.mubr.bf16.mxu0 %v417
    %3899 = vmatmul.mubr.bf16.gmra.mrb[0].mxu0 %v416
    %v3900 = vpop.f32.mrb[0].mxu0
    %v3901 = vadd.f32 %v957, %v3900
    %v3902 = vpop.f32.mrb[0].mxu0
    %v3903 = vadd.f32 %v961, %v3902
    %v3904 = vpop.f32.mrb[0].mxu0
    %v3905 = vpop.f32.mrb[0].mxu0
    %3906 = vdwg.mxu0
    %3907 = vmatprep.subr.bf16.mxu0 %v2647
    %3908 = vmatpush1.bf16.msra.mxu0 %v2646
    %3909 = vmatprep.subr.bf16.mxu0 %v2655
    %3910 = vmatpush1.bf16.msra.mxu0 %v2654
    %3911 = vmatprep.subr.bf16.mxu0 %v2663
    %3912 = vmatpush1.bf16.msra.mxu0 %v2662
    %3913 = vmatprep.subr.bf16.mxu0 %v2671
    %3914 = vmatpush1.bf16.msra.mxu0 %v2670
    %3915 = vmatprep.subr.bf16.mxu0 %v2679
    %3916 = vmatpush1.bf16.msra.mxu0 %v2678
    %3917 = vmatprep.subr.bf16.mxu0 %v2687
    %3918 = vmatpush1.bf16.msra.mxu0 %v2686
    %3919 = vmatprep.subr.bf16.mxu0 %v2695
    %3920 = vmatpush1.bf16.msra.mxu0 %v2694
    %3921 = vmatprep.subr.bf16.mxu0 %v2703
    %3922 = vmatpush1.bf16.msra.mxu0 %v2702
    %3923 = vmatprep.subr.bf16.mxu0 %v2711
    %3924 = vmatpush1.bf16.msra.mxu0 %v2710
    %3925 = vmatprep.subr.bf16.mxu0 %v2719
    %3926 = vmatpush1.bf16.msra.mxu0 %v2718
    %3927 = vmatprep.subr.bf16.mxu0 %v2727
    %3928 = vmatpush1.bf16.msra.mxu0 %v2726
    %3929 = vmatprep.subr.bf16.mxu0 %v2735
    %3930 = vmatpush1.bf16.msra.mxu0 %v2734
    %3931 = vmatprep.subr.bf16.mxu0 %v2743
    %3932 = vmatpush1.bf16.msra.mxu0 %v2742
    %3933 = vmatprep.subr.bf16.mxu0 %v2751
    %3934 = vmatpush1.bf16.msra.mxu0 %v2750
    %3935 = vmatprep.subr.bf16.mxu0 %v2759
    %3936 = vmatpush1.bf16.msra.mxu0 %v2758
    %3937 = vmatprep.subr.bf16.mxu0 %v2767
    %3938 = vmatpush1.bf16.msra.mxu0 %v2766
    %3939 = vmatprep.mubr.bf16.mxu0 %v419
    %3940 = vmatmul.mubr.bf16.gmra.mrb[0].mxu0 %v418
    %v3941 = vpop.f32.mrb[0].mxu0
    %v3942 = vadd.f32 %v3901, %v3941
    %v3943 = vpop.f32.mrb[0].mxu0
    %v3944 = vadd.f32 %v3903, %v3943
    %v3945 = vpop.f32.mrb[0].mxu0
    %v3946 = vpop.f32.mrb[0].mxu0
    %3947 = vdwg.mxu0
    %3948 = vmatprep.subr.bf16.mxu0 %v2775
    %3949 = vmatpush1.bf16.msra.mxu0 %v2774
    %3950 = vmatprep.subr.bf16.mxu0 %v2783
    %3951 = vmatpush1.bf16.msra.mxu0 %v2782
    %3952 = vmatprep.subr.bf16.mxu0 %v2791
    %3953 = vmatpush1.bf16.msra.mxu0 %v2790
    %3954 = vmatprep.subr.bf16.mxu0 %v2799
    %3955 = vmatpush1.bf16.msra.mxu0 %v2798
    %3956 = vmatprep.subr.bf16.mxu0 %v2807
    %3957 = vmatpush1.bf16.msra.mxu0 %v2806
    %3958 = vmatprep.subr.bf16.mxu0 %v2815
    %3959 = vmatpush1.bf16.msra.mxu0 %v2814
    %3960 = vmatprep.subr.bf16.mxu0 %v2823
    %3961 = vmatpush1.bf16.msra.mxu0 %v2822
    %3962 = vmatprep.subr.bf16.mxu0 %v2831
    %3963 = vmatpush1.bf16.msra.mxu0 %v2830
    %3964 = vmatprep.subr.bf16.mxu0 %v2839
    %3965 = vmatpush1.bf16.msra.mxu0 %v2838
    %3966 = vmatprep.subr.bf16.mxu0 %v2847
    %3967 = vmatpush1.bf16.msra.mxu0 %v2846
    %3968 = vmatprep.subr.bf16.mxu0 %v2855
    %3969 = vmatpush1.bf16.msra.mxu0 %v2854
    %3970 = vmatprep.subr.bf16.mxu0 %v2863
    %3971 = vmatpush1.bf16.msra.mxu0 %v2862
    %3972 = vmatprep.subr.bf16.mxu0 %v2871
    %3973 = vmatpush1.bf16.msra.mxu0 %v2870
    %3974 = vmatprep.subr.bf16.mxu0 %v2879
    %3975 = vmatpush1.bf16.msra.mxu0 %v2878
    %3976 = vmatprep.subr.bf16.mxu0 %v2887
    %3977 = vmatpush1.bf16.msra.mxu0 %v2886
    %3978 = vmatprep.subr.bf16.mxu0 %v2895
    %3979 = vmatpush1.bf16.msra.mxu0 %v2894
    %3980 = vmatprep.mubr.bf16.mxu0 %v421
    %3981 = vmatmul.mubr.bf16.gmra.mrb[0].mxu0 %v420
    %v3982 = vpop.f32.mrb[0].mxu0
    %v3983 = vadd.f32 %v3942, %v3982
    %v3984 = vpop.f32.mrb[0].mxu0
    %v3985 = vadd.f32 %v3944, %v3984
    %v3986 = vpop.f32.mrb[0].mxu0
    %v3987 = vpop.f32.mrb[0].mxu0
    %3988 = vdwg.mxu0
    %3989 = vmatprep.subr.bf16.mxu0 %v2903
    %3990 = vmatpush1.bf16.msra.mxu0 %v2902
    %3991 = vmatprep.subr.bf16.mxu0 %v2911
    %3992 = vmatpush1.bf16.msra.mxu0 %v2910
    %3993 = vmatprep.subr.bf16.mxu0 %v2919
    %3994 = vmatpush1.bf16.msra.mxu0 %v2918
    %3995 = vmatprep.subr.bf16.mxu0 %v2927
    %3996 = vmatpush1.bf16.msra.mxu0 %v2926
    %3997 = vmatprep.subr.bf16.mxu0 %v2935
    %3998 = vmatpush1.bf16.msra.mxu0 %v2934
    %3999 = vmatprep.subr.bf16.mxu0 %v2943
    %4000 = vmatpush1.bf16.msra.mxu0 %v2942
    %4001 = vmatprep.subr.bf16.mxu0 %v2951
    %4002 = vmatpush1.bf16.msra.mxu0 %v2950
    %4003 = vmatprep.subr.bf16.mxu0 %v2959
    %4004 = vmatpush1.bf16.msra.mxu0 %v2958
    %4005 = vmatprep.subr.bf16.mxu0 %v2967
    %4006 = vmatpush1.bf16.msra.mxu0 %v2966
    %4007 = vmatprep.subr.bf16.mxu0 %v2975
    %4008 = vmatpush1.bf16.msra.mxu0 %v2974
    %4009 = vmatprep.subr.bf16.mxu0 %v2983
    %4010 = vmatpush1.bf16.msra.mxu0 %v2982
    %4011 = vmatprep.subr.bf16.mxu0 %v2991
    %4012 = vmatpush1.bf16.msra.mxu0 %v2990
    %4013 = vmatprep.subr.bf16.mxu0 %v2999
    %4014 = vmatpush1.bf16.msra.mxu0 %v2998
    %4015 = vmatprep.subr.bf16.mxu0 %v3007
    %4016 = vmatpush1.bf16.msra.mxu0 %v3006
    %4017 = vmatprep.subr.bf16.mxu0 %v3015
    %4018 = vmatpush1.bf16.msra.mxu0 %v3014
    %4019 = vmatprep.subr.bf16.mxu0 %v3023
    %4020 = vmatpush1.bf16.msra.mxu0 %v3022
    %4021 = vmatprep.mubr.bf16.mxu0 %v423
    %4022 = vmatmul.mubr.bf16.gmra.mrb[0].mxu0 %v422
    %v4023 = vpop.f32.mrb[0].mxu0
    %v4024 = vadd.f32 %v3983, %v4023
    %v4025 = vpop.f32.mrb[0].mxu0
    %v4026 = vadd.f32 %v3985, %v4025
    %v4027 = vpop.f32.mrb[0].mxu0
    %v4028 = vpop.f32.mrb[0].mxu0
    %4029 = vdwg.mxu0
    %4030 = vmatprep.subr.bf16.mxu0 %v2521
    %4031 = vmatpush1.bf16.msra.mxu0 %v2520
    %4032 = vmatprep.subr.bf16.mxu0 %v2529
    %4033 = vmatpush1.bf16.msra.mxu0 %v2528
    %4034 = vmatprep.subr.bf16.mxu0 %v2537
    %4035 = vmatpush1.bf16.msra.mxu0 %v2536
    %4036 = vmatprep.subr.bf16.mxu0 %v2545
    %4037 = vmatpush1.bf16.msra.mxu0 %v2544
    %4038 = vmatprep.subr.bf16.mxu0 %v2553
    %4039 = vmatpush1.bf16.msra.mxu0 %v2552
    %4040 = vmatprep.subr.bf16.mxu0 %v2561
    %4041 = vmatpush1.bf16.msra.mxu0 %v2560
    %4042 = vmatprep.subr.bf16.mxu0 %v2569
    %4043 = vmatpush1.bf16.msra.mxu0 %v2568
    %4044 = vmatprep.subr.bf16.mxu0 %v2577
    %4045 = vmatpush1.bf16.msra.mxu0 %v2576
    %4046 = vmatprep.subr.bf16.mxu0 %v2585
    %4047 = vmatpush1.bf16.msra.mxu0 %v2584
    %4048 = vmatprep.subr.bf16.mxu0 %v2593
    %4049 = vmatpush1.bf16.msra.mxu0 %v2592
    %4050 = vmatprep.subr.bf16.mxu0 %v2601
    %4051 = vmatpush1.bf16.msra.mxu0 %v2600
    %4052 = vmatprep.subr.bf16.mxu0 %v2609
    %4053 = vmatpush1.bf16.msra.mxu0 %v2608
    %4054 = vmatprep.subr.bf16.mxu0 %v2617
    %4055 = vmatpush1.bf16.msra.mxu0 %v2616
    %4056 = vmatprep.subr.bf16.mxu0 %v2625
    %4057 = vmatpush1.bf16.msra.mxu0 %v2624
    %4058 = vmatprep.subr.bf16.mxu0 %v2633
    %4059 = vmatpush1.bf16.msra.mxu0 %v2632
    %4060 = vmatprep.subr.bf16.mxu0 %v2641
    %4061 = vmatpush1.bf16.msra.mxu0 %v2640
    %4062 = vmatprep.mubr.bf16.mxu0 %v417
    %4063 = vmatmul.mubr.bf16.gmra.mrb[0].mxu0 %v416
    %v4064 = vpop.f32.mrb[0].mxu0
    %v4065 = vadd.f32 %v965, %v4064
    %v4066 = vpop.f32.mrb[0].mxu0
    %v4067 = vadd.f32 %v969, %v4066
    %v4068 = vpop.f32.mrb[0].mxu0
    %v4069 = vpop.f32.mrb[0].mxu0
    %4070 = vdwg.mxu0
    %4071 = vmatprep.subr.bf16.mxu0 %v2649
    %4072 = vmatpush1.bf16.msra.mxu0 %v2648
    %4073 = vmatprep.subr.bf16.mxu0 %v2657
    %4074 = vmatpush1.bf16.msra.mxu0 %v2656
    %4075 = vmatprep.subr.bf16.mxu0 %v2665
    %4076 = vmatpush1.bf16.msra.mxu0 %v2664
    %4077 = vmatprep.subr.bf16.mxu0 %v2673
    %4078 = vmatpush1.bf16.msra.mxu0 %v2672
    %4079 = vmatprep.subr.bf16.mxu0 %v2681
    %4080 = vmatpush1.bf16.msra.mxu0 %v2680
    %4081 = vmatprep.subr.bf16.mxu0 %v2689
    %4082 = vmatpush1.bf16.msra.mxu0 %v2688
    %4083 = vmatprep.subr.bf16.mxu0 %v2697
    %4084 = vmatpush1.bf16.msra.mxu0 %v2696
    %4085 = vmatprep.subr.bf16.mxu0 %v2705
    %4086 = vmatpush1.bf16.msra.mxu0 %v2704
    %4087 = vmatprep.subr.bf16.mxu0 %v2713
    %4088 = vmatpush1.bf16.msra.mxu0 %v2712
    %4089 = vmatprep.subr.bf16.mxu0 %v2721
    %4090 = vmatpush1.bf16.msra.mxu0 %v2720
    %4091 = vmatprep.subr.bf16.mxu0 %v2729
    %4092 = vmatpush1.bf16.msra.mxu0 %v2728
    %4093 = vmatprep.subr.bf16.mxu0 %v2737
    %4094 = vmatpush1.bf16.msra.mxu0 %v2736
    %4095 = vmatprep.subr.bf16.mxu0 %v2745
    %4096 = vmatpush1.bf16.msra.mxu0 %v2744
    %4097 = vmatprep.subr.bf16.mxu0 %v2753
    %4098 = vmatpush1.bf16.msra.mxu0 %v2752
    %4099 = vmatprep.subr.bf16.mxu0 %v2761
    %4100 = vmatpush1.bf16.msra.mxu0 %v2760
    %4101 = vmatprep.subr.bf16.mxu0 %v2769
    %4102 = vmatpush1.bf16.msra.mxu0 %v2768
    %4103 = vmatprep.mubr.bf16.mxu0 %v419
    %4104 = vmatmul.mubr.bf16.gmra.mrb[0].mxu0 %v418
    %v4105 = vpop.f32.mrb[0].mxu0
    %v4106 = vadd.f32 %v4065, %v4105
    %v4107 = vpop.f32.mrb[0].mxu0
    %v4108 = vadd.f32 %v4067, %v4107
    %v4109 = vpop.f32.mrb[0].mxu0
    %v4110 = vpop.f32.mrb[0].mxu0
    %4111 = vdwg.mxu0
    %4112 = vmatprep.subr.bf16.mxu0 %v2777
    %4113 = vmatpush1.bf16.msra.mxu0 %v2776
    %4114 = vmatprep.subr.bf16.mxu0 %v2785
    %4115 = vmatpush1.bf16.msra.mxu0 %v2784
    %4116 = vmatprep.subr.bf16.mxu0 %v2793
    %4117 = vmatpush1.bf16.msra.mxu0 %v2792
    %4118 = vmatprep.subr.bf16.mxu0 %v2801
    %4119 = vmatpush1.bf16.msra.mxu0 %v2800
    %4120 = vmatprep.subr.bf16.mxu0 %v2809
    %4121 = vmatpush1.bf16.msra.mxu0 %v2808
    %4122 = vmatprep.subr.bf16.mxu0 %v2817
    %4123 = vmatpush1.bf16.msra.mxu0 %v2816
    %4124 = vmatprep.subr.bf16.mxu0 %v2825
    %4125 = vmatpush1.bf16.msra.mxu0 %v2824
    %4126 = vmatprep.subr.bf16.mxu0 %v2833
    %4127 = vmatpush1.bf16.msra.mxu0 %v2832
    %4128 = vmatprep.subr.bf16.mxu0 %v2841
    %4129 = vmatpush1.bf16.msra.mxu0 %v2840
    %4130 = vmatprep.subr.bf16.mxu0 %v2849
    %4131 = vmatpush1.bf16.msra.mxu0 %v2848
    %4132 = vmatprep.subr.bf16.mxu0 %v2857
    %4133 = vmatpush1.bf16.msra.mxu0 %v2856
    %4134 = vmatprep.subr.bf16.mxu0 %v2865
    %4135 = vmatpush1.bf16.msra.mxu0 %v2864
    %4136 = vmatprep.subr.bf16.mxu0 %v2873
    %4137 = vmatpush1.bf16.msra.mxu0 %v2872
    %4138 = vmatprep.subr.bf16.mxu0 %v2881
    %4139 = vmatpush1.bf16.msra.mxu0 %v2880
    %4140 = vmatprep.subr.bf16.mxu0 %v2889
    %4141 = vmatpush1.bf16.msra.mxu0 %v2888
    %4142 = vmatprep.subr.bf16.mxu0 %v2897
    %4143 = vmatpush1.bf16.msra.mxu0 %v2896
    %4144 = vmatprep.mubr.bf16.mxu0 %v421
    %4145 = vmatmul.mubr.bf16.gmra.mrb[0].mxu0 %v420
    %v4146 = vpop.f32.mrb[0].mxu0
    %v4147 = vadd.f32 %v4106, %v4146
    %v4148 = vpop.f32.mrb[0].mxu0
    %v4149 = vadd.f32 %v4108, %v4148
    %v4150 = vpop.f32.mrb[0].mxu0
    %v4151 = vpop.f32.mrb[0].mxu0
    %4152 = vdwg.mxu0
    %4153 = vmatprep.subr.bf16.mxu0 %v2905
    %4154 = vmatpush1.bf16.msra.mxu0 %v2904
    %4155 = vmatprep.subr.bf16.mxu0 %v2913
    %4156 = vmatpush1.bf16.msra.mxu0 %v2912
    %4157 = vmatprep.subr.bf16.mxu0 %v2921
    %4158 = vmatpush1.bf16.msra.mxu0 %v2920
    %4159 = vmatprep.subr.bf16.mxu0 %v2929
    %4160 = vmatpush1.bf16.msra.mxu0 %v2928
    %4161 = vmatprep.subr.bf16.mxu0 %v2937
    %4162 = vmatpush1.bf16.msra.mxu0 %v2936
    %4163 = vmatprep.subr.bf16.mxu0 %v2945
    %4164 = vmatpush1.bf16.msra.mxu0 %v2944
    %4165 = vmatprep.subr.bf16.mxu0 %v2953
    %4166 = vmatpush1.bf16.msra.mxu0 %v2952
    %4167 = vmatprep.subr.bf16.mxu0 %v2961
    %4168 = vmatpush1.bf16.msra.mxu0 %v2960
    %4169 = vmatprep.subr.bf16.mxu0 %v2969
    %4170 = vmatpush1.bf16.msra.mxu0 %v2968
    %4171 = vmatprep.subr.bf16.mxu0 %v2977
    %4172 = vmatpush1.bf16.msra.mxu0 %v2976
    %4173 = vmatprep.subr.bf16.mxu0 %v2985
    %4174 = vmatpush1.bf16.msra.mxu0 %v2984
    %4175 = vmatprep.subr.bf16.mxu0 %v2993
    %4176 = vmatpush1.bf16.msra.mxu0 %v2992
    %4177 = vmatprep.subr.bf16.mxu0 %v3001
    %4178 = vmatpush1.bf16.msra.mxu0 %v3000
    %4179 = vmatprep.subr.bf16.mxu0 %v3009
    %4180 = vmatpush1.bf16.msra.mxu0 %v3008
    %4181 = vmatprep.subr.bf16.mxu0 %v3017
    %4182 = vmatpush1.bf16.msra.mxu0 %v3016
    %4183 = vmatprep.subr.bf16.mxu0 %v3025
    %4184 = vmatpush1.bf16.msra.mxu0 %v3024
    %4185 = vmatprep.mubr.bf16.mxu0 %v423
    %4186 = vmatmul.mubr.bf16.gmra.mrb[0].mxu0 %v422
    %v4187 = vpop.f32.mrb[0].mxu0
    %v4188 = vadd.f32 %v4147, %v4187
    %v4189 = vpop.f32.mrb[0].mxu0
    %v4190 = vadd.f32 %v4149, %v4189
    %v4191 = vpop.f32.mrb[0].mxu0
    %v4192 = vpop.f32.mrb[0].mxu0
    %4193 = vdwg.mxu0
    %v4194 = vmax.f32 %v3696, 0.0
    %v4195 = vmax.f32 %v3698, 0.0
    %v4196 = vmax.f32 %v3860, 0.0
    %v4197 = vmax.f32 %v3862, 0.0
    %v4198 = vmax.f32 %v4024, 0.0
    %v4199 = vmax.f32 %v4026, 0.0
    %v4200 = vmax.f32 %v4188, 0.0
    %v4201 = vmax.f32 %v4190, 0.0
    %v4202 = vpack.c.bf16 %v4194, %v4194
    %v4203 = vpack.c.bf16 %v4195, %v4195
    %v4204 = vpack.c.bf16 %v4196, %v4196
    %v4205 = vpack.c.bf16 %v4197, %v4197
    %v4206 = vpack.c.bf16 %v4198, %v4198
    %v4207 = vpack.c.bf16 %v4199, %v4199
    %v4208 = vpack.c.bf16 %v4200, %v4200
    %v4209 = vpack.c.bf16 %v4201, %v4201
    %v4210 = vld [vmem:[#allocation10] sm:$0xff]
    %v4211 = vld [vmem:[#allocation10 + $0x8] sm:$0xff]
    %v4212 = vld [vmem:[#allocation10 + $0x10] sm:$0xff]
    %v4213 = vld [vmem:[#allocation10 + $0x18] sm:$0xff]
    %v4214 = vld [vmem:[#allocation10 + $0x20] sm:$0xff]
    %v4215 = vld [vmem:[#allocation10 + $0x28] sm:$0xff]
    %v4216 = vld [vmem:[#allocation10 + $0x30] sm:$0xff]
    %v4217 = vld [vmem:[#allocation10 + $0x38] sm:$0xff]
    %v4218 = vld [vmem:[#allocation10 + $0x40] sm:$0xff]
    %v4219 = vld [vmem:[#allocation10 + $0x48] sm:$0xff]
    %v4220 = vld [vmem:[#allocation10 + $0x50] sm:$0xff]
    %v4221 = vld [vmem:[#allocation10 + $0x58] sm:$0xff]
    %v4222 = vld [vmem:[#allocation10 + $0x60] sm:$0xff]
    %v4223 = vld [vmem:[#allocation10 + $0x68] sm:$0xff]
    %v4224 = vld [vmem:[#allocation10 + $0x70] sm:$0xff]
    %v4225 = vld [vmem:[#allocation10 + $0x78] sm:$0xff]
    %v4226 = vld [vmem:[#allocation10 + $0x80] sm:$0xff]
    %v4227 = vld [vmem:[#allocation10 + $0x88] sm:$0xff]
    %v4228 = vld [vmem:[#allocation10 + $0x90] sm:$0xff]
    %v4229 = vld [vmem:[#allocation10 + $0x98] sm:$0xff]
    %v4230 = vld [vmem:[#allocation10 + $0xa0] sm:$0xff]
    %v4231 = vld [vmem:[#allocation10 + $0xa8] sm:$0xff]
    %v4232 = vld [vmem:[#allocation10 + $0xb0] sm:$0xff]
    %v4233 = vld [vmem:[#allocation10 + $0xb8] sm:$0xff]
    %v4234 = vld [vmem:[#allocation10 + $0xc0] sm:$0xff]
    %v4235 = vld [vmem:[#allocation10 + $0xc8] sm:$0xff]
    %v4236 = vld [vmem:[#allocation10 + $0xd0] sm:$0xff]
    %v4237 = vld [vmem:[#allocation10 + $0xd8] sm:$0xff]
    %v4238 = vld [vmem:[#allocation10 + $0xe0] sm:$0xff]
    %v4239 = vld [vmem:[#allocation10 + $0xe8] sm:$0xff]
    %v4240 = vld [vmem:[#allocation10 + $0xf0] sm:$0xff]
    %v4241 = vld [vmem:[#allocation10 + $0xf8] sm:$0xff]
    %v4242 = vld [vmem:[#allocation10 + $0x100] sm:$0xff]
    %v4243 = vld [vmem:[#allocation10 + $0x108] sm:$0xff]
    %v4244 = vld [vmem:[#allocation10 + $0x110] sm:$0xff]
    %v4245 = vld [vmem:[#allocation10 + $0x118] sm:$0xff]
    %v4246 = vld [vmem:[#allocation10 + $0x120] sm:$0xff]
    %v4247 = vld [vmem:[#allocation10 + $0x128] sm:$0xff]
    %v4248 = vld [vmem:[#allocation10 + $0x130] sm:$0xff]
    %v4249 = vld [vmem:[#allocation10 + $0x138] sm:$0xff]
    %v4250 = vld [vmem:[#allocation10 + $0x140] sm:$0xff]
    %v4251 = vld [vmem:[#allocation10 + $0x148] sm:$0xff]
    %v4252 = vld [vmem:[#allocation10 + $0x150] sm:$0xff]
    %v4253 = vld [vmem:[#allocation10 + $0x158] sm:$0xff]
    %v4254 = vld [vmem:[#allocation10 + $0x160] sm:$0xff]
    %v4255 = vld [vmem:[#allocation10 + $0x168] sm:$0xff]
    %v4256 = vld [vmem:[#allocation10 + $0x170] sm:$0xff]
    %v4257 = vld [vmem:[#allocation10 + $0x178] sm:$0xff]
    %v4258 = vld [vmem:[#allocation10 + $0x180] sm:$0xff]
    %v4259 = vld [vmem:[#allocation10 + $0x188] sm:$0xff]
    %v4260 = vld [vmem:[#allocation10 + $0x190] sm:$0xff]
    %v4261 = vld [vmem:[#allocation10 + $0x198] sm:$0xff]
    %v4262 = vld [vmem:[#allocation10 + $0x1a0] sm:$0xff]
    %v4263 = vld [vmem:[#allocation10 + $0x1a8] sm:$0xff]
    %v4264 = vld [vmem:[#allocation10 + $0x1b0] sm:$0xff]
    %v4265 = vld [vmem:[#allocation10 + $0x1b8] sm:$0xff]
    %v4266 = vld [vmem:[#allocation10 + $0x1c0] sm:$0xff]
    %v4267 = vld [vmem:[#allocation10 + $0x1c8] sm:$0xff]
    %v4268 = vld [vmem:[#allocation10 + $0x1d0] sm:$0xff]
    %v4269 = vld [vmem:[#allocation10 + $0x1d8] sm:$0xff]
    %v4270 = vld [vmem:[#allocation10 + $0x1e0] sm:$0xff]
    %v4271 = vld [vmem:[#allocation10 + $0x1e8] sm:$0xff]
    %v4272 = vld [vmem:[#allocation10 + $0x1f0] sm:$0xff]
    %v4273 = vld [vmem:[#allocation10 + $0x1f8] sm:$0xff]
    %v4274 = vld [vmem:[#allocation10 + $0x200] sm:$0xff]
    %v4275 = vld [vmem:[#allocation10 + $0x208] sm:$0xff]
    %v4276 = vld [vmem:[#allocation10 + $0x210] sm:$0xff]
    %v4277 = vld [vmem:[#allocation10 + $0x218] sm:$0xff]
    %v4278 = vld [vmem:[#allocation10 + $0x220] sm:$0xff]
    %v4279 = vld [vmem:[#allocation10 + $0x228] sm:$0xff]
    %v4280 = vld [vmem:[#allocation10 + $0x230] sm:$0xff]
    %v4281 = vld [vmem:[#allocation10 + $0x238] sm:$0xff]
    %v4282 = vld [vmem:[#allocation10 + $0x240] sm:$0xff]
    %v4283 = vld [vmem:[#allocation10 + $0x248] sm:$0xff]
    %v4284 = vld [vmem:[#allocation10 + $0x250] sm:$0xff]
    %v4285 = vld [vmem:[#allocation10 + $0x258] sm:$0xff]
    %v4286 = vld [vmem:[#allocation10 + $0x260] sm:$0xff]
    %v4287 = vld [vmem:[#allocation10 + $0x268] sm:$0xff]
    %v4288 = vld [vmem:[#allocation10 + $0x270] sm:$0xff]
    %v4289 = vld [vmem:[#allocation10 + $0x278] sm:$0xff]
    %v4290 = vld [vmem:[#allocation10 + $0x280] sm:$0xff]
    %v4291 = vld [vmem:[#allocation10 + $0x288] sm:$0xff]
    %v4292 = vld [vmem:[#allocation10 + $0x290] sm:$0xff]
    %v4293 = vld [vmem:[#allocation10 + $0x298] sm:$0xff]
    %v4294 = vld [vmem:[#allocation10 + $0x2a0] sm:$0xff]
    %v4295 = vld [vmem:[#allocation10 + $0x2a8] sm:$0xff]
    %v4296 = vld [vmem:[#allocation10 + $0x2b0] sm:$0xff]
    %v4297 = vld [vmem:[#allocation10 + $0x2b8] sm:$0xff]
    %v4298 = vld [vmem:[#allocation10 + $0x2c0] sm:$0xff]
    %v4299 = vld [vmem:[#allocation10 + $0x2c8] sm:$0xff]
    %v4300 = vld [vmem:[#allocation10 + $0x2d0] sm:$0xff]
    %v4301 = vld [vmem:[#allocation10 + $0x2d8] sm:$0xff]
    %v4302 = vld [vmem:[#allocation10 + $0x2e0] sm:$0xff]
    %v4303 = vld [vmem:[#allocation10 + $0x2e8] sm:$0xff]
    %v4304 = vld [vmem:[#allocation10 + $0x2f0] sm:$0xff]
    %v4305 = vld [vmem:[#allocation10 + $0x2f8] sm:$0xff]
    %v4306 = vld [vmem:[#allocation10 + $0x300] sm:$0xff]
    %v4307 = vld [vmem:[#allocation10 + $0x308] sm:$0xff]
    %v4308 = vld [vmem:[#allocation10 + $0x310] sm:$0xff]
    %v4309 = vld [vmem:[#allocation10 + $0x318] sm:$0xff]
    %v4310 = vld [vmem:[#allocation10 + $0x320] sm:$0xff]
    %v4311 = vld [vmem:[#allocation10 + $0x328] sm:$0xff]
    %v4312 = vld [vmem:[#allocation10 + $0x330] sm:$0xff]
    %v4313 = vld [vmem:[#allocation10 + $0x338] sm:$0xff]
    %v4314 = vld [vmem:[#allocation10 + $0x340] sm:$0xff]
    %v4315 = vld [vmem:[#allocation10 + $0x348] sm:$0xff]
    %v4316 = vld [vmem:[#allocation10 + $0x350] sm:$0xff]
    %v4317 = vld [vmem:[#allocation10 + $0x358] sm:$0xff]
    %v4318 = vld [vmem:[#allocation10 + $0x360] sm:$0xff]
    %v4319 = vld [vmem:[#allocation10 + $0x368] sm:$0xff]
    %v4320 = vld [vmem:[#allocation10 + $0x370] sm:$0xff]
    %v4321 = vld [vmem:[#allocation10 + $0x378] sm:$0xff]
    %v4322 = vld [vmem:[#allocation10 + $0x380] sm:$0xff]
    %v4323 = vld [vmem:[#allocation10 + $0x388] sm:$0xff]
    %v4324 = vld [vmem:[#allocation10 + $0x390] sm:$0xff]
    %v4325 = vld [vmem:[#allocation10 + $0x398] sm:$0xff]
    %v4326 = vld [vmem:[#allocation10 + $0x3a0] sm:$0xff]
    %v4327 = vld [vmem:[#allocation10 + $0x3a8] sm:$0xff]
    %v4328 = vld [vmem:[#allocation10 + $0x3b0] sm:$0xff]
    %v4329 = vld [vmem:[#allocation10 + $0x3b8] sm:$0xff]
    %v4330 = vld [vmem:[#allocation10 + $0x3c0] sm:$0xff]
    %v4331 = vld [vmem:[#allocation10 + $0x3c8] sm:$0xff]
    %v4332 = vld [vmem:[#allocation10 + $0x3d0] sm:$0xff]
    %v4333 = vld [vmem:[#allocation10 + $0x3d8] sm:$0xff]
    %v4334 = vld [vmem:[#allocation10 + $0x3e0] sm:$0xff]
    %v4335 = vld [vmem:[#allocation10 + $0x3e8] sm:$0xff]
    %v4336 = vld [vmem:[#allocation10 + $0x3f0] sm:$0xff]
    %v4337 = vld [vmem:[#allocation10 + $0x3f8] sm:$0xff]
    %v4338 = vld [vmem:[#allocation10 + $0x400] sm:$0xff]
    %v4339 = vld [vmem:[#allocation10 + $0x408] sm:$0xff]
    %v4340 = vld [vmem:[#allocation10 + $0x410] sm:$0xff]
    %v4341 = vld [vmem:[#allocation10 + $0x418] sm:$0xff]
    %v4342 = vld [vmem:[#allocation10 + $0x420] sm:$0xff]
    %v4343 = vld [vmem:[#allocation10 + $0x428] sm:$0xff]
    %v4344 = vld [vmem:[#allocation10 + $0x430] sm:$0xff]
    %v4345 = vld [vmem:[#allocation10 + $0x438] sm:$0xff]
    %v4346 = vld [vmem:[#allocation10 + $0x440] sm:$0xff]
    %v4347 = vld [vmem:[#allocation10 + $0x448] sm:$0xff]
    %v4348 = vld [vmem:[#allocation10 + $0x450] sm:$0xff]
    %v4349 = vld [vmem:[#allocation10 + $0x458] sm:$0xff]
    %v4350 = vld [vmem:[#allocation10 + $0x460] sm:$0xff]
    %v4351 = vld [vmem:[#allocation10 + $0x468] sm:$0xff]
    %v4352 = vld [vmem:[#allocation10 + $0x470] sm:$0xff]
    %v4353 = vld [vmem:[#allocation10 + $0x478] sm:$0xff]
    %v4354 = vld [vmem:[#allocation10 + $0x480] sm:$0xff]
    %v4355 = vld [vmem:[#allocation10 + $0x488] sm:$0xff]
    %v4356 = vld [vmem:[#allocation10 + $0x490] sm:$0xff]
    %v4357 = vld [vmem:[#allocation10 + $0x498] sm:$0xff]
    %v4358 = vld [vmem:[#allocation10 + $0x4a0] sm:$0xff]
    %v4359 = vld [vmem:[#allocation10 + $0x4a8] sm:$0xff]
    %v4360 = vld [vmem:[#allocation10 + $0x4b0] sm:$0xff]
    %v4361 = vld [vmem:[#allocation10 + $0x4b8] sm:$0xff]
    %v4362 = vld [vmem:[#allocation10 + $0x4c0] sm:$0xff]
    %v4363 = vld [vmem:[#allocation10 + $0x4c8] sm:$0xff]
    %v4364 = vld [vmem:[#allocation10 + $0x4d0] sm:$0xff]
    %v4365 = vld [vmem:[#allocation10 + $0x4d8] sm:$0xff]
    %v4366 = vld [vmem:[#allocation10 + $0x4e0] sm:$0xff]
    %v4367 = vld [vmem:[#allocation10 + $0x4e8] sm:$0xff]
    %v4368 = vld [vmem:[#allocation10 + $0x4f0] sm:$0xff]
    %v4369 = vld [vmem:[#allocation10 + $0x4f8] sm:$0xff]
    %v4370 = vld [vmem:[#allocation10 + $0x500] sm:$0xff]
    %v4371 = vld [vmem:[#allocation10 + $0x508] sm:$0xff]
    %v4372 = vld [vmem:[#allocation10 + $0x510] sm:$0xff]
    %v4373 = vld [vmem:[#allocation10 + $0x518] sm:$0xff]
    %v4374 = vld [vmem:[#allocation10 + $0x520] sm:$0xff]
    %v4375 = vld [vmem:[#allocation10 + $0x528] sm:$0xff]
    %v4376 = vld [vmem:[#allocation10 + $0x530] sm:$0xff]
    %v4377 = vld [vmem:[#allocation10 + $0x538] sm:$0xff]
    %v4378 = vld [vmem:[#allocation10 + $0x540] sm:$0xff]
    %v4379 = vld [vmem:[#allocation10 + $0x548] sm:$0xff]
    %v4380 = vld [vmem:[#allocation10 + $0x550] sm:$0xff]
    %v4381 = vld [vmem:[#allocation10 + $0x558] sm:$0xff]
    %v4382 = vld [vmem:[#allocation10 + $0x560] sm:$0xff]
    %v4383 = vld [vmem:[#allocation10 + $0x568] sm:$0xff]
    %v4384 = vld [vmem:[#allocation10 + $0x570] sm:$0xff]
    %v4385 = vld [vmem:[#allocation10 + $0x578] sm:$0xff]
    %v4386 = vld [vmem:[#allocation10 + $0x580] sm:$0xff]
    %v4387 = vld [vmem:[#allocation10 + $0x588] sm:$0xff]
    %v4388 = vld [vmem:[#allocation10 + $0x590] sm:$0xff]
    %v4389 = vld [vmem:[#allocation10 + $0x598] sm:$0xff]
    %v4390 = vld [vmem:[#allocation10 + $0x5a0] sm:$0xff]
    %v4391 = vld [vmem:[#allocation10 + $0x5a8] sm:$0xff]
    %v4392 = vld [vmem:[#allocation10 + $0x5b0] sm:$0xff]
    %v4393 = vld [vmem:[#allocation10 + $0x5b8] sm:$0xff]
    %v4394 = vld [vmem:[#allocation10 + $0x5c0] sm:$0xff]
    %v4395 = vld [vmem:[#allocation10 + $0x5c8] sm:$0xff]
    %v4396 = vld [vmem:[#allocation10 + $0x5d0] sm:$0xff]
    %v4397 = vld [vmem:[#allocation10 + $0x5d8] sm:$0xff]
    %v4398 = vld [vmem:[#allocation10 + $0x5e0] sm:$0xff]
    %v4399 = vld [vmem:[#allocation10 + $0x5e8] sm:$0xff]
    %v4400 = vld [vmem:[#allocation10 + $0x5f0] sm:$0xff]
    %v4401 = vld [vmem:[#allocation10 + $0x5f8] sm:$0xff]
    %v4402 = vld [vmem:[#allocation10 + $0x600] sm:$0xff]
    %v4403 = vld [vmem:[#allocation10 + $0x608] sm:$0xff]
    %v4404 = vld [vmem:[#allocation10 + $0x610] sm:$0xff]
    %v4405 = vld [vmem:[#allocation10 + $0x618] sm:$0xff]
    %v4406 = vld [vmem:[#allocation10 + $0x620] sm:$0xff]
    %v4407 = vld [vmem:[#allocation10 + $0x628] sm:$0xff]
    %v4408 = vld [vmem:[#allocation10 + $0x630] sm:$0xff]
    %v4409 = vld [vmem:[#allocation10 + $0x638] sm:$0xff]
    %v4410 = vld [vmem:[#allocation10 + $0x640] sm:$0xff]
    %v4411 = vld [vmem:[#allocation10 + $0x648] sm:$0xff]
    %v4412 = vld [vmem:[#allocation10 + $0x650] sm:$0xff]
    %v4413 = vld [vmem:[#allocation10 + $0x658] sm:$0xff]
    %v4414 = vld [vmem:[#allocation10 + $0x660] sm:$0xff]
    %v4415 = vld [vmem:[#allocation10 + $0x668] sm:$0xff]
    %v4416 = vld [vmem:[#allocation10 + $0x670] sm:$0xff]
    %v4417 = vld [vmem:[#allocation10 + $0x678] sm:$0xff]
    %v4418 = vld [vmem:[#allocation10 + $0x680] sm:$0xff]
    %v4419 = vld [vmem:[#allocation10 + $0x688] sm:$0xff]
    %v4420 = vld [vmem:[#allocation10 + $0x690] sm:$0xff]
    %v4421 = vld [vmem:[#allocation10 + $0x698] sm:$0xff]
    %v4422 = vld [vmem:[#allocation10 + $0x6a0] sm:$0xff]
    %v4423 = vld [vmem:[#allocation10 + $0x6a8] sm:$0xff]
    %v4424 = vld [vmem:[#allocation10 + $0x6b0] sm:$0xff]
    %v4425 = vld [vmem:[#allocation10 + $0x6b8] sm:$0xff]
    %v4426 = vld [vmem:[#allocation10 + $0x6c0] sm:$0xff]
    %v4427 = vld [vmem:[#allocation10 + $0x6c8] sm:$0xff]
    %v4428 = vld [vmem:[#allocation10 + $0x6d0] sm:$0xff]
    %v4429 = vld [vmem:[#allocation10 + $0x6d8] sm:$0xff]
    %v4430 = vld [vmem:[#allocation10 + $0x6e0] sm:$0xff]
    %v4431 = vld [vmem:[#allocation10 + $0x6e8] sm:$0xff]
    %v4432 = vld [vmem:[#allocation10 + $0x6f0] sm:$0xff]
    %v4433 = vld [vmem:[#allocation10 + $0x6f8] sm:$0xff]
    %v4434 = vld [vmem:[#allocation10 + $0x700] sm:$0xff]
    %v4435 = vld [vmem:[#allocation10 + $0x708] sm:$0xff]
    %v4436 = vld [vmem:[#allocation10 + $0x710] sm:$0xff]
    %v4437 = vld [vmem:[#allocation10 + $0x718] sm:$0xff]
    %v4438 = vld [vmem:[#allocation10 + $0x720] sm:$0xff]
    %v4439 = vld [vmem:[#allocation10 + $0x728] sm:$0xff]
    %v4440 = vld [vmem:[#allocation10 + $0x730] sm:$0xff]
    %v4441 = vld [vmem:[#allocation10 + $0x738] sm:$0xff]
    %v4442 = vld [vmem:[#allocation10 + $0x740] sm:$0xff]
    %v4443 = vld [vmem:[#allocation10 + $0x748] sm:$0xff]
    %v4444 = vld [vmem:[#allocation10 + $0x750] sm:$0xff]
    %v4445 = vld [vmem:[#allocation10 + $0x758] sm:$0xff]
    %v4446 = vld [vmem:[#allocation10 + $0x760] sm:$0xff]
    %v4447 = vld [vmem:[#allocation10 + $0x768] sm:$0xff]
    %v4448 = vld [vmem:[#allocation10 + $0x770] sm:$0xff]
    %v4449 = vld [vmem:[#allocation10 + $0x778] sm:$0xff]
    %v4450 = vld [vmem:[#allocation10 + $0x780] sm:$0xff]
    %v4451 = vld [vmem:[#allocation10 + $0x788] sm:$0xff]
    %v4452 = vld [vmem:[#allocation10 + $0x790] sm:$0xff]
    %v4453 = vld [vmem:[#allocation10 + $0x798] sm:$0xff]
    %v4454 = vld [vmem:[#allocation10 + $0x7a0] sm:$0xff]
    %v4455 = vld [vmem:[#allocation10 + $0x7a8] sm:$0xff]
    %v4456 = vld [vmem:[#allocation10 + $0x7b0] sm:$0xff]
    %v4457 = vld [vmem:[#allocation10 + $0x7b8] sm:$0xff]
    %v4458 = vld [vmem:[#allocation10 + $0x7c0] sm:$0xff]
    %v4459 = vld [vmem:[#allocation10 + $0x7c8] sm:$0xff]
    %v4460 = vld [vmem:[#allocation10 + $0x7d0] sm:$0xff]
    %v4461 = vld [vmem:[#allocation10 + $0x7d8] sm:$0xff]
    %v4462 = vld [vmem:[#allocation10 + $0x7e0] sm:$0xff]
    %v4463 = vld [vmem:[#allocation10 + $0x7e8] sm:$0xff]
    %v4464 = vld [vmem:[#allocation10 + $0x7f0] sm:$0xff]
    %v4465 = vld [vmem:[#allocation10 + $0x7f8] sm:$0xff]
    %v4466 = vld [vmem:[#allocation10 + $0x800] sm:$0xff]
    %v4467 = vld [vmem:[#allocation10 + $0x808] sm:$0xff]
    %v4468 = vld [vmem:[#allocation10 + $0x810] sm:$0xff]
    %v4469 = vld [vmem:[#allocation10 + $0x818] sm:$0xff]
    %v4470 = vld [vmem:[#allocation10 + $0x820] sm:$0xff]
    %v4471 = vld [vmem:[#allocation10 + $0x828] sm:$0xff]
    %v4472 = vld [vmem:[#allocation10 + $0x830] sm:$0xff]
    %v4473 = vld [vmem:[#allocation10 + $0x838] sm:$0xff]
    %v4474 = vld [vmem:[#allocation10 + $0x840] sm:$0xff]
    %v4475 = vld [vmem:[#allocation10 + $0x848] sm:$0xff]
    %v4476 = vld [vmem:[#allocation10 + $0x850] sm:$0xff]
    %v4477 = vld [vmem:[#allocation10 + $0x858] sm:$0xff]
    %v4478 = vld [vmem:[#allocation10 + $0x860] sm:$0xff]
    %v4479 = vld [vmem:[#allocation10 + $0x868] sm:$0xff]
    %v4480 = vld [vmem:[#allocation10 + $0x870] sm:$0xff]
    %v4481 = vld [vmem:[#allocation10 + $0x878] sm:$0xff]
    %v4482 = vld [vmem:[#allocation10 + $0x880] sm:$0xff]
    %v4483 = vld [vmem:[#allocation10 + $0x888] sm:$0xff]
    %v4484 = vld [vmem:[#allocation10 + $0x890] sm:$0xff]
    %v4485 = vld [vmem:[#allocation10 + $0x898] sm:$0xff]
    %v4486 = vld [vmem:[#allocation10 + $0x8a0] sm:$0xff]
    %v4487 = vld [vmem:[#allocation10 + $0x8a8] sm:$0xff]
    %v4488 = vld [vmem:[#allocation10 + $0x8b0] sm:$0xff]
    %v4489 = vld [vmem:[#allocation10 + $0x8b8] sm:$0xff]
    %v4490 = vld [vmem:[#allocation10 + $0x8c0] sm:$0xff]
    %v4491 = vld [vmem:[#allocation10 + $0x8c8] sm:$0xff]
    %v4492 = vld [vmem:[#allocation10 + $0x8d0] sm:$0xff]
    %v4493 = vld [vmem:[#allocation10 + $0x8d8] sm:$0xff]
    %v4494 = vld [vmem:[#allocation10 + $0x8e0] sm:$0xff]
    %v4495 = vld [vmem:[#allocation10 + $0x8e8] sm:$0xff]
    %v4496 = vld [vmem:[#allocation10 + $0x8f0] sm:$0xff]
    %v4497 = vld [vmem:[#allocation10 + $0x8f8] sm:$0xff]
    %v4498 = vld [vmem:[#allocation10 + $0x900] sm:$0xff]
    %v4499 = vld [vmem:[#allocation10 + $0x908] sm:$0xff]
    %v4500 = vld [vmem:[#allocation10 + $0x910] sm:$0xff]
    %v4501 = vld [vmem:[#allocation10 + $0x918] sm:$0xff]
    %v4502 = vld [vmem:[#allocation10 + $0x920] sm:$0xff]
    %v4503 = vld [vmem:[#allocation10 + $0x928] sm:$0xff]
    %v4504 = vld [vmem:[#allocation10 + $0x930] sm:$0xff]
    %v4505 = vld [vmem:[#allocation10 + $0x938] sm:$0xff]
    %v4506 = vld [vmem:[#allocation10 + $0x940] sm:$0xff]
    %v4507 = vld [vmem:[#allocation10 + $0x948] sm:$0xff]
    %v4508 = vld [vmem:[#allocation10 + $0x950] sm:$0xff]
    %v4509 = vld [vmem:[#allocation10 + $0x958] sm:$0xff]
    %v4510 = vld [vmem:[#allocation10 + $0x960] sm:$0xff]
    %v4511 = vld [vmem:[#allocation10 + $0x968] sm:$0xff]
    %v4512 = vld [vmem:[#allocation10 + $0x970] sm:$0xff]
    %v4513 = vld [vmem:[#allocation10 + $0x978] sm:$0xff]
    %v4514 = vld [vmem:[#allocation10 + $0x980] sm:$0xff]
    %v4515 = vld [vmem:[#allocation10 + $0x988] sm:$0xff]
    %v4516 = vld [vmem:[#allocation10 + $0x990] sm:$0xff]
    %v4517 = vld [vmem:[#allocation10 + $0x998] sm:$0xff]
    %v4518 = vld [vmem:[#allocation10 + $0x9a0] sm:$0xff]
    %v4519 = vld [vmem:[#allocation10 + $0x9a8] sm:$0xff]
    %v4520 = vld [vmem:[#allocation10 + $0x9b0] sm:$0xff]
    %v4521 = vld [vmem:[#allocation10 + $0x9b8] sm:$0xff]
    %v4522 = vld [vmem:[#allocation10 + $0x9c0] sm:$0xff]
    %v4523 = vld [vmem:[#allocation10 + $0x9c8] sm:$0xff]
    %v4524 = vld [vmem:[#allocation10 + $0x9d0] sm:$0xff]
    %v4525 = vld [vmem:[#allocation10 + $0x9d8] sm:$0xff]
    %v4526 = vld [vmem:[#allocation10 + $0x9e0] sm:$0xff]
    %v4527 = vld [vmem:[#allocation10 + $0x9e8] sm:$0xff]
    %v4528 = vld [vmem:[#allocation10 + $0x9f0] sm:$0xff]
    %v4529 = vld [vmem:[#allocation10 + $0x9f8] sm:$0xff]
    %v4530 = vld [vmem:[#allocation10 + $0xa00] sm:$0xff]
    %v4531 = vld [vmem:[#allocation10 + $0xa08] sm:$0xff]
    %v4532 = vld [vmem:[#allocation10 + $0xa10] sm:$0xff]
    %v4533 = vld [vmem:[#allocation10 + $0xa18] sm:$0xff]
    %v4534 = vld [vmem:[#allocation10 + $0xa20] sm:$0xff]
    %v4535 = vld [vmem:[#allocation10 + $0xa28] sm:$0xff]
    %v4536 = vld [vmem:[#allocation10 + $0xa30] sm:$0xff]
    %v4537 = vld [vmem:[#allocation10 + $0xa38] sm:$0xff]
    %v4538 = vld [vmem:[#allocation10 + $0xa40] sm:$0xff]
    %v4539 = vld [vmem:[#allocation10 + $0xa48] sm:$0xff]
    %v4540 = vld [vmem:[#allocation10 + $0xa50] sm:$0xff]
    %v4541 = vld [vmem:[#allocation10 + $0xa58] sm:$0xff]
    %v4542 = vld [vmem:[#allocation10 + $0xa60] sm:$0xff]
    %v4543 = vld [vmem:[#allocation10 + $0xa68] sm:$0xff]
    %v4544 = vld [vmem:[#allocation10 + $0xa70] sm:$0xff]
    %v4545 = vld [vmem:[#allocation10 + $0xa78] sm:$0xff]
    %v4546 = vld [vmem:[#allocation10 + $0xa80] sm:$0xff]
    %v4547 = vld [vmem:[#allocation10 + $0xa88] sm:$0xff]
    %v4548 = vld [vmem:[#allocation10 + $0xa90] sm:$0xff]
    %v4549 = vld [vmem:[#allocation10 + $0xa98] sm:$0xff]
    %v4550 = vld [vmem:[#allocation10 + $0xaa0] sm:$0xff]
    %v4551 = vld [vmem:[#allocation10 + $0xaa8] sm:$0xff]
    %v4552 = vld [vmem:[#allocation10 + $0xab0] sm:$0xff]
    %v4553 = vld [vmem:[#allocation10 + $0xab8] sm:$0xff]
    %v4554 = vld [vmem:[#allocation10 + $0xac0] sm:$0xff]
    %v4555 = vld [vmem:[#allocation10 + $0xac8] sm:$0xff]
    %v4556 = vld [vmem:[#allocation10 + $0xad0] sm:$0xff]
    %v4557 = vld [vmem:[#allocation10 + $0xad8] sm:$0xff]
    %v4558 = vld [vmem:[#allocation10 + $0xae0] sm:$0xff]
    %v4559 = vld [vmem:[#allocation10 + $0xae8] sm:$0xff]
    %v4560 = vld [vmem:[#allocation10 + $0xaf0] sm:$0xff]
    %v4561 = vld [vmem:[#allocation10 + $0xaf8] sm:$0xff]
    %v4562 = vld [vmem:[#allocation10 + $0xb00] sm:$0xff]
    %v4563 = vld [vmem:[#allocation10 + $0xb08] sm:$0xff]
    %v4564 = vld [vmem:[#allocation10 + $0xb10] sm:$0xff]
    %v4565 = vld [vmem:[#allocation10 + $0xb18] sm:$0xff]
    %v4566 = vld [vmem:[#allocation10 + $0xb20] sm:$0xff]
    %v4567 = vld [vmem:[#allocation10 + $0xb28] sm:$0xff]
    %v4568 = vld [vmem:[#allocation10 + $0xb30] sm:$0xff]
    %v4569 = vld [vmem:[#allocation10 + $0xb38] sm:$0xff]
    %v4570 = vld [vmem:[#allocation10 + $0xb40] sm:$0xff]
    %v4571 = vld [vmem:[#allocation10 + $0xb48] sm:$0xff]
    %v4572 = vld [vmem:[#allocation10 + $0xb50] sm:$0xff]
    %v4573 = vld [vmem:[#allocation10 + $0xb58] sm:$0xff]
    %v4574 = vld [vmem:[#allocation10 + $0xb60] sm:$0xff]
    %v4575 = vld [vmem:[#allocation10 + $0xb68] sm:$0xff]
    %v4576 = vld [vmem:[#allocation10 + $0xb70] sm:$0xff]
    %v4577 = vld [vmem:[#allocation10 + $0xb78] sm:$0xff]
    %v4578 = vld [vmem:[#allocation10 + $0xb80] sm:$0xff]
    %v4579 = vld [vmem:[#allocation10 + $0xb88] sm:$0xff]
    %v4580 = vld [vmem:[#allocation10 + $0xb90] sm:$0xff]
    %v4581 = vld [vmem:[#allocation10 + $0xb98] sm:$0xff]
    %v4582 = vld [vmem:[#allocation10 + $0xba0] sm:$0xff]
    %v4583 = vld [vmem:[#allocation10 + $0xba8] sm:$0xff]
    %v4584 = vld [vmem:[#allocation10 + $0xbb0] sm:$0xff]
    %v4585 = vld [vmem:[#allocation10 + $0xbb8] sm:$0xff]
    %v4586 = vld [vmem:[#allocation10 + $0xbc0] sm:$0xff]
    %v4587 = vld [vmem:[#allocation10 + $0xbc8] sm:$0xff]
    %v4588 = vld [vmem:[#allocation10 + $0xbd0] sm:$0xff]
    %v4589 = vld [vmem:[#allocation10 + $0xbd8] sm:$0xff]
    %v4590 = vld [vmem:[#allocation10 + $0xbe0] sm:$0xff]
    %v4591 = vld [vmem:[#allocation10 + $0xbe8] sm:$0xff]
    %v4592 = vld [vmem:[#allocation10 + $0xbf0] sm:$0xff]
    %v4593 = vld [vmem:[#allocation10 + $0xbf8] sm:$0xff]
    %v4594 = vld [vmem:[#allocation10 + $0xc00] sm:$0xff]
    %v4595 = vld [vmem:[#allocation10 + $0xc08] sm:$0xff]
    %v4596 = vld [vmem:[#allocation10 + $0xc10] sm:$0xff]
    %v4597 = vld [vmem:[#allocation10 + $0xc18] sm:$0xff]
    %v4598 = vld [vmem:[#allocation10 + $0xc20] sm:$0xff]
    %v4599 = vld [vmem:[#allocation10 + $0xc28] sm:$0xff]
    %v4600 = vld [vmem:[#allocation10 + $0xc30] sm:$0xff]
    %v4601 = vld [vmem:[#allocation10 + $0xc38] sm:$0xff]
    %v4602 = vld [vmem:[#allocation10 + $0xc40] sm:$0xff]
    %v4603 = vld [vmem:[#allocation10 + $0xc48] sm:$0xff]
    %v4604 = vld [vmem:[#allocation10 + $0xc50] sm:$0xff]
    %v4605 = vld [vmem:[#allocation10 + $0xc58] sm:$0xff]
    %v4606 = vld [vmem:[#allocation10 + $0xc60] sm:$0xff]
    %v4607 = vld [vmem:[#allocation10 + $0xc68] sm:$0xff]
    %v4608 = vld [vmem:[#allocation10 + $0xc70] sm:$0xff]
    %v4609 = vld [vmem:[#allocation10 + $0xc78] sm:$0xff]
    %v4610 = vld [vmem:[#allocation10 + $0xc80] sm:$0xff]
    %v4611 = vld [vmem:[#allocation10 + $0xc88] sm:$0xff]
    %v4612 = vld [vmem:[#allocation10 + $0xc90] sm:$0xff]
    %v4613 = vld [vmem:[#allocation10 + $0xc98] sm:$0xff]
    %v4614 = vld [vmem:[#allocation10 + $0xca0] sm:$0xff]
    %v4615 = vld [vmem:[#allocation10 + $0xca8] sm:$0xff]
    %v4616 = vld [vmem:[#allocation10 + $0xcb0] sm:$0xff]
    %v4617 = vld [vmem:[#allocation10 + $0xcb8] sm:$0xff]
    %v4618 = vld [vmem:[#allocation10 + $0xcc0] sm:$0xff]
    %v4619 = vld [vmem:[#allocation10 + $0xcc8] sm:$0xff]
    %v4620 = vld [vmem:[#allocation10 + $0xcd0] sm:$0xff]
    %v4621 = vld [vmem:[#allocation10 + $0xcd8] sm:$0xff]
    %v4622 = vld [vmem:[#allocation10 + $0xce0] sm:$0xff]
    %v4623 = vld [vmem:[#allocation10 + $0xce8] sm:$0xff]
    %v4624 = vld [vmem:[#allocation10 + $0xcf0] sm:$0xff]
    %v4625 = vld [vmem:[#allocation10 + $0xcf8] sm:$0xff]
    %v4626 = vld [vmem:[#allocation10 + $0xd00] sm:$0xff]
    %v4627 = vld [vmem:[#allocation10 + $0xd08] sm:$0xff]
    %v4628 = vld [vmem:[#allocation10 + $0xd10] sm:$0xff]
    %v4629 = vld [vmem:[#allocation10 + $0xd18] sm:$0xff]
    %v4630 = vld [vmem:[#allocation10 + $0xd20] sm:$0xff]
    %v4631 = vld [vmem:[#allocation10 + $0xd28] sm:$0xff]
    %v4632 = vld [vmem:[#allocation10 + $0xd30] sm:$0xff]
    %v4633 = vld [vmem:[#allocation10 + $0xd38] sm:$0xff]
    %v4634 = vld [vmem:[#allocation10 + $0xd40] sm:$0xff]
    %v4635 = vld [vmem:[#allocation10 + $0xd48] sm:$0xff]
    %v4636 = vld [vmem:[#allocation10 + $0xd50] sm:$0xff]
    %v4637 = vld [vmem:[#allocation10 + $0xd58] sm:$0xff]
    %v4638 = vld [vmem:[#allocation10 + $0xd60] sm:$0xff]
    %v4639 = vld [vmem:[#allocation10 + $0xd68] sm:$0xff]
    %v4640 = vld [vmem:[#allocation10 + $0xd70] sm:$0xff]
    %v4641 = vld [vmem:[#allocation10 + $0xd78] sm:$0xff]
    %v4642 = vld [vmem:[#allocation10 + $0xd80] sm:$0xff]
    %v4643 = vld [vmem:[#allocation10 + $0xd88] sm:$0xff]
    %v4644 = vld [vmem:[#allocation10 + $0xd90] sm:$0xff]
    %v4645 = vld [vmem:[#allocation10 + $0xd98] sm:$0xff]
    %v4646 = vld [vmem:[#allocation10 + $0xda0] sm:$0xff]
    %v4647 = vld [vmem:[#allocation10 + $0xda8] sm:$0xff]
    %v4648 = vld [vmem:[#allocation10 + $0xdb0] sm:$0xff]
    %v4649 = vld [vmem:[#allocation10 + $0xdb8] sm:$0xff]
    %v4650 = vld [vmem:[#allocation10 + $0xdc0] sm:$0xff]
    %v4651 = vld [vmem:[#allocation10 + $0xdc8] sm:$0xff]
    %v4652 = vld [vmem:[#allocation10 + $0xdd0] sm:$0xff]
    %v4653 = vld [vmem:[#allocation10 + $0xdd8] sm:$0xff]
    %v4654 = vld [vmem:[#allocation10 + $0xde0] sm:$0xff]
    %v4655 = vld [vmem:[#allocation10 + $0xde8] sm:$0xff]
    %v4656 = vld [vmem:[#allocation10 + $0xdf0] sm:$0xff]
    %v4657 = vld [vmem:[#allocation10 + $0xdf8] sm:$0xff]
    %v4658 = vld [vmem:[#allocation10 + $0xe00] sm:$0xff]
    %v4659 = vld [vmem:[#allocation10 + $0xe08] sm:$0xff]
    %v4660 = vld [vmem:[#allocation10 + $0xe10] sm:$0xff]
    %v4661 = vld [vmem:[#allocation10 + $0xe18] sm:$0xff]
    %v4662 = vld [vmem:[#allocation10 + $0xe20] sm:$0xff]
    %v4663 = vld [vmem:[#allocation10 + $0xe28] sm:$0xff]
    %v4664 = vld [vmem:[#allocation10 + $0xe30] sm:$0xff]
    %v4665 = vld [vmem:[#allocation10 + $0xe38] sm:$0xff]
    %v4666 = vld [vmem:[#allocation10 + $0xe40] sm:$0xff]
    %v4667 = vld [vmem:[#allocation10 + $0xe48] sm:$0xff]
    %v4668 = vld [vmem:[#allocation10 + $0xe50] sm:$0xff]
    %v4669 = vld [vmem:[#allocation10 + $0xe58] sm:$0xff]
    %v4670 = vld [vmem:[#allocation10 + $0xe60] sm:$0xff]
    %v4671 = vld [vmem:[#allocation10 + $0xe68] sm:$0xff]
    %v4672 = vld [vmem:[#allocation10 + $0xe70] sm:$0xff]
    %v4673 = vld [vmem:[#allocation10 + $0xe78] sm:$0xff]
    %v4674 = vld [vmem:[#allocation10 + $0xe80] sm:$0xff]
    %v4675 = vld [vmem:[#allocation10 + $0xe88] sm:$0xff]
    %v4676 = vld [vmem:[#allocation10 + $0xe90] sm:$0xff]
    %v4677 = vld [vmem:[#allocation10 + $0xe98] sm:$0xff]
    %v4678 = vld [vmem:[#allocation10 + $0xea0] sm:$0xff]
    %v4679 = vld [vmem:[#allocation10 + $0xea8] sm:$0xff]
    %v4680 = vld [vmem:[#allocation10 + $0xeb0] sm:$0xff]
    %v4681 = vld [vmem:[#allocation10 + $0xeb8] sm:$0xff]
    %v4682 = vld [vmem:[#allocation10 + $0xec0] sm:$0xff]
    %v4683 = vld [vmem:[#allocation10 + $0xec8] sm:$0xff]
    %v4684 = vld [vmem:[#allocation10 + $0xed0] sm:$0xff]
    %v4685 = vld [vmem:[#allocation10 + $0xed8] sm:$0xff]
    %v4686 = vld [vmem:[#allocation10 + $0xee0] sm:$0xff]
    %v4687 = vld [vmem:[#allocation10 + $0xee8] sm:$0xff]
    %v4688 = vld [vmem:[#allocation10 + $0xef0] sm:$0xff]
    %v4689 = vld [vmem:[#allocation10 + $0xef8] sm:$0xff]
    %v4690 = vld [vmem:[#allocation10 + $0xf00] sm:$0xff]
    %v4691 = vld [vmem:[#allocation10 + $0xf08] sm:$0xff]
    %v4692 = vld [vmem:[#allocation10 + $0xf10] sm:$0xff]
    %v4693 = vld [vmem:[#allocation10 + $0xf18] sm:$0xff]
    %v4694 = vld [vmem:[#allocation10 + $0xf20] sm:$0xff]
    %v4695 = vld [vmem:[#allocation10 + $0xf28] sm:$0xff]
    %v4696 = vld [vmem:[#allocation10 + $0xf30] sm:$0xff]
    %v4697 = vld [vmem:[#allocation10 + $0xf38] sm:$0xff]
    %v4698 = vld [vmem:[#allocation10 + $0xf40] sm:$0xff]
    %v4699 = vld [vmem:[#allocation10 + $0xf48] sm:$0xff]
    %v4700 = vld [vmem:[#allocation10 + $0xf50] sm:$0xff]
    %v4701 = vld [vmem:[#allocation10 + $0xf58] sm:$0xff]
    %v4702 = vld [vmem:[#allocation10 + $0xf60] sm:$0xff]
    %v4703 = vld [vmem:[#allocation10 + $0xf68] sm:$0xff]
    %v4704 = vld [vmem:[#allocation10 + $0xf70] sm:$0xff]
    %v4705 = vld [vmem:[#allocation10 + $0xf78] sm:$0xff]
    %v4706 = vld [vmem:[#allocation10 + $0xf80] sm:$0xff]
    %v4707 = vld [vmem:[#allocation10 + $0xf88] sm:$0xff]
    %v4708 = vld [vmem:[#allocation10 + $0xf90] sm:$0xff]
    %v4709 = vld [vmem:[#allocation10 + $0xf98] sm:$0xff]
    %v4710 = vld [vmem:[#allocation10 + $0xfa0] sm:$0xff]
    %v4711 = vld [vmem:[#allocation10 + $0xfa8] sm:$0xff]
    %v4712 = vld [vmem:[#allocation10 + $0xfb0] sm:$0xff]
    %v4713 = vld [vmem:[#allocation10 + $0xfb8] sm:$0xff]
    %v4714 = vld [vmem:[#allocation10 + $0xfc0] sm:$0xff]
    %v4715 = vld [vmem:[#allocation10 + $0xfc8] sm:$0xff]
    %v4716 = vld [vmem:[#allocation10 + $0xfd0] sm:$0xff]
    %v4717 = vld [vmem:[#allocation10 + $0xfd8] sm:$0xff]
    %v4718 = vld [vmem:[#allocation10 + $0xfe0] sm:$0xff]
    %v4719 = vld [vmem:[#allocation10 + $0xfe8] sm:$0xff]
    %v4720 = vld [vmem:[#allocation10 + $0xff0] sm:$0xff]
    %v4721 = vld [vmem:[#allocation10 + $0xff8] sm:$0xff]
    %v4722 = vld [vmem:[#allocation11] sm:$0xff]
    %v4724 = vlaneseq
    %v4725 = vshrl.u32 %v4724, 7
    %v4726 = vsub.s32 0, %v4725
    %v4727 = vrot.slane %v4722, %v4726
    %v4728 = vlaneseq
    %v4729 = vshrl.u32 %v4728, 7
    %v4730 = vsub.s32 1, %v4729
    %v4731 = vrot.slane %v4722, %v4730
    %v4732 = vlaneseq
    %v4733 = vshrl.u32 %v4732, 7
    %v4734 = vsub.s32 2, %v4733
    %v4735 = vrot.slane %v4722, %v4734
    %v4736 = vlaneseq
    %v4737 = vshrl.u32 %v4736, 7
    %v4738 = vsub.s32 3, %v4737
    %v4739 = vrot.slane %v4722, %v4738
    %v4740 = vlaneseq
    %v4741 = vshrl.u32 %v4740, 7
    %v4742 = vsub.s32 4, %v4741
    %v4743 = vrot.slane %v4722, %v4742
    %v4744 = vlaneseq
    %v4745 = vshrl.u32 %v4744, 7
    %v4746 = vsub.s32 5, %v4745
    %v4747 = vrot.slane %v4722, %v4746
    %v4748 = vlaneseq
    %v4749 = vshrl.u32 %v4748, 7
    %v4750 = vsub.s32 6, %v4749
    %v4751 = vrot.slane %v4722, %v4750
    %v4752 = vlaneseq
    %v4753 = vshrl.u32 %v4752, 7
    %v4754 = vsub.s32 7, %v4753
    %v4755 = vrot.slane %v4722, %v4754
    %v5276 = vunpack.c.l.b16 %v4210
    %v5277 = vunpack.c.h.b16 %v4210
    %v5278 = vunpack.c.l.b16 %v4211
    %v5279 = vunpack.c.h.b16 %v4211
    %v5280 = vunpack.c.l.b16 %v4212
    %v5281 = vunpack.c.h.b16 %v4212
    %v5282 = vunpack.c.l.b16 %v4213
    %v5283 = vunpack.c.h.b16 %v4213
    %v5284 = vunpack.c.l.b16 %v4214
    %v5285 = vunpack.c.h.b16 %v4214
    %v5286 = vunpack.c.l.b16 %v4215
    %v5287 = vunpack.c.h.b16 %v4215
    %v5288 = vunpack.c.l.b16 %v4216
    %v5289 = vunpack.c.h.b16 %v4216
    %v5290 = vunpack.c.l.b16 %v4217
    %v5291 = vunpack.c.h.b16 %v4217
    %v5292 = vunpack.c.l.b16 %v4218
    %v5293 = vunpack.c.h.b16 %v4218
    %v5294 = vunpack.c.l.b16 %v4219
    %v5295 = vunpack.c.h.b16 %v4219
    %v5296 = vunpack.c.l.b16 %v4220
    %v5297 = vunpack.c.h.b16 %v4220
    %v5298 = vunpack.c.l.b16 %v4221
    %v5299 = vunpack.c.h.b16 %v4221
    %v5300 = vunpack.c.l.b16 %v4222
    %v5301 = vunpack.c.h.b16 %v4222
    %v5302 = vunpack.c.l.b16 %v4223
    %v5303 = vunpack.c.h.b16 %v4223
    %v5304 = vunpack.c.l.b16 %v4224
    %v5305 = vunpack.c.h.b16 %v4224
    %v5306 = vunpack.c.l.b16 %v4225
    %v5307 = vunpack.c.h.b16 %v4225
    %v5308 = vunpack.c.l.b16 %v4226
    %v5309 = vunpack.c.h.b16 %v4226
    %v5310 = vunpack.c.l.b16 %v4227
    %v5311 = vunpack.c.h.b16 %v4227
    %v5312 = vunpack.c.l.b16 %v4228
    %v5313 = vunpack.c.h.b16 %v4228
    %v5314 = vunpack.c.l.b16 %v4229
    %v5315 = vunpack.c.h.b16 %v4229
    %v5316 = vunpack.c.l.b16 %v4230
    %v5317 = vunpack.c.h.b16 %v4230
    %v5318 = vunpack.c.l.b16 %v4231
    %v5319 = vunpack.c.h.b16 %v4231
    %v5320 = vunpack.c.l.b16 %v4232
    %v5321 = vunpack.c.h.b16 %v4232
    %v5322 = vunpack.c.l.b16 %v4233
    %v5323 = vunpack.c.h.b16 %v4233
    %v5324 = vunpack.c.l.b16 %v4234
    %v5325 = vunpack.c.h.b16 %v4234
    %v5326 = vunpack.c.l.b16 %v4235
    %v5327 = vunpack.c.h.b16 %v4235
    %v5328 = vunpack.c.l.b16 %v4236
    %v5329 = vunpack.c.h.b16 %v4236
    %v5330 = vunpack.c.l.b16 %v4237
    %v5331 = vunpack.c.h.b16 %v4237
    %v5332 = vunpack.c.l.b16 %v4238
    %v5333 = vunpack.c.h.b16 %v4238
    %v5334 = vunpack.c.l.b16 %v4239
    %v5335 = vunpack.c.h.b16 %v4239
    %v5336 = vunpack.c.l.b16 %v4240
    %v5337 = vunpack.c.h.b16 %v4240
    %v5338 = vunpack.c.l.b16 %v4241
    %v5339 = vunpack.c.h.b16 %v4241
    %v5340 = vunpack.c.l.b16 %v4242
    %v5341 = vunpack.c.h.b16 %v4242
    %v5342 = vunpack.c.l.b16 %v4243
    %v5343 = vunpack.c.h.b16 %v4243
    %v5344 = vunpack.c.l.b16 %v4244
    %v5345 = vunpack.c.h.b16 %v4244
    %v5346 = vunpack.c.l.b16 %v4245
    %v5347 = vunpack.c.h.b16 %v4245
    %v5348 = vunpack.c.l.b16 %v4246
    %v5349 = vunpack.c.h.b16 %v4246
    %v5350 = vunpack.c.l.b16 %v4247
    %v5351 = vunpack.c.h.b16 %v4247
    %v5352 = vunpack.c.l.b16 %v4248
    %v5353 = vunpack.c.h.b16 %v4248
    %v5354 = vunpack.c.l.b16 %v4249
    %v5355 = vunpack.c.h.b16 %v4249
    %v5356 = vunpack.c.l.b16 %v4250
    %v5357 = vunpack.c.h.b16 %v4250
    %v5358 = vunpack.c.l.b16 %v4251
    %v5359 = vunpack.c.h.b16 %v4251
    %v5360 = vunpack.c.l.b16 %v4252
    %v5361 = vunpack.c.h.b16 %v4252
    %v5362 = vunpack.c.l.b16 %v4253
    %v5363 = vunpack.c.h.b16 %v4253
    %v5364 = vunpack.c.l.b16 %v4254
    %v5365 = vunpack.c.h.b16 %v4254
    %v5366 = vunpack.c.l.b16 %v4255
    %v5367 = vunpack.c.h.b16 %v4255
    %v5368 = vunpack.c.l.b16 %v4256
    %v5369 = vunpack.c.h.b16 %v4256
    %v5370 = vunpack.c.l.b16 %v4257
    %v5371 = vunpack.c.h.b16 %v4257
    %v5372 = vunpack.c.l.b16 %v4258
    %v5373 = vunpack.c.h.b16 %v4258
    %v5374 = vunpack.c.l.b16 %v4259
    %v5375 = vunpack.c.h.b16 %v4259
    %v5376 = vunpack.c.l.b16 %v4260
    %v5377 = vunpack.c.h.b16 %v4260
    %v5378 = vunpack.c.l.b16 %v4261
    %v5379 = vunpack.c.h.b16 %v4261
    %v5380 = vunpack.c.l.b16 %v4262
    %v5381 = vunpack.c.h.b16 %v4262
    %v5382 = vunpack.c.l.b16 %v4263
    %v5383 = vunpack.c.h.b16 %v4263
    %v5384 = vunpack.c.l.b16 %v4264
    %v5385 = vunpack.c.h.b16 %v4264
    %v5386 = vunpack.c.l.b16 %v4265
    %v5387 = vunpack.c.h.b16 %v4265
    %v5388 = vunpack.c.l.b16 %v4266
    %v5389 = vunpack.c.h.b16 %v4266
    %v5390 = vunpack.c.l.b16 %v4267
    %v5391 = vunpack.c.h.b16 %v4267
    %v5392 = vunpack.c.l.b16 %v4268
    %v5393 = vunpack.c.h.b16 %v4268
    %v5394 = vunpack.c.l.b16 %v4269
    %v5395 = vunpack.c.h.b16 %v4269
    %v5396 = vunpack.c.l.b16 %v4270
    %v5397 = vunpack.c.h.b16 %v4270
    %v5398 = vunpack.c.l.b16 %v4271
    %v5399 = vunpack.c.h.b16 %v4271
    %v5400 = vunpack.c.l.b16 %v4272
    %v5401 = vunpack.c.h.b16 %v4272
    %v5402 = vunpack.c.l.b16 %v4273
    %v5403 = vunpack.c.h.b16 %v4273
    %v5404 = vunpack.c.l.b16 %v4274
    %v5405 = vunpack.c.h.b16 %v4274
    %v5406 = vunpack.c.l.b16 %v4275
    %v5407 = vunpack.c.h.b16 %v4275
    %v5408 = vunpack.c.l.b16 %v4276
    %v5409 = vunpack.c.h.b16 %v4276
    %v5410 = vunpack.c.l.b16 %v4277
    %v5411 = vunpack.c.h.b16 %v4277
    %v5412 = vunpack.c.l.b16 %v4278
    %v5413 = vunpack.c.h.b16 %v4278
    %v5414 = vunpack.c.l.b16 %v4279
    %v5415 = vunpack.c.h.b16 %v4279
    %v5416 = vunpack.c.l.b16 %v4280
    %v5417 = vunpack.c.h.b16 %v4280
    %v5418 = vunpack.c.l.b16 %v4281
    %v5419 = vunpack.c.h.b16 %v4281
    %v5420 = vunpack.c.l.b16 %v4282
    %v5421 = vunpack.c.h.b16 %v4282
    %v5422 = vunpack.c.l.b16 %v4283
    %v5423 = vunpack.c.h.b16 %v4283
    %v5424 = vunpack.c.l.b16 %v4284
    %v5425 = vunpack.c.h.b16 %v4284
    %v5426 = vunpack.c.l.b16 %v4285
    %v5427 = vunpack.c.h.b16 %v4285
    %v5428 = vunpack.c.l.b16 %v4286
    %v5429 = vunpack.c.h.b16 %v4286
    %v5430 = vunpack.c.l.b16 %v4287
    %v5431 = vunpack.c.h.b16 %v4287
    %v5432 = vunpack.c.l.b16 %v4288
    %v5433 = vunpack.c.h.b16 %v4288
    %v5434 = vunpack.c.l.b16 %v4289
    %v5435 = vunpack.c.h.b16 %v4289
    %v5436 = vunpack.c.l.b16 %v4290
    %v5437 = vunpack.c.h.b16 %v4290
    %v5438 = vunpack.c.l.b16 %v4291
    %v5439 = vunpack.c.h.b16 %v4291
    %v5440 = vunpack.c.l.b16 %v4292
    %v5441 = vunpack.c.h.b16 %v4292
    %v5442 = vunpack.c.l.b16 %v4293
    %v5443 = vunpack.c.h.b16 %v4293
    %v5444 = vunpack.c.l.b16 %v4294
    %v5445 = vunpack.c.h.b16 %v4294
    %v5446 = vunpack.c.l.b16 %v4295
    %v5447 = vunpack.c.h.b16 %v4295
    %v5448 = vunpack.c.l.b16 %v4296
    %v5449 = vunpack.c.h.b16 %v4296
    %v5450 = vunpack.c.l.b16 %v4297
    %v5451 = vunpack.c.h.b16 %v4297
    %v5452 = vunpack.c.l.b16 %v4298
    %v5453 = vunpack.c.h.b16 %v4298
    %v5454 = vunpack.c.l.b16 %v4299
    %v5455 = vunpack.c.h.b16 %v4299
    %v5456 = vunpack.c.l.b16 %v4300
    %v5457 = vunpack.c.h.b16 %v4300
    %v5458 = vunpack.c.l.b16 %v4301
    %v5459 = vunpack.c.h.b16 %v4301
    %v5460 = vunpack.c.l.b16 %v4302
    %v5461 = vunpack.c.h.b16 %v4302
    %v5462 = vunpack.c.l.b16 %v4303
    %v5463 = vunpack.c.h.b16 %v4303
    %v5464 = vunpack.c.l.b16 %v4304
    %v5465 = vunpack.c.h.b16 %v4304
    %v5466 = vunpack.c.l.b16 %v4305
    %v5467 = vunpack.c.h.b16 %v4305
    %v5468 = vunpack.c.l.b16 %v4306
    %v5469 = vunpack.c.h.b16 %v4306
    %v5470 = vunpack.c.l.b16 %v4307
    %v5471 = vunpack.c.h.b16 %v4307
    %v5472 = vunpack.c.l.b16 %v4308
    %v5473 = vunpack.c.h.b16 %v4308
    %v5474 = vunpack.c.l.b16 %v4309
    %v5475 = vunpack.c.h.b16 %v4309
    %v5476 = vunpack.c.l.b16 %v4310
    %v5477 = vunpack.c.h.b16 %v4310
    %v5478 = vunpack.c.l.b16 %v4311
    %v5479 = vunpack.c.h.b16 %v4311
    %v5480 = vunpack.c.l.b16 %v4312
    %v5481 = vunpack.c.h.b16 %v4312
    %v5482 = vunpack.c.l.b16 %v4313
    %v5483 = vunpack.c.h.b16 %v4313
    %v5484 = vunpack.c.l.b16 %v4314
    %v5485 = vunpack.c.h.b16 %v4314
    %v5486 = vunpack.c.l.b16 %v4315
    %v5487 = vunpack.c.h.b16 %v4315
    %v5488 = vunpack.c.l.b16 %v4316
    %v5489 = vunpack.c.h.b16 %v4316
    %v5490 = vunpack.c.l.b16 %v4317
    %v5491 = vunpack.c.h.b16 %v4317
    %v5492 = vunpack.c.l.b16 %v4318
    %v5493 = vunpack.c.h.b16 %v4318
    %v5494 = vunpack.c.l.b16 %v4319
    %v5495 = vunpack.c.h.b16 %v4319
    %v5496 = vunpack.c.l.b16 %v4320
    %v5497 = vunpack.c.h.b16 %v4320
    %v5498 = vunpack.c.l.b16 %v4321
    %v5499 = vunpack.c.h.b16 %v4321
    %v5500 = vunpack.c.l.b16 %v4322
    %v5501 = vunpack.c.h.b16 %v4322
    %v5502 = vunpack.c.l.b16 %v4323
    %v5503 = vunpack.c.h.b16 %v4323
    %v5504 = vunpack.c.l.b16 %v4324
    %v5505 = vunpack.c.h.b16 %v4324
    %v5506 = vunpack.c.l.b16 %v4325
    %v5507 = vunpack.c.h.b16 %v4325
    %v5508 = vunpack.c.l.b16 %v4326
    %v5509 = vunpack.c.h.b16 %v4326
    %v5510 = vunpack.c.l.b16 %v4327
    %v5511 = vunpack.c.h.b16 %v4327
    %v5512 = vunpack.c.l.b16 %v4328
    %v5513 = vunpack.c.h.b16 %v4328
    %v5514 = vunpack.c.l.b16 %v4329
    %v5515 = vunpack.c.h.b16 %v4329
    %v5516 = vunpack.c.l.b16 %v4330
    %v5517 = vunpack.c.h.b16 %v4330
    %v5518 = vunpack.c.l.b16 %v4331
    %v5519 = vunpack.c.h.b16 %v4331
    %v5520 = vunpack.c.l.b16 %v4332
    %v5521 = vunpack.c.h.b16 %v4332
    %v5522 = vunpack.c.l.b16 %v4333
    %v5523 = vunpack.c.h.b16 %v4333
    %v5524 = vunpack.c.l.b16 %v4334
    %v5525 = vunpack.c.h.b16 %v4334
    %v5526 = vunpack.c.l.b16 %v4335
    %v5527 = vunpack.c.h.b16 %v4335
    %v5528 = vunpack.c.l.b16 %v4336
    %v5529 = vunpack.c.h.b16 %v4336
    %v5530 = vunpack.c.l.b16 %v4337
    %v5531 = vunpack.c.h.b16 %v4337
    %v5532 = vunpack.c.l.b16 %v4338
    %v5533 = vunpack.c.h.b16 %v4338
    %v5534 = vunpack.c.l.b16 %v4339
    %v5535 = vunpack.c.h.b16 %v4339
    %v5536 = vunpack.c.l.b16 %v4340
    %v5537 = vunpack.c.h.b16 %v4340
    %v5538 = vunpack.c.l.b16 %v4341
    %v5539 = vunpack.c.h.b16 %v4341
    %v5540 = vunpack.c.l.b16 %v4342
    %v5541 = vunpack.c.h.b16 %v4342
    %v5542 = vunpack.c.l.b16 %v4343
    %v5543 = vunpack.c.h.b16 %v4343
    %v5544 = vunpack.c.l.b16 %v4344
    %v5545 = vunpack.c.h.b16 %v4344
    %v5546 = vunpack.c.l.b16 %v4345
    %v5547 = vunpack.c.h.b16 %v4345
    %v5548 = vunpack.c.l.b16 %v4346
    %v5549 = vunpack.c.h.b16 %v4346
    %v5550 = vunpack.c.l.b16 %v4347
    %v5551 = vunpack.c.h.b16 %v4347
    %v5552 = vunpack.c.l.b16 %v4348
    %v5553 = vunpack.c.h.b16 %v4348
    %v5554 = vunpack.c.l.b16 %v4349
    %v5555 = vunpack.c.h.b16 %v4349
    %v5556 = vunpack.c.l.b16 %v4350
    %v5557 = vunpack.c.h.b16 %v4350
    %v5558 = vunpack.c.l.b16 %v4351
    %v5559 = vunpack.c.h.b16 %v4351
    %v5560 = vunpack.c.l.b16 %v4352
    %v5561 = vunpack.c.h.b16 %v4352
    %v5562 = vunpack.c.l.b16 %v4353
    %v5563 = vunpack.c.h.b16 %v4353
    %v5564 = vunpack.c.l.b16 %v4354
    %v5565 = vunpack.c.h.b16 %v4354
    %v5566 = vunpack.c.l.b16 %v4355
    %v5567 = vunpack.c.h.b16 %v4355
    %v5568 = vunpack.c.l.b16 %v4356
    %v5569 = vunpack.c.h.b16 %v4356
    %v5570 = vunpack.c.l.b16 %v4357
    %v5571 = vunpack.c.h.b16 %v4357
    %v5572 = vunpack.c.l.b16 %v4358
    %v5573 = vunpack.c.h.b16 %v4358
    %v5574 = vunpack.c.l.b16 %v4359
    %v5575 = vunpack.c.h.b16 %v4359
    %v5576 = vunpack.c.l.b16 %v4360
    %v5577 = vunpack.c.h.b16 %v4360
    %v5578 = vunpack.c.l.b16 %v4361
    %v5579 = vunpack.c.h.b16 %v4361
    %v5580 = vunpack.c.l.b16 %v4362
    %v5581 = vunpack.c.h.b16 %v4362
    %v5582 = vunpack.c.l.b16 %v4363
    %v5583 = vunpack.c.h.b16 %v4363
    %v5584 = vunpack.c.l.b16 %v4364
    %v5585 = vunpack.c.h.b16 %v4364
    %v5586 = vunpack.c.l.b16 %v4365
    %v5587 = vunpack.c.h.b16 %v4365
    %v5588 = vunpack.c.l.b16 %v4366
    %v5589 = vunpack.c.h.b16 %v4366
    %v5590 = vunpack.c.l.b16 %v4367
    %v5591 = vunpack.c.h.b16 %v4367
    %v5592 = vunpack.c.l.b16 %v4368
    %v5593 = vunpack.c.h.b16 %v4368
    %v5594 = vunpack.c.l.b16 %v4369
    %v5595 = vunpack.c.h.b16 %v4369
    %v5596 = vunpack.c.l.b16 %v4370
    %v5597 = vunpack.c.h.b16 %v4370
    %v5598 = vunpack.c.l.b16 %v4371
    %v5599 = vunpack.c.h.b16 %v4371
    %v5600 = vunpack.c.l.b16 %v4372
    %v5601 = vunpack.c.h.b16 %v4372
    %v5602 = vunpack.c.l.b16 %v4373
    %v5603 = vunpack.c.h.b16 %v4373
    %v5604 = vunpack.c.l.b16 %v4374
    %v5605 = vunpack.c.h.b16 %v4374
    %v5606 = vunpack.c.l.b16 %v4375
    %v5607 = vunpack.c.h.b16 %v4375
    %v5608 = vunpack.c.l.b16 %v4376
    %v5609 = vunpack.c.h.b16 %v4376
    %v5610 = vunpack.c.l.b16 %v4377
    %v5611 = vunpack.c.h.b16 %v4377
    %v5612 = vunpack.c.l.b16 %v4378
    %v5613 = vunpack.c.h.b16 %v4378
    %v5614 = vunpack.c.l.b16 %v4379
    %v5615 = vunpack.c.h.b16 %v4379
    %v5616 = vunpack.c.l.b16 %v4380
    %v5617 = vunpack.c.h.b16 %v4380
    %v5618 = vunpack.c.l.b16 %v4381
    %v5619 = vunpack.c.h.b16 %v4381
    %v5620 = vunpack.c.l.b16 %v4382
    %v5621 = vunpack.c.h.b16 %v4382
    %v5622 = vunpack.c.l.b16 %v4383
    %v5623 = vunpack.c.h.b16 %v4383
    %v5624 = vunpack.c.l.b16 %v4384
    %v5625 = vunpack.c.h.b16 %v4384
    %v5626 = vunpack.c.l.b16 %v4385
    %v5627 = vunpack.c.h.b16 %v4385
    %v5628 = vunpack.c.l.b16 %v4386
    %v5629 = vunpack.c.h.b16 %v4386
    %v5630 = vunpack.c.l.b16 %v4387
    %v5631 = vunpack.c.h.b16 %v4387
    %v5632 = vunpack.c.l.b16 %v4388
    %v5633 = vunpack.c.h.b16 %v4388
    %v5634 = vunpack.c.l.b16 %v4389
    %v5635 = vunpack.c.h.b16 %v4389
    %v5636 = vunpack.c.l.b16 %v4390
    %v5637 = vunpack.c.h.b16 %v4390
    %v5638 = vunpack.c.l.b16 %v4391
    %v5639 = vunpack.c.h.b16 %v4391
    %v5640 = vunpack.c.l.b16 %v4392
    %v5641 = vunpack.c.h.b16 %v4392
    %v5642 = vunpack.c.l.b16 %v4393
    %v5643 = vunpack.c.h.b16 %v4393
    %v5644 = vunpack.c.l.b16 %v4394
    %v5645 = vunpack.c.h.b16 %v4394
    %v5646 = vunpack.c.l.b16 %v4395
    %v5647 = vunpack.c.h.b16 %v4395
    %v5648 = vunpack.c.l.b16 %v4396
    %v5649 = vunpack.c.h.b16 %v4396
    %v5650 = vunpack.c.l.b16 %v4397
    %v5651 = vunpack.c.h.b16 %v4397
    %v5652 = vunpack.c.l.b16 %v4398
    %v5653 = vunpack.c.h.b16 %v4398
    %v5654 = vunpack.c.l.b16 %v4399
    %v5655 = vunpack.c.h.b16 %v4399
    %v5656 = vunpack.c.l.b16 %v4400
    %v5657 = vunpack.c.h.b16 %v4400
    %v5658 = vunpack.c.l.b16 %v4401
    %v5659 = vunpack.c.h.b16 %v4401
    %v5660 = vunpack.c.l.b16 %v4402
    %v5661 = vunpack.c.h.b16 %v4402
    %v5662 = vunpack.c.l.b16 %v4403
    %v5663 = vunpack.c.h.b16 %v4403
    %v5664 = vunpack.c.l.b16 %v4404
    %v5665 = vunpack.c.h.b16 %v4404
    %v5666 = vunpack.c.l.b16 %v4405
    %v5667 = vunpack.c.h.b16 %v4405
    %v5668 = vunpack.c.l.b16 %v4406
    %v5669 = vunpack.c.h.b16 %v4406
    %v5670 = vunpack.c.l.b16 %v4407
    %v5671 = vunpack.c.h.b16 %v4407
    %v5672 = vunpack.c.l.b16 %v4408
    %v5673 = vunpack.c.h.b16 %v4408
    %v5674 = vunpack.c.l.b16 %v4409
    %v5675 = vunpack.c.h.b16 %v4409
    %v5676 = vunpack.c.l.b16 %v4410
    %v5677 = vunpack.c.h.b16 %v4410
    %v5678 = vunpack.c.l.b16 %v4411
    %v5679 = vunpack.c.h.b16 %v4411
    %v5680 = vunpack.c.l.b16 %v4412
    %v5681 = vunpack.c.h.b16 %v4412
    %v5682 = vunpack.c.l.b16 %v4413
    %v5683 = vunpack.c.h.b16 %v4413
    %v5684 = vunpack.c.l.b16 %v4414
    %v5685 = vunpack.c.h.b16 %v4414
    %v5686 = vunpack.c.l.b16 %v4415
    %v5687 = vunpack.c.h.b16 %v4415
    %v5688 = vunpack.c.l.b16 %v4416
    %v5689 = vunpack.c.h.b16 %v4416
    %v5690 = vunpack.c.l.b16 %v4417
    %v5691 = vunpack.c.h.b16 %v4417
    %v5692 = vunpack.c.l.b16 %v4418
    %v5693 = vunpack.c.h.b16 %v4418
    %v5694 = vunpack.c.l.b16 %v4419
    %v5695 = vunpack.c.h.b16 %v4419
    %v5696 = vunpack.c.l.b16 %v4420
    %v5697 = vunpack.c.h.b16 %v4420
    %v5698 = vunpack.c.l.b16 %v4421
    %v5699 = vunpack.c.h.b16 %v4421
    %v5700 = vunpack.c.l.b16 %v4422
    %v5701 = vunpack.c.h.b16 %v4422
    %v5702 = vunpack.c.l.b16 %v4423
    %v5703 = vunpack.c.h.b16 %v4423
    %v5704 = vunpack.c.l.b16 %v4424
    %v5705 = vunpack.c.h.b16 %v4424
    %v5706 = vunpack.c.l.b16 %v4425
    %v5707 = vunpack.c.h.b16 %v4425
    %v5708 = vunpack.c.l.b16 %v4426
    %v5709 = vunpack.c.h.b16 %v4426
    %v5710 = vunpack.c.l.b16 %v4427
    %v5711 = vunpack.c.h.b16 %v4427
    %v5712 = vunpack.c.l.b16 %v4428
    %v5713 = vunpack.c.h.b16 %v4428
    %v5714 = vunpack.c.l.b16 %v4429
    %v5715 = vunpack.c.h.b16 %v4429
    %v5716 = vunpack.c.l.b16 %v4430
    %v5717 = vunpack.c.h.b16 %v4430
    %v5718 = vunpack.c.l.b16 %v4431
    %v5719 = vunpack.c.h.b16 %v4431
    %v5720 = vunpack.c.l.b16 %v4432
    %v5721 = vunpack.c.h.b16 %v4432
    %v5722 = vunpack.c.l.b16 %v4433
    %v5723 = vunpack.c.h.b16 %v4433
    %v5724 = vunpack.c.l.b16 %v4434
    %v5725 = vunpack.c.h.b16 %v4434
    %v5726 = vunpack.c.l.b16 %v4435
    %v5727 = vunpack.c.h.b16 %v4435
    %v5728 = vunpack.c.l.b16 %v4436
    %v5729 = vunpack.c.h.b16 %v4436
    %v5730 = vunpack.c.l.b16 %v4437
    %v5731 = vunpack.c.h.b16 %v4437
    %v5732 = vunpack.c.l.b16 %v4438
    %v5733 = vunpack.c.h.b16 %v4438
    %v5734 = vunpack.c.l.b16 %v4439
    %v5735 = vunpack.c.h.b16 %v4439
    %v5736 = vunpack.c.l.b16 %v4440
    %v5737 = vunpack.c.h.b16 %v4440
    %v5738 = vunpack.c.l.b16 %v4441
    %v5739 = vunpack.c.h.b16 %v4441
    %v5740 = vunpack.c.l.b16 %v4442
    %v5741 = vunpack.c.h.b16 %v4442
    %v5742 = vunpack.c.l.b16 %v4443
    %v5743 = vunpack.c.h.b16 %v4443
    %v5744 = vunpack.c.l.b16 %v4444
    %v5745 = vunpack.c.h.b16 %v4444
    %v5746 = vunpack.c.l.b16 %v4445
    %v5747 = vunpack.c.h.b16 %v4445
    %v5748 = vunpack.c.l.b16 %v4446
    %v5749 = vunpack.c.h.b16 %v4446
    %v5750 = vunpack.c.l.b16 %v4447
    %v5751 = vunpack.c.h.b16 %v4447
    %v5752 = vunpack.c.l.b16 %v4448
    %v5753 = vunpack.c.h.b16 %v4448
    %v5754 = vunpack.c.l.b16 %v4449
    %v5755 = vunpack.c.h.b16 %v4449
    %v5756 = vunpack.c.l.b16 %v4450
    %v5757 = vunpack.c.h.b16 %v4450
    %v5758 = vunpack.c.l.b16 %v4451
    %v5759 = vunpack.c.h.b16 %v4451
    %v5760 = vunpack.c.l.b16 %v4452
    %v5761 = vunpack.c.h.b16 %v4452
    %v5762 = vunpack.c.l.b16 %v4453
    %v5763 = vunpack.c.h.b16 %v4453
    %v5764 = vunpack.c.l.b16 %v4454
    %v5765 = vunpack.c.h.b16 %v4454
    %v5766 = vunpack.c.l.b16 %v4455
    %v5767 = vunpack.c.h.b16 %v4455
    %v5768 = vunpack.c.l.b16 %v4456
    %v5769 = vunpack.c.h.b16 %v4456
    %v5770 = vunpack.c.l.b16 %v4457
    %v5771 = vunpack.c.h.b16 %v4457
    %v5772 = vunpack.c.l.b16 %v4458
    %v5773 = vunpack.c.h.b16 %v4458
    %v5774 = vunpack.c.l.b16 %v4459
    %v5775 = vunpack.c.h.b16 %v4459
    %v5776 = vunpack.c.l.b16 %v4460
    %v5777 = vunpack.c.h.b16 %v4460
    %v5778 = vunpack.c.l.b16 %v4461
    %v5779 = vunpack.c.h.b16 %v4461
    %v5780 = vunpack.c.l.b16 %v4462
    %v5781 = vunpack.c.h.b16 %v4462
    %v5782 = vunpack.c.l.b16 %v4463
    %v5783 = vunpack.c.h.b16 %v4463
    %v5784 = vunpack.c.l.b16 %v4464
    %v5785 = vunpack.c.h.b16 %v4464
    %v5786 = vunpack.c.l.b16 %v4465
    %v5787 = vunpack.c.h.b16 %v4465
    %v5788 = vunpack.c.l.b16 %v4466
    %v5789 = vunpack.c.h.b16 %v4466
    %v5790 = vunpack.c.l.b16 %v4467
    %v5791 = vunpack.c.h.b16 %v4467
    %v5792 = vunpack.c.l.b16 %v4468
    %v5793 = vunpack.c.h.b16 %v4468
    %v5794 = vunpack.c.l.b16 %v4469
    %v5795 = vunpack.c.h.b16 %v4469
    %v5796 = vunpack.c.l.b16 %v4470
    %v5797 = vunpack.c.h.b16 %v4470
    %v5798 = vunpack.c.l.b16 %v4471
    %v5799 = vunpack.c.h.b16 %v4471
    %v5800 = vunpack.c.l.b16 %v4472
    %v5801 = vunpack.c.h.b16 %v4472
    %v5802 = vunpack.c.l.b16 %v4473
    %v5803 = vunpack.c.h.b16 %v4473
    %v5804 = vunpack.c.l.b16 %v4474
    %v5805 = vunpack.c.h.b16 %v4474
    %v5806 = vunpack.c.l.b16 %v4475
    %v5807 = vunpack.c.h.b16 %v4475
    %v5808 = vunpack.c.l.b16 %v4476
    %v5809 = vunpack.c.h.b16 %v4476
    %v5810 = vunpack.c.l.b16 %v4477
    %v5811 = vunpack.c.h.b16 %v4477
    %v5812 = vunpack.c.l.b16 %v4478
    %v5813 = vunpack.c.h.b16 %v4478
    %v5814 = vunpack.c.l.b16 %v4479
    %v5815 = vunpack.c.h.b16 %v4479
    %v5816 = vunpack.c.l.b16 %v4480
    %v5817 = vunpack.c.h.b16 %v4480
    %v5818 = vunpack.c.l.b16 %v4481
    %v5819 = vunpack.c.h.b16 %v4481
    %v5820 = vunpack.c.l.b16 %v4482
    %v5821 = vunpack.c.h.b16 %v4482
    %v5822 = vunpack.c.l.b16 %v4483
    %v5823 = vunpack.c.h.b16 %v4483
    %v5824 = vunpack.c.l.b16 %v4484
    %v5825 = vunpack.c.h.b16 %v4484
    %v5826 = vunpack.c.l.b16 %v4485
    %v5827 = vunpack.c.h.b16 %v4485
    %v5828 = vunpack.c.l.b16 %v4486
    %v5829 = vunpack.c.h.b16 %v4486
    %v5830 = vunpack.c.l.b16 %v4487
    %v5831 = vunpack.c.h.b16 %v4487
    %v5832 = vunpack.c.l.b16 %v4488
    %v5833 = vunpack.c.h.b16 %v4488
    %v5834 = vunpack.c.l.b16 %v4489
    %v5835 = vunpack.c.h.b16 %v4489
    %v5836 = vunpack.c.l.b16 %v4490
    %v5837 = vunpack.c.h.b16 %v4490
    %v5838 = vunpack.c.l.b16 %v4491
    %v5839 = vunpack.c.h.b16 %v4491
    %v5840 = vunpack.c.l.b16 %v4492
    %v5841 = vunpack.c.h.b16 %v4492
    %v5842 = vunpack.c.l.b16 %v4493
    %v5843 = vunpack.c.h.b16 %v4493
    %v5844 = vunpack.c.l.b16 %v4494
    %v5845 = vunpack.c.h.b16 %v4494
    %v5846 = vunpack.c.l.b16 %v4495
    %v5847 = vunpack.c.h.b16 %v4495
    %v5848 = vunpack.c.l.b16 %v4496
    %v5849 = vunpack.c.h.b16 %v4496
    %v5850 = vunpack.c.l.b16 %v4497
    %v5851 = vunpack.c.h.b16 %v4497
    %v5852 = vunpack.c.l.b16 %v4498
    %v5853 = vunpack.c.h.b16 %v4498
    %v5854 = vunpack.c.l.b16 %v4499
    %v5855 = vunpack.c.h.b16 %v4499
    %v5856 = vunpack.c.l.b16 %v4500
    %v5857 = vunpack.c.h.b16 %v4500
    %v5858 = vunpack.c.l.b16 %v4501
    %v5859 = vunpack.c.h.b16 %v4501
    %v5860 = vunpack.c.l.b16 %v4502
    %v5861 = vunpack.c.h.b16 %v4502
    %v5862 = vunpack.c.l.b16 %v4503
    %v5863 = vunpack.c.h.b16 %v4503
    %v5864 = vunpack.c.l.b16 %v4504
    %v5865 = vunpack.c.h.b16 %v4504
    %v5866 = vunpack.c.l.b16 %v4505
    %v5867 = vunpack.c.h.b16 %v4505
    %v5868 = vunpack.c.l.b16 %v4506
    %v5869 = vunpack.c.h.b16 %v4506
    %v5870 = vunpack.c.l.b16 %v4507
    %v5871 = vunpack.c.h.b16 %v4507
    %v5872 = vunpack.c.l.b16 %v4508
    %v5873 = vunpack.c.h.b16 %v4508
    %v5874 = vunpack.c.l.b16 %v4509
    %v5875 = vunpack.c.h.b16 %v4509
    %v5876 = vunpack.c.l.b16 %v4510
    %v5877 = vunpack.c.h.b16 %v4510
    %v5878 = vunpack.c.l.b16 %v4511
    %v5879 = vunpack.c.h.b16 %v4511
    %v5880 = vunpack.c.l.b16 %v4512
    %v5881 = vunpack.c.h.b16 %v4512
    %v5882 = vunpack.c.l.b16 %v4513
    %v5883 = vunpack.c.h.b16 %v4513
    %v5884 = vunpack.c.l.b16 %v4514
    %v5885 = vunpack.c.h.b16 %v4514
    %v5886 = vunpack.c.l.b16 %v4515
    %v5887 = vunpack.c.h.b16 %v4515
    %v5888 = vunpack.c.l.b16 %v4516
    %v5889 = vunpack.c.h.b16 %v4516
    %v5890 = vunpack.c.l.b16 %v4517
    %v5891 = vunpack.c.h.b16 %v4517
    %v5892 = vunpack.c.l.b16 %v4518
    %v5893 = vunpack.c.h.b16 %v4518
    %v5894 = vunpack.c.l.b16 %v4519
    %v5895 = vunpack.c.h.b16 %v4519
    %v5896 = vunpack.c.l.b16 %v4520
    %v5897 = vunpack.c.h.b16 %v4520
    %v5898 = vunpack.c.l.b16 %v4521
    %v5899 = vunpack.c.h.b16 %v4521
    %v5900 = vunpack.c.l.b16 %v4522
    %v5901 = vunpack.c.h.b16 %v4522
    %v5902 = vunpack.c.l.b16 %v4523
    %v5903 = vunpack.c.h.b16 %v4523
    %v5904 = vunpack.c.l.b16 %v4524
    %v5905 = vunpack.c.h.b16 %v4524
    %v5906 = vunpack.c.l.b16 %v4525
    %v5907 = vunpack.c.h.b16 %v4525
    %v5908 = vunpack.c.l.b16 %v4526
    %v5909 = vunpack.c.h.b16 %v4526
    %v5910 = vunpack.c.l.b16 %v4527
    %v5911 = vunpack.c.h.b16 %v4527
    %v5912 = vunpack.c.l.b16 %v4528
    %v5913 = vunpack.c.h.b16 %v4528
    %v5914 = vunpack.c.l.b16 %v4529
    %v5915 = vunpack.c.h.b16 %v4529
    %v5916 = vunpack.c.l.b16 %v4530
    %v5917 = vunpack.c.h.b16 %v4530
    %v5918 = vunpack.c.l.b16 %v4531
    %v5919 = vunpack.c.h.b16 %v4531
    %v5920 = vunpack.c.l.b16 %v4532
    %v5921 = vunpack.c.h.b16 %v4532
    %v5922 = vunpack.c.l.b16 %v4533
    %v5923 = vunpack.c.h.b16 %v4533
    %v5924 = vunpack.c.l.b16 %v4534
    %v5925 = vunpack.c.h.b16 %v4534
    %v5926 = vunpack.c.l.b16 %v4535
    %v5927 = vunpack.c.h.b16 %v4535
    %v5928 = vunpack.c.l.b16 %v4536
    %v5929 = vunpack.c.h.b16 %v4536
    %v5930 = vunpack.c.l.b16 %v4537
    %v5931 = vunpack.c.h.b16 %v4537
    %v5932 = vunpack.c.l.b16 %v4538
    %v5933 = vunpack.c.h.b16 %v4538
    %v5934 = vunpack.c.l.b16 %v4539
    %v5935 = vunpack.c.h.b16 %v4539
    %v5936 = vunpack.c.l.b16 %v4540
    %v5937 = vunpack.c.h.b16 %v4540
    %v5938 = vunpack.c.l.b16 %v4541
    %v5939 = vunpack.c.h.b16 %v4541
    %v5940 = vunpack.c.l.b16 %v4542
    %v5941 = vunpack.c.h.b16 %v4542
    %v5942 = vunpack.c.l.b16 %v4543
    %v5943 = vunpack.c.h.b16 %v4543
    %v5944 = vunpack.c.l.b16 %v4544
    %v5945 = vunpack.c.h.b16 %v4544
    %v5946 = vunpack.c.l.b16 %v4545
    %v5947 = vunpack.c.h.b16 %v4545
    %v5948 = vunpack.c.l.b16 %v4546
    %v5949 = vunpack.c.h.b16 %v4546
    %v5950 = vunpack.c.l.b16 %v4547
    %v5951 = vunpack.c.h.b16 %v4547
    %v5952 = vunpack.c.l.b16 %v4548
    %v5953 = vunpack.c.h.b16 %v4548
    %v5954 = vunpack.c.l.b16 %v4549
    %v5955 = vunpack.c.h.b16 %v4549
    %v5956 = vunpack.c.l.b16 %v4550
    %v5957 = vunpack.c.h.b16 %v4550
    %v5958 = vunpack.c.l.b16 %v4551
    %v5959 = vunpack.c.h.b16 %v4551
    %v5960 = vunpack.c.l.b16 %v4552
    %v5961 = vunpack.c.h.b16 %v4552
    %v5962 = vunpack.c.l.b16 %v4553
    %v5963 = vunpack.c.h.b16 %v4553
    %v5964 = vunpack.c.l.b16 %v4554
    %v5965 = vunpack.c.h.b16 %v4554
    %v5966 = vunpack.c.l.b16 %v4555
    %v5967 = vunpack.c.h.b16 %v4555
    %v5968 = vunpack.c.l.b16 %v4556
    %v5969 = vunpack.c.h.b16 %v4556
    %v5970 = vunpack.c.l.b16 %v4557
    %v5971 = vunpack.c.h.b16 %v4557
    %v5972 = vunpack.c.l.b16 %v4558
    %v5973 = vunpack.c.h.b16 %v4558
    %v5974 = vunpack.c.l.b16 %v4559
    %v5975 = vunpack.c.h.b16 %v4559
    %v5976 = vunpack.c.l.b16 %v4560
    %v5977 = vunpack.c.h.b16 %v4560
    %v5978 = vunpack.c.l.b16 %v4561
    %v5979 = vunpack.c.h.b16 %v4561
    %v5980 = vunpack.c.l.b16 %v4562
    %v5981 = vunpack.c.h.b16 %v4562
    %v5982 = vunpack.c.l.b16 %v4563
    %v5983 = vunpack.c.h.b16 %v4563
    %v5984 = vunpack.c.l.b16 %v4564
    %v5985 = vunpack.c.h.b16 %v4564
    %v5986 = vunpack.c.l.b16 %v4565
    %v5987 = vunpack.c.h.b16 %v4565
    %v5988 = vunpack.c.l.b16 %v4566
    %v5989 = vunpack.c.h.b16 %v4566
    %v5990 = vunpack.c.l.b16 %v4567
    %v5991 = vunpack.c.h.b16 %v4567
    %v5992 = vunpack.c.l.b16 %v4568
    %v5993 = vunpack.c.h.b16 %v4568
    %v5994 = vunpack.c.l.b16 %v4569
    %v5995 = vunpack.c.h.b16 %v4569
    %v5996 = vunpack.c.l.b16 %v4570
    %v5997 = vunpack.c.h.b16 %v4570
    %v5998 = vunpack.c.l.b16 %v4571
    %v5999 = vunpack.c.h.b16 %v4571
    %v6000 = vunpack.c.l.b16 %v4572
    %v6001 = vunpack.c.h.b16 %v4572
    %v6002 = vunpack.c.l.b16 %v4573
    %v6003 = vunpack.c.h.b16 %v4573
    %v6004 = vunpack.c.l.b16 %v4574
    %v6005 = vunpack.c.h.b16 %v4574
    %v6006 = vunpack.c.l.b16 %v4575
    %v6007 = vunpack.c.h.b16 %v4575
    %v6008 = vunpack.c.l.b16 %v4576
    %v6009 = vunpack.c.h.b16 %v4576
    %v6010 = vunpack.c.l.b16 %v4577
    %v6011 = vunpack.c.h.b16 %v4577
    %v6012 = vunpack.c.l.b16 %v4578
    %v6013 = vunpack.c.h.b16 %v4578
    %v6014 = vunpack.c.l.b16 %v4579
    %v6015 = vunpack.c.h.b16 %v4579
    %v6016 = vunpack.c.l.b16 %v4580
    %v6017 = vunpack.c.h.b16 %v4580
    %v6018 = vunpack.c.l.b16 %v4581
    %v6019 = vunpack.c.h.b16 %v4581
    %v6020 = vunpack.c.l.b16 %v4582
    %v6021 = vunpack.c.h.b16 %v4582
    %v6022 = vunpack.c.l.b16 %v4583
    %v6023 = vunpack.c.h.b16 %v4583
    %v6024 = vunpack.c.l.b16 %v4584
    %v6025 = vunpack.c.h.b16 %v4584
    %v6026 = vunpack.c.l.b16 %v4585
    %v6027 = vunpack.c.h.b16 %v4585
    %v6028 = vunpack.c.l.b16 %v4586
    %v6029 = vunpack.c.h.b16 %v4586
    %v6030 = vunpack.c.l.b16 %v4587
    %v6031 = vunpack.c.h.b16 %v4587
    %v6032 = vunpack.c.l.b16 %v4588
    %v6033 = vunpack.c.h.b16 %v4588
    %v6034 = vunpack.c.l.b16 %v4589
    %v6035 = vunpack.c.h.b16 %v4589
    %v6036 = vunpack.c.l.b16 %v4590
    %v6037 = vunpack.c.h.b16 %v4590
    %v6038 = vunpack.c.l.b16 %v4591
    %v6039 = vunpack.c.h.b16 %v4591
    %v6040 = vunpack.c.l.b16 %v4592
    %v6041 = vunpack.c.h.b16 %v4592
    %v6042 = vunpack.c.l.b16 %v4593
    %v6043 = vunpack.c.h.b16 %v4593
    %v6044 = vunpack.c.l.b16 %v4594
    %v6045 = vunpack.c.h.b16 %v4594
    %v6046 = vunpack.c.l.b16 %v4595
    %v6047 = vunpack.c.h.b16 %v4595
    %v6048 = vunpack.c.l.b16 %v4596
    %v6049 = vunpack.c.h.b16 %v4596
    %v6050 = vunpack.c.l.b16 %v4597
    %v6051 = vunpack.c.h.b16 %v4597
    %v6052 = vunpack.c.l.b16 %v4598
    %v6053 = vunpack.c.h.b16 %v4598
    %v6054 = vunpack.c.l.b16 %v4599
    %v6055 = vunpack.c.h.b16 %v4599
    %v6056 = vunpack.c.l.b16 %v4600
    %v6057 = vunpack.c.h.b16 %v4600
    %v6058 = vunpack.c.l.b16 %v4601
    %v6059 = vunpack.c.h.b16 %v4601
    %v6060 = vunpack.c.l.b16 %v4602
    %v6061 = vunpack.c.h.b16 %v4602
    %v6062 = vunpack.c.l.b16 %v4603
    %v6063 = vunpack.c.h.b16 %v4603
    %v6064 = vunpack.c.l.b16 %v4604
    %v6065 = vunpack.c.h.b16 %v4604
    %v6066 = vunpack.c.l.b16 %v4605
    %v6067 = vunpack.c.h.b16 %v4605
    %v6068 = vunpack.c.l.b16 %v4606
    %v6069 = vunpack.c.h.b16 %v4606
    %v6070 = vunpack.c.l.b16 %v4607
    %v6071 = vunpack.c.h.b16 %v4607
    %v6072 = vunpack.c.l.b16 %v4608
    %v6073 = vunpack.c.h.b16 %v4608
    %v6074 = vunpack.c.l.b16 %v4609
    %v6075 = vunpack.c.h.b16 %v4609
    %v6076 = vunpack.c.l.b16 %v4610
    %v6077 = vunpack.c.h.b16 %v4610
    %v6078 = vunpack.c.l.b16 %v4611
    %v6079 = vunpack.c.h.b16 %v4611
    %v6080 = vunpack.c.l.b16 %v4612
    %v6081 = vunpack.c.h.b16 %v4612
    %v6082 = vunpack.c.l.b16 %v4613
    %v6083 = vunpack.c.h.b16 %v4613
    %v6084 = vunpack.c.l.b16 %v4614
    %v6085 = vunpack.c.h.b16 %v4614
    %v6086 = vunpack.c.l.b16 %v4615
    %v6087 = vunpack.c.h.b16 %v4615
    %v6088 = vunpack.c.l.b16 %v4616
    %v6089 = vunpack.c.h.b16 %v4616
    %v6090 = vunpack.c.l.b16 %v4617
    %v6091 = vunpack.c.h.b16 %v4617
    %v6092 = vunpack.c.l.b16 %v4618
    %v6093 = vunpack.c.h.b16 %v4618
    %v6094 = vunpack.c.l.b16 %v4619
    %v6095 = vunpack.c.h.b16 %v4619
    %v6096 = vunpack.c.l.b16 %v4620
    %v6097 = vunpack.c.h.b16 %v4620
    %v6098 = vunpack.c.l.b16 %v4621
    %v6099 = vunpack.c.h.b16 %v4621
    %v6100 = vunpack.c.l.b16 %v4622
    %v6101 = vunpack.c.h.b16 %v4622
    %v6102 = vunpack.c.l.b16 %v4623
    %v6103 = vunpack.c.h.b16 %v4623
    %v6104 = vunpack.c.l.b16 %v4624
    %v6105 = vunpack.c.h.b16 %v4624
    %v6106 = vunpack.c.l.b16 %v4625
    %v6107 = vunpack.c.h.b16 %v4625
    %v6108 = vunpack.c.l.b16 %v4626
    %v6109 = vunpack.c.h.b16 %v4626
    %v6110 = vunpack.c.l.b16 %v4627
    %v6111 = vunpack.c.h.b16 %v4627
    %v6112 = vunpack.c.l.b16 %v4628
    %v6113 = vunpack.c.h.b16 %v4628
    %v6114 = vunpack.c.l.b16 %v4629
    %v6115 = vunpack.c.h.b16 %v4629
    %v6116 = vunpack.c.l.b16 %v4630
    %v6117 = vunpack.c.h.b16 %v4630
    %v6118 = vunpack.c.l.b16 %v4631
    %v6119 = vunpack.c.h.b16 %v4631
    %v6120 = vunpack.c.l.b16 %v4632
    %v6121 = vunpack.c.h.b16 %v4632
    %v6122 = vunpack.c.l.b16 %v4633
    %v6123 = vunpack.c.h.b16 %v4633
    %v6124 = vunpack.c.l.b16 %v4634
    %v6125 = vunpack.c.h.b16 %v4634
    %v6126 = vunpack.c.l.b16 %v4635
    %v6127 = vunpack.c.h.b16 %v4635
    %v6128 = vunpack.c.l.b16 %v4636
    %v6129 = vunpack.c.h.b16 %v4636
    %v6130 = vunpack.c.l.b16 %v4637
    %v6131 = vunpack.c.h.b16 %v4637
    %v6132 = vunpack.c.l.b16 %v4638
    %v6133 = vunpack.c.h.b16 %v4638
    %v6134 = vunpack.c.l.b16 %v4639
    %v6135 = vunpack.c.h.b16 %v4639
    %v6136 = vunpack.c.l.b16 %v4640
    %v6137 = vunpack.c.h.b16 %v4640
    %v6138 = vunpack.c.l.b16 %v4641
    %v6139 = vunpack.c.h.b16 %v4641
    %v6140 = vunpack.c.l.b16 %v4642
    %v6141 = vunpack.c.h.b16 %v4642
    %v6142 = vunpack.c.l.b16 %v4643
    %v6143 = vunpack.c.h.b16 %v4643
    %v6144 = vunpack.c.l.b16 %v4644
    %v6145 = vunpack.c.h.b16 %v4644
    %v6146 = vunpack.c.l.b16 %v4645
    %v6147 = vunpack.c.h.b16 %v4645
    %v6148 = vunpack.c.l.b16 %v4646
    %v6149 = vunpack.c.h.b16 %v4646
    %v6150 = vunpack.c.l.b16 %v4647
    %v6151 = vunpack.c.h.b16 %v4647
    %v6152 = vunpack.c.l.b16 %v4648
    %v6153 = vunpack.c.h.b16 %v4648
    %v6154 = vunpack.c.l.b16 %v4649
    %v6155 = vunpack.c.h.b16 %v4649
    %v6156 = vunpack.c.l.b16 %v4650
    %v6157 = vunpack.c.h.b16 %v4650
    %v6158 = vunpack.c.l.b16 %v4651
    %v6159 = vunpack.c.h.b16 %v4651
    %v6160 = vunpack.c.l.b16 %v4652
    %v6161 = vunpack.c.h.b16 %v4652
    %v6162 = vunpack.c.l.b16 %v4653
    %v6163 = vunpack.c.h.b16 %v4653
    %v6164 = vunpack.c.l.b16 %v4654
    %v6165 = vunpack.c.h.b16 %v4654
    %v6166 = vunpack.c.l.b16 %v4655
    %v6167 = vunpack.c.h.b16 %v4655
    %v6168 = vunpack.c.l.b16 %v4656
    %v6169 = vunpack.c.h.b16 %v4656
    %v6170 = vunpack.c.l.b16 %v4657
    %v6171 = vunpack.c.h.b16 %v4657
    %v6172 = vunpack.c.l.b16 %v4658
    %v6173 = vunpack.c.h.b16 %v4658
    %v6174 = vunpack.c.l.b16 %v4659
    %v6175 = vunpack.c.h.b16 %v4659
    %v6176 = vunpack.c.l.b16 %v4660
    %v6177 = vunpack.c.h.b16 %v4660
    %v6178 = vunpack.c.l.b16 %v4661
    %v6179 = vunpack.c.h.b16 %v4661
    %v6180 = vunpack.c.l.b16 %v4662
    %v6181 = vunpack.c.h.b16 %v4662
    %v6182 = vunpack.c.l.b16 %v4663
    %v6183 = vunpack.c.h.b16 %v4663
    %v6184 = vunpack.c.l.b16 %v4664
    %v6185 = vunpack.c.h.b16 %v4664
    %v6186 = vunpack.c.l.b16 %v4665
    %v6187 = vunpack.c.h.b16 %v4665
    %v6188 = vunpack.c.l.b16 %v4666
    %v6189 = vunpack.c.h.b16 %v4666
    %v6190 = vunpack.c.l.b16 %v4667
    %v6191 = vunpack.c.h.b16 %v4667
    %v6192 = vunpack.c.l.b16 %v4668
    %v6193 = vunpack.c.h.b16 %v4668
    %v6194 = vunpack.c.l.b16 %v4669
    %v6195 = vunpack.c.h.b16 %v4669
    %v6196 = vunpack.c.l.b16 %v4670
    %v6197 = vunpack.c.h.b16 %v4670
    %v6198 = vunpack.c.l.b16 %v4671
    %v6199 = vunpack.c.h.b16 %v4671
    %v6200 = vunpack.c.l.b16 %v4672
    %v6201 = vunpack.c.h.b16 %v4672
    %v6202 = vunpack.c.l.b16 %v4673
    %v6203 = vunpack.c.h.b16 %v4673
    %v6204 = vunpack.c.l.b16 %v4674
    %v6205 = vunpack.c.h.b16 %v4674
    %v6206 = vunpack.c.l.b16 %v4675
    %v6207 = vunpack.c.h.b16 %v4675
    %v6208 = vunpack.c.l.b16 %v4676
    %v6209 = vunpack.c.h.b16 %v4676
    %v6210 = vunpack.c.l.b16 %v4677
    %v6211 = vunpack.c.h.b16 %v4677
    %v6212 = vunpack.c.l.b16 %v4678
    %v6213 = vunpack.c.h.b16 %v4678
    %v6214 = vunpack.c.l.b16 %v4679
    %v6215 = vunpack.c.h.b16 %v4679
    %v6216 = vunpack.c.l.b16 %v4680
    %v6217 = vunpack.c.h.b16 %v4680
    %v6218 = vunpack.c.l.b16 %v4681
    %v6219 = vunpack.c.h.b16 %v4681
    %v6220 = vunpack.c.l.b16 %v4682
    %v6221 = vunpack.c.h.b16 %v4682
    %v6222 = vunpack.c.l.b16 %v4683
    %v6223 = vunpack.c.h.b16 %v4683
    %v6224 = vunpack.c.l.b16 %v4684
    %v6225 = vunpack.c.h.b16 %v4684
    %v6226 = vunpack.c.l.b16 %v4685
    %v6227 = vunpack.c.h.b16 %v4685
    %v6228 = vunpack.c.l.b16 %v4686
    %v6229 = vunpack.c.h.b16 %v4686
    %v6230 = vunpack.c.l.b16 %v4687
    %v6231 = vunpack.c.h.b16 %v4687
    %v6232 = vunpack.c.l.b16 %v4688
    %v6233 = vunpack.c.h.b16 %v4688
    %v6234 = vunpack.c.l.b16 %v4689
    %v6235 = vunpack.c.h.b16 %v4689
    %v6236 = vunpack.c.l.b16 %v4690
    %v6237 = vunpack.c.h.b16 %v4690
    %v6238 = vunpack.c.l.b16 %v4691
    %v6239 = vunpack.c.h.b16 %v4691
    %v6240 = vunpack.c.l.b16 %v4692
    %v6241 = vunpack.c.h.b16 %v4692
    %v6242 = vunpack.c.l.b16 %v4693
    %v6243 = vunpack.c.h.b16 %v4693
    %v6244 = vunpack.c.l.b16 %v4694
    %v6245 = vunpack.c.h.b16 %v4694
    %v6246 = vunpack.c.l.b16 %v4695
    %v6247 = vunpack.c.h.b16 %v4695
    %v6248 = vunpack.c.l.b16 %v4696
    %v6249 = vunpack.c.h.b16 %v4696
    %v6250 = vunpack.c.l.b16 %v4697
    %v6251 = vunpack.c.h.b16 %v4697
    %v6252 = vunpack.c.l.b16 %v4698
    %v6253 = vunpack.c.h.b16 %v4698
    %v6254 = vunpack.c.l.b16 %v4699
    %v6255 = vunpack.c.h.b16 %v4699
    %v6256 = vunpack.c.l.b16 %v4700
    %v6257 = vunpack.c.h.b16 %v4700
    %v6258 = vunpack.c.l.b16 %v4701
    %v6259 = vunpack.c.h.b16 %v4701
    %v6260 = vunpack.c.l.b16 %v4702
    %v6261 = vunpack.c.h.b16 %v4702
    %v6262 = vunpack.c.l.b16 %v4703
    %v6263 = vunpack.c.h.b16 %v4703
    %v6264 = vunpack.c.l.b16 %v4704
    %v6265 = vunpack.c.h.b16 %v4704
    %v6266 = vunpack.c.l.b16 %v4705
    %v6267 = vunpack.c.h.b16 %v4705
    %v6268 = vunpack.c.l.b16 %v4706
    %v6269 = vunpack.c.h.b16 %v4706
    %v6270 = vunpack.c.l.b16 %v4707
    %v6271 = vunpack.c.h.b16 %v4707
    %v6272 = vunpack.c.l.b16 %v4708
    %v6273 = vunpack.c.h.b16 %v4708
    %v6274 = vunpack.c.l.b16 %v4709
    %v6275 = vunpack.c.h.b16 %v4709
    %v6276 = vunpack.c.l.b16 %v4710
    %v6277 = vunpack.c.h.b16 %v4710
    %v6278 = vunpack.c.l.b16 %v4711
    %v6279 = vunpack.c.h.b16 %v4711
    %v6280 = vunpack.c.l.b16 %v4712
    %v6281 = vunpack.c.h.b16 %v4712
    %v6282 = vunpack.c.l.b16 %v4713
    %v6283 = vunpack.c.h.b16 %v4713
    %v6284 = vunpack.c.l.b16 %v4714
    %v6285 = vunpack.c.h.b16 %v4714
    %v6286 = vunpack.c.l.b16 %v4715
    %v6287 = vunpack.c.h.b16 %v4715
    %v6288 = vunpack.c.l.b16 %v4716
    %v6289 = vunpack.c.h.b16 %v4716
    %v6290 = vunpack.c.l.b16 %v4717
    %v6291 = vunpack.c.h.b16 %v4717
    %v6292 = vunpack.c.l.b16 %v4718
    %v6293 = vunpack.c.h.b16 %v4718
    %v6294 = vunpack.c.l.b16 %v4719
    %v6295 = vunpack.c.h.b16 %v4719
    %v6296 = vunpack.c.l.b16 %v4720
    %v6297 = vunpack.c.h.b16 %v4720
    %v6298 = vunpack.c.l.b16 %v4721
    %v6299 = vunpack.c.h.b16 %v4721
    %v6300 = vpack.c.b16 %v5284, %v5276
    %v6301 = vpack.c.b16 %v5285, %v5277
    %v6302 = vpack.c.b16 %v5286, %v5278
    %v6303 = vpack.c.b16 %v5287, %v5279
    %v6304 = vpack.c.b16 %v5288, %v5280
    %v6305 = vpack.c.b16 %v5289, %v5281
    %v6306 = vpack.c.b16 %v5290, %v5282
    %v6307 = vpack.c.b16 %v5291, %v5283
    %v6308 = vpack.c.b16 %v5300, %v5292
    %v6309 = vpack.c.b16 %v5301, %v5293
    %v6310 = vpack.c.b16 %v5302, %v5294
    %v6311 = vpack.c.b16 %v5303, %v5295
    %v6312 = vpack.c.b16 %v5304, %v5296
    %v6313 = vpack.c.b16 %v5305, %v5297
    %v6314 = vpack.c.b16 %v5306, %v5298
    %v6315 = vpack.c.b16 %v5307, %v5299
    %v6316 = vpack.c.b16 %v5316, %v5308
    %v6317 = vpack.c.b16 %v5317, %v5309
    %v6318 = vpack.c.b16 %v5318, %v5310
    %v6319 = vpack.c.b16 %v5319, %v5311
    %v6320 = vpack.c.b16 %v5320, %v5312
    %v6321 = vpack.c.b16 %v5321, %v5313
    %v6322 = vpack.c.b16 %v5322, %v5314
    %v6323 = vpack.c.b16 %v5323, %v5315
    %v6324 = vpack.c.b16 %v5332, %v5324
    %v6325 = vpack.c.b16 %v5333, %v5325
    %v6326 = vpack.c.b16 %v5334, %v5326
    %v6327 = vpack.c.b16 %v5335, %v5327
    %v6328 = vpack.c.b16 %v5336, %v5328
    %v6329 = vpack.c.b16 %v5337, %v5329
    %v6330 = vpack.c.b16 %v5338, %v5330
    %v6331 = vpack.c.b16 %v5339, %v5331
    %v6332 = vpack.c.b16 %v5348, %v5340
    %v6333 = vpack.c.b16 %v5349, %v5341
    %v6334 = vpack.c.b16 %v5350, %v5342
    %v6335 = vpack.c.b16 %v5351, %v5343
    %v6336 = vpack.c.b16 %v5352, %v5344
    %v6337 = vpack.c.b16 %v5353, %v5345
    %v6338 = vpack.c.b16 %v5354, %v5346
    %v6339 = vpack.c.b16 %v5355, %v5347
    %v6340 = vpack.c.b16 %v5364, %v5356
    %v6341 = vpack.c.b16 %v5365, %v5357
    %v6342 = vpack.c.b16 %v5366, %v5358
    %v6343 = vpack.c.b16 %v5367, %v5359
    %v6344 = vpack.c.b16 %v5368, %v5360
    %v6345 = vpack.c.b16 %v5369, %v5361
    %v6346 = vpack.c.b16 %v5370, %v5362
    %v6347 = vpack.c.b16 %v5371, %v5363
    %v6348 = vpack.c.b16 %v5380, %v5372
    %v6349 = vpack.c.b16 %v5381, %v5373
    %v6350 = vpack.c.b16 %v5382, %v5374
    %v6351 = vpack.c.b16 %v5383, %v5375
    %v6352 = vpack.c.b16 %v5384, %v5376
    %v6353 = vpack.c.b16 %v5385, %v5377
    %v6354 = vpack.c.b16 %v5386, %v5378
    %v6355 = vpack.c.b16 %v5387, %v5379
    %v6356 = vpack.c.b16 %v5396, %v5388
    %v6357 = vpack.c.b16 %v5397, %v5389
    %v6358 = vpack.c.b16 %v5398, %v5390
    %v6359 = vpack.c.b16 %v5399, %v5391
    %v6360 = vpack.c.b16 %v5400, %v5392
    %v6361 = vpack.c.b16 %v5401, %v5393
    %v6362 = vpack.c.b16 %v5402, %v5394
    %v6363 = vpack.c.b16 %v5403, %v5395
    %v6364 = vpack.c.b16 %v5412, %v5404
    %v6365 = vpack.c.b16 %v5413, %v5405
    %v6366 = vpack.c.b16 %v5414, %v5406
    %v6367 = vpack.c.b16 %v5415, %v5407
    %v6368 = vpack.c.b16 %v5416, %v5408
    %v6369 = vpack.c.b16 %v5417, %v5409
    %v6370 = vpack.c.b16 %v5418, %v5410
    %v6371 = vpack.c.b16 %v5419, %v5411
    %v6372 = vpack.c.b16 %v5428, %v5420
    %v6373 = vpack.c.b16 %v5429, %v5421
    %v6374 = vpack.c.b16 %v5430, %v5422
    %v6375 = vpack.c.b16 %v5431, %v5423
    %v6376 = vpack.c.b16 %v5432, %v5424
    %v6377 = vpack.c.b16 %v5433, %v5425
    %v6378 = vpack.c.b16 %v5434, %v5426
    %v6379 = vpack.c.b16 %v5435, %v5427
    %v6380 = vpack.c.b16 %v5444, %v5436
    %v6381 = vpack.c.b16 %v5445, %v5437
    %v6382 = vpack.c.b16 %v5446, %v5438
    %v6383 = vpack.c.b16 %v5447, %v5439
    %v6384 = vpack.c.b16 %v5448, %v5440
    %v6385 = vpack.c.b16 %v5449, %v5441
    %v6386 = vpack.c.b16 %v5450, %v5442
    %v6387 = vpack.c.b16 %v5451, %v5443
    %v6388 = vpack.c.b16 %v5460, %v5452
    %v6389 = vpack.c.b16 %v5461, %v5453
    %v6390 = vpack.c.b16 %v5462, %v5454
    %v6391 = vpack.c.b16 %v5463, %v5455
    %v6392 = vpack.c.b16 %v5464, %v5456
    %v6393 = vpack.c.b16 %v5465, %v5457
    %v6394 = vpack.c.b16 %v5466, %v5458
    %v6395 = vpack.c.b16 %v5467, %v5459
    %v6396 = vpack.c.b16 %v5476, %v5468
    %v6397 = vpack.c.b16 %v5477, %v5469
    %v6398 = vpack.c.b16 %v5478, %v5470
    %v6399 = vpack.c.b16 %v5479, %v5471
    %v6400 = vpack.c.b16 %v5480, %v5472
    %v6401 = vpack.c.b16 %v5481, %v5473
    %v6402 = vpack.c.b16 %v5482, %v5474
    %v6403 = vpack.c.b16 %v5483, %v5475
    %v6404 = vpack.c.b16 %v5492, %v5484
    %v6405 = vpack.c.b16 %v5493, %v5485
    %v6406 = vpack.c.b16 %v5494, %v5486
    %v6407 = vpack.c.b16 %v5495, %v5487
    %v6408 = vpack.c.b16 %v5496, %v5488
    %v6409 = vpack.c.b16 %v5497, %v5489
    %v6410 = vpack.c.b16 %v5498, %v5490
    %v6411 = vpack.c.b16 %v5499, %v5491
    %v6412 = vpack.c.b16 %v5508, %v5500
    %v6413 = vpack.c.b16 %v5509, %v5501
    %v6414 = vpack.c.b16 %v5510, %v5502
    %v6415 = vpack.c.b16 %v5511, %v5503
    %v6416 = vpack.c.b16 %v5512, %v5504
    %v6417 = vpack.c.b16 %v5513, %v5505
    %v6418 = vpack.c.b16 %v5514, %v5506
    %v6419 = vpack.c.b16 %v5515, %v5507
    %v6420 = vpack.c.b16 %v5524, %v5516
    %v6421 = vpack.c.b16 %v5525, %v5517
    %v6422 = vpack.c.b16 %v5526, %v5518
    %v6423 = vpack.c.b16 %v5527, %v5519
    %v6424 = vpack.c.b16 %v5528, %v5520
    %v6425 = vpack.c.b16 %v5529, %v5521
    %v6426 = vpack.c.b16 %v5530, %v5522
    %v6427 = vpack.c.b16 %v5531, %v5523
    %v6428 = vpack.c.b16 %v5540, %v5532
    %v6429 = vpack.c.b16 %v5541, %v5533
    %v6430 = vpack.c.b16 %v5542, %v5534
    %v6431 = vpack.c.b16 %v5543, %v5535
    %v6432 = vpack.c.b16 %v5544, %v5536
    %v6433 = vpack.c.b16 %v5545, %v5537
    %v6434 = vpack.c.b16 %v5546, %v5538
    %v6435 = vpack.c.b16 %v5547, %v5539
    %v6436 = vpack.c.b16 %v5556, %v5548
    %v6437 = vpack.c.b16 %v5557, %v5549
    %v6438 = vpack.c.b16 %v5558, %v5550
    %v6439 = vpack.c.b16 %v5559, %v5551
    %v6440 = vpack.c.b16 %v5560, %v5552
    %v6441 = vpack.c.b16 %v5561, %v5553
    %v6442 = vpack.c.b16 %v5562, %v5554
    %v6443 = vpack.c.b16 %v5563, %v5555
    %v6444 = vpack.c.b16 %v5572, %v5564
    %v6445 = vpack.c.b16 %v5573, %v5565
    %v6446 = vpack.c.b16 %v5574, %v5566
    %v6447 = vpack.c.b16 %v5575, %v5567
    %v6448 = vpack.c.b16 %v5576, %v5568
    %v6449 = vpack.c.b16 %v5577, %v5569
    %v6450 = vpack.c.b16 %v5578, %v5570
    %v6451 = vpack.c.b16 %v5579, %v5571
    %v6452 = vpack.c.b16 %v5588, %v5580
    %v6453 = vpack.c.b16 %v5589, %v5581
    %v6454 = vpack.c.b16 %v5590, %v5582
    %v6455 = vpack.c.b16 %v5591, %v5583
    %v6456 = vpack.c.b16 %v5592, %v5584
    %v6457 = vpack.c.b16 %v5593, %v5585
    %v6458 = vpack.c.b16 %v5594, %v5586
    %v6459 = vpack.c.b16 %v5595, %v5587
    %v6460 = vpack.c.b16 %v5604, %v5596
    %v6461 = vpack.c.b16 %v5605, %v5597
    %v6462 = vpack.c.b16 %v5606, %v5598
    %v6463 = vpack.c.b16 %v5607, %v5599
    %v6464 = vpack.c.b16 %v5608, %v5600
    %v6465 = vpack.c.b16 %v5609, %v5601
    %v6466 = vpack.c.b16 %v5610, %v5602
    %v6467 = vpack.c.b16 %v5611, %v5603
    %v6468 = vpack.c.b16 %v5620, %v5612
    %v6469 = vpack.c.b16 %v5621, %v5613
    %v6470 = vpack.c.b16 %v5622, %v5614
    %v6471 = vpack.c.b16 %v5623, %v5615
    %v6472 = vpack.c.b16 %v5624, %v5616
    %v6473 = vpack.c.b16 %v5625, %v5617
    %v6474 = vpack.c.b16 %v5626, %v5618
    %v6475 = vpack.c.b16 %v5627, %v5619
    %v6476 = vpack.c.b16 %v5636, %v5628
    %v6477 = vpack.c.b16 %v5637, %v5629
    %v6478 = vpack.c.b16 %v5638, %v5630
    %v6479 = vpack.c.b16 %v5639, %v5631
    %v6480 = vpack.c.b16 %v5640, %v5632
    %v6481 = vpack.c.b16 %v5641, %v5633
    %v6482 = vpack.c.b16 %v5642, %v5634
    %v6483 = vpack.c.b16 %v5643, %v5635
    %v6484 = vpack.c.b16 %v5652, %v5644
    %v6485 = vpack.c.b16 %v5653, %v5645
    %v6486 = vpack.c.b16 %v5654, %v5646
    %v6487 = vpack.c.b16 %v5655, %v5647
    %v6488 = vpack.c.b16 %v5656, %v5648
    %v6489 = vpack.c.b16 %v5657, %v5649
    %v6490 = vpack.c.b16 %v5658, %v5650
    %v6491 = vpack.c.b16 %v5659, %v5651
    %v6492 = vpack.c.b16 %v5668, %v5660
    %v6493 = vpack.c.b16 %v5669, %v5661
    %v6494 = vpack.c.b16 %v5670, %v5662
    %v6495 = vpack.c.b16 %v5671, %v5663
    %v6496 = vpack.c.b16 %v5672, %v5664
    %v6497 = vpack.c.b16 %v5673, %v5665
    %v6498 = vpack.c.b16 %v5674, %v5666
    %v6499 = vpack.c.b16 %v5675, %v5667
    %v6500 = vpack.c.b16 %v5684, %v5676
    %v6501 = vpack.c.b16 %v5685, %v5677
    %v6502 = vpack.c.b16 %v5686, %v5678
    %v6503 = vpack.c.b16 %v5687, %v5679
    %v6504 = vpack.c.b16 %v5688, %v5680
    %v6505 = vpack.c.b16 %v5689, %v5681
    %v6506 = vpack.c.b16 %v5690, %v5682
    %v6507 = vpack.c.b16 %v5691, %v5683
    %v6508 = vpack.c.b16 %v5700, %v5692
    %v6509 = vpack.c.b16 %v5701, %v5693
    %v6510 = vpack.c.b16 %v5702, %v5694
    %v6511 = vpack.c.b16 %v5703, %v5695
    %v6512 = vpack.c.b16 %v5704, %v5696
    %v6513 = vpack.c.b16 %v5705, %v5697
    %v6514 = vpack.c.b16 %v5706, %v5698
    %v6515 = vpack.c.b16 %v5707, %v5699
    %v6516 = vpack.c.b16 %v5716, %v5708
    %v6517 = vpack.c.b16 %v5717, %v5709
    %v6518 = vpack.c.b16 %v5718, %v5710
    %v6519 = vpack.c.b16 %v5719, %v5711
    %v6520 = vpack.c.b16 %v5720, %v5712
    %v6521 = vpack.c.b16 %v5721, %v5713
    %v6522 = vpack.c.b16 %v5722, %v5714
    %v6523 = vpack.c.b16 %v5723, %v5715
    %v6524 = vpack.c.b16 %v5732, %v5724
    %v6525 = vpack.c.b16 %v5733, %v5725
    %v6526 = vpack.c.b16 %v5734, %v5726
    %v6527 = vpack.c.b16 %v5735, %v5727
    %v6528 = vpack.c.b16 %v5736, %v5728
    %v6529 = vpack.c.b16 %v5737, %v5729
    %v6530 = vpack.c.b16 %v5738, %v5730
    %v6531 = vpack.c.b16 %v5739, %v5731
    %v6532 = vpack.c.b16 %v5748, %v5740
    %v6533 = vpack.c.b16 %v5749, %v5741
    %v6534 = vpack.c.b16 %v5750, %v5742
    %v6535 = vpack.c.b16 %v5751, %v5743
    %v6536 = vpack.c.b16 %v5752, %v5744
    %v6537 = vpack.c.b16 %v5753, %v5745
    %v6538 = vpack.c.b16 %v5754, %v5746
    %v6539 = vpack.c.b16 %v5755, %v5747
    %v6540 = vpack.c.b16 %v5764, %v5756
    %v6541 = vpack.c.b16 %v5765, %v5757
    %v6542 = vpack.c.b16 %v5766, %v5758
    %v6543 = vpack.c.b16 %v5767, %v5759
    %v6544 = vpack.c.b16 %v5768, %v5760
    %v6545 = vpack.c.b16 %v5769, %v5761
    %v6546 = vpack.c.b16 %v5770, %v5762
    %v6547 = vpack.c.b16 %v5771, %v5763
    %v6548 = vpack.c.b16 %v5780, %v5772
    %v6549 = vpack.c.b16 %v5781, %v5773
    %v6550 = vpack.c.b16 %v5782, %v5774
    %v6551 = vpack.c.b16 %v5783, %v5775
    %v6552 = vpack.c.b16 %v5784, %v5776
    %v6553 = vpack.c.b16 %v5785, %v5777
    %v6554 = vpack.c.b16 %v5786, %v5778
    %v6555 = vpack.c.b16 %v5787, %v5779
    %v6556 = vpack.c.b16 %v5796, %v5788
    %v6557 = vpack.c.b16 %v5797, %v5789
    %v6558 = vpack.c.b16 %v5798, %v5790
    %v6559 = vpack.c.b16 %v5799, %v5791
    %v6560 = vpack.c.b16 %v5800, %v5792
    %v6561 = vpack.c.b16 %v5801, %v5793
    %v6562 = vpack.c.b16 %v5802, %v5794
    %v6563 = vpack.c.b16 %v5803, %v5795
    %v6564 = vpack.c.b16 %v5812, %v5804
    %v6565 = vpack.c.b16 %v5813, %v5805
    %v6566 = vpack.c.b16 %v5814, %v5806
    %v6567 = vpack.c.b16 %v5815, %v5807
    %v6568 = vpack.c.b16 %v5816, %v5808
    %v6569 = vpack.c.b16 %v5817, %v5809
    %v6570 = vpack.c.b16 %v5818, %v5810
    %v6571 = vpack.c.b16 %v5819, %v5811
    %v6572 = vpack.c.b16 %v5828, %v5820
    %v6573 = vpack.c.b16 %v5829, %v5821
    %v6574 = vpack.c.b16 %v5830, %v5822
    %v6575 = vpack.c.b16 %v5831, %v5823
    %v6576 = vpack.c.b16 %v5832, %v5824
    %v6577 = vpack.c.b16 %v5833, %v5825
    %v6578 = vpack.c.b16 %v5834, %v5826
    %v6579 = vpack.c.b16 %v5835, %v5827
    %v6580 = vpack.c.b16 %v5844, %v5836
    %v6581 = vpack.c.b16 %v5845, %v5837
    %v6582 = vpack.c.b16 %v5846, %v5838
    %v6583 = vpack.c.b16 %v5847, %v5839
    %v6584 = vpack.c.b16 %v5848, %v5840
    %v6585 = vpack.c.b16 %v5849, %v5841
    %v6586 = vpack.c.b16 %v5850, %v5842
    %v6587 = vpack.c.b16 %v5851, %v5843
    %v6588 = vpack.c.b16 %v5860, %v5852
    %v6589 = vpack.c.b16 %v5861, %v5853
    %v6590 = vpack.c.b16 %v5862, %v5854
    %v6591 = vpack.c.b16 %v5863, %v5855
    %v6592 = vpack.c.b16 %v5864, %v5856
    %v6593 = vpack.c.b16 %v5865, %v5857
    %v6594 = vpack.c.b16 %v5866, %v5858
    %v6595 = vpack.c.b16 %v5867, %v5859
    %v6596 = vpack.c.b16 %v5876, %v5868
    %v6597 = vpack.c.b16 %v5877, %v5869
    %v6598 = vpack.c.b16 %v5878, %v5870
    %v6599 = vpack.c.b16 %v5879, %v5871
    %v6600 = vpack.c.b16 %v5880, %v5872
    %v6601 = vpack.c.b16 %v5881, %v5873
    %v6602 = vpack.c.b16 %v5882, %v5874
    %v6603 = vpack.c.b16 %v5883, %v5875
    %v6604 = vpack.c.b16 %v5892, %v5884
    %v6605 = vpack.c.b16 %v5893, %v5885
    %v6606 = vpack.c.b16 %v5894, %v5886
    %v6607 = vpack.c.b16 %v5895, %v5887
    %v6608 = vpack.c.b16 %v5896, %v5888
    %v6609 = vpack.c.b16 %v5897, %v5889
    %v6610 = vpack.c.b16 %v5898, %v5890
    %v6611 = vpack.c.b16 %v5899, %v5891
    %v6612 = vpack.c.b16 %v5908, %v5900
    %v6613 = vpack.c.b16 %v5909, %v5901
    %v6614 = vpack.c.b16 %v5910, %v5902
    %v6615 = vpack.c.b16 %v5911, %v5903
    %v6616 = vpack.c.b16 %v5912, %v5904
    %v6617 = vpack.c.b16 %v5913, %v5905
    %v6618 = vpack.c.b16 %v5914, %v5906
    %v6619 = vpack.c.b16 %v5915, %v5907
    %v6620 = vpack.c.b16 %v5924, %v5916
    %v6621 = vpack.c.b16 %v5925, %v5917
    %v6622 = vpack.c.b16 %v5926, %v5918
    %v6623 = vpack.c.b16 %v5927, %v5919
    %v6624 = vpack.c.b16 %v5928, %v5920
    %v6625 = vpack.c.b16 %v5929, %v5921
    %v6626 = vpack.c.b16 %v5930, %v5922
    %v6627 = vpack.c.b16 %v5931, %v5923
    %v6628 = vpack.c.b16 %v5940, %v5932
    %v6629 = vpack.c.b16 %v5941, %v5933
    %v6630 = vpack.c.b16 %v5942, %v5934
    %v6631 = vpack.c.b16 %v5943, %v5935
    %v6632 = vpack.c.b16 %v5944, %v5936
    %v6633 = vpack.c.b16 %v5945, %v5937
    %v6634 = vpack.c.b16 %v5946, %v5938
    %v6635 = vpack.c.b16 %v5947, %v5939
    %v6636 = vpack.c.b16 %v5956, %v5948
    %v6637 = vpack.c.b16 %v5957, %v5949
    %v6638 = vpack.c.b16 %v5958, %v5950
    %v6639 = vpack.c.b16 %v5959, %v5951
    %v6640 = vpack.c.b16 %v5960, %v5952
    %v6641 = vpack.c.b16 %v5961, %v5953
    %v6642 = vpack.c.b16 %v5962, %v5954
    %v6643 = vpack.c.b16 %v5963, %v5955
    %v6644 = vpack.c.b16 %v5972, %v5964
    %v6645 = vpack.c.b16 %v5973, %v5965
    %v6646 = vpack.c.b16 %v5974, %v5966
    %v6647 = vpack.c.b16 %v5975, %v5967
    %v6648 = vpack.c.b16 %v5976, %v5968
    %v6649 = vpack.c.b16 %v5977, %v5969
    %v6650 = vpack.c.b16 %v5978, %v5970
    %v6651 = vpack.c.b16 %v5979, %v5971
    %v6652 = vpack.c.b16 %v5988, %v5980
    %v6653 = vpack.c.b16 %v5989, %v5981
    %v6654 = vpack.c.b16 %v5990, %v5982
    %v6655 = vpack.c.b16 %v5991, %v5983
    %v6656 = vpack.c.b16 %v5992, %v5984
    %v6657 = vpack.c.b16 %v5993, %v5985
    %v6658 = vpack.c.b16 %v5994, %v5986
    %v6659 = vpack.c.b16 %v5995, %v5987
    %v6660 = vpack.c.b16 %v6004, %v5996
    %v6661 = vpack.c.b16 %v6005, %v5997
    %v6662 = vpack.c.b16 %v6006, %v5998
    %v6663 = vpack.c.b16 %v6007, %v5999
    %v6664 = vpack.c.b16 %v6008, %v6000
    %v6665 = vpack.c.b16 %v6009, %v6001
    %v6666 = vpack.c.b16 %v6010, %v6002
    %v6667 = vpack.c.b16 %v6011, %v6003
    %v6668 = vpack.c.b16 %v6020, %v6012
    %v6669 = vpack.c.b16 %v6021, %v6013
    %v6670 = vpack.c.b16 %v6022, %v6014
    %v6671 = vpack.c.b16 %v6023, %v6015
    %v6672 = vpack.c.b16 %v6024, %v6016
    %v6673 = vpack.c.b16 %v6025, %v6017
    %v6674 = vpack.c.b16 %v6026, %v6018
    %v6675 = vpack.c.b16 %v6027, %v6019
    %v6676 = vpack.c.b16 %v6036, %v6028
    %v6677 = vpack.c.b16 %v6037, %v6029
    %v6678 = vpack.c.b16 %v6038, %v6030
    %v6679 = vpack.c.b16 %v6039, %v6031
    %v6680 = vpack.c.b16 %v6040, %v6032
    %v6681 = vpack.c.b16 %v6041, %v6033
    %v6682 = vpack.c.b16 %v6042, %v6034
    %v6683 = vpack.c.b16 %v6043, %v6035
    %v6684 = vpack.c.b16 %v6052, %v6044
    %v6685 = vpack.c.b16 %v6053, %v6045
    %v6686 = vpack.c.b16 %v6054, %v6046
    %v6687 = vpack.c.b16 %v6055, %v6047
    %v6688 = vpack.c.b16 %v6056, %v6048
    %v6689 = vpack.c.b16 %v6057, %v6049
    %v6690 = vpack.c.b16 %v6058, %v6050
    %v6691 = vpack.c.b16 %v6059, %v6051
    %v6692 = vpack.c.b16 %v6068, %v6060
    %v6693 = vpack.c.b16 %v6069, %v6061
    %v6694 = vpack.c.b16 %v6070, %v6062
    %v6695 = vpack.c.b16 %v6071, %v6063
    %v6696 = vpack.c.b16 %v6072, %v6064
    %v6697 = vpack.c.b16 %v6073, %v6065
    %v6698 = vpack.c.b16 %v6074, %v6066
    %v6699 = vpack.c.b16 %v6075, %v6067
    %v6700 = vpack.c.b16 %v6084, %v6076
    %v6701 = vpack.c.b16 %v6085, %v6077
    %v6702 = vpack.c.b16 %v6086, %v6078
    %v6703 = vpack.c.b16 %v6087, %v6079
    %v6704 = vpack.c.b16 %v6088, %v6080
    %v6705 = vpack.c.b16 %v6089, %v6081
    %v6706 = vpack.c.b16 %v6090, %v6082
    %v6707 = vpack.c.b16 %v6091, %v6083
    %v6708 = vpack.c.b16 %v6100, %v6092
    %v6709 = vpack.c.b16 %v6101, %v6093
    %v6710 = vpack.c.b16 %v6102, %v6094
    %v6711 = vpack.c.b16 %v6103, %v6095
    %v6712 = vpack.c.b16 %v6104, %v6096
    %v6713 = vpack.c.b16 %v6105, %v6097
    %v6714 = vpack.c.b16 %v6106, %v6098
    %v6715 = vpack.c.b16 %v6107, %v6099
    %v6716 = vpack.c.b16 %v6116, %v6108
    %v6717 = vpack.c.b16 %v6117, %v6109
    %v6718 = vpack.c.b16 %v6118, %v6110
    %v6719 = vpack.c.b16 %v6119, %v6111
    %v6720 = vpack.c.b16 %v6120, %v6112
    %v6721 = vpack.c.b16 %v6121, %v6113
    %v6722 = vpack.c.b16 %v6122, %v6114
    %v6723 = vpack.c.b16 %v6123, %v6115
    %v6724 = vpack.c.b16 %v6132, %v6124
    %v6725 = vpack.c.b16 %v6133, %v6125
    %v6726 = vpack.c.b16 %v6134, %v6126
    %v6727 = vpack.c.b16 %v6135, %v6127
    %v6728 = vpack.c.b16 %v6136, %v6128
    %v6729 = vpack.c.b16 %v6137, %v6129
    %v6730 = vpack.c.b16 %v6138, %v6130
    %v6731 = vpack.c.b16 %v6139, %v6131
    %v6732 = vpack.c.b16 %v6148, %v6140
    %v6733 = vpack.c.b16 %v6149, %v6141
    %v6734 = vpack.c.b16 %v6150, %v6142
    %v6735 = vpack.c.b16 %v6151, %v6143
    %v6736 = vpack.c.b16 %v6152, %v6144
    %v6737 = vpack.c.b16 %v6153, %v6145
    %v6738 = vpack.c.b16 %v6154, %v6146
    %v6739 = vpack.c.b16 %v6155, %v6147
    %v6740 = vpack.c.b16 %v6164, %v6156
    %v6741 = vpack.c.b16 %v6165, %v6157
    %v6742 = vpack.c.b16 %v6166, %v6158
    %v6743 = vpack.c.b16 %v6167, %v6159
    %v6744 = vpack.c.b16 %v6168, %v6160
    %v6745 = vpack.c.b16 %v6169, %v6161
    %v6746 = vpack.c.b16 %v6170, %v6162
    %v6747 = vpack.c.b16 %v6171, %v6163
    %v6748 = vpack.c.b16 %v6180, %v6172
    %v6749 = vpack.c.b16 %v6181, %v6173
    %v6750 = vpack.c.b16 %v6182, %v6174
    %v6751 = vpack.c.b16 %v6183, %v6175
    %v6752 = vpack.c.b16 %v6184, %v6176
    %v6753 = vpack.c.b16 %v6185, %v6177
    %v6754 = vpack.c.b16 %v6186, %v6178
    %v6755 = vpack.c.b16 %v6187, %v6179
    %v6756 = vpack.c.b16 %v6196, %v6188
    %v6757 = vpack.c.b16 %v6197, %v6189
    %v6758 = vpack.c.b16 %v6198, %v6190
    %v6759 = vpack.c.b16 %v6199, %v6191
    %v6760 = vpack.c.b16 %v6200, %v6192
    %v6761 = vpack.c.b16 %v6201, %v6193
    %v6762 = vpack.c.b16 %v6202, %v6194
    %v6763 = vpack.c.b16 %v6203, %v6195
    %v6764 = vpack.c.b16 %v6212, %v6204
    %v6765 = vpack.c.b16 %v6213, %v6205
    %v6766 = vpack.c.b16 %v6214, %v6206
    %v6767 = vpack.c.b16 %v6215, %v6207
    %v6768 = vpack.c.b16 %v6216, %v6208
    %v6769 = vpack.c.b16 %v6217, %v6209
    %v6770 = vpack.c.b16 %v6218, %v6210
    %v6771 = vpack.c.b16 %v6219, %v6211
    %v6772 = vpack.c.b16 %v6228, %v6220
    %v6773 = vpack.c.b16 %v6229, %v6221
    %v6774 = vpack.c.b16 %v6230, %v6222
    %v6775 = vpack.c.b16 %v6231, %v6223
    %v6776 = vpack.c.b16 %v6232, %v6224
    %v6777 = vpack.c.b16 %v6233, %v6225
    %v6778 = vpack.c.b16 %v6234, %v6226
    %v6779 = vpack.c.b16 %v6235, %v6227
    %v6780 = vpack.c.b16 %v6244, %v6236
    %v6781 = vpack.c.b16 %v6245, %v6237
    %v6782 = vpack.c.b16 %v6246, %v6238
    %v6783 = vpack.c.b16 %v6247, %v6239
    %v6784 = vpack.c.b16 %v6248, %v6240
    %v6785 = vpack.c.b16 %v6249, %v6241
    %v6786 = vpack.c.b16 %v6250, %v6242
    %v6787 = vpack.c.b16 %v6251, %v6243
    %v6788 = vpack.c.b16 %v6260, %v6252
    %v6789 = vpack.c.b16 %v6261, %v6253
    %v6790 = vpack.c.b16 %v6262, %v6254
    %v6791 = vpack.c.b16 %v6263, %v6255
    %v6792 = vpack.c.b16 %v6264, %v6256
    %v6793 = vpack.c.b16 %v6265, %v6257
    %v6794 = vpack.c.b16 %v6266, %v6258
    %v6795 = vpack.c.b16 %v6267, %v6259
    %v6796 = vpack.c.b16 %v6276, %v6268
    %v6797 = vpack.c.b16 %v6277, %v6269
    %v6798 = vpack.c.b16 %v6278, %v6270
    %v6799 = vpack.c.b16 %v6279, %v6271
    %v6800 = vpack.c.b16 %v6280, %v6272
    %v6801 = vpack.c.b16 %v6281, %v6273
    %v6802 = vpack.c.b16 %v6282, %v6274
    %v6803 = vpack.c.b16 %v6283, %v6275
    %v6804 = vpack.c.b16 %v6292, %v6284
    %v6805 = vpack.c.b16 %v6293, %v6285
    %v6806 = vpack.c.b16 %v6294, %v6286
    %v6807 = vpack.c.b16 %v6295, %v6287
    %v6808 = vpack.c.b16 %v6296, %v6288
    %v6809 = vpack.c.b16 %v6297, %v6289
    %v6810 = vpack.c.b16 %v6298, %v6290
    %v6811 = vpack.c.b16 %v6299, %v6291
    %7324 = vmatprep.subr.bf16.mxu0 %v6301
    %7325 = vmatpush1.bf16.msra.mxu0 %v6300
    %7326 = vmatprep.subr.bf16.mxu0 %v6309
    %7327 = vmatpush1.bf16.msra.mxu0 %v6308
    %7328 = vmatprep.subr.bf16.mxu0 %v6317
    %7329 = vmatpush1.bf16.msra.mxu0 %v6316
    %7330 = vmatprep.subr.bf16.mxu0 %v6325
    %7331 = vmatpush1.bf16.msra.mxu0 %v6324
    %7332 = vmatprep.subr.bf16.mxu0 %v6333
    %7333 = vmatpush1.bf16.msra.mxu0 %v6332
    %7334 = vmatprep.subr.bf16.mxu0 %v6341
    %7335 = vmatpush1.bf16.msra.mxu0 %v6340
    %7336 = vmatprep.subr.bf16.mxu0 %v6349
    %7337 = vmatpush1.bf16.msra.mxu0 %v6348
    %7338 = vmatprep.subr.bf16.mxu0 %v6357
    %7339 = vmatpush1.bf16.msra.mxu0 %v6356
    %7340 = vmatprep.subr.bf16.mxu0 %v6365
    %7341 = vmatpush1.bf16.msra.mxu0 %v6364
    %7342 = vmatprep.subr.bf16.mxu0 %v6373
    %7343 = vmatpush1.bf16.msra.mxu0 %v6372
    %7344 = vmatprep.subr.bf16.mxu0 %v6381
    %7345 = vmatpush1.bf16.msra.mxu0 %v6380
    %7346 = vmatprep.subr.bf16.mxu0 %v6389
    %7347 = vmatpush1.bf16.msra.mxu0 %v6388
    %7348 = vmatprep.subr.bf16.mxu0 %v6397
    %7349 = vmatpush1.bf16.msra.mxu0 %v6396
    %7350 = vmatprep.subr.bf16.mxu0 %v6405
    %7351 = vmatpush1.bf16.msra.mxu0 %v6404
    %7352 = vmatprep.subr.bf16.mxu0 %v6413
    %7353 = vmatpush1.bf16.msra.mxu0 %v6412
    %7354 = vmatprep.subr.bf16.mxu0 %v6421
    %7355 = vmatpush1.bf16.msra.mxu0 %v6420
    %7356 = vmatprep.mubr.bf16.mxu0 %v4203
    %7357 = vmatmul.mubr.bf16.gmra.mrb[0].mxu0 %v4202
    %v7358 = vpop.f32.mrb[0].mxu0
    %v7359 = vadd.f32 %v4727, %v7358
    %v7360 = vpop.f32.mrb[0].mxu0
    %v7361 = vadd.f32 %v4731, %v7360
    %v7362 = vpop.f32.mrb[0].mxu0
    %v7363 = vpop.f32.mrb[0].mxu0
    %7364 = vdwg.mxu0
    %7365 = vmatprep.subr.bf16.mxu0 %v6429
    %7366 = vmatpush1.bf16.msra.mxu0 %v6428
    %7367 = vmatprep.subr.bf16.mxu0 %v6437
    %7368 = vmatpush1.bf16.msra.mxu0 %v6436
    %7369 = vmatprep.subr.bf16.mxu0 %v6445
    %7370 = vmatpush1.bf16.msra.mxu0 %v6444
    %7371 = vmatprep.subr.bf16.mxu0 %v6453
    %7372 = vmatpush1.bf16.msra.mxu0 %v6452
    %7373 = vmatprep.subr.bf16.mxu0 %v6461
    %7374 = vmatpush1.bf16.msra.mxu0 %v6460
    %7375 = vmatprep.subr.bf16.mxu0 %v6469
    %7376 = vmatpush1.bf16.msra.mxu0 %v6468
    %7377 = vmatprep.subr.bf16.mxu0 %v6477
    %7378 = vmatpush1.bf16.msra.mxu0 %v6476
    %7379 = vmatprep.subr.bf16.mxu0 %v6485
    %7380 = vmatpush1.bf16.msra.mxu0 %v6484
    %7381 = vmatprep.subr.bf16.mxu0 %v6493
    %7382 = vmatpush1.bf16.msra.mxu0 %v6492
    %7383 = vmatprep.subr.bf16.mxu0 %v6501
    %7384 = vmatpush1.bf16.msra.mxu0 %v6500
    %7385 = vmatprep.subr.bf16.mxu0 %v6509
    %7386 = vmatpush1.bf16.msra.mxu0 %v6508
    %7387 = vmatprep.subr.bf16.mxu0 %v6517
    %7388 = vmatpush1.bf16.msra.mxu0 %v6516
    %7389 = vmatprep.subr.bf16.mxu0 %v6525
    %7390 = vmatpush1.bf16.msra.mxu0 %v6524
    %7391 = vmatprep.subr.bf16.mxu0 %v6533
    %7392 = vmatpush1.bf16.msra.mxu0 %v6532
    %7393 = vmatprep.subr.bf16.mxu0 %v6541
    %7394 = vmatpush1.bf16.msra.mxu0 %v6540
    %7395 = vmatprep.subr.bf16.mxu0 %v6549
    %7396 = vmatpush1.bf16.msra.mxu0 %v6548
    %7397 = vmatprep.mubr.bf16.mxu0 %v4205
    %7398 = vmatmul.mubr.bf16.gmra.mrb[0].mxu0 %v4204
    %v7399 = vpop.f32.mrb[0].mxu0
    %v7400 = vadd.f32 %v7359, %v7399
    %v7401 = vpop.f32.mrb[0].mxu0
    %v7402 = vadd.f32 %v7361, %v7401
    %v7403 = vpop.f32.mrb[0].mxu0
    %v7404 = vpop.f32.mrb[0].mxu0
    %7405 = vdwg.mxu0
    %7406 = vmatprep.subr.bf16.mxu0 %v6557
    %7407 = vmatpush1.bf16.msra.mxu0 %v6556
    %7408 = vmatprep.subr.bf16.mxu0 %v6565
    %7409 = vmatpush1.bf16.msra.mxu0 %v6564
    %7410 = vmatprep.subr.bf16.mxu0 %v6573
    %7411 = vmatpush1.bf16.msra.mxu0 %v6572
    %7412 = vmatprep.subr.bf16.mxu0 %v6581
    %7413 = vmatpush1.bf16.msra.mxu0 %v6580
    %7414 = vmatprep.subr.bf16.mxu0 %v6589
    %7415 = vmatpush1.bf16.msra.mxu0 %v6588
    %7416 = vmatprep.subr.bf16.mxu0 %v6597
    %7417 = vmatpush1.bf16.msra.mxu0 %v6596
    %7418 = vmatprep.subr.bf16.mxu0 %v6605
    %7419 = vmatpush1.bf16.msra.mxu0 %v6604
    %7420 = vmatprep.subr.bf16.mxu0 %v6613
    %7421 = vmatpush1.bf16.msra.mxu0 %v6612
    %7422 = vmatprep.subr.bf16.mxu0 %v6621
    %7423 = vmatpush1.bf16.msra.mxu0 %v6620
    %7424 = vmatprep.subr.bf16.mxu0 %v6629
    %7425 = vmatpush1.bf16.msra.mxu0 %v6628
    %7426 = vmatprep.subr.bf16.mxu0 %v6637
    %7427 = vmatpush1.bf16.msra.mxu0 %v6636
    %7428 = vmatprep.subr.bf16.mxu0 %v6645
    %7429 = vmatpush1.bf16.msra.mxu0 %v6644
    %7430 = vmatprep.subr.bf16.mxu0 %v6653
    %7431 = vmatpush1.bf16.msra.mxu0 %v6652
    %7432 = vmatprep.subr.bf16.mxu0 %v6661
    %7433 = vmatpush1.bf16.msra.mxu0 %v6660
    %7434 = vmatprep.subr.bf16.mxu0 %v6669
    %7435 = vmatpush1.bf16.msra.mxu0 %v6668
    %7436 = vmatprep.subr.bf16.mxu0 %v6677
    %7437 = vmatpush1.bf16.msra.mxu0 %v6676
    %7438 = vmatprep.mubr.bf16.mxu0 %v4207
    %7439 = vmatmul.mubr.bf16.gmra.mrb[0].mxu0 %v4206
    %v7440 = vpop.f32.mrb[0].mxu0
    %v7441 = vadd.f32 %v7400, %v7440
    %v7442 = vpop.f32.mrb[0].mxu0
    %v7443 = vadd.f32 %v7402, %v7442
    %v7444 = vpop.f32.mrb[0].mxu0
    %v7445 = vpop.f32.mrb[0].mxu0
    %7446 = vdwg.mxu0
    %7447 = vmatprep.subr.bf16.mxu0 %v6685
    %7448 = vmatpush1.bf16.msra.mxu0 %v6684
    %7449 = vmatprep.subr.bf16.mxu0 %v6693
    %7450 = vmatpush1.bf16.msra.mxu0 %v6692
    %7451 = vmatprep.subr.bf16.mxu0 %v6701
    %7452 = vmatpush1.bf16.msra.mxu0 %v6700
    %7453 = vmatprep.subr.bf16.mxu0 %v6709
    %7454 = vmatpush1.bf16.msra.mxu0 %v6708
    %7455 = vmatprep.subr.bf16.mxu0 %v6717
    %7456 = vmatpush1.bf16.msra.mxu0 %v6716
    %7457 = vmatprep.subr.bf16.mxu0 %v6725
    %7458 = vmatpush1.bf16.msra.mxu0 %v6724
    %7459 = vmatprep.subr.bf16.mxu0 %v6733
    %7460 = vmatpush1.bf16.msra.mxu0 %v6732
    %7461 = vmatprep.subr.bf16.mxu0 %v6741
    %7462 = vmatpush1.bf16.msra.mxu0 %v6740
    %7463 = vmatprep.subr.bf16.mxu0 %v6749
    %7464 = vmatpush1.bf16.msra.mxu0 %v6748
    %7465 = vmatprep.subr.bf16.mxu0 %v6757
    %7466 = vmatpush1.bf16.msra.mxu0 %v6756
    %7467 = vmatprep.subr.bf16.mxu0 %v6765
    %7468 = vmatpush1.bf16.msra.mxu0 %v6764
    %7469 = vmatprep.subr.bf16.mxu0 %v6773
    %7470 = vmatpush1.bf16.msra.mxu0 %v6772
    %7471 = vmatprep.subr.bf16.mxu0 %v6781
    %7472 = vmatpush1.bf16.msra.mxu0 %v6780
    %7473 = vmatprep.subr.bf16.mxu0 %v6789
    %7474 = vmatpush1.bf16.msra.mxu0 %v6788
    %7475 = vmatprep.subr.bf16.mxu0 %v6797
    %7476 = vmatpush1.bf16.msra.mxu0 %v6796
    %7477 = vmatprep.subr.bf16.mxu0 %v6805
    %7478 = vmatpush1.bf16.msra.mxu0 %v6804
    %7479 = vmatprep.mubr.bf16.mxu0 %v4209
    %7480 = vmatmul.mubr.bf16.gmra.mrb[0].mxu0 %v4208
    %v7481 = vpop.f32.mrb[0].mxu0
    %v7482 = vadd.f32 %v7441, %v7481
    %v7483 = vpop.f32.mrb[0].mxu0
    %v7484 = vadd.f32 %v7443, %v7483
    %v7485 = vpop.f32.mrb[0].mxu0
    %v7486 = vpop.f32.mrb[0].mxu0
    %7487 = vdwg.mxu0
    %7488 = vmatprep.subr.bf16.mxu0 %v6303
    %7489 = vmatpush1.bf16.msra.mxu0 %v6302
    %7490 = vmatprep.subr.bf16.mxu0 %v6311
    %7491 = vmatpush1.bf16.msra.mxu0 %v6310
    %7492 = vmatprep.subr.bf16.mxu0 %v6319
    %7493 = vmatpush1.bf16.msra.mxu0 %v6318
    %7494 = vmatprep.subr.bf16.mxu0 %v6327
    %7495 = vmatpush1.bf16.msra.mxu0 %v6326
    %7496 = vmatprep.subr.bf16.mxu0 %v6335
    %7497 = vmatpush1.bf16.msra.mxu0 %v6334
    %7498 = vmatprep.subr.bf16.mxu0 %v6343
    %7499 = vmatpush1.bf16.msra.mxu0 %v6342
    %7500 = vmatprep.subr.bf16.mxu0 %v6351
    %7501 = vmatpush1.bf16.msra.mxu0 %v6350
    %7502 = vmatprep.subr.bf16.mxu0 %v6359
    %7503 = vmatpush1.bf16.msra.mxu0 %v6358
    %7504 = vmatprep.subr.bf16.mxu0 %v6367
    %7505 = vmatpush1.bf16.msra.mxu0 %v6366
    %7506 = vmatprep.subr.bf16.mxu0 %v6375
    %7507 = vmatpush1.bf16.msra.mxu0 %v6374
    %7508 = vmatprep.subr.bf16.mxu0 %v6383
    %7509 = vmatpush1.bf16.msra.mxu0 %v6382
    %7510 = vmatprep.subr.bf16.mxu0 %v6391
    %7511 = vmatpush1.bf16.msra.mxu0 %v6390
    %7512 = vmatprep.subr.bf16.mxu0 %v6399
    %7513 = vmatpush1.bf16.msra.mxu0 %v6398
    %7514 = vmatprep.subr.bf16.mxu0 %v6407
    %7515 = vmatpush1.bf16.msra.mxu0 %v6406
    %7516 = vmatprep.subr.bf16.mxu0 %v6415
    %7517 = vmatpush1.bf16.msra.mxu0 %v6414
    %7518 = vmatprep.subr.bf16.mxu0 %v6423
    %7519 = vmatpush1.bf16.msra.mxu0 %v6422
    %7520 = vmatprep.mubr.bf16.mxu0 %v4203
    %7521 = vmatmul.mubr.bf16.gmra.mrb[0].mxu0 %v4202
    %v7522 = vpop.f32.mrb[0].mxu0
    %v7523 = vadd.f32 %v4735, %v7522
    %v7524 = vpop.f32.mrb[0].mxu0
    %v7525 = vadd.f32 %v4739, %v7524
    %v7526 = vpop.f32.mrb[0].mxu0
    %v7527 = vpop.f32.mrb[0].mxu0
    %7528 = vdwg.mxu0
    %7529 = vmatprep.subr.bf16.mxu0 %v6431
    %7530 = vmatpush1.bf16.msra.mxu0 %v6430
    %7531 = vmatprep.subr.bf16.mxu0 %v6439
    %7532 = vmatpush1.bf16.msra.mxu0 %v6438
    %7533 = vmatprep.subr.bf16.mxu0 %v6447
    %7534 = vmatpush1.bf16.msra.mxu0 %v6446
    %7535 = vmatprep.subr.bf16.mxu0 %v6455
    %7536 = vmatpush1.bf16.msra.mxu0 %v6454
    %7537 = vmatprep.subr.bf16.mxu0 %v6463
    %7538 = vmatpush1.bf16.msra.mxu0 %v6462
    %7539 = vmatprep.subr.bf16.mxu0 %v6471
    %7540 = vmatpush1.bf16.msra.mxu0 %v6470
    %7541 = vmatprep.subr.bf16.mxu0 %v6479
    %7542 = vmatpush1.bf16.msra.mxu0 %v6478
    %7543 = vmatprep.subr.bf16.mxu0 %v6487
    %7544 = vmatpush1.bf16.msra.mxu0 %v6486
    %7545 = vmatprep.subr.bf16.mxu0 %v6495
    %7546 = vmatpush1.bf16.msra.mxu0 %v6494
    %7547 = vmatprep.subr.bf16.mxu0 %v6503
    %7548 = vmatpush1.bf16.msra.mxu0 %v6502
    %7549 = vmatprep.subr.bf16.mxu0 %v6511
    %7550 = vmatpush1.bf16.msra.mxu0 %v6510
    %7551 = vmatprep.subr.bf16.mxu0 %v6519
    %7552 = vmatpush1.bf16.msra.mxu0 %v6518
    %7553 = vmatprep.subr.bf16.mxu0 %v6527
    %7554 = vmatpush1.bf16.msra.mxu0 %v6526
    %7555 = vmatprep.subr.bf16.mxu0 %v6535
    %7556 = vmatpush1.bf16.msra.mxu0 %v6534
    %7557 = vmatprep.subr.bf16.mxu0 %v6543
    %7558 = vmatpush1.bf16.msra.mxu0 %v6542
    %7559 = vmatprep.subr.bf16.mxu0 %v6551
    %7560 = vmatpush1.bf16.msra.mxu0 %v6550
    %7561 = vmatprep.mubr.bf16.mxu0 %v4205
    %7562 = vmatmul.mubr.bf16.gmra.mrb[0].mxu0 %v4204
    %v7563 = vpop.f32.mrb[0].mxu0
    %v7564 = vadd.f32 %v7523, %v7563
    %v7565 = vpop.f32.mrb[0].mxu0
    %v7566 = vadd.f32 %v7525, %v7565
    %v7567 = vpop.f32.mrb[0].mxu0
    %v7568 = vpop.f32.mrb[0].mxu0
    %7569 = vdwg.mxu0
    %7570 = vmatprep.subr.bf16.mxu0 %v6559
    %7571 = vmatpush1.bf16.msra.mxu0 %v6558
    %7572 = vmatprep.subr.bf16.mxu0 %v6567
    %7573 = vmatpush1.bf16.msra.mxu0 %v6566
    %7574 = vmatprep.subr.bf16.mxu0 %v6575
    %7575 = vmatpush1.bf16.msra.mxu0 %v6574
    %7576 = vmatprep.subr.bf16.mxu0 %v6583
    %7577 = vmatpush1.bf16.msra.mxu0 %v6582
    %7578 = vmatprep.subr.bf16.mxu0 %v6591
    %7579 = vmatpush1.bf16.msra.mxu0 %v6590
    %7580 = vmatprep.subr.bf16.mxu0 %v6599
    %7581 = vmatpush1.bf16.msra.mxu0 %v6598
    %7582 = vmatprep.subr.bf16.mxu0 %v6607
    %7583 = vmatpush1.bf16.msra.mxu0 %v6606
    %7584 = vmatprep.subr.bf16.mxu0 %v6615
    %7585 = vmatpush1.bf16.msra.mxu0 %v6614
    %7586 = vmatprep.subr.bf16.mxu0 %v6623
    %7587 = vmatpush1.bf16.msra.mxu0 %v6622
    %7588 = vmatprep.subr.bf16.mxu0 %v6631
    %7589 = vmatpush1.bf16.msra.mxu0 %v6630
    %7590 = vmatprep.subr.bf16.mxu0 %v6639
    %7591 = vmatpush1.bf16.msra.mxu0 %v6638
    %7592 = vmatprep.subr.bf16.mxu0 %v6647
    %7593 = vmatpush1.bf16.msra.mxu0 %v6646
    %7594 = vmatprep.subr.bf16.mxu0 %v6655
    %7595 = vmatpush1.bf16.msra.mxu0 %v6654
    %7596 = vmatprep.subr.bf16.mxu0 %v6663
    %7597 = vmatpush1.bf16.msra.mxu0 %v6662
    %7598 = vmatprep.subr.bf16.mxu0 %v6671
    %7599 = vmatpush1.bf16.msra.mxu0 %v6670
    %7600 = vmatprep.subr.bf16.mxu0 %v6679
    %7601 = vmatpush1.bf16.msra.mxu0 %v6678
    %7602 = vmatprep.mubr.bf16.mxu0 %v4207
    %7603 = vmatmul.mubr.bf16.gmra.mrb[0].mxu0 %v4206
    %v7604 = vpop.f32.mrb[0].mxu0
    %v7605 = vadd.f32 %v7564, %v7604
    %v7606 = vpop.f32.mrb[0].mxu0
    %v7607 = vadd.f32 %v7566, %v7606
    %v7608 = vpop.f32.mrb[0].mxu0
    %v7609 = vpop.f32.mrb[0].mxu0
    %7610 = vdwg.mxu0
    %7611 = vmatprep.subr.bf16.mxu0 %v6687
    %7612 = vmatpush1.bf16.msra.mxu0 %v6686
    %7613 = vmatprep.subr.bf16.mxu0 %v6695
    %7614 = vmatpush1.bf16.msra.mxu0 %v6694
    %7615 = vmatprep.subr.bf16.mxu0 %v6703
    %7616 = vmatpush1.bf16.msra.mxu0 %v6702
    %7617 = vmatprep.subr.bf16.mxu0 %v6711
    %7618 = vmatpush1.bf16.msra.mxu0 %v6710
    %7619 = vmatprep.subr.bf16.mxu0 %v6719
    %7620 = vmatpush1.bf16.msra.mxu0 %v6718
    %7621 = vmatprep.subr.bf16.mxu0 %v6727
    %7622 = vmatpush1.bf16.msra.mxu0 %v6726
    %7623 = vmatprep.subr.bf16.mxu0 %v6735
    %7624 = vmatpush1.bf16.msra.mxu0 %v6734
    %7625 = vmatprep.subr.bf16.mxu0 %v6743
    %7626 = vmatpush1.bf16.msra.mxu0 %v6742
    %7627 = vmatprep.subr.bf16.mxu0 %v6751
    %7628 = vmatpush1.bf16.msra.mxu0 %v6750
    %7629 = vmatprep.subr.bf16.mxu0 %v6759
    %7630 = vmatpush1.bf16.msra.mxu0 %v6758
    %7631 = vmatprep.subr.bf16.mxu0 %v6767
    %7632 = vmatpush1.bf16.msra.mxu0 %v6766
    %7633 = vmatprep.subr.bf16.mxu0 %v6775
    %7634 = vmatpush1.bf16.msra.mxu0 %v6774
    %7635 = vmatprep.subr.bf16.mxu0 %v6783
    %7636 = vmatpush1.bf16.msra.mxu0 %v6782
    %7637 = vmatprep.subr.bf16.mxu0 %v6791
    %7638 = vmatpush1.bf16.msra.mxu0 %v6790
    %7639 = vmatprep.subr.bf16.mxu0 %v6799
    %7640 = vmatpush1.bf16.msra.mxu0 %v6798
    %7641 = vmatprep.subr.bf16.mxu0 %v6807
    %7642 = vmatpush1.bf16.msra.mxu0 %v6806
    %7643 = vmatprep.mubr.bf16.mxu0 %v4209
    %7644 = vmatmul.mubr.bf16.gmra.mrb[0].mxu0 %v4208
    %v7645 = vpop.f32.mrb[0].mxu0
    %v7646 = vadd.f32 %v7605, %v7645
    %v7647 = vpop.f32.mrb[0].mxu0
    %v7648 = vadd.f32 %v7607, %v7647
    %v7649 = vpop.f32.mrb[0].mxu0
    %v7650 = vpop.f32.mrb[0].mxu0
    %7651 = vdwg.mxu0
    %7652 = vmatprep.subr.bf16.mxu0 %v6305
    %7653 = vmatpush1.bf16.msra.mxu0 %v6304
    %7654 = vmatprep.subr.bf16.mxu0 %v6313
    %7655 = vmatpush1.bf16.msra.mxu0 %v6312
    %7656 = vmatprep.subr.bf16.mxu0 %v6321
    %7657 = vmatpush1.bf16.msra.mxu0 %v6320
    %7658 = vmatprep.subr.bf16.mxu0 %v6329
    %7659 = vmatpush1.bf16.msra.mxu0 %v6328
    %7660 = vmatprep.subr.bf16.mxu0 %v6337
    %7661 = vmatpush1.bf16.msra.mxu0 %v6336
    %7662 = vmatprep.subr.bf16.mxu0 %v6345
    %7663 = vmatpush1.bf16.msra.mxu0 %v6344
    %7664 = vmatprep.subr.bf16.mxu0 %v6353
    %7665 = vmatpush1.bf16.msra.mxu0 %v6352
    %7666 = vmatprep.subr.bf16.mxu0 %v6361
    %7667 = vmatpush1.bf16.msra.mxu0 %v6360
    %7668 = vmatprep.subr.bf16.mxu0 %v6369
    %7669 = vmatpush1.bf16.msra.mxu0 %v6368
    %7670 = vmatprep.subr.bf16.mxu0 %v6377
    %7671 = vmatpush1.bf16.msra.mxu0 %v6376
    %7672 = vmatprep.subr.bf16.mxu0 %v6385
    %7673 = vmatpush1.bf16.msra.mxu0 %v6384
    %7674 = vmatprep.subr.bf16.mxu0 %v6393
    %7675 = vmatpush1.bf16.msra.mxu0 %v6392
    %7676 = vmatprep.subr.bf16.mxu0 %v6401
    %7677 = vmatpush1.bf16.msra.mxu0 %v6400
    %7678 = vmatprep.subr.bf16.mxu0 %v6409
    %7679 = vmatpush1.bf16.msra.mxu0 %v6408
    %7680 = vmatprep.subr.bf16.mxu0 %v6417
    %7681 = vmatpush1.bf16.msra.mxu0 %v6416
    %7682 = vmatprep.subr.bf16.mxu0 %v6425
    %7683 = vmatpush1.bf16.msra.mxu0 %v6424
    %7684 = vmatprep.mubr.bf16.mxu0 %v4203
    %7685 = vmatmul.mubr.bf16.gmra.mrb[0].mxu0 %v4202
    %v7686 = vpop.f32.mrb[0].mxu0
    %v7687 = vadd.f32 %v4743, %v7686
    %v7688 = vpop.f32.mrb[0].mxu0
    %v7689 = vadd.f32 %v4747, %v7688
    %v7690 = vpop.f32.mrb[0].mxu0
    %v7691 = vpop.f32.mrb[0].mxu0
    %7692 = vdwg.mxu0
    %7693 = vmatprep.subr.bf16.mxu0 %v6433
    %7694 = vmatpush1.bf16.msra.mxu0 %v6432
    %7695 = vmatprep.subr.bf16.mxu0 %v6441
    %7696 = vmatpush1.bf16.msra.mxu0 %v6440
    %7697 = vmatprep.subr.bf16.mxu0 %v6449
    %7698 = vmatpush1.bf16.msra.mxu0 %v6448
    %7699 = vmatprep.subr.bf16.mxu0 %v6457
    %7700 = vmatpush1.bf16.msra.mxu0 %v6456
    %7701 = vmatprep.subr.bf16.mxu0 %v6465
    %7702 = vmatpush1.bf16.msra.mxu0 %v6464
    %7703 = vmatprep.subr.bf16.mxu0 %v6473
    %7704 = vmatpush1.bf16.msra.mxu0 %v6472
    %7705 = vmatprep.subr.bf16.mxu0 %v6481
    %7706 = vmatpush1.bf16.msra.mxu0 %v6480
    %7707 = vmatprep.subr.bf16.mxu0 %v6489
    %7708 = vmatpush1.bf16.msra.mxu0 %v6488
    %7709 = vmatprep.subr.bf16.mxu0 %v6497
    %7710 = vmatpush1.bf16.msra.mxu0 %v6496
    %7711 = vmatprep.subr.bf16.mxu0 %v6505
    %7712 = vmatpush1.bf16.msra.mxu0 %v6504
    %7713 = vmatprep.subr.bf16.mxu0 %v6513
    %7714 = vmatpush1.bf16.msra.mxu0 %v6512
    %7715 = vmatprep.subr.bf16.mxu0 %v6521
    %7716 = vmatpush1.bf16.msra.mxu0 %v6520
    %7717 = vmatprep.subr.bf16.mxu0 %v6529
    %7718 = vmatpush1.bf16.msra.mxu0 %v6528
    %7719 = vmatprep.subr.bf16.mxu0 %v6537
    %7720 = vmatpush1.bf16.msra.mxu0 %v6536
    %7721 = vmatprep.subr.bf16.mxu0 %v6545
    %7722 = vmatpush1.bf16.msra.mxu0 %v6544
    %7723 = vmatprep.subr.bf16.mxu0 %v6553
    %7724 = vmatpush1.bf16.msra.mxu0 %v6552
    %7725 = vmatprep.mubr.bf16.mxu0 %v4205
    %7726 = vmatmul.mubr.bf16.gmra.mrb[0].mxu0 %v4204
    %v7727 = vpop.f32.mrb[0].mxu0
    %v7728 = vadd.f32 %v7687, %v7727
    %v7729 = vpop.f32.mrb[0].mxu0
    %v7730 = vadd.f32 %v7689, %v7729
    %v7731 = vpop.f32.mrb[0].mxu0
    %v7732 = vpop.f32.mrb[0].mxu0
    %7733 = vdwg.mxu0
    %7734 = vmatprep.subr.bf16.mxu0 %v6561
    %7735 = vmatpush1.bf16.msra.mxu0 %v6560
    %7736 = vmatprep.subr.bf16.mxu0 %v6569
    %7737 = vmatpush1.bf16.msra.mxu0 %v6568
    %7738 = vmatprep.subr.bf16.mxu0 %v6577
    %7739 = vmatpush1.bf16.msra.mxu0 %v6576
    %7740 = vmatprep.subr.bf16.mxu0 %v6585
    %7741 = vmatpush1.bf16.msra.mxu0 %v6584
    %7742 = vmatprep.subr.bf16.mxu0 %v6593
    %7743 = vmatpush1.bf16.msra.mxu0 %v6592
    %7744 = vmatprep.subr.bf16.mxu0 %v6601
    %7745 = vmatpush1.bf16.msra.mxu0 %v6600
    %7746 = vmatprep.subr.bf16.mxu0 %v6609
    %7747 = vmatpush1.bf16.msra.mxu0 %v6608
    %7748 = vmatprep.subr.bf16.mxu0 %v6617
    %7749 = vmatpush1.bf16.msra.mxu0 %v6616
    %7750 = vmatprep.subr.bf16.mxu0 %v6625
    %7751 = vmatpush1.bf16.msra.mxu0 %v6624
    %7752 = vmatprep.subr.bf16.mxu0 %v6633
    %7753 = vmatpush1.bf16.msra.mxu0 %v6632
    %7754 = vmatprep.subr.bf16.mxu0 %v6641
    %7755 = vmatpush1.bf16.msra.mxu0 %v6640
    %7756 = vmatprep.subr.bf16.mxu0 %v6649
    %7757 = vmatpush1.bf16.msra.mxu0 %v6648
    %7758 = vmatprep.subr.bf16.mxu0 %v6657
    %7759 = vmatpush1.bf16.msra.mxu0 %v6656
    %7760 = vmatprep.subr.bf16.mxu0 %v6665
    %7761 = vmatpush1.bf16.msra.mxu0 %v6664
    %7762 = vmatprep.subr.bf16.mxu0 %v6673
    %7763 = vmatpush1.bf16.msra.mxu0 %v6672
    %7764 = vmatprep.subr.bf16.mxu0 %v6681
    %7765 = vmatpush1.bf16.msra.mxu0 %v6680
    %7766 = vmatprep.mubr.bf16.mxu0 %v4207
    %7767 = vmatmul.mubr.bf16.gmra.mrb[0].mxu0 %v4206
    %v7768 = vpop.f32.mrb[0].mxu0
    %v7769 = vadd.f32 %v7728, %v7768
    %v7770 = vpop.f32.mrb[0].mxu0
    %v7771 = vadd.f32 %v7730, %v7770
    %v7772 = vpop.f32.mrb[0].mxu0
    %v7773 = vpop.f32.mrb[0].mxu0
    %7774 = vdwg.mxu0
    %7775 = vmatprep.subr.bf16.mxu0 %v6689
    %7776 = vmatpush1.bf16.msra.mxu0 %v6688
    %7777 = vmatprep.subr.bf16.mxu0 %v6697
    %7778 = vmatpush1.bf16.msra.mxu0 %v6696
    %7779 = vmatprep.subr.bf16.mxu0 %v6705
    %7780 = vmatpush1.bf16.msra.mxu0 %v6704
    %7781 = vmatprep.subr.bf16.mxu0 %v6713
    %7782 = vmatpush1.bf16.msra.mxu0 %v6712
    %7783 = vmatprep.subr.bf16.mxu0 %v6721
    %7784 = vmatpush1.bf16.msra.mxu0 %v6720
    %7785 = vmatprep.subr.bf16.mxu0 %v6729
    %7786 = vmatpush1.bf16.msra.mxu0 %v6728
    %7787 = vmatprep.subr.bf16.mxu0 %v6737
    %7788 = vmatpush1.bf16.msra.mxu0 %v6736
    %7789 = vmatprep.subr.bf16.mxu0 %v6745
    %7790 = vmatpush1.bf16.msra.mxu0 %v6744
    %7791 = vmatprep.subr.bf16.mxu0 %v6753
    %7792 = vmatpush1.bf16.msra.mxu0 %v6752
    %7793 = vmatprep.subr.bf16.mxu0 %v6761
    %7794 = vmatpush1.bf16.msra.mxu0 %v6760
    %7795 = vmatprep.subr.bf16.mxu0 %v6769
    %7796 = vmatpush1.bf16.msra.mxu0 %v6768
    %7797 = vmatprep.subr.bf16.mxu0 %v6777
    %7798 = vmatpush1.bf16.msra.mxu0 %v6776
    %7799 = vmatprep.subr.bf16.mxu0 %v6785
    %7800 = vmatpush1.bf16.msra.mxu0 %v6784
    %7801 = vmatprep.subr.bf16.mxu0 %v6793
    %7802 = vmatpush1.bf16.msra.mxu0 %v6792
    %7803 = vmatprep.subr.bf16.mxu0 %v6801
    %7804 = vmatpush1.bf16.msra.mxu0 %v6800
    %7805 = vmatprep.subr.bf16.mxu0 %v6809
    %7806 = vmatpush1.bf16.msra.mxu0 %v6808
    %7807 = vmatprep.mubr.bf16.mxu0 %v4209
    %7808 = vmatmul.mubr.bf16.gmra.mrb[0].mxu0 %v4208
    %v7809 = vpop.f32.mrb[0].mxu0
    %v7810 = vadd.f32 %v7769, %v7809
    %v7811 = vpop.f32.mrb[0].mxu0
    %v7812 = vadd.f32 %v7771, %v7811
    %v7813 = vpop.f32.mrb[0].mxu0
    %v7814 = vpop.f32.mrb[0].mxu0
    %7815 = vdwg.mxu0
    %7816 = vmatprep.subr.bf16.mxu0 %v6307
    %7817 = vmatpush1.bf16.msra.mxu0 %v6306
    %7818 = vmatprep.subr.bf16.mxu0 %v6315
    %7819 = vmatpush1.bf16.msra.mxu0 %v6314
    %7820 = vmatprep.subr.bf16.mxu0 %v6323
    %7821 = vmatpush1.bf16.msra.mxu0 %v6322
    %7822 = vmatprep.subr.bf16.mxu0 %v6331
    %7823 = vmatpush1.bf16.msra.mxu0 %v6330
    %7824 = vmatprep.subr.bf16.mxu0 %v6339
    %7825 = vmatpush1.bf16.msra.mxu0 %v6338
    %7826 = vmatprep.subr.bf16.mxu0 %v6347
    %7827 = vmatpush1.bf16.msra.mxu0 %v6346
    %7828 = vmatprep.subr.bf16.mxu0 %v6355
    %7829 = vmatpush1.bf16.msra.mxu0 %v6354
    %7830 = vmatprep.subr.bf16.mxu0 %v6363
    %7831 = vmatpush1.bf16.msra.mxu0 %v6362
    %7832 = vmatprep.subr.bf16.mxu0 %v6371
    %7833 = vmatpush1.bf16.msra.mxu0 %v6370
    %7834 = vmatprep.subr.bf16.mxu0 %v6379
    %7835 = vmatpush1.bf16.msra.mxu0 %v6378
    %7836 = vmatprep.subr.bf16.mxu0 %v6387
    %7837 = vmatpush1.bf16.msra.mxu0 %v6386
    %7838 = vmatprep.subr.bf16.mxu0 %v6395
    %7839 = vmatpush1.bf16.msra.mxu0 %v6394
    %7840 = vmatprep.subr.bf16.mxu0 %v6403
    %7841 = vmatpush1.bf16.msra.mxu0 %v6402
    %7842 = vmatprep.subr.bf16.mxu0 %v6411
    %7843 = vmatpush1.bf16.msra.mxu0 %v6410
    %7844 = vmatprep.subr.bf16.mxu0 %v6419
    %7845 = vmatpush1.bf16.msra.mxu0 %v6418
    %7846 = vmatprep.subr.bf16.mxu0 %v6427
    %7847 = vmatpush1.bf16.msra.mxu0 %v6426
    %7848 = vmatprep.mubr.bf16.mxu0 %v4203
    %7849 = vmatmul.mubr.bf16.gmra.mrb[0].mxu0 %v4202
    %v7850 = vpop.f32.mrb[0].mxu0
    %v7851 = vadd.f32 %v4751, %v7850
    %v7852 = vpop.f32.mrb[0].mxu0
    %v7853 = vadd.f32 %v4755, %v7852
    %v7854 = vpop.f32.mrb[0].mxu0
    %v7855 = vpop.f32.mrb[0].mxu0
    %7856 = vdwg.mxu0
    %7857 = vmatprep.subr.bf16.mxu0 %v6435
    %7858 = vmatpush1.bf16.msra.mxu0 %v6434
    %7859 = vmatprep.subr.bf16.mxu0 %v6443
    %7860 = vmatpush1.bf16.msra.mxu0 %v6442
    %7861 = vmatprep.subr.bf16.mxu0 %v6451
    %7862 = vmatpush1.bf16.msra.mxu0 %v6450
    %7863 = vmatprep.subr.bf16.mxu0 %v6459
    %7864 = vmatpush1.bf16.msra.mxu0 %v6458
    %7865 = vmatprep.subr.bf16.mxu0 %v6467
    %7866 = vmatpush1.bf16.msra.mxu0 %v6466
    %7867 = vmatprep.subr.bf16.mxu0 %v6475
    %7868 = vmatpush1.bf16.msra.mxu0 %v6474
    %7869 = vmatprep.subr.bf16.mxu0 %v6483
    %7870 = vmatpush1.bf16.msra.mxu0 %v6482
    %7871 = vmatprep.subr.bf16.mxu0 %v6491
    %7872 = vmatpush1.bf16.msra.mxu0 %v6490
    %7873 = vmatprep.subr.bf16.mxu0 %v6499
    %7874 = vmatpush1.bf16.msra.mxu0 %v6498
    %7875 = vmatprep.subr.bf16.mxu0 %v6507
    %7876 = vmatpush1.bf16.msra.mxu0 %v6506
    %7877 = vmatprep.subr.bf16.mxu0 %v6515
    %7878 = vmatpush1.bf16.msra.mxu0 %v6514
    %7879 = vmatprep.subr.bf16.mxu0 %v6523
    %7880 = vmatpush1.bf16.msra.mxu0 %v6522
    %7881 = vmatprep.subr.bf16.mxu0 %v6531
    %7882 = vmatpush1.bf16.msra.mxu0 %v6530
    %7883 = vmatprep.subr.bf16.mxu0 %v6539
    %7884 = vmatpush1.bf16.msra.mxu0 %v6538
    %7885 = vmatprep.subr.bf16.mxu0 %v6547
    %7886 = vmatpush1.bf16.msra.mxu0 %v6546
    %7887 = vmatprep.subr.bf16.mxu0 %v6555
    %7888 = vmatpush1.bf16.msra.mxu0 %v6554
    %7889 = vmatprep.mubr.bf16.mxu0 %v4205
    %7890 = vmatmul.mubr.bf16.gmra.mrb[0].mxu0 %v4204
    %v7891 = vpop.f32.mrb[0].mxu0
    %v7892 = vadd.f32 %v7851, %v7891
    %v7893 = vpop.f32.mrb[0].mxu0
    %v7894 = vadd.f32 %v7853, %v7893
    %v7895 = vpop.f32.mrb[0].mxu0
    %v7896 = vpop.f32.mrb[0].mxu0
    %7897 = vdwg.mxu0
    %7898 = vmatprep.subr.bf16.mxu0 %v6563
    %7899 = vmatpush1.bf16.msra.mxu0 %v6562
    %7900 = vmatprep.subr.bf16.mxu0 %v6571
    %7901 = vmatpush1.bf16.msra.mxu0 %v6570
    %7902 = vmatprep.subr.bf16.mxu0 %v6579
    %7903 = vmatpush1.bf16.msra.mxu0 %v6578
    %7904 = vmatprep.subr.bf16.mxu0 %v6587
    %7905 = vmatpush1.bf16.msra.mxu0 %v6586
    %7906 = vmatprep.subr.bf16.mxu0 %v6595
    %7907 = vmatpush1.bf16.msra.mxu0 %v6594
    %7908 = vmatprep.subr.bf16.mxu0 %v6603
    %7909 = vmatpush1.bf16.msra.mxu0 %v6602
    %7910 = vmatprep.subr.bf16.mxu0 %v6611
    %7911 = vmatpush1.bf16.msra.mxu0 %v6610
    %7912 = vmatprep.subr.bf16.mxu0 %v6619
    %7913 = vmatpush1.bf16.msra.mxu0 %v6618
    %7914 = vmatprep.subr.bf16.mxu0 %v6627
    %7915 = vmatpush1.bf16.msra.mxu0 %v6626
    %7916 = vmatprep.subr.bf16.mxu0 %v6635
    %7917 = vmatpush1.bf16.msra.mxu0 %v6634
    %7918 = vmatprep.subr.bf16.mxu0 %v6643
    %7919 = vmatpush1.bf16.msra.mxu0 %v6642
    %7920 = vmatprep.subr.bf16.mxu0 %v6651
    %7921 = vmatpush1.bf16.msra.mxu0 %v6650
    %7922 = vmatprep.subr.bf16.mxu0 %v6659
    %7923 = vmatpush1.bf16.msra.mxu0 %v6658
    %7924 = vmatprep.subr.bf16.mxu0 %v6667
    %7925 = vmatpush1.bf16.msra.mxu0 %v6666
    %7926 = vmatprep.subr.bf16.mxu0 %v6675
    %7927 = vmatpush1.bf16.msra.mxu0 %v6674
    %7928 = vmatprep.subr.bf16.mxu0 %v6683
    %7929 = vmatpush1.bf16.msra.mxu0 %v6682
    %7930 = vmatprep.mubr.bf16.mxu0 %v4207
    %7931 = vmatmul.mubr.bf16.gmra.mrb[0].mxu0 %v4206
    %v7932 = vpop.f32.mrb[0].mxu0
    %v7933 = vadd.f32 %v7892, %v7932
    %v7934 = vpop.f32.mrb[0].mxu0
    %v7935 = vadd.f32 %v7894, %v7934
    %v7936 = vpop.f32.mrb[0].mxu0
    %v7937 = vpop.f32.mrb[0].mxu0
    %7938 = vdwg.mxu0
    %7939 = vmatprep.subr.bf16.mxu0 %v6691
    %7940 = vmatpush1.bf16.msra.mxu0 %v6690
    %7941 = vmatprep.subr.bf16.mxu0 %v6699
    %7942 = vmatpush1.bf16.msra.mxu0 %v6698
    %7943 = vmatprep.subr.bf16.mxu0 %v6707
    %7944 = vmatpush1.bf16.msra.mxu0 %v6706
    %7945 = vmatprep.subr.bf16.mxu0 %v6715
    %7946 = vmatpush1.bf16.msra.mxu0 %v6714
    %7947 = vmatprep.subr.bf16.mxu0 %v6723
    %7948 = vmatpush1.bf16.msra.mxu0 %v6722
    %7949 = vmatprep.subr.bf16.mxu0 %v6731
    %7950 = vmatpush1.bf16.msra.mxu0 %v6730
    %7951 = vmatprep.subr.bf16.mxu0 %v6739
    %7952 = vmatpush1.bf16.msra.mxu0 %v6738
    %7953 = vmatprep.subr.bf16.mxu0 %v6747
    %7954 = vmatpush1.bf16.msra.mxu0 %v6746
    %7955 = vmatprep.subr.bf16.mxu0 %v6755
    %7956 = vmatpush1.bf16.msra.mxu0 %v6754
    %7957 = vmatprep.subr.bf16.mxu0 %v6763
    %7958 = vmatpush1.bf16.msra.mxu0 %v6762
    %7959 = vmatprep.subr.bf16.mxu0 %v6771
    %7960 = vmatpush1.bf16.msra.mxu0 %v6770
    %7961 = vmatprep.subr.bf16.mxu0 %v6779
    %7962 = vmatpush1.bf16.msra.mxu0 %v6778
    %7963 = vmatprep.subr.bf16.mxu0 %v6787
    %7964 = vmatpush1.bf16.msra.mxu0 %v6786
    %7965 = vmatprep.subr.bf16.mxu0 %v6795
    %7966 = vmatpush1.bf16.msra.mxu0 %v6794
    %7967 = vmatprep.subr.bf16.mxu0 %v6803
    %7968 = vmatpush1.bf16.msra.mxu0 %v6802
    %7969 = vmatprep.subr.bf16.mxu0 %v6811
    %7970 = vmatpush1.bf16.msra.mxu0 %v6810
    %7971 = vmatprep.mubr.bf16.mxu0 %v4209
    %7972 = vmatmul.mubr.bf16.gmra.mrb[0].mxu0 %v4208
    %v7973 = vpop.f32.mrb[0].mxu0
    %v7974 = vadd.f32 %v7933, %v7973
    %v7975 = vpop.f32.mrb[0].mxu0
    %v7976 = vadd.f32 %v7935, %v7975
    %v7977 = vpop.f32.mrb[0].mxu0
    %v7978 = vpop.f32.mrb[0].mxu0
    %7979 = vdwg.mxu0
    %v7980 = vmax.f32 %v7482, 0.0
    %v7981 = vmax.f32 %v7484, 0.0
    %v7982 = vmax.f32 %v7646, 0.0
    %v7983 = vmax.f32 %v7648, 0.0
    %v7984 = vmax.f32 %v7810, 0.0
    %v7985 = vmax.f32 %v7812, 0.0
    %v7986 = vmax.f32 %v7974, 0.0
    %v7987 = vmax.f32 %v7976, 0.0
    %v7988 = vpack.c.bf16 %v7980, %v7980
    %v7989 = vpack.c.bf16 %v7981, %v7981
    %v7990 = vpack.c.bf16 %v7982, %v7982
    %v7991 = vpack.c.bf16 %v7983, %v7983
    %v7992 = vpack.c.bf16 %v7984, %v7984
    %v7993 = vpack.c.bf16 %v7985, %v7985
    %v7994 = vpack.c.bf16 %v7986, %v7986
    %v7995 = vpack.c.bf16 %v7987, %v7987
    %v7996 = vld [vmem:[#allocation13] sm:$0xf]
    %v7997 = vld [vmem:[#allocation13 + $0x4] sm:$0xf]
    %v7998 = vld [vmem:[#allocation13 + $0x8] sm:$0xf]
    %v7999 = vld [vmem:[#allocation13 + $0xc] sm:$0xf]
    %v8000 = vld [vmem:[#allocation13 + $0x10] sm:$0xf]
    %v8001 = vld [vmem:[#allocation13 + $0x14] sm:$0xf]
    %v8002 = vld [vmem:[#allocation13 + $0x18] sm:$0xf]
    %v8003 = vld [vmem:[#allocation13 + $0x1c] sm:$0xf]
    %v8004 = vld [vmem:[#allocation13 + $0x20] sm:$0xf]
    %v8005 = vld [vmem:[#allocation13 + $0x24] sm:$0xf]
    %v8006 = vld [vmem:[#allocation13 + $0x28] sm:$0xf]
    %v8007 = vld [vmem:[#allocation13 + $0x2c] sm:$0xf]
    %v8008 = vld [vmem:[#allocation13 + $0x30] sm:$0xf]
    %v8009 = vld [vmem:[#allocation13 + $0x34] sm:$0xf]
    %v8010 = vld [vmem:[#allocation13 + $0x38] sm:$0xf]
    %v8011 = vld [vmem:[#allocation13 + $0x3c] sm:$0xf]
    %v8012 = vld [vmem:[#allocation13 + $0x40] sm:$0xf]
    %v8013 = vld [vmem:[#allocation13 + $0x44] sm:$0xf]
    %v8014 = vld [vmem:[#allocation13 + $0x48] sm:$0xf]
    %v8015 = vld [vmem:[#allocation13 + $0x4c] sm:$0xf]
    %v8016 = vld [vmem:[#allocation13 + $0x50] sm:$0xf]
    %v8017 = vld [vmem:[#allocation13 + $0x54] sm:$0xf]
    %v8018 = vld [vmem:[#allocation13 + $0x58] sm:$0xf]
    %v8019 = vld [vmem:[#allocation13 + $0x5c] sm:$0xf]
    %v8020 = vld [vmem:[#allocation13 + $0x60] sm:$0xf]
    %v8021 = vld [vmem:[#allocation13 + $0x64] sm:$0xf]
    %v8022 = vld [vmem:[#allocation13 + $0x68] sm:$0xf]
    %v8023 = vld [vmem:[#allocation13 + $0x6c] sm:$0xf]
    %v8024 = vld [vmem:[#allocation13 + $0x70] sm:$0xf]
    %v8025 = vld [vmem:[#allocation13 + $0x74] sm:$0xf]
    %v8026 = vld [vmem:[#allocation13 + $0x78] sm:$0xf]
    %v8027 = vld [vmem:[#allocation13 + $0x7c] sm:$0xf]
    %v8028 = vld [vmem:[#allocation13 + $0x80] sm:$0xf]
    %v8029 = vld [vmem:[#allocation13 + $0x84] sm:$0xf]
    %v8030 = vld [vmem:[#allocation13 + $0x88] sm:$0xf]
    %v8031 = vld [vmem:[#allocation13 + $0x8c] sm:$0xf]
    %v8032 = vld [vmem:[#allocation13 + $0x90] sm:$0xf]
    %v8033 = vld [vmem:[#allocation13 + $0x94] sm:$0xf]
    %v8034 = vld [vmem:[#allocation13 + $0x98] sm:$0xf]
    %v8035 = vld [vmem:[#allocation13 + $0x9c] sm:$0xf]
    %v8036 = vld [vmem:[#allocation13 + $0xa0] sm:$0xf]
    %v8037 = vld [vmem:[#allocation13 + $0xa4] sm:$0xf]
    %v8038 = vld [vmem:[#allocation13 + $0xa8] sm:$0xf]
    %v8039 = vld [vmem:[#allocation13 + $0xac] sm:$0xf]
    %v8040 = vld [vmem:[#allocation13 + $0xb0] sm:$0xf]
    %v8041 = vld [vmem:[#allocation13 + $0xb4] sm:$0xf]
    %v8042 = vld [vmem:[#allocation13 + $0xb8] sm:$0xf]
    %v8043 = vld [vmem:[#allocation13 + $0xbc] sm:$0xf]
    %v8044 = vld [vmem:[#allocation13 + $0xc0] sm:$0xf]
    %v8045 = vld [vmem:[#allocation13 + $0xc4] sm:$0xf]
    %v8046 = vld [vmem:[#allocation13 + $0xc8] sm:$0xf]
    %v8047 = vld [vmem:[#allocation13 + $0xcc] sm:$0xf]
    %v8048 = vld [vmem:[#allocation13 + $0xd0] sm:$0xf]
    %v8049 = vld [vmem:[#allocation13 + $0xd4] sm:$0xf]
    %v8050 = vld [vmem:[#allocation13 + $0xd8] sm:$0xf]
    %v8051 = vld [vmem:[#allocation13 + $0xdc] sm:$0xf]
    %v8052 = vld [vmem:[#allocation13 + $0xe0] sm:$0xf]
    %v8053 = vld [vmem:[#allocation13 + $0xe4] sm:$0xf]
    %v8054 = vld [vmem:[#allocation13 + $0xe8] sm:$0xf]
    %v8055 = vld [vmem:[#allocation13 + $0xec] sm:$0xf]
    %v8056 = vld [vmem:[#allocation13 + $0xf0] sm:$0xf]
    %v8057 = vld [vmem:[#allocation13 + $0xf4] sm:$0xf]
    %v8058 = vld [vmem:[#allocation13 + $0xf8] sm:$0xf]
    %v8059 = vld [vmem:[#allocation13 + $0xfc] sm:$0xf]
    %v8060 = vld [vmem:[#allocation13 + $0x100] sm:$0xf]
    %v8061 = vld [vmem:[#allocation13 + $0x104] sm:$0xf]
    %v8062 = vld [vmem:[#allocation13 + $0x108] sm:$0xf]
    %v8063 = vld [vmem:[#allocation13 + $0x10c] sm:$0xf]
    %v8064 = vld [vmem:[#allocation13 + $0x110] sm:$0xf]
    %v8065 = vld [vmem:[#allocation13 + $0x114] sm:$0xf]
    %v8066 = vld [vmem:[#allocation13 + $0x118] sm:$0xf]
    %v8067 = vld [vmem:[#allocation13 + $0x11c] sm:$0xf]
    %v8068 = vld [vmem:[#allocation13 + $0x120] sm:$0xf]
    %v8069 = vld [vmem:[#allocation13 + $0x124] sm:$0xf]
    %v8070 = vld [vmem:[#allocation13 + $0x128] sm:$0xf]
    %v8071 = vld [vmem:[#allocation13 + $0x12c] sm:$0xf]
    %v8072 = vld [vmem:[#allocation13 + $0x130] sm:$0xf]
    %v8073 = vld [vmem:[#allocation13 + $0x134] sm:$0xf]
    %v8074 = vld [vmem:[#allocation13 + $0x138] sm:$0xf]
    %v8075 = vld [vmem:[#allocation13 + $0x13c] sm:$0xf]
    %v8076 = vld [vmem:[#allocation13 + $0x140] sm:$0xf]
    %v8077 = vld [vmem:[#allocation13 + $0x144] sm:$0xf]
    %v8078 = vld [vmem:[#allocation13 + $0x148] sm:$0xf]
    %v8079 = vld [vmem:[#allocation13 + $0x14c] sm:$0xf]
    %v8080 = vld [vmem:[#allocation13 + $0x150] sm:$0xf]
    %v8081 = vld [vmem:[#allocation13 + $0x154] sm:$0xf]
    %v8082 = vld [vmem:[#allocation13 + $0x158] sm:$0xf]
    %v8083 = vld [vmem:[#allocation13 + $0x15c] sm:$0xf]
    %v8084 = vld [vmem:[#allocation13 + $0x160] sm:$0xf]
    %v8085 = vld [vmem:[#allocation13 + $0x164] sm:$0xf]
    %v8086 = vld [vmem:[#allocation13 + $0x168] sm:$0xf]
    %v8087 = vld [vmem:[#allocation13 + $0x16c] sm:$0xf]
    %v8088 = vld [vmem:[#allocation13 + $0x170] sm:$0xf]
    %v8089 = vld [vmem:[#allocation13 + $0x174] sm:$0xf]
    %v8090 = vld [vmem:[#allocation13 + $0x178] sm:$0xf]
    %v8091 = vld [vmem:[#allocation13 + $0x17c] sm:$0xf]
    %v8092 = vld [vmem:[#allocation13 + $0x180] sm:$0xf]
    %v8093 = vld [vmem:[#allocation13 + $0x184] sm:$0xf]
    %v8094 = vld [vmem:[#allocation13 + $0x188] sm:$0xf]
    %v8095 = vld [vmem:[#allocation13 + $0x18c] sm:$0xf]
    %v8096 = vld [vmem:[#allocation13 + $0x190] sm:$0xf]
    %v8097 = vld [vmem:[#allocation13 + $0x194] sm:$0xf]
    %v8098 = vld [vmem:[#allocation13 + $0x198] sm:$0xf]
    %v8099 = vld [vmem:[#allocation13 + $0x19c] sm:$0xf]
    %v8100 = vld [vmem:[#allocation13 + $0x1a0] sm:$0xf]
    %v8101 = vld [vmem:[#allocation13 + $0x1a4] sm:$0xf]
    %v8102 = vld [vmem:[#allocation13 + $0x1a8] sm:$0xf]
    %v8103 = vld [vmem:[#allocation13 + $0x1ac] sm:$0xf]
    %v8104 = vld [vmem:[#allocation13 + $0x1b0] sm:$0xf]
    %v8105 = vld [vmem:[#allocation13 + $0x1b4] sm:$0xf]
    %v8106 = vld [vmem:[#allocation13 + $0x1b8] sm:$0xf]
    %v8107 = vld [vmem:[#allocation13 + $0x1bc] sm:$0xf]
    %v8108 = vld [vmem:[#allocation13 + $0x1c0] sm:$0xf]
    %v8109 = vld [vmem:[#allocation13 + $0x1c4] sm:$0xf]
    %v8110 = vld [vmem:[#allocation13 + $0x1c8] sm:$0xf]
    %v8111 = vld [vmem:[#allocation13 + $0x1cc] sm:$0xf]
    %v8112 = vld [vmem:[#allocation13 + $0x1d0] sm:$0xf]
    %v8113 = vld [vmem:[#allocation13 + $0x1d4] sm:$0xf]
    %v8114 = vld [vmem:[#allocation13 + $0x1d8] sm:$0xf]
    %v8115 = vld [vmem:[#allocation13 + $0x1dc] sm:$0xf]
    %v8116 = vld [vmem:[#allocation13 + $0x1e0] sm:$0xf]
    %v8117 = vld [vmem:[#allocation13 + $0x1e4] sm:$0xf]
    %v8118 = vld [vmem:[#allocation13 + $0x1e8] sm:$0xf]
    %v8119 = vld [vmem:[#allocation13 + $0x1ec] sm:$0xf]
    %v8120 = vld [vmem:[#allocation13 + $0x1f0] sm:$0xf]
    %v8121 = vld [vmem:[#allocation13 + $0x1f4] sm:$0xf]
    %v8122 = vld [vmem:[#allocation13 + $0x1f8] sm:$0xf]
    %v8123 = vld [vmem:[#allocation13 + $0x1fc] sm:$0xf]
    %v8124 = vld [vmem:[#allocation14] sm:$0x1]
    %v8126 = vlaneseq
    %v8127 = vshrl.u32 %v8126, 7
    %v8128 = vsub.s32 0, %v8127
    %v8129 = vrot.slane %v8124, %v8128
    %v8259 = vunpack.c.l.b16 %v7996
    %v8260 = vunpack.c.l.b16 %v7997
    %v8261 = vunpack.c.l.b16 %v7998
    %v8262 = vunpack.c.l.b16 %v7999
    %v8263 = vunpack.c.l.b16 %v8000
    %v8264 = vunpack.c.l.b16 %v8001
    %v8265 = vunpack.c.l.b16 %v8002
    %v8266 = vunpack.c.l.b16 %v8003
    %v8267 = vunpack.c.l.b16 %v8004
    %v8268 = vunpack.c.l.b16 %v8005
    %v8269 = vunpack.c.l.b16 %v8006
    %v8270 = vunpack.c.l.b16 %v8007
    %v8271 = vunpack.c.l.b16 %v8008
    %v8272 = vunpack.c.l.b16 %v8009
    %v8273 = vunpack.c.l.b16 %v8010
    %v8274 = vunpack.c.l.b16 %v8011
    %v8275 = vunpack.c.l.b16 %v8012
    %v8276 = vunpack.c.l.b16 %v8013
    %v8277 = vunpack.c.l.b16 %v8014
    %v8278 = vunpack.c.l.b16 %v8015
    %v8279 = vunpack.c.l.b16 %v8016
    %v8280 = vunpack.c.l.b16 %v8017
    %v8281 = vunpack.c.l.b16 %v8018
    %v8282 = vunpack.c.l.b16 %v8019
    %v8283 = vunpack.c.l.b16 %v8020
    %v8284 = vunpack.c.l.b16 %v8021
    %v8285 = vunpack.c.l.b16 %v8022
    %v8286 = vunpack.c.l.b16 %v8023
    %v8287 = vunpack.c.l.b16 %v8024
    %v8288 = vunpack.c.l.b16 %v8025
    %v8289 = vunpack.c.l.b16 %v8026
    %v8290 = vunpack.c.l.b16 %v8027
    %v8291 = vunpack.c.l.b16 %v8028
    %v8292 = vunpack.c.l.b16 %v8029
    %v8293 = vunpack.c.l.b16 %v8030
    %v8294 = vunpack.c.l.b16 %v8031
    %v8295 = vunpack.c.l.b16 %v8032
    %v8296 = vunpack.c.l.b16 %v8033
    %v8297 = vunpack.c.l.b16 %v8034
    %v8298 = vunpack.c.l.b16 %v8035
    %v8299 = vunpack.c.l.b16 %v8036
    %v8300 = vunpack.c.l.b16 %v8037
    %v8301 = vunpack.c.l.b16 %v8038
    %v8302 = vunpack.c.l.b16 %v8039
    %v8303 = vunpack.c.l.b16 %v8040
    %v8304 = vunpack.c.l.b16 %v8041
    %v8305 = vunpack.c.l.b16 %v8042
    %v8306 = vunpack.c.l.b16 %v8043
    %v8307 = vunpack.c.l.b16 %v8044
    %v8308 = vunpack.c.l.b16 %v8045
    %v8309 = vunpack.c.l.b16 %v8046
    %v8310 = vunpack.c.l.b16 %v8047
    %v8311 = vunpack.c.l.b16 %v8048
    %v8312 = vunpack.c.l.b16 %v8049
    %v8313 = vunpack.c.l.b16 %v8050
    %v8314 = vunpack.c.l.b16 %v8051
    %v8315 = vunpack.c.l.b16 %v8052
    %v8316 = vunpack.c.l.b16 %v8053
    %v8317 = vunpack.c.l.b16 %v8054
    %v8318 = vunpack.c.l.b16 %v8055
    %v8319 = vunpack.c.l.b16 %v8056
    %v8320 = vunpack.c.l.b16 %v8057
    %v8321 = vunpack.c.l.b16 %v8058
    %v8322 = vunpack.c.l.b16 %v8059
    %v8323 = vunpack.c.l.b16 %v8060
    %v8324 = vunpack.c.l.b16 %v8061
    %v8325 = vunpack.c.l.b16 %v8062
    %v8326 = vunpack.c.l.b16 %v8063
    %v8327 = vunpack.c.l.b16 %v8064
    %v8328 = vunpack.c.l.b16 %v8065
    %v8329 = vunpack.c.l.b16 %v8066
    %v8330 = vunpack.c.l.b16 %v8067
    %v8331 = vunpack.c.l.b16 %v8068
    %v8332 = vunpack.c.l.b16 %v8069
    %v8333 = vunpack.c.l.b16 %v8070
    %v8334 = vunpack.c.l.b16 %v8071
    %v8335 = vunpack.c.l.b16 %v8072
    %v8336 = vunpack.c.l.b16 %v8073
    %v8337 = vunpack.c.l.b16 %v8074
    %v8338 = vunpack.c.l.b16 %v8075
    %v8339 = vunpack.c.l.b16 %v8076
    %v8340 = vunpack.c.l.b16 %v8077
    %v8341 = vunpack.c.l.b16 %v8078
    %v8342 = vunpack.c.l.b16 %v8079
    %v8343 = vunpack.c.l.b16 %v8080
    %v8344 = vunpack.c.l.b16 %v8081
    %v8345 = vunpack.c.l.b16 %v8082
    %v8346 = vunpack.c.l.b16 %v8083
    %v8347 = vunpack.c.l.b16 %v8084
    %v8348 = vunpack.c.l.b16 %v8085
    %v8349 = vunpack.c.l.b16 %v8086
    %v8350 = vunpack.c.l.b16 %v8087
    %v8351 = vunpack.c.l.b16 %v8088
    %v8352 = vunpack.c.l.b16 %v8089
    %v8353 = vunpack.c.l.b16 %v8090
    %v8354 = vunpack.c.l.b16 %v8091
    %v8355 = vunpack.c.l.b16 %v8092
    %v8356 = vunpack.c.l.b16 %v8093
    %v8357 = vunpack.c.l.b16 %v8094
    %v8358 = vunpack.c.l.b16 %v8095
    %v8359 = vunpack.c.l.b16 %v8096
    %v8360 = vunpack.c.l.b16 %v8097
    %v8361 = vunpack.c.l.b16 %v8098
    %v8362 = vunpack.c.l.b16 %v8099
    %v8363 = vunpack.c.l.b16 %v8100
    %v8364 = vunpack.c.l.b16 %v8101
    %v8365 = vunpack.c.l.b16 %v8102
    %v8366 = vunpack.c.l.b16 %v8103
    %v8367 = vunpack.c.l.b16 %v8104
    %v8368 = vunpack.c.l.b16 %v8105
    %v8369 = vunpack.c.l.b16 %v8106
    %v8370 = vunpack.c.l.b16 %v8107
    %v8371 = vunpack.c.l.b16 %v8108
    %v8372 = vunpack.c.l.b16 %v8109
    %v8373 = vunpack.c.l.b16 %v8110
    %v8374 = vunpack.c.l.b16 %v8111
    %v8375 = vunpack.c.l.b16 %v8112
    %v8376 = vunpack.c.l.b16 %v8113
    %v8377 = vunpack.c.l.b16 %v8114
    %v8378 = vunpack.c.l.b16 %v8115
    %v8379 = vunpack.c.l.b16 %v8116
    %v8380 = vunpack.c.l.b16 %v8117
    %v8381 = vunpack.c.l.b16 %v8118
    %v8382 = vunpack.c.l.b16 %v8119
    %v8383 = vunpack.c.l.b16 %v8120
    %v8384 = vunpack.c.l.b16 %v8121
    %v8385 = vunpack.c.l.b16 %v8122
    %v8386 = vunpack.c.l.b16 %v8123
    %v8387 = vpack.c.b16 %v8260, %v8259
    %v8388 = vpack.c.b16 %v8262, %v8261
    %v8389 = vpack.c.b16 %v8264, %v8263
    %v8390 = vpack.c.b16 %v8266, %v8265
    %v8391 = vpack.c.b16 %v8268, %v8267
    %v8392 = vpack.c.b16 %v8270, %v8269
    %v8393 = vpack.c.b16 %v8272, %v8271
    %v8394 = vpack.c.b16 %v8274, %v8273
    %v8395 = vpack.c.b16 %v8276, %v8275
    %v8396 = vpack.c.b16 %v8278, %v8277
    %v8397 = vpack.c.b16 %v8280, %v8279
    %v8398 = vpack.c.b16 %v8282, %v8281
    %v8399 = vpack.c.b16 %v8284, %v8283
    %v8400 = vpack.c.b16 %v8286, %v8285
    %v8401 = vpack.c.b16 %v8288, %v8287
    %v8402 = vpack.c.b16 %v8290, %v8289
    %v8403 = vpack.c.b16 %v8292, %v8291
    %v8404 = vpack.c.b16 %v8294, %v8293
    %v8405 = vpack.c.b16 %v8296, %v8295
    %v8406 = vpack.c.b16 %v8298, %v8297
    %v8407 = vpack.c.b16 %v8300, %v8299
    %v8408 = vpack.c.b16 %v8302, %v8301
    %v8409 = vpack.c.b16 %v8304, %v8303
    %v8410 = vpack.c.b16 %v8306, %v8305
    %v8411 = vpack.c.b16 %v8308, %v8307
    %v8412 = vpack.c.b16 %v8310, %v8309
    %v8413 = vpack.c.b16 %v8312, %v8311
    %v8414 = vpack.c.b16 %v8314, %v8313
    %v8415 = vpack.c.b16 %v8316, %v8315
    %v8416 = vpack.c.b16 %v8318, %v8317
    %v8417 = vpack.c.b16 %v8320, %v8319
    %v8418 = vpack.c.b16 %v8322, %v8321
    %v8419 = vpack.c.b16 %v8324, %v8323
    %v8420 = vpack.c.b16 %v8326, %v8325
    %v8421 = vpack.c.b16 %v8328, %v8327
    %v8422 = vpack.c.b16 %v8330, %v8329
    %v8423 = vpack.c.b16 %v8332, %v8331
    %v8424 = vpack.c.b16 %v8334, %v8333
    %v8425 = vpack.c.b16 %v8336, %v8335
    %v8426 = vpack.c.b16 %v8338, %v8337
    %v8427 = vpack.c.b16 %v8340, %v8339
    %v8428 = vpack.c.b16 %v8342, %v8341
    %v8429 = vpack.c.b16 %v8344, %v8343
    %v8430 = vpack.c.b16 %v8346, %v8345
    %v8431 = vpack.c.b16 %v8348, %v8347
    %v8432 = vpack.c.b16 %v8350, %v8349
    %v8433 = vpack.c.b16 %v8352, %v8351
    %v8434 = vpack.c.b16 %v8354, %v8353
    %v8435 = vpack.c.b16 %v8356, %v8355
    %v8436 = vpack.c.b16 %v8358, %v8357
    %v8437 = vpack.c.b16 %v8360, %v8359
    %v8438 = vpack.c.b16 %v8362, %v8361
    %v8439 = vpack.c.b16 %v8364, %v8363
    %v8440 = vpack.c.b16 %v8366, %v8365
    %v8441 = vpack.c.b16 %v8368, %v8367
    %v8442 = vpack.c.b16 %v8370, %v8369
    %v8443 = vpack.c.b16 %v8372, %v8371
    %v8444 = vpack.c.b16 %v8374, %v8373
    %v8445 = vpack.c.b16 %v8376, %v8375
    %v8446 = vpack.c.b16 %v8378, %v8377
    %v8447 = vpack.c.b16 %v8380, %v8379
    %v8448 = vpack.c.b16 %v8382, %v8381
    %v8449 = vpack.c.b16 %v8384, %v8383
    %v8450 = vpack.c.b16 %v8386, %v8385
    %8515 = vmatprep.subr.bf16.mxu0 0
    %8516 = vmatpush1.bf16.msra.mxu0 %v8387
    %8517 = vmatprep.subr.bf16.mxu0 0
    %8518 = vmatpush1.bf16.msra.mxu0 %v8388
    %8519 = vmatprep.subr.bf16.mxu0 0
    %8520 = vmatpush1.bf16.msra.mxu0 %v8389
    %8521 = vmatprep.subr.bf16.mxu0 0
    %8522 = vmatpush1.bf16.msra.mxu0 %v8390
    %8523 = vmatprep.subr.bf16.mxu0 0
    %8524 = vmatpush1.bf16.msra.mxu0 %v8391
    %8525 = vmatprep.subr.bf16.mxu0 0
    %8526 = vmatpush1.bf16.msra.mxu0 %v8392
    %8527 = vmatprep.subr.bf16.mxu0 0
    %8528 = vmatpush1.bf16.msra.mxu0 %v8393
    %8529 = vmatprep.subr.bf16.mxu0 0
    %8530 = vmatpush1.bf16.msra.mxu0 %v8394
    %8531 = vmatprep.subr.bf16.mxu0 0
    %8532 = vmatpush1.bf16.msra.mxu0 %v8395
    %8533 = vmatprep.subr.bf16.mxu0 0
    %8534 = vmatpush1.bf16.msra.mxu0 %v8396
    %8535 = vmatprep.subr.bf16.mxu0 0
    %8536 = vmatpush1.bf16.msra.mxu0 %v8397
    %8537 = vmatprep.subr.bf16.mxu0 0
    %8538 = vmatpush1.bf16.msra.mxu0 %v8398
    %8539 = vmatprep.subr.bf16.mxu0 0
    %8540 = vmatpush1.bf16.msra.mxu0 %v8399
    %8541 = vmatprep.subr.bf16.mxu0 0
    %8542 = vmatpush1.bf16.msra.mxu0 %v8400
    %8543 = vmatprep.subr.bf16.mxu0 0
    %8544 = vmatpush1.bf16.msra.mxu0 %v8401
    %8545 = vmatprep.subr.bf16.mxu0 0
    %8546 = vmatpush1.bf16.msra.mxu0 %v8402
    %8547 = vmatprep.mubr.bf16.mxu0 %v7989
    %8548 = vmatmul.mubr.bf16.gmra.mrb[0].mxu0 %v7988
    %v8549 = vpop.f32.mrb[0].mxu0
    %v8550 = vadd.f32 %v8129, %v8549
    %v8551 = vpop.f32.mrb[0].mxu0
    %v8552 = vpop.f32.mrb[0].mxu0
    %v8553 = vpop.f32.mrb[0].mxu0
    %8554 = vdwg.mxu0
    %8555 = vmatprep.subr.bf16.mxu0 0
    %8556 = vmatpush1.bf16.msra.mxu0 %v8403
    %8557 = vmatprep.subr.bf16.mxu0 0
    %8558 = vmatpush1.bf16.msra.mxu0 %v8404
    %8559 = vmatprep.subr.bf16.mxu0 0
    %8560 = vmatpush1.bf16.msra.mxu0 %v8405
    %8561 = vmatprep.subr.bf16.mxu0 0
    %8562 = vmatpush1.bf16.msra.mxu0 %v8406
    %8563 = vmatprep.subr.bf16.mxu0 0
    %8564 = vmatpush1.bf16.msra.mxu0 %v8407
    %8565 = vmatprep.subr.bf16.mxu0 0
    %8566 = vmatpush1.bf16.msra.mxu0 %v8408
    %8567 = vmatprep.subr.bf16.mxu0 0
    %8568 = vmatpush1.bf16.msra.mxu0 %v8409
    %8569 = vmatprep.subr.bf16.mxu0 0
    %8570 = vmatpush1.bf16.msra.mxu0 %v8410
    %8571 = vmatprep.subr.bf16.mxu0 0
    %8572 = vmatpush1.bf16.msra.mxu0 %v8411
    %8573 = vmatprep.subr.bf16.mxu0 0
    %8574 = vmatpush1.bf16.msra.mxu0 %v8412
    %8575 = vmatprep.subr.bf16.mxu0 0
    %8576 = vmatpush1.bf16.msra.mxu0 %v8413
    %8577 = vmatprep.subr.bf16.mxu0 0
    %8578 = vmatpush1.bf16.msra.mxu0 %v8414
    %8579 = vmatprep.subr.bf16.mxu0 0
    %8580 = vmatpush1.bf16.msra.mxu0 %v8415
    %8581 = vmatprep.subr.bf16.mxu0 0
    %8582 = vmatpush1.bf16.msra.mxu0 %v8416
    %8583 = vmatprep.subr.bf16.mxu0 0
    %8584 = vmatpush1.bf16.msra.mxu0 %v8417
    %8585 = vmatprep.subr.bf16.mxu0 0
    %8586 = vmatpush1.bf16.msra.mxu0 %v8418
    %8587 = vmatprep.mubr.bf16.mxu0 %v7991
    %8588 = vmatmul.mubr.bf16.gmra.mrb[0].mxu0 %v7990
    %v8589 = vpop.f32.mrb[0].mxu0
    %v8590 = vadd.f32 %v8550, %v8589
    %v8591 = vpop.f32.mrb[0].mxu0
    %v8592 = vpop.f32.mrb[0].mxu0
    %v8593 = vpop.f32.mrb[0].mxu0
    %8594 = vdwg.mxu0
    %8595 = vmatprep.subr.bf16.mxu0 0
    %8596 = vmatpush1.bf16.msra.mxu0 %v8419
    %8597 = vmatprep.subr.bf16.mxu0 0
    %8598 = vmatpush1.bf16.msra.mxu0 %v8420
    %8599 = vmatprep.subr.bf16.mxu0 0
    %8600 = vmatpush1.bf16.msra.mxu0 %v8421
    %8601 = vmatprep.subr.bf16.mxu0 0
    %8602 = vmatpush1.bf16.msra.mxu0 %v8422
    %8603 = vmatprep.subr.bf16.mxu0 0
    %8604 = vmatpush1.bf16.msra.mxu0 %v8423
    %8605 = vmatprep.subr.bf16.mxu0 0
    %8606 = vmatpush1.bf16.msra.mxu0 %v8424
    %8607 = vmatprep.subr.bf16.mxu0 0
    %8608 = vmatpush1.bf16.msra.mxu0 %v8425
    %8609 = vmatprep.subr.bf16.mxu0 0
    %8610 = vmatpush1.bf16.msra.mxu0 %v8426
    %8611 = vmatprep.subr.bf16.mxu0 0
    %8612 = vmatpush1.bf16.msra.mxu0 %v8427
    %8613 = vmatprep.subr.bf16.mxu0 0
    %8614 = vmatpush1.bf16.msra.mxu0 %v8428
    %8615 = vmatprep.subr.bf16.mxu0 0
    %8616 = vmatpush1.bf16.msra.mxu0 %v8429
    %8617 = vmatprep.subr.bf16.mxu0 0
    %8618 = vmatpush1.bf16.msra.mxu0 %v8430
    %8619 = vmatprep.subr.bf16.mxu0 0
    %8620 = vmatpush1.bf16.msra.mxu0 %v8431
    %8621 = vmatprep.subr.bf16.mxu0 0
    %8622 = vmatpush1.bf16.msra.mxu0 %v8432
    %8623 = vmatprep.subr.bf16.mxu0 0
    %8624 = vmatpush1.bf16.msra.mxu0 %v8433
    %8625 = vmatprep.subr.bf16.mxu0 0
    %8626 = vmatpush1.bf16.msra.mxu0 %v8434
    %8627 = vmatprep.mubr.bf16.mxu0 %v7993
    %8628 = vmatmul.mubr.bf16.gmra.mrb[0].mxu0 %v7992
    %v8629 = vpop.f32.mrb[0].mxu0
    %v8630 = vadd.f32 %v8590, %v8629
    %v8631 = vpop.f32.mrb[0].mxu0
    %v8632 = vpop.f32.mrb[0].mxu0
    %v8633 = vpop.f32.mrb[0].mxu0
    %8634 = vdwg.mxu0
    %8635 = vmatprep.subr.bf16.mxu0 0
    %8636 = vmatpush1.bf16.msra.mxu0 %v8435
    %8637 = vmatprep.subr.bf16.mxu0 0
    %8638 = vmatpush1.bf16.msra.mxu0 %v8436
    %8639 = vmatprep.subr.bf16.mxu0 0
    %8640 = vmatpush1.bf16.msra.mxu0 %v8437
    %8641 = vmatprep.subr.bf16.mxu0 0
    %8642 = vmatpush1.bf16.msra.mxu0 %v8438
    %8643 = vmatprep.subr.bf16.mxu0 0
    %8644 = vmatpush1.bf16.msra.mxu0 %v8439
    %8645 = vmatprep.subr.bf16.mxu0 0
    %8646 = vmatpush1.bf16.msra.mxu0 %v8440
    %8647 = vmatprep.subr.bf16.mxu0 0
    %8648 = vmatpush1.bf16.msra.mxu0 %v8441
    %8649 = vmatprep.subr.bf16.mxu0 0
    %8650 = vmatpush1.bf16.msra.mxu0 %v8442
    %8651 = vmatprep.subr.bf16.mxu0 0
    %8652 = vmatpush1.bf16.msra.mxu0 %v8443
    %8653 = vmatprep.subr.bf16.mxu0 0
    %8654 = vmatpush1.bf16.msra.mxu0 %v8444
    %8655 = vmatprep.subr.bf16.mxu0 0
    %8656 = vmatpush1.bf16.msra.mxu0 %v8445
    %8657 = vmatprep.subr.bf16.mxu0 0
    %8658 = vmatpush1.bf16.msra.mxu0 %v8446
    %8659 = vmatprep.subr.bf16.mxu0 0
    %8660 = vmatpush1.bf16.msra.mxu0 %v8447
    %8661 = vmatprep.subr.bf16.mxu0 0
    %8662 = vmatpush1.bf16.msra.mxu0 %v8448
    %8663 = vmatprep.subr.bf16.mxu0 0
    %8664 = vmatpush1.bf16.msra.mxu0 %v8449
    %8665 = vmatprep.subr.bf16.mxu0 0
    %8666 = vmatpush1.bf16.msra.mxu0 %v8450
    %8667 = vmatprep.mubr.bf16.mxu0 %v7995
    %8668 = vmatmul.mubr.bf16.gmra.mrb[0].mxu0 %v7994
    %v8669 = vpop.f32.mrb[0].mxu0
    %v8670 = vadd.f32 %v8630, %v8669
    %v8671 = vpop.f32.mrb[0].mxu0
    %v8672 = vpop.f32.mrb[0].mxu0
    %v8673 = vpop.f32.mrb[0].mxu0
    %8674 = vdwg.mxu0
    %8675 = vst [vmem:[#allocation16] sm:$0xff] %v8670
    // Predicated region
    $region70: #{tpu_custom_call.1} parent=1 // pred_check
      _
    $region71: #{tpu_custom_call.1} parent=1 // pred_check_branch
      %8677 = sbr.rel (0) target = $region73
    $region72: #{tpu_custom_call.1} parent=1 // pred_region
      %s8679 = ssub.s32 128, 128
      %8680 = vsyncadd [#allocation4], %s8679
      %s8682 = sshll.u32 [#allocation16], 4
      %s8683 = int_to_ptr.vmem [resolvable:$true] %s8682
      %8685 = dma.vmem_to_hbm [thread:$0]  %s8683, 128, %s9, [#allocation4]
    $region73: #{tpu_custom_call.1} parent=1 // pred_fallthru
      _
    // Predicated region
    $region74: #{tpu_custom_call.1} parent=1 // pred_check
      _
    $region75: #{tpu_custom_call.1} parent=1 // pred_check_branch
      %8687 = sbr.rel (0) target = $region77
    $region76: #{tpu_custom_call.1} parent=1 // pred_region
      %8688 = dma.done [#allocation4], 128
    $region77: #{tpu_custom_call.1} parent=1 // pred_fallthru
      _
    %8689 = vsyncpa [#allocation3], 1
    %8690 = vsyncpa [#allocation6], 1
    %8691 = vsyncpa [#allocation9], 1
    %8692 = vsyncpa [#allocation12], 1
    %8693 = vsyncpa [#allocation15], 1
    %8694 = vsyncpa [#allocation4], 1

</llo_original>
